<compile_context>
chip_gen: v5e
topology: v5e:2x2
jax: 0.10.0
libtpu: 0.0.40
codegen_flags: <defaults>
</compile_context>

<pallas_src>
import jax
import jax.numpy as jnp
from jax.experimental import pallas as pl
from jax.experimental.pallas import tpu as pltpu


def ffn_kernel(x_ref, w1_ref, b1_ref, w2_ref, b2_ref, o_ref):
    c = pl.program_id(0)   # TensorCore split of the d_ff reduction ("parallel")
    k = pl.program_id(1)   # d_ff chunk within this split ("arbitrary")

    @pl.when(k == 0)
    def _init():
        o_ref[...] = jnp.zeros_like(o_ref)

    @pl.when((k == 0) & (c == 0))
    def _fold_b2():
        # Fold the second bias into split 0's accumulator exactly once, so the
        # cross-core partials sum to relu(X @ W1 + b1) @ W2 + b2.
        o_ref[0] += b2_ref[...]            # (1, d_model) broadcasts over seq

    # Hidden slice for this d_ff chunk: bf16 x bf16 -> f32 on the MXU.
    h = jnp.dot(x_ref[...], w1_ref[0], preferred_element_type=jnp.float32)
    h = jnp.maximum(h + b1_ref[...], 0.0)  # bias + ReLU in f32 (VPU has slack)

    # Accumulate this chunk's contribution into the VMEM-resident f32 partial.
    o_ref[0] += jnp.dot(h.astype(w2_ref.dtype), w2_ref[...],
                        preferred_element_type=jnp.float32)


def default_ffn_config(d_ff):
    """Pick (tile_ff, num_splits) from the TPU generation's roofline."""
    kind = ""
    try:
        kind = jax.devices()[0].device_kind.lower()
    except Exception:
        pass
    if "v7" in kind:                          # 2 TCs: split the weight stream
        return dict(tile_ff=d_ff // 2, num_splits=2)
    if "v5" in kind:                          # keep 2 steps so DMA overlaps compute
        return dict(tile_ff=min(1024, d_ff), num_splits=1)
    return dict(tile_ff=d_ff, num_splits=1)   # v6e & default: single grid step


def prepare_ffn_params(w1, b1, w2, b2, *, tile_ff, stream_dtype=jnp.bfloat16):
    """One-time (init-time) parameter prep -- NOT on the per-call hot path.

    w1: [d_model, d_ff], b1: [d_ff], w2: [d_ff, d_model], b2: [d_model]
    (math layout, i.e. transpose of nn.Linear's [out, in] weights).

    Weights are cast to `stream_dtype` once and W1 is pre-chunked along d_ff to
    (n_chunks, d_model, tile_ff) so each grid step fetches a contiguous slab.
    """
    d_model, d_ff = w1.shape
    assert d_ff % tile_ff == 0, "d_ff must be divisible by tile_ff"
    assert d_model % 128 == 0 and tile_ff % 128 == 0, (
        "d_model / tile_ff must respect the 128-lane TPU tiling")
    n_chunks = d_ff // tile_ff
    w1c = (jnp.asarray(w1, stream_dtype)
           .reshape(d_model, n_chunks, tile_ff)
           .transpose(1, 0, 2))               # chunk k == w1[:, k*tf:(k+1)*tf]
    return dict(
        w1=w1c,                               # (n_chunks, d_model, tile_ff) bf16
        w2=jnp.asarray(w2, stream_dtype),     # (d_ff, d_model)              bf16
        b1=jnp.asarray(b1, jnp.float32).reshape(1, d_ff),
        b2=jnp.asarray(b2, jnp.float32).reshape(1, d_model),
        stream_dtype=stream_dtype,
    )


def feed_forward_network(x, params, *, num_splits=1):
    """x: [S, d_model] -> f32 [S, d_model] = relu(x @ W1 + b1) @ W2 + b2."""
    S, d_model = x.shape
    n_chunks, _, tile_ff = params["w1"].shape
    d_ff = n_chunks * tile_ff
    assert params["w2"].shape == (d_ff, d_model)
    assert n_chunks % num_splits == 0, "d_ff chunks must split evenly across cores"
    assert S % 8 == 0, "seq_len must respect the 8-sublane TPU tiling"
    n_k = n_chunks // num_splits              # reduction steps per core

    x_in = x.astype(params["stream_dtype"])   # 64 KiB per call -- negligible

    partials = pl.pallas_call(
        ffn_kernel,
        out_shape=jax.ShapeDtypeStruct((num_splits, S, d_model), jnp.float32),
        grid_spec=pltpu.PrefetchScalarGridSpec(
            num_scalar_prefetch=0,
            grid=(num_splits, n_k),
            in_specs=[
                # X / biases have constant block indices -> DMA'd once per core.
                pl.BlockSpec((S, d_model), lambda c, k: (0, 0)),             # X
                pl.BlockSpec((1, d_model, tile_ff),
                             lambda c, k: (c * n_k + k, 0, 0)),              # W1 chunk (contiguous)
                pl.BlockSpec((1, tile_ff), lambda c, k: (0, c * n_k + k)),   # b1 slice
                pl.BlockSpec((tile_ff, d_model),
                             lambda c, k: (c * n_k + k, 0)),                 # W2 slab (contiguous)
                pl.BlockSpec((1, d_model), lambda c, k: (0, 0)),             # b2
            ],
            # Constant block index across k -> each core's f32 output tile stays
            # resident in VMEM and doubles as the accumulator; written back once.
            out_specs=pl.BlockSpec((1, S, d_model), lambda c, k: (c, 0, 0)),
        ),
        compiler_params=pltpu.CompilerParams(
            dimension_semantics=("parallel", "arbitrary"),
        ),
    )(x_in, params["w1"], params["b1"], params["w2"], params["b2"])

    if num_splits == 1:
        return partials[0]
    return partials.sum(axis=0)   # tiny (S, d_model) merge of the per-core partials


if __name__ == "__main__":
    # Shapes from the module spec: seq_length=32, d_model=512, d_ff=2048.
    seq_length, d_model, d_ff = 32, 512, 2048

    key = jax.random.PRNGKey(0)
    kx, kw1, kb1, kw2, kb2 = jax.random.split(key, 5)

    # PyTorch nn.Linear-style uniform(-1/sqrt(fan_in), 1/sqrt(fan_in)) init.
    bound1 = 1.0 / (d_model ** 0.5)
    bound2 = 1.0 / (d_ff ** 0.5)
    w1 = jax.random.uniform(kw1, (d_model, d_ff), jnp.float32, -bound1, bound1)
    b1 = jax.random.uniform(kb1, (d_ff,), jnp.float32, -bound1, bound1)
    w2 = jax.random.uniform(kw2, (d_ff, d_model), jnp.float32, -bound2, bound2)
    b2 = jax.random.uniform(kb2, (d_model,), jnp.float32, -bound2, bound2)
    x = jax.random.normal(kx, (seq_length, d_model), jnp.float32)

    cfg = default_ffn_config(d_ff)
    params = prepare_ffn_params(w1, b1, w2, b2, tile_ff=cfg["tile_ff"])  # one-time init cost

    out = feed_forward_network(x, params, num_splits=cfg["num_splits"])
    out = jax.block_until_ready(out)
    assert out.shape == (seq_length, d_model)
    assert out.dtype == jnp.float32

    # Reference 1: same bf16-stream / f32-accumulate path -> tight tolerance.
    xb = x.astype(jnp.bfloat16)
    w1b = w1.astype(jnp.bfloat16)
    w2b = w2.astype(jnp.bfloat16)
    h_ref = jnp.maximum(
        jnp.dot(xb, w1b, preferred_element_type=jnp.float32) + b1, 0.0)
    ref_bf16 = (jnp.dot(h_ref.astype(jnp.bfloat16), w2b,
                        preferred_element_type=jnp.float32) + b2)
    assert jnp.allclose(out, ref_bf16, atol=3e-3, rtol=3e-3), (
        "mismatch vs bf16-path reference")

    # Reference 2: full-f32 math (PyTorch semantics) -> loose tolerance
    # (bf16 weight/activation quantization of the streamed path).
    ref_f32 = jnp.maximum(x @ w1 + b1, 0.0) @ w2 + b2
    assert jnp.allclose(out, ref_f32, atol=5e-2, rtol=5e-2), (
        "mismatch vs f32 reference")

    print("KERNEL_OK")
</pallas_src>

<mosaic_0001>
module attributes {stable_mosaic.version = 11 : i64} {
  func.func @ffn_kernel(%arg0: i32, %arg1: i32, %arg2: memref<32x512xbf16, #tpu.memory_space<vmem>>, %arg3: memref<1x512x2048xbf16, #tpu.memory_space<vmem>>, %arg4: memref<1x2048xf32, #tpu.memory_space<vmem>>, %arg5: memref<2048x512xbf16, #tpu.memory_space<vmem>>, %arg6: memref<1x512xf32, #tpu.memory_space<vmem>>, %arg7: memref<1x32x512xf32, #tpu.memory_space<vmem>>) attributes {dimension_semantics = [#tpu.dimension_semantics<parallel>, #tpu.dimension_semantics<arbitrary>], iteration_bounds = array<i64: 1, 1>, scalar_prefetch = 0 : i64, scratch_operands = 0 : i64, tpu.core_type = #tpu.core_type<tc>, window_params = [{pipeline_mode = #tpu.pipeline_mode<synchronous>, transform_indices = @transform_0, window_bounds = array<i64: 32, 512>}, {transform_indices = @transform_1, window_bounds = array<i64: 1, 512, 2048>}, {transform_indices = @transform_2, window_bounds = array<i64: 1, 2048>}, {transform_indices = @transform_3, window_bounds = array<i64: 2048, 512>}, {pipeline_mode = #tpu.pipeline_mode<synchronous>, transform_indices = @transform_4, window_bounds = array<i64: 1, 512>}, {transform_indices = @transform_5, window_bounds = array<i64: 1, 32, 512>}]} {
    %c0_i32 = arith.constant 0 : i32
    %0 = arith.cmpi eq, %arg1, %c0_i32 : i32
    %1 = arith.extui %0 : i1 to i32
    %c0_i32_0 = arith.constant 0 : i32
    %2 = arith.cmpi ne, %1, %c0_i32_0 : i32
    scf.if %2 {
      %cst_20 = arith.constant 0.000000e+00 : f32
      %26 = vector.broadcast %cst_20 : f32 to vector<1x32x512xf32>
      %c0_21 = arith.constant 0 : index
      %c0_22 = arith.constant 0 : index
      %c0_23 = arith.constant 0 : index
      %27 = vector.load %arg7[%c0_21, %c0_22, %c0_23] : memref<1x32x512xf32, #tpu.memory_space<vmem>>, vector<1x32x512xf32>
      tpu.vector_store %arg7[%c0_21, %c0_22, %c0_23], %26 {strides = array<i32>} : memref<1x32x512xf32, #tpu.memory_space<vmem>>, vector<1x32x512xf32>,
    } else {
    }
    %c0_i32_1 = arith.constant 0 : i32
    %3 = arith.cmpi eq, %arg1, %c0_i32_1 : i32
    %c0_i32_2 = arith.constant 0 : i32
    %4 = arith.cmpi eq, %arg0, %c0_i32_2 : i32
    %5 = arith.andi %3, %4 : i1
    %6 = arith.extui %5 : i1 to i32
    %c0_i32_3 = arith.constant 0 : i32
    %7 = arith.cmpi ne, %6, %c0_i32_3 : i32
    scf.if %7 {
      %c0_20 = arith.constant 0 : index
      %c0_21 = arith.constant 0 : index
      %c0_22 = arith.constant 0 : index
      %26 = vector.load %arg7[%c0_20, %c0_21, %c0_22] : memref<1x32x512xf32, #tpu.memory_space<vmem>>, vector<1x32x512xf32>
      %27 = vector.shape_cast %26 : vector<1x32x512xf32> to vector<32x512xf32>
      %c0_23 = arith.constant 0 : index
      %c0_24 = arith.constant 0 : index
      %28 = vector.load %arg6[%c0_23, %c0_24] : memref<1x512xf32, #tpu.memory_space<vmem>>, vector<1x512xf32>
      %29 = vector.broadcast %28 : vector<1x512xf32> to vector<32x512xf32>
      %30 = arith.addf %27, %29 : vector<32x512xf32>
      %c0_25 = arith.constant 0 : index
      %c0_26 = arith.constant 0 : index
      %c0_27 = arith.constant 0 : index
      %31 = vector.load %arg7[%c0_25, %c0_26, %c0_27] : memref<1x32x512xf32, #tpu.memory_space<vmem>>, vector<1x32x512xf32>
      %32 = vector.shape_cast %31 : vector<1x32x512xf32> to vector<32x512xf32>
      %33 = vector.shape_cast %30 : vector<32x512xf32> to vector<1x32x512xf32>
      tpu.vector_store %arg7[%c0_25, %c0_26, %c0_27], %33 {strides = array<i32>} : memref<1x32x512xf32, #tpu.memory_space<vmem>>, vector<1x32x512xf32>,
    } else {
    }
    %c0 = arith.constant 0 : index
    %c0_4 = arith.constant 0 : index
    %8 = vector.load %arg2[%c0, %c0_4] : memref<32x512xbf16, #tpu.memory_space<vmem>>, vector<32x512xbf16>
    %c0_5 = arith.constant 0 : index
    %c0_6 = arith.constant 0 : index
    %c0_7 = arith.constant 0 : index
    %9 = vector.load %arg3[%c0_5, %c0_6, %c0_7] : memref<1x512x2048xbf16, #tpu.memory_space<vmem>>, vector<1x512x2048xbf16>
    %10 = vector.shape_cast %9 : vector<1x512x2048xbf16> to vector<512x2048xbf16>
    %cst = arith.constant dense<0.000000e+00> : vector<32x2048xf32>
    %11 = tpu.matmul %8, %10, %cst {dimension_numbers = #tpu.dot_dimension_numbers<[1], [0], [0], [1], [0, 0, 1, 1], [], []>} : vector<32x512xbf16>, vector<512x2048xbf16>, vector<32x2048xf32> -> vector<32x2048xf32>
    %c0_8 = arith.constant 0 : index
    %c0_9 = arith.constant 0 : index
    %12 = vector.load %arg4[%c0_8, %c0_9] : memref<1x2048xf32, #tpu.memory_space<vmem>>, vector<1x2048xf32>
    %13 = vector.broadcast %12 : vector<1x2048xf32> to vector<32x2048xf32>
    %14 = arith.addf %11, %13 : vector<32x2048xf32>
    %cst_10 = arith.constant 0.000000e+00 : f32
    %15 = vector.broadcast %cst_10 : f32 to vector<32x2048xf32>
    %16 = arith.maximumf %14, %15 : vector<32x2048xf32>
    %c0_11 = arith.constant 0 : index
    %c0_12 = arith.constant 0 : index
    %c0_13 = arith.constant 0 : index
    %17 = vector.load %arg7[%c0_11, %c0_12, %c0_13] : memref<1x32x512xf32, #tpu.memory_space<vmem>>, vector<1x32x512xf32>
    %18 = vector.shape_cast %17 : vector<1x32x512xf32> to vector<32x512xf32>
    %19 = arith.truncf %16 : vector<32x2048xf32> to vector<32x2048xbf16>
    %c0_14 = arith.constant 0 : index
    %c0_15 = arith.constant 0 : index
    %20 = vector.load %arg5[%c0_14, %c0_15] : memref<2048x512xbf16, #tpu.memory_space<vmem>>, vector<2048x512xbf16>
    %cst_16 = arith.constant dense<0.000000e+00> : vector<32x512xf32>
    %21 = tpu.matmul %19, %20, %cst_16 {dimension_numbers = #tpu.dot_dimension_numbers<[1], [0], [0], [1], [0, 0, 1, 1], [], []>} : vector<32x2048xbf16>, vector<2048x512xbf16>, vector<32x512xf32> -> vector<32x512xf32>
    %22 = arith.addf %18, %21 : vector<32x512xf32>
    %c0_17 = arith.constant 0 : index
    %c0_18 = arith.constant 0 : index
    %c0_19 = arith.constant 0 : index
    %23 = vector.load %arg7[%c0_17, %c0_18, %c0_19] : memref<1x32x512xf32, #tpu.memory_space<vmem>>, vector<1x32x512xf32>
    %24 = vector.shape_cast %23 : vector<1x32x512xf32> to vector<32x512xf32>
    %25 = vector.shape_cast %22 : vector<32x512xf32> to vector<1x32x512xf32>
    tpu.vector_store %arg7[%c0_17, %c0_18, %c0_19], %25 {strides = array<i32>} : memref<1x32x512xf32, #tpu.memory_space<vmem>>, vector<1x32x512xf32>,
    return
  }
  func.func @transform_0(%arg0: i32, %arg1: i32) -> (i32, i32) {
    %c0_i32 = arith.constant 0 : i32
    %c0_i32_0 = arith.constant 0 : i32
    %c0_i32_1 = arith.constant 0 : i32
    return %c0_i32, %c0_i32_0 : i32, i32
  }
  func.func @transform_1(%arg0: i32, %arg1: i32) -> (i32, i32, i32) {
    %c1_i32 = arith.constant 1 : i32
    %0 = arith.muli %arg0, %c1_i32 : i32
    %1 = arith.addi %0, %arg1 : i32
    %c0_i32 = arith.constant 0 : i32
    %c0_i32_0 = arith.constant 0 : i32
    %c0_i32_1 = arith.constant 0 : i32
    return %1, %c0_i32, %c0_i32_0 : i32, i32, i32
  }
  func.func @transform_2(%arg0: i32, %arg1: i32) -> (i32, i32) {
    %c1_i32 = arith.constant 1 : i32
    %0 = arith.muli %arg0, %c1_i32 : i32
    %1 = arith.addi %0, %arg1 : i32
    %c0_i32 = arith.constant 0 : i32
    %c0_i32_0 = arith.constant 0 : i32
    return %c0_i32, %1 : i32, i32
  }
  func.func @transform_3(%arg0: i32, %arg1: i32) -> (i32, i32) {
    %c1_i32 = arith.constant 1 : i32
    %0 = arith.muli %arg0, %c1_i32 : i32
    %1 = arith.addi %0, %arg1 : i32
    %c0_i32 = arith.constant 0 : i32
    %c0_i32_0 = arith.constant 0 : i32
    return %1, %c0_i32 : i32, i32
  }
  func.func @transform_4(%arg0: i32, %arg1: i32) -> (i32, i32) {
    %c0_i32 = arith.constant 0 : i32
    %c0_i32_0 = arith.constant 0 : i32
    %c0_i32_1 = arith.constant 0 : i32
    return %c0_i32, %c0_i32_0 : i32, i32
  }
  func.func @transform_5(%arg0: i32, %arg1: i32) -> (i32, i32, i32) {
    %c0_i32 = arith.constant 0 : i32
    %c0_i32_0 = arith.constant 0 : i32
    %c0_i32_1 = arith.constant 0 : i32
    return %arg0, %c0_i32, %c0_i32_0 : i32, i32, i32
  }
}

</mosaic_0001>

<llo_original>
// kernel: tpu_custom_call.1
$region0: #{tpu_custom_call.1}
  #allocation0 [shape = 'u32[]', space=smem, size = 0x4, offset = 0x4, fixed_abs, tag = 'smem constant byte address 0x4 - core index']
  #allocation1 [shape = 'u32[72,128]{1,0:T(1,128)}', space=vmem, size = 0x9000, scoped, tag = 'internal scratch']
  %s0 = inlined_call_operand.hbm [shape: bf16[32,512], index: 0, kind: input, shape index: {}]
  %s1 = inlined_call_operand.hbm [shape: bf16[1,512,2048], index: 1, kind: input, shape index: {}]
  %s2 = inlined_call_operand.hbm [shape: f32[1,2048], index: 2, kind: input, shape index: {}]
  %s3 = inlined_call_operand.hbm [shape: bf16[2048,512], index: 3, kind: input, shape index: {}]
  %s4 = inlined_call_operand.hbm [shape: f32[1,512], index: 4, kind: input, shape index: {}]
  %s5 = inlined_call_operand.hbm [shape: f32[1,32,512], index: 5, kind: output, shape index: {}]
  %s6 = sld [smem:[#allocation0]]
  $region58: #{tpu_custom_call.1} parent=0
    _
  %s8 = ssub.s32 1, %s6
  %s9 = scalar_select 0, %s8, %s6
  $region1: #{tpu_custom_call.1} parent=0
    #allocation2 [shape = 'u8[32768]{0}', space=vmem, size = 0x8000, scoped, tag = 'input window, operand 0, single buffered']
    #allocation3 [shape = 's32[1]{0}', space=sflag, size = 0x4, scoped, tag = 'scoped memory for tpu_custom_call.1']
    #allocation4 [shape = 's32[1]{0}', space=sflag, size = 0x4, scoped, tag = 'scoped memory for tpu_custom_call.1']
    #allocation5 [shape = 'u8[2097152]{0}', space=vmem, size = 0x200000, scoped, tag = 'input window, operand 1, single buffered']
    #allocation6 [shape = 's32[1]{0}', space=sflag, size = 0x4, scoped, tag = 'scoped memory for tpu_custom_call.1']
    #allocation7 [shape = 'u8[8192]{0}', space=vmem, size = 0x2000, scoped, tag = 'input window, operand 2, single buffered']
    #allocation8 [shape = 'u8[2097152]{0}', space=vmem, size = 0x200000, scoped, tag = 'input window, operand 3, single buffered']
    #allocation9 [shape = 's32[1]{0}', space=sflag, size = 0x4, scoped, tag = 'scoped memory for tpu_custom_call.1']
    #allocation10 [shape = 'u8[2048]{0}', space=vmem, size = 0x800, scoped, tag = 'input window, operand 4, single buffered']
    #allocation11 [shape = 'u8[65536]{0}', space=vmem, size = 0x10000, scoped, tag = 'output window, operand 0, single buffered']
    %10 = vsyncpa [#allocation3], 0
    %11 = vsyncpa [#allocation6], 0
    %12 = vsyncpa [#allocation9], 0
    %13 = vsyncpa [#allocation4], 0
    // Predicated region
    $region2: #{tpu_custom_call.1} parent=1 // pred_check
      _
    $region3: #{tpu_custom_call.1} parent=1 // pred_check_branch
      %15 = sbr.rel (0) target = $region5
    $region4: #{tpu_custom_call.1} parent=1 // pred_region
      %17 = vsyncadd [#allocation3], 0
      %s18 = sshll.u32 %s0, 4
      %s19 = int_to_ptr.hbm [resolvable:$true] %s18
      %s20 = sshll.u32 [#allocation2], 4
      %s21 = int_to_ptr.vmem [resolvable:$true] %s20
      %26 = dma.hbm_to_vmem [thread:$0]  %s19, 1024, %s21, [#allocation3], 256, 256, 16
    $region5: #{tpu_custom_call.1} parent=1 // pred_fallthru
      _
    // Predicated region
    $region6: #{tpu_custom_call.1} parent=1 // pred_check
      _
    $region7: #{tpu_custom_call.1} parent=1 // pred_check_branch
      %28 = sbr.rel (0) target = $region9
    $region8: #{tpu_custom_call.1} parent=1 // pred_region
      %s29 = sadd.s32 0, 0
      %31 = vsyncadd [#allocation6], 0
      %s32 = smul.addr %s29, 1024
      %s33 = smul.addr %s32, 4
      %s34 = scalar_lea.hbm %s1, %s33
      %s35 = sshll.u32 %s34, 4
      %s36 = int_to_ptr.hbm [resolvable:$true] %s35
      %s37 = sshll.u32 [#allocation5], 4
      %s38 = int_to_ptr.vmem [resolvable:$true] %s37
      %43 = dma.hbm_to_vmem [thread:$0]  %s36, 65536, %s38, [#allocation6], 1024, 1024, 64
    $region9: #{tpu_custom_call.1} parent=1 // pred_fallthru
      _
    // Predicated region
    $region10: #{tpu_custom_call.1} parent=1 // pred_check
      _
    $region11: #{tpu_custom_call.1} parent=1 // pred_check_branch
      %45 = sbr.rel (0) target = $region13
    $region12: #{tpu_custom_call.1} parent=1 // pred_region
      %s46 = sadd.s32 0, 0
      %s47 = smul.u32 16, %s46
      %49 = vsyncadd [#allocation6], 0
      %s50 = scalar_lea.hbm %s2, %s47
      %s52 = sshll.u32 %s50, 4
      %s53 = int_to_ptr.hbm [resolvable:$true] %s52
      %s54 = sshll.u32 [#allocation7], 4
      %s55 = int_to_ptr.vmem [resolvable:$true] %s54
      %57 = dma.hbm_to_vmem [thread:$0]  %s53, 256, %s55, [#allocation6]
    $region13: #{tpu_custom_call.1} parent=1 // pred_fallthru
      _
    // Predicated region
    $region14: #{tpu_custom_call.1} parent=1 // pred_check
      _
    $region15: #{tpu_custom_call.1} parent=1 // pred_check_branch
      %59 = sbr.rel (0) target = $region17
    $region16: #{tpu_custom_call.1} parent=1 // pred_region
      %s60 = sadd.s32 0, 0
      %s61 = smul.u32 256, %s60
      %63 = vsyncadd [#allocation9], 0
      %s64 = smul.addr %s61, 4
      %s65 = smul.addr %s64, 4
      %s66 = scalar_lea.hbm %s3, %s65
      %s67 = sshll.u32 %s66, 4
      %s68 = int_to_ptr.hbm [resolvable:$true] %s67
      %s69 = sshll.u32 [#allocation8], 4
      %s70 = int_to_ptr.vmem [resolvable:$true] %s69
      %75 = dma.hbm_to_vmem [thread:$0]  %s68, 65536, %s70, [#allocation9], 256, 256, 16
    $region17: #{tpu_custom_call.1} parent=1 // pred_fallthru
      _
    // Predicated region
    $region18: #{tpu_custom_call.1} parent=1 // pred_check
      _
    $region19: #{tpu_custom_call.1} parent=1 // pred_check_branch
      %77 = sbr.rel (0) target = $region21
    $region20: #{tpu_custom_call.1} parent=1 // pred_region
      %79 = vsyncadd [#allocation9], 0
      %s81 = sshll.u32 %s4, 4
      %s82 = int_to_ptr.hbm [resolvable:$true] %s81
      %s83 = sshll.u32 [#allocation10], 4
      %s84 = int_to_ptr.vmem [resolvable:$true] %s83
      %86 = dma.hbm_to_vmem [thread:$0]  %s82, 64, %s84, [#allocation9]
    $region21: #{tpu_custom_call.1} parent=1 // pred_fallthru
      _
    // Predicated region
    $region22: #{tpu_custom_call.1} parent=1 // pred_check
      _
    $region23: #{tpu_custom_call.1} parent=1 // pred_check_branch
      %88 = sbr.rel (0) target = $region25
    $region24: #{tpu_custom_call.1} parent=1 // pred_region
      %90 = dma.done [#allocation3], 1024
    $region25: #{tpu_custom_call.1} parent=1 // pred_fallthru
      _
    // Predicated region
    $region26: #{tpu_custom_call.1} parent=1 // pred_check
      _
    $region27: #{tpu_custom_call.1} parent=1 // pred_check_branch
      %92 = sbr.rel (0) target = $region29
    $region28: #{tpu_custom_call.1} parent=1 // pred_region
      %94 = dma.done [#allocation6], 65536
    $region29: #{tpu_custom_call.1} parent=1 // pred_fallthru
      _
    // Predicated region
    $region30: #{tpu_custom_call.1} parent=1 // pred_check
      _
    $region31: #{tpu_custom_call.1} parent=1 // pred_check_branch
      %96 = sbr.rel (0) target = $region33
    $region32: #{tpu_custom_call.1} parent=1 // pred_region
      %98 = dma.done [#allocation6], 256
    $region33: #{tpu_custom_call.1} parent=1 // pred_fallthru
      _
    // Predicated region
    $region34: #{tpu_custom_call.1} parent=1 // pred_check
      _
    $region35: #{tpu_custom_call.1} parent=1 // pred_check_branch
      %100 = sbr.rel (0) target = $region37
    $region36: #{tpu_custom_call.1} parent=1 // pred_region
      %102 = dma.done [#allocation9], 65536
    $region37: #{tpu_custom_call.1} parent=1 // pred_fallthru
      _
    // Predicated region
    $region38: #{tpu_custom_call.1} parent=1 // pred_check
      _
    $region39: #{tpu_custom_call.1} parent=1 // pred_check_branch
      %104 = sbr.rel (0) target = $region41
    $region40: #{tpu_custom_call.1} parent=1 // pred_region
      %106 = dma.done [#allocation9], 64
    $region41: #{tpu_custom_call.1} parent=1 // pred_fallthru
      _
    %s107 = sadd.s32 0, 0
    %s108 = sadd.s32 0, 0
    %s109 = smul.u32 16, %s108
    %s110 = sadd.s32 0, 0
    %s111 = smul.u32 256, %s110
    %p112 = scmp.eq.s32.totalorder 0, 0
    // Predicated region
    $region42: #{tpu_custom_call.1} parent=1 // pred_check
      %p113 = pneg %p112
    $region43: #{tpu_custom_call.1} parent=1 // pred_check_branch
      %115 = sbr.rel (%p113) target = $region45
    $region44: #{tpu_custom_call.1} parent=1 // pred_region
      %116 = vst [vmem:[#allocation11] sm:$0xff] 0.0
      %117 = vst [vmem:[#allocation11 + $0x8] sm:$0xff] 0.0
      %118 = vst [vmem:[#allocation11 + $0x10] sm:$0xff] 0.0
      %119 = vst [vmem:[#allocation11 + $0x18] sm:$0xff] 0.0
      %120 = vst [vmem:[#allocation11 + $0x20] sm:$0xff] 0.0
      %121 = vst [vmem:[#allocation11 + $0x28] sm:$0xff] 0.0
      %122 = vst [vmem:[#allocation11 + $0x30] sm:$0xff] 0.0
      %123 = vst [vmem:[#allocation11 + $0x38] sm:$0xff] 0.0
      %124 = vst [vmem:[#allocation11 + $0x40] sm:$0xff] 0.0
      %125 = vst [vmem:[#allocation11 + $0x48] sm:$0xff] 0.0
      %126 = vst [vmem:[#allocation11 + $0x50] sm:$0xff] 0.0
      %127 = vst [vmem:[#allocation11 + $0x58] sm:$0xff] 0.0
      %128 = vst [vmem:[#allocation11 + $0x60] sm:$0xff] 0.0
      %129 = vst [vmem:[#allocation11 + $0x68] sm:$0xff] 0.0
      %130 = vst [vmem:[#allocation11 + $0x70] sm:$0xff] 0.0
      %131 = vst [vmem:[#allocation11 + $0x78] sm:$0xff] 0.0
    $region45: #{tpu_custom_call.1} parent=1 // pred_fallthru
      _
    %p132 = scmp.eq.s32.totalorder 0, 0
    %p133 = pnand %p112, %p132
    %p134 = pneg %p133
    // Predicated region
    $region46: #{tpu_custom_call.1} parent=1 // pred_check
      _
    $region47: #{tpu_custom_call.1} parent=1 // pred_check_branch
      %136 = sbr.rel (%p133) target = $region49
    $region48: #{tpu_custom_call.1} parent=1 // pred_region
      %v137 = vld [vmem:[#allocation11] sm:$0xff]
      %v138 = vld [vmem:[#allocation11 + $0x8] sm:$0xff]
      %v139 = vld [vmem:[#allocation11 + $0x10] sm:$0xff]
      %v140 = vld [vmem:[#allocation11 + $0x18] sm:$0xff]
      %v141 = vld [vmem:[#allocation11 + $0x20] sm:$0xff]
      %v142 = vld [vmem:[#allocation11 + $0x28] sm:$0xff]
      %v143 = vld [vmem:[#allocation11 + $0x30] sm:$0xff]
      %v144 = vld [vmem:[#allocation11 + $0x38] sm:$0xff]
      %v145 = vld [vmem:[#allocation11 + $0x40] sm:$0xff]
      %v146 = vld [vmem:[#allocation11 + $0x48] sm:$0xff]
      %v147 = vld [vmem:[#allocation11 + $0x50] sm:$0xff]
      %v148 = vld [vmem:[#allocation11 + $0x58] sm:$0xff]
      %v149 = vld [vmem:[#allocation11 + $0x60] sm:$0xff]
      %v150 = vld [vmem:[#allocation11 + $0x68] sm:$0xff]
      %v151 = vld [vmem:[#allocation11 + $0x70] sm:$0xff]
      %v152 = vld [vmem:[#allocation11 + $0x78] sm:$0xff]
      %v153 = vld [vmem:[#allocation10] sm:$0xf]
      %v155 = vperm.slane %v153, 0
      %v156 = vperm.slane %v153, 1
      %v157 = vperm.slane %v153, 2
      %v158 = vperm.slane %v153, 3
      %v163 = vadd.f32 %v137, %v155
      %v164 = vadd.f32 %v138, %v156
      %v165 = vadd.f32 %v139, %v157
      %v166 = vadd.f32 %v140, %v158
      %v167 = vadd.f32 %v141, %v155
      %v168 = vadd.f32 %v142, %v156
      %v169 = vadd.f32 %v143, %v157
      %v170 = vadd.f32 %v144, %v158
      %v171 = vadd.f32 %v145, %v155
      %v172 = vadd.f32 %v146, %v156
      %v173 = vadd.f32 %v147, %v157
      %v174 = vadd.f32 %v148, %v158
      %v175 = vadd.f32 %v149, %v155
      %v176 = vadd.f32 %v150, %v156
      %v177 = vadd.f32 %v151, %v157
      %v178 = vadd.f32 %v152, %v158
      %179 = vst [vmem:[#allocation11] sm:$0xff] %v163
      %180 = vst [vmem:[#allocation11 + $0x8] sm:$0xff] %v164
      %181 = vst [vmem:[#allocation11 + $0x10] sm:$0xff] %v165
      %182 = vst [vmem:[#allocation11 + $0x18] sm:$0xff] %v166
      %183 = vst [vmem:[#allocation11 + $0x20] sm:$0xff] %v167
      %184 = vst [vmem:[#allocation11 + $0x28] sm:$0xff] %v168
      %185 = vst [vmem:[#allocation11 + $0x30] sm:$0xff] %v169
      %186 = vst [vmem:[#allocation11 + $0x38] sm:$0xff] %v170
      %187 = vst [vmem:[#allocation11 + $0x40] sm:$0xff] %v171
      %188 = vst [vmem:[#allocation11 + $0x48] sm:$0xff] %v172
      %189 = vst [vmem:[#allocation11 + $0x50] sm:$0xff] %v173
      %190 = vst [vmem:[#allocation11 + $0x58] sm:$0xff] %v174
      %191 = vst [vmem:[#allocation11 + $0x60] sm:$0xff] %v175
      %192 = vst [vmem:[#allocation11 + $0x68] sm:$0xff] %v176
      %193 = vst [vmem:[#allocation11 + $0x70] sm:$0xff] %v177
      %194 = vst [vmem:[#allocation11 + $0x78] sm:$0xff] %v178
    $region49: #{tpu_custom_call.1} parent=1 // pred_fallthru
      _
    %v195 = vld [vmem:[#allocation2] sm:$0xff]
    %v196 = vld [vmem:[#allocation2 + $0x8] sm:$0xff]
    %v197 = vld [vmem:[#allocation2 + $0x10] sm:$0xff]
    %v198 = vld [vmem:[#allocation2 + $0x18] sm:$0xff]
    %v199 = vld [vmem:[#allocation2 + $0x20] sm:$0xff]
    %v200 = vld [vmem:[#allocation2 + $0x28] sm:$0xff]
    %v201 = vld [vmem:[#allocation2 + $0x30] sm:$0xff]
    %v202 = vld [vmem:[#allocation2 + $0x38] sm:$0xff]
    %v203 = vld [vmem:[#allocation5] sm:$0xff]
    %v204 = vld [vmem:[#allocation5 + $0x8] sm:$0xff]
    %v205 = vld [vmem:[#allocation5 + $0x10] sm:$0xff]
    %v206 = vld [vmem:[#allocation5 + $0x18] sm:$0xff]
    %v207 = vld [vmem:[#allocation5 + $0x20] sm:$0xff]
    %v208 = vld [vmem:[#allocation5 + $0x28] sm:$0xff]
    %v209 = vld [vmem:[#allocation5 + $0x30] sm:$0xff]
    %v210 = vld [vmem:[#allocation5 + $0x38] sm:$0xff]
    %v211 = vld [vmem:[#allocation5 + $0x40] sm:$0xff]
    %v212 = vld [vmem:[#allocation5 + $0x48] sm:$0xff]
    %v213 = vld [vmem:[#allocation5 + $0x50] sm:$0xff]
    %v214 = vld [vmem:[#allocation5 + $0x58] sm:$0xff]
    %v215 = vld [vmem:[#allocation5 + $0x60] sm:$0xff]
    %v216 = vld [vmem:[#allocation5 + $0x68] sm:$0xff]
    %v217 = vld [vmem:[#allocation5 + $0x70] sm:$0xff]
    %v218 = vld [vmem:[#allocation5 + $0x78] sm:$0xff]
    %v219 = vld [vmem:[#allocation5 + $0x80] sm:$0xff]
    %v220 = vld [vmem:[#allocation5 + $0x88] sm:$0xff]
    %v221 = vld [vmem:[#allocation5 + $0x90] sm:$0xff]
    %v222 = vld [vmem:[#allocation5 + $0x98] sm:$0xff]
    %v223 = vld [vmem:[#allocation5 + $0xa0] sm:$0xff]
    %v224 = vld [vmem:[#allocation5 + $0xa8] sm:$0xff]
    %v225 = vld [vmem:[#allocation5 + $0xb0] sm:$0xff]
    %v226 = vld [vmem:[#allocation5 + $0xb8] sm:$0xff]
    %v227 = vld [vmem:[#allocation5 + $0xc0] sm:$0xff]
    %v228 = vld [vmem:[#allocation5 + $0xc8] sm:$0xff]
    %v229 = vld [vmem:[#allocation5 + $0xd0] sm:$0xff]
    %v230 = vld [vmem:[#allocation5 + $0xd8] sm:$0xff]
    %v231 = vld [vmem:[#allocation5 + $0xe0] sm:$0xff]
    %v232 = vld [vmem:[#allocation5 + $0xe8] sm:$0xff]
    %v233 = vld [vmem:[#allocation5 + $0xf0] sm:$0xff]
    %v234 = vld [vmem:[#allocation5 + $0xf8] sm:$0xff]
    %v235 = vld [vmem:[#allocation5 + $0x100] sm:$0xff]
    %v236 = vld [vmem:[#allocation5 + $0x108] sm:$0xff]
    %v237 = vld [vmem:[#allocation5 + $0x110] sm:$0xff]
    %v238 = vld [vmem:[#allocation5 + $0x118] sm:$0xff]
    %v239 = vld [vmem:[#allocation5 + $0x120] sm:$0xff]
    %v240 = vld [vmem:[#allocation5 + $0x128] sm:$0xff]
    %v241 = vld [vmem:[#allocation5 + $0x130] sm:$0xff]
    %v242 = vld [vmem:[#allocation5 + $0x138] sm:$0xff]
    %v243 = vld [vmem:[#allocation5 + $0x140] sm:$0xff]
    %v244 = vld [vmem:[#allocation5 + $0x148] sm:$0xff]
    %v245 = vld [vmem:[#allocation5 + $0x150] sm:$0xff]
    %v246 = vld [vmem:[#allocation5 + $0x158] sm:$0xff]
    %v247 = vld [vmem:[#allocation5 + $0x160] sm:$0xff]
    %v248 = vld [vmem:[#allocation5 + $0x168] sm:$0xff]
    %v249 = vld [vmem:[#allocation5 + $0x170] sm:$0xff]
    %v250 = vld [vmem:[#allocation5 + $0x178] sm:$0xff]
    %v251 = vld [vmem:[#allocation5 + $0x180] sm:$0xff]
    %v252 = vld [vmem:[#allocation5 + $0x188] sm:$0xff]
    %v253 = vld [vmem:[#allocation5 + $0x190] sm:$0xff]
    %v254 = vld [vmem:[#allocation5 + $0x198] sm:$0xff]
    %v255 = vld [vmem:[#allocation5 + $0x1a0] sm:$0xff]
    %v256 = vld [vmem:[#allocation5 + $0x1a8] sm:$0xff]
    %v257 = vld [vmem:[#allocation5 + $0x1b0] sm:$0xff]
    %v258 = vld [vmem:[#allocation5 + $0x1b8] sm:$0xff]
    %v259 = vld [vmem:[#allocation5 + $0x1c0] sm:$0xff]
    %v260 = vld [vmem:[#allocation5 + $0x1c8] sm:$0xff]
    %v261 = vld [vmem:[#allocation5 + $0x1d0] sm:$0xff]
    %v262 = vld [vmem:[#allocation5 + $0x1d8] sm:$0xff]
    %v263 = vld [vmem:[#allocation5 + $0x1e0] sm:$0xff]
    %v264 = vld [vmem:[#allocation5 + $0x1e8] sm:$0xff]
    %v265 = vld [vmem:[#allocation5 + $0x1f0] sm:$0xff]
    %v266 = vld [vmem:[#allocation5 + $0x1f8] sm:$0xff]
    %v267 = vld [vmem:[#allocation5 + $0x200] sm:$0xff]
    %v268 = vld [vmem:[#allocation5 + $0x208] sm:$0xff]
    %v269 = vld [vmem:[#allocation5 + $0x210] sm:$0xff]
    %v270 = vld [vmem:[#allocation5 + $0x218] sm:$0xff]
    %v271 = vld [vmem:[#allocation5 + $0x220] sm:$0xff]
    %v272 = vld [vmem:[#allocation5 + $0x228] sm:$0xff]
    %v273 = vld [vmem:[#allocation5 + $0x230] sm:$0xff]
    %v274 = vld [vmem:[#allocation5 + $0x238] sm:$0xff]
    %v275 = vld [vmem:[#allocation5 + $0x240] sm:$0xff]
    %v276 = vld [vmem:[#allocation5 + $0x248] sm:$0xff]
    %v277 = vld [vmem:[#allocation5 + $0x250] sm:$0xff]
    %v278 = vld [vmem:[#allocation5 + $0x258] sm:$0xff]
    %v279 = vld [vmem:[#allocation5 + $0x260] sm:$0xff]
    %v280 = vld [vmem:[#allocation5 + $0x268] sm:$0xff]
    %v281 = vld [vmem:[#allocation5 + $0x270] sm:$0xff]
    %v282 = vld [vmem:[#allocation5 + $0x278] sm:$0xff]
    %v283 = vld [vmem:[#allocation5 + $0x280] sm:$0xff]
    %v284 = vld [vmem:[#allocation5 + $0x288] sm:$0xff]
    %v285 = vld [vmem:[#allocation5 + $0x290] sm:$0xff]
    %v286 = vld [vmem:[#allocation5 + $0x298] sm:$0xff]
    %v287 = vld [vmem:[#allocation5 + $0x2a0] sm:$0xff]
    %v288 = vld [vmem:[#allocation5 + $0x2a8] sm:$0xff]
    %v289 = vld [vmem:[#allocation5 + $0x2b0] sm:$0xff]
    %v290 = vld [vmem:[#allocation5 + $0x2b8] sm:$0xff]
    %v291 = vld [vmem:[#allocation5 + $0x2c0] sm:$0xff]
    %v292 = vld [vmem:[#allocation5 + $0x2c8] sm:$0xff]
    %v293 = vld [vmem:[#allocation5 + $0x2d0] sm:$0xff]
    %v294 = vld [vmem:[#allocation5 + $0x2d8] sm:$0xff]
    %v295 = vld [vmem:[#allocation5 + $0x2e0] sm:$0xff]
    %v296 = vld [vmem:[#allocation5 + $0x2e8] sm:$0xff]
    %v297 = vld [vmem:[#allocation5 + $0x2f0] sm:$0xff]
    %v298 = vld [vmem:[#allocation5 + $0x2f8] sm:$0xff]
    %v299 = vld [vmem:[#allocation5 + $0x300] sm:$0xff]
    %v300 = vld [vmem:[#allocation5 + $0x308] sm:$0xff]
    %v301 = vld [vmem:[#allocation5 + $0x310] sm:$0xff]
    %v302 = vld [vmem:[#allocation5 + $0x318] sm:$0xff]
    %v303 = vld [vmem:[#allocation5 + $0x320] sm:$0xff]
    %v304 = vld [vmem:[#allocation5 + $0x328] sm:$0xff]
    %v305 = vld [vmem:[#allocation5 + $0x330] sm:$0xff]
    %v306 = vld [vmem:[#allocation5 + $0x338] sm:$0xff]
    %v307 = vld [vmem:[#allocation5 + $0x340] sm:$0xff]
    %v308 = vld [vmem:[#allocation5 + $0x348] sm:$0xff]
    %v309 = vld [vmem:[#allocation5 + $0x350] sm:$0xff]
    %v310 = vld [vmem:[#allocation5 + $0x358] sm:$0xff]
    %v311 = vld [vmem:[#allocation5 + $0x360] sm:$0xff]
    %v312 = vld [vmem:[#allocation5 + $0x368] sm:$0xff]
    %v313 = vld [vmem:[#allocation5 + $0x370] sm:$0xff]
    %v314 = vld [vmem:[#allocation5 + $0x378] sm:$0xff]
    %v315 = vld [vmem:[#allocation5 + $0x380] sm:$0xff]
    %v316 = vld [vmem:[#allocation5 + $0x388] sm:$0xff]
    %v317 = vld [vmem:[#allocation5 + $0x390] sm:$0xff]
    %v318 = vld [vmem:[#allocation5 + $0x398] sm:$0xff]
    %v319 = vld [vmem:[#allocation5 + $0x3a0] sm:$0xff]
    %v320 = vld [vmem:[#allocation5 + $0x3a8] sm:$0xff]
    %v321 = vld [vmem:[#allocation5 + $0x3b0] sm:$0xff]
    %v322 = vld [vmem:[#allocation5 + $0x3b8] sm:$0xff]
    %v323 = vld [vmem:[#allocation5 + $0x3c0] sm:$0xff]
    %v324 = vld [vmem:[#allocation5 + $0x3c8] sm:$0xff]
    %v325 = vld [vmem:[#allocation5 + $0x3d0] sm:$0xff]
    %v326 = vld [vmem:[#allocation5 + $0x3d8] sm:$0xff]
    %v327 = vld [vmem:[#allocation5 + $0x3e0] sm:$0xff]
    %v328 = vld [vmem:[#allocation5 + $0x3e8] sm:$0xff]
    %v329 = vld [vmem:[#allocation5 + $0x3f0] sm:$0xff]
    %v330 = vld [vmem:[#allocation5 + $0x3f8] sm:$0xff]
    %v331 = vld [vmem:[#allocation5 + $0x400] sm:$0xff]
    %v332 = vld [vmem:[#allocation5 + $0x408] sm:$0xff]
    %v333 = vld [vmem:[#allocation5 + $0x410] sm:$0xff]
    %v334 = vld [vmem:[#allocation5 + $0x418] sm:$0xff]
    %v335 = vld [vmem:[#allocation5 + $0x420] sm:$0xff]
    %v336 = vld [vmem:[#allocation5 + $0x428] sm:$0xff]
    %v337 = vld [vmem:[#allocation5 + $0x430] sm:$0xff]
    %v338 = vld [vmem:[#allocation5 + $0x438] sm:$0xff]
    %v339 = vld [vmem:[#allocation5 + $0x440] sm:$0xff]
    %v340 = vld [vmem:[#allocation5 + $0x448] sm:$0xff]
    %v341 = vld [vmem:[#allocation5 + $0x450] sm:$0xff]
    %v342 = vld [vmem:[#allocation5 + $0x458] sm:$0xff]
    %v343 = vld [vmem:[#allocation5 + $0x460] sm:$0xff]
    %v344 = vld [vmem:[#allocation5 + $0x468] sm:$0xff]
    %v345 = vld [vmem:[#allocation5 + $0x470] sm:$0xff]
    %v346 = vld [vmem:[#allocation5 + $0x478] sm:$0xff]
    %v347 = vld [vmem:[#allocation5 + $0x480] sm:$0xff]
    %v348 = vld [vmem:[#allocation5 + $0x488] sm:$0xff]
    %v349 = vld [vmem:[#allocation5 + $0x490] sm:$0xff]
    %v350 = vld [vmem:[#allocation5 + $0x498] sm:$0xff]
    %v351 = vld [vmem:[#allocation5 + $0x4a0] sm:$0xff]
    %v352 = vld [vmem:[#allocation5 + $0x4a8] sm:$0xff]
    %v353 = vld [vmem:[#allocation5 + $0x4b0] sm:$0xff]
    %v354 = vld [vmem:[#allocation5 + $0x4b8] sm:$0xff]
    %v355 = vld [vmem:[#allocation5 + $0x4c0] sm:$0xff]
    %v356 = vld [vmem:[#allocation5 + $0x4c8] sm:$0xff]
    %v357 = vld [vmem:[#allocation5 + $0x4d0] sm:$0xff]
    %v358 = vld [vmem:[#allocation5 + $0x4d8] sm:$0xff]
    %v359 = vld [vmem:[#allocation5 + $0x4e0] sm:$0xff]
    %v360 = vld [vmem:[#allocation5 + $0x4e8] sm:$0xff]
    %v361 = vld [vmem:[#allocation5 + $0x4f0] sm:$0xff]
    %v362 = vld [vmem:[#allocation5 + $0x4f8] sm:$0xff]
    %v363 = vld [vmem:[#allocation5 + $0x500] sm:$0xff]
    %v364 = vld [vmem:[#allocation5 + $0x508] sm:$0xff]
    %v365 = vld [vmem:[#allocation5 + $0x510] sm:$0xff]
    %v366 = vld [vmem:[#allocation5 + $0x518] sm:$0xff]
    %v367 = vld [vmem:[#allocation5 + $0x520] sm:$0xff]
    %v368 = vld [vmem:[#allocation5 + $0x528] sm:$0xff]
    %v369 = vld [vmem:[#allocation5 + $0x530] sm:$0xff]
    %v370 = vld [vmem:[#allocation5 + $0x538] sm:$0xff]
    %v371 = vld [vmem:[#allocation5 + $0x540] sm:$0xff]
    %v372 = vld [vmem:[#allocation5 + $0x548] sm:$0xff]
    %v373 = vld [vmem:[#allocation5 + $0x550] sm:$0xff]
    %v374 = vld [vmem:[#allocation5 + $0x558] sm:$0xff]
    %v375 = vld [vmem:[#allocation5 + $0x560] sm:$0xff]
    %v376 = vld [vmem:[#allocation5 + $0x568] sm:$0xff]
    %v377 = vld [vmem:[#allocation5 + $0x570] sm:$0xff]
    %v378 = vld [vmem:[#allocation5 + $0x578] sm:$0xff]
    %v379 = vld [vmem:[#allocation5 + $0x580] sm:$0xff]
    %v380 = vld [vmem:[#allocation5 + $0x588] sm:$0xff]
    %v381 = vld [vmem:[#allocation5 + $0x590] sm:$0xff]
    %v382 = vld [vmem:[#allocation5 + $0x598] sm:$0xff]
    %v383 = vld [vmem:[#allocation5 + $0x5a0] sm:$0xff]
    %v384 = vld [vmem:[#allocation5 + $0x5a8] sm:$0xff]
    %v385 = vld [vmem:[#allocation5 + $0x5b0] sm:$0xff]
    %v386 = vld [vmem:[#allocation5 + $0x5b8] sm:$0xff]
    %v387 = vld [vmem:[#allocation5 + $0x5c0] sm:$0xff]
    %v388 = vld [vmem:[#allocation5 + $0x5c8] sm:$0xff]
    %v389 = vld [vmem:[#allocation5 + $0x5d0] sm:$0xff]
    %v390 = vld [vmem:[#allocation5 + $0x5d8] sm:$0xff]
    %v391 = vld [vmem:[#allocation5 + $0x5e0] sm:$0xff]
    %v392 = vld [vmem:[#allocation5 + $0x5e8] sm:$0xff]
    %v393 = vld [vmem:[#allocation5 + $0x5f0] sm:$0xff]
    %v394 = vld [vmem:[#allocation5 + $0x5f8] sm:$0xff]
    %v395 = vld [vmem:[#allocation5 + $0x600] sm:$0xff]
    %v396 = vld [vmem:[#allocation5 + $0x608] sm:$0xff]
    %v397 = vld [vmem:[#allocation5 + $0x610] sm:$0xff]
    %v398 = vld [vmem:[#allocation5 + $0x618] sm:$0xff]
    %v399 = vld [vmem:[#allocation5 + $0x620] sm:$0xff]
    %v400 = vld [vmem:[#allocation5 + $0x628] sm:$0xff]
    %v401 = vld [vmem:[#allocation5 + $0x630] sm:$0xff]
    %v402 = vld [vmem:[#allocation5 + $0x638] sm:$0xff]
    %v403 = vld [vmem:[#allocation5 + $0x640] sm:$0xff]
    %v404 = vld [vmem:[#allocation5 + $0x648] sm:$0xff]
    %v405 = vld [vmem:[#allocation5 + $0x650] sm:$0xff]
    %v406 = vld [vmem:[#allocation5 + $0x658] sm:$0xff]
    %v407 = vld [vmem:[#allocation5 + $0x660] sm:$0xff]
    %v408 = vld [vmem:[#allocation5 + $0x668] sm:$0xff]
    %v409 = vld [vmem:[#allocation5 + $0x670] sm:$0xff]
    %v410 = vld [vmem:[#allocation5 + $0x678] sm:$0xff]
    %v411 = vld [vmem:[#allocation5 + $0x680] sm:$0xff]
    %v412 = vld [vmem:[#allocation5 + $0x688] sm:$0xff]
    %v413 = vld [vmem:[#allocation5 + $0x690] sm:$0xff]
    %v414 = vld [vmem:[#allocation5 + $0x698] sm:$0xff]
    %v415 = vld [vmem:[#allocation5 + $0x6a0] sm:$0xff]
    %v416 = vld [vmem:[#allocation5 + $0x6a8] sm:$0xff]
    %v417 = vld [vmem:[#allocation5 + $0x6b0] sm:$0xff]
    %v418 = vld [vmem:[#allocation5 + $0x6b8] sm:$0xff]
    %v419 = vld [vmem:[#allocation5 + $0x6c0] sm:$0xff]
    %v420 = vld [vmem:[#allocation5 + $0x6c8] sm:$0xff]
    %v421 = vld [vmem:[#allocation5 + $0x6d0] sm:$0xff]
    %v422 = vld [vmem:[#allocation5 + $0x6d8] sm:$0xff]
    %v423 = vld [vmem:[#allocation5 + $0x6e0] sm:$0xff]
    %v424 = vld [vmem:[#allocation5 + $0x6e8] sm:$0xff]
    %v425 = vld [vmem:[#allocation5 + $0x6f0] sm:$0xff]
    %v426 = vld [vmem:[#allocation5 + $0x6f8] sm:$0xff]
    %v427 = vld [vmem:[#allocation5 + $0x700] sm:$0xff]
    %v428 = vld [vmem:[#allocation5 + $0x708] sm:$0xff]
    %v429 = vld [vmem:[#allocation5 + $0x710] sm:$0xff]
    %v430 = vld [vmem:[#allocation5 + $0x718] sm:$0xff]
    %v431 = vld [vmem:[#allocation5 + $0x720] sm:$0xff]
    %v432 = vld [vmem:[#allocation5 + $0x728] sm:$0xff]
    %v433 = vld [vmem:[#allocation5 + $0x730] sm:$0xff]
    %v434 = vld [vmem:[#allocation5 + $0x738] sm:$0xff]
    %v435 = vld [vmem:[#allocation5 + $0x740] sm:$0xff]
    %v436 = vld [vmem:[#allocation5 + $0x748] sm:$0xff]
    %v437 = vld [vmem:[#allocation5 + $0x750] sm:$0xff]
    %v438 = vld [vmem:[#allocation5 + $0x758] sm:$0xff]
    %v439 = vld [vmem:[#allocation5 + $0x760] sm:$0xff]
    %v440 = vld [vmem:[#allocation5 + $0x768] sm:$0xff]
    %v441 = vld [vmem:[#allocation5 + $0x770] sm:$0xff]
    %v442 = vld [vmem:[#allocation5 + $0x778] sm:$0xff]
    %v443 = vld [vmem:[#allocation5 + $0x780] sm:$0xff]
    %v444 = vld [vmem:[#allocation5 + $0x788] sm:$0xff]
    %v445 = vld [vmem:[#allocation5 + $0x790] sm:$0xff]
    %v446 = vld [vmem:[#allocation5 + $0x798] sm:$0xff]
    %v447 = vld [vmem:[#allocation5 + $0x7a0] sm:$0xff]
    %v448 = vld [vmem:[#allocation5 + $0x7a8] sm:$0xff]
    %v449 = vld [vmem:[#allocation5 + $0x7b0] sm:$0xff]
    %v450 = vld [vmem:[#allocation5 + $0x7b8] sm:$0xff]
    %v451 = vld [vmem:[#allocation5 + $0x7c0] sm:$0xff]
    %v452 = vld [vmem:[#allocation5 + $0x7c8] sm:$0xff]
    %v453 = vld [vmem:[#allocation5 + $0x7d0] sm:$0xff]
    %v454 = vld [vmem:[#allocation5 + $0x7d8] sm:$0xff]
    %v455 = vld [vmem:[#allocation5 + $0x7e0] sm:$0xff]
    %v456 = vld [vmem:[#allocation5 + $0x7e8] sm:$0xff]
    %v457 = vld [vmem:[#allocation5 + $0x7f0] sm:$0xff]
    %v458 = vld [vmem:[#allocation5 + $0x7f8] sm:$0xff]
    %v459 = vld [vmem:[#allocation5 + $0x800] sm:$0xff]
    %v460 = vld [vmem:[#allocation5 + $0x808] sm:$0xff]
    %v461 = vld [vmem:[#allocation5 + $0x810] sm:$0xff]
    %v462 = vld [vmem:[#allocation5 + $0x818] sm:$0xff]
    %v463 = vld [vmem:[#allocation5 + $0x820] sm:$0xff]
    %v464 = vld [vmem:[#allocation5 + $0x828] sm:$0xff]
    %v465 = vld [vmem:[#allocation5 + $0x830] sm:$0xff]
    %v466 = vld [vmem:[#allocation5 + $0x838] sm:$0xff]
    %v467 = vld [vmem:[#allocation5 + $0x840] sm:$0xff]
    %v468 = vld [vmem:[#allocation5 + $0x848] sm:$0xff]
    %v469 = vld [vmem:[#allocation5 + $0x850] sm:$0xff]
    %v470 = vld [vmem:[#allocation5 + $0x858] sm:$0xff]
    %v471 = vld [vmem:[#allocation5 + $0x860] sm:$0xff]
    %v472 = vld [vmem:[#allocation5 + $0x868] sm:$0xff]
    %v473 = vld [vmem:[#allocation5 + $0x870] sm:$0xff]
    %v474 = vld [vmem:[#allocation5 + $0x878] sm:$0xff]
    %v475 = vld [vmem:[#allocation5 + $0x880] sm:$0xff]
    %v476 = vld [vmem:[#allocation5 + $0x888] sm:$0xff]
    %v477 = vld [vmem:[#allocation5 + $0x890] sm:$0xff]
    %v478 = vld [vmem:[#allocation5 + $0x898] sm:$0xff]
    %v479 = vld [vmem:[#allocation5 + $0x8a0] sm:$0xff]
    %v480 = vld [vmem:[#allocation5 + $0x8a8] sm:$0xff]
    %v481 = vld [vmem:[#allocation5 + $0x8b0] sm:$0xff]
    %v482 = vld [vmem:[#allocation5 + $0x8b8] sm:$0xff]
    %v483 = vld [vmem:[#allocation5 + $0x8c0] sm:$0xff]
    %v484 = vld [vmem:[#allocation5 + $0x8c8] sm:$0xff]
    %v485 = vld [vmem:[#allocation5 + $0x8d0] sm:$0xff]
    %v486 = vld [vmem:[#allocation5 + $0x8d8] sm:$0xff]
    %v487 = vld [vmem:[#allocation5 + $0x8e0] sm:$0xff]
    %v488 = vld [vmem:[#allocation5 + $0x8e8] sm:$0xff]
    %v489 = vld [vmem:[#allocation5 + $0x8f0] sm:$0xff]
    %v490 = vld [vmem:[#allocation5 + $0x8f8] sm:$0xff]
    %v491 = vld [vmem:[#allocation5 + $0x900] sm:$0xff]
    %v492 = vld [vmem:[#allocation5 + $0x908] sm:$0xff]
    %v493 = vld [vmem:[#allocation5 + $0x910] sm:$0xff]
    %v494 = vld [vmem:[#allocation5 + $0x918] sm:$0xff]
    %v495 = vld [vmem:[#allocation5 + $0x920] sm:$0xff]
    %v496 = vld [vmem:[#allocation5 + $0x928] sm:$0xff]
    %v497 = vld [vmem:[#allocation5 + $0x930] sm:$0xff]
    %v498 = vld [vmem:[#allocation5 + $0x938] sm:$0xff]
    %v499 = vld [vmem:[#allocation5 + $0x940] sm:$0xff]
    %v500 = vld [vmem:[#allocation5 + $0x948] sm:$0xff]
    %v501 = vld [vmem:[#allocation5 + $0x950] sm:$0xff]
    %v502 = vld [vmem:[#allocation5 + $0x958] sm:$0xff]
    %v503 = vld [vmem:[#allocation5 + $0x960] sm:$0xff]
    %v504 = vld [vmem:[#allocation5 + $0x968] sm:$0xff]
    %v505 = vld [vmem:[#allocation5 + $0x970] sm:$0xff]
    %v506 = vld [vmem:[#allocation5 + $0x978] sm:$0xff]
    %v507 = vld [vmem:[#allocation5 + $0x980] sm:$0xff]
    %v508 = vld [vmem:[#allocation5 + $0x988] sm:$0xff]
    %v509 = vld [vmem:[#allocation5 + $0x990] sm:$0xff]
    %v510 = vld [vmem:[#allocation5 + $0x998] sm:$0xff]
    %v511 = vld [vmem:[#allocation5 + $0x9a0] sm:$0xff]
    %v512 = vld [vmem:[#allocation5 + $0x9a8] sm:$0xff]
    %v513 = vld [vmem:[#allocation5 + $0x9b0] sm:$0xff]
    %v514 = vld [vmem:[#allocation5 + $0x9b8] sm:$0xff]
    %v515 = vld [vmem:[#allocation5 + $0x9c0] sm:$0xff]
    %v516 = vld [vmem:[#allocation5 + $0x9c8] sm:$0xff]
    %v517 = vld [vmem:[#allocation5 + $0x9d0] sm:$0xff]
    %v518 = vld [vmem:[#allocation5 + $0x9d8] sm:$0xff]
    %v519 = vld [vmem:[#allocation5 + $0x9e0] sm:$0xff]
    %v520 = vld [vmem:[#allocation5 + $0x9e8] sm:$0xff]
    %v521 = vld [vmem:[#allocation5 + $0x9f0] sm:$0xff]
    %v522 = vld [vmem:[#allocation5 + $0x9f8] sm:$0xff]
    %v523 = vld [vmem:[#allocation5 + $0xa00] sm:$0xff]
    %v524 = vld [vmem:[#allocation5 + $0xa08] sm:$0xff]
    %v525 = vld [vmem:[#allocation5 + $0xa10] sm:$0xff]
    %v526 = vld [vmem:[#allocation5 + $0xa18] sm:$0xff]
    %v527 = vld [vmem:[#allocation5 + $0xa20] sm:$0xff]
    %v528 = vld [vmem:[#allocation5 + $0xa28] sm:$0xff]
    %v529 = vld [vmem:[#allocation5 + $0xa30] sm:$0xff]
    %v530 = vld [vmem:[#allocation5 + $0xa38] sm:$0xff]
    %v531 = vld [vmem:[#allocation5 + $0xa40] sm:$0xff]
    %v532 = vld [vmem:[#allocation5 + $0xa48] sm:$0xff]
    %v533 = vld [vmem:[#allocation5 + $0xa50] sm:$0xff]
    %v534 = vld [vmem:[#allocation5 + $0xa58] sm:$0xff]
    %v535 = vld [vmem:[#allocation5 + $0xa60] sm:$0xff]
    %v536 = vld [vmem:[#allocation5 + $0xa68] sm:$0xff]
    %v537 = vld [vmem:[#allocation5 + $0xa70] sm:$0xff]
    %v538 = vld [vmem:[#allocation5 + $0xa78] sm:$0xff]
    %v539 = vld [vmem:[#allocation5 + $0xa80] sm:$0xff]
    %v540 = vld [vmem:[#allocation5 + $0xa88] sm:$0xff]
    %v541 = vld [vmem:[#allocation5 + $0xa90] sm:$0xff]
    %v542 = vld [vmem:[#allocation5 + $0xa98] sm:$0xff]
    %v543 = vld [vmem:[#allocation5 + $0xaa0] sm:$0xff]
    %v544 = vld [vmem:[#allocation5 + $0xaa8] sm:$0xff]
    %v545 = vld [vmem:[#allocation5 + $0xab0] sm:$0xff]
    %v546 = vld [vmem:[#allocation5 + $0xab8] sm:$0xff]
    %v547 = vld [vmem:[#allocation5 + $0xac0] sm:$0xff]
    %v548 = vld [vmem:[#allocation5 + $0xac8] sm:$0xff]
    %v549 = vld [vmem:[#allocation5 + $0xad0] sm:$0xff]
    %v550 = vld [vmem:[#allocation5 + $0xad8] sm:$0xff]
    %v551 = vld [vmem:[#allocation5 + $0xae0] sm:$0xff]
    %v552 = vld [vmem:[#allocation5 + $0xae8] sm:$0xff]
    %v553 = vld [vmem:[#allocation5 + $0xaf0] sm:$0xff]
    %v554 = vld [vmem:[#allocation5 + $0xaf8] sm:$0xff]
    %v555 = vld [vmem:[#allocation5 + $0xb00] sm:$0xff]
    %v556 = vld [vmem:[#allocation5 + $0xb08] sm:$0xff]
    %v557 = vld [vmem:[#allocation5 + $0xb10] sm:$0xff]
    %v558 = vld [vmem:[#allocation5 + $0xb18] sm:$0xff]
    %v559 = vld [vmem:[#allocation5 + $0xb20] sm:$0xff]
    %v560 = vld [vmem:[#allocation5 + $0xb28] sm:$0xff]
    %v561 = vld [vmem:[#allocation5 + $0xb30] sm:$0xff]
    %v562 = vld [vmem:[#allocation5 + $0xb38] sm:$0xff]
    %v563 = vld [vmem:[#allocation5 + $0xb40] sm:$0xff]
    %v564 = vld [vmem:[#allocation5 + $0xb48] sm:$0xff]
    %v565 = vld [vmem:[#allocation5 + $0xb50] sm:$0xff]
    %v566 = vld [vmem:[#allocation5 + $0xb58] sm:$0xff]
    %v567 = vld [vmem:[#allocation5 + $0xb60] sm:$0xff]
    %v568 = vld [vmem:[#allocation5 + $0xb68] sm:$0xff]
    %v569 = vld [vmem:[#allocation5 + $0xb70] sm:$0xff]
    %v570 = vld [vmem:[#allocation5 + $0xb78] sm:$0xff]
    %v571 = vld [vmem:[#allocation5 + $0xb80] sm:$0xff]
    %v572 = vld [vmem:[#allocation5 + $0xb88] sm:$0xff]
    %v573 = vld [vmem:[#allocation5 + $0xb90] sm:$0xff]
    %v574 = vld [vmem:[#allocation5 + $0xb98] sm:$0xff]
    %v575 = vld [vmem:[#allocation5 + $0xba0] sm:$0xff]
    %v576 = vld [vmem:[#allocation5 + $0xba8] sm:$0xff]
    %v577 = vld [vmem:[#allocation5 + $0xbb0] sm:$0xff]
    %v578 = vld [vmem:[#allocation5 + $0xbb8] sm:$0xff]
    %v579 = vld [vmem:[#allocation5 + $0xbc0] sm:$0xff]
    %v580 = vld [vmem:[#allocation5 + $0xbc8] sm:$0xff]
    %v581 = vld [vmem:[#allocation5 + $0xbd0] sm:$0xff]
    %v582 = vld [vmem:[#allocation5 + $0xbd8] sm:$0xff]
    %v583 = vld [vmem:[#allocation5 + $0xbe0] sm:$0xff]
    %v584 = vld [vmem:[#allocation5 + $0xbe8] sm:$0xff]
    %v585 = vld [vmem:[#allocation5 + $0xbf0] sm:$0xff]
    %v586 = vld [vmem:[#allocation5 + $0xbf8] sm:$0xff]
    %v587 = vld [vmem:[#allocation5 + $0xc00] sm:$0xff]
    %v588 = vld [vmem:[#allocation5 + $0xc08] sm:$0xff]
    %v589 = vld [vmem:[#allocation5 + $0xc10] sm:$0xff]
    %v590 = vld [vmem:[#allocation5 + $0xc18] sm:$0xff]
    %v591 = vld [vmem:[#allocation5 + $0xc20] sm:$0xff]
    %v592 = vld [vmem:[#allocation5 + $0xc28] sm:$0xff]
    %v593 = vld [vmem:[#allocation5 + $0xc30] sm:$0xff]
    %v594 = vld [vmem:[#allocation5 + $0xc38] sm:$0xff]
    %v595 = vld [vmem:[#allocation5 + $0xc40] sm:$0xff]
    %v596 = vld [vmem:[#allocation5 + $0xc48] sm:$0xff]
    %v597 = vld [vmem:[#allocation5 + $0xc50] sm:$0xff]
    %v598 = vld [vmem:[#allocation5 + $0xc58] sm:$0xff]
    %v599 = vld [vmem:[#allocation5 + $0xc60] sm:$0xff]
    %v600 = vld [vmem:[#allocation5 + $0xc68] sm:$0xff]
    %v601 = vld [vmem:[#allocation5 + $0xc70] sm:$0xff]
    %v602 = vld [vmem:[#allocation5 + $0xc78] sm:$0xff]
    %v603 = vld [vmem:[#allocation5 + $0xc80] sm:$0xff]
    %v604 = vld [vmem:[#allocation5 + $0xc88] sm:$0xff]
    %v605 = vld [vmem:[#allocation5 + $0xc90] sm:$0xff]
    %v606 = vld [vmem:[#allocation5 + $0xc98] sm:$0xff]
    %v607 = vld [vmem:[#allocation5 + $0xca0] sm:$0xff]
    %v608 = vld [vmem:[#allocation5 + $0xca8] sm:$0xff]
    %v609 = vld [vmem:[#allocation5 + $0xcb0] sm:$0xff]
    %v610 = vld [vmem:[#allocation5 + $0xcb8] sm:$0xff]
    %v611 = vld [vmem:[#allocation5 + $0xcc0] sm:$0xff]
    %v612 = vld [vmem:[#allocation5 + $0xcc8] sm:$0xff]
    %v613 = vld [vmem:[#allocation5 + $0xcd0] sm:$0xff]
    %v614 = vld [vmem:[#allocation5 + $0xcd8] sm:$0xff]
    %v615 = vld [vmem:[#allocation5 + $0xce0] sm:$0xff]
    %v616 = vld [vmem:[#allocation5 + $0xce8] sm:$0xff]
    %v617 = vld [vmem:[#allocation5 + $0xcf0] sm:$0xff]
    %v618 = vld [vmem:[#allocation5 + $0xcf8] sm:$0xff]
    %v619 = vld [vmem:[#allocation5 + $0xd00] sm:$0xff]
    %v620 = vld [vmem:[#allocation5 + $0xd08] sm:$0xff]
    %v621 = vld [vmem:[#allocation5 + $0xd10] sm:$0xff]
    %v622 = vld [vmem:[#allocation5 + $0xd18] sm:$0xff]
    %v623 = vld [vmem:[#allocation5 + $0xd20] sm:$0xff]
    %v624 = vld [vmem:[#allocation5 + $0xd28] sm:$0xff]
    %v625 = vld [vmem:[#allocation5 + $0xd30] sm:$0xff]
    %v626 = vld [vmem:[#allocation5 + $0xd38] sm:$0xff]
    %v627 = vld [vmem:[#allocation5 + $0xd40] sm:$0xff]
    %v628 = vld [vmem:[#allocation5 + $0xd48] sm:$0xff]
    %v629 = vld [vmem:[#allocation5 + $0xd50] sm:$0xff]
    %v630 = vld [vmem:[#allocation5 + $0xd58] sm:$0xff]
    %v631 = vld [vmem:[#allocation5 + $0xd60] sm:$0xff]
    %v632 = vld [vmem:[#allocation5 + $0xd68] sm:$0xff]
    %v633 = vld [vmem:[#allocation5 + $0xd70] sm:$0xff]
    %v634 = vld [vmem:[#allocation5 + $0xd78] sm:$0xff]
    %v635 = vld [vmem:[#allocation5 + $0xd80] sm:$0xff]
    %v636 = vld [vmem:[#allocation5 + $0xd88] sm:$0xff]
    %v637 = vld [vmem:[#allocation5 + $0xd90] sm:$0xff]
    %v638 = vld [vmem:[#allocation5 + $0xd98] sm:$0xff]
    %v639 = vld [vmem:[#allocation5 + $0xda0] sm:$0xff]
    %v640 = vld [vmem:[#allocation5 + $0xda8] sm:$0xff]
    %v641 = vld [vmem:[#allocation5 + $0xdb0] sm:$0xff]
    %v642 = vld [vmem:[#allocation5 + $0xdb8] sm:$0xff]
    %v643 = vld [vmem:[#allocation5 + $0xdc0] sm:$0xff]
    %v644 = vld [vmem:[#allocation5 + $0xdc8] sm:$0xff]
    %v645 = vld [vmem:[#allocation5 + $0xdd0] sm:$0xff]
    %v646 = vld [vmem:[#allocation5 + $0xdd8] sm:$0xff]
    %v647 = vld [vmem:[#allocation5 + $0xde0] sm:$0xff]
    %v648 = vld [vmem:[#allocation5 + $0xde8] sm:$0xff]
    %v649 = vld [vmem:[#allocation5 + $0xdf0] sm:$0xff]
    %v650 = vld [vmem:[#allocation5 + $0xdf8] sm:$0xff]
    %v651 = vld [vmem:[#allocation5 + $0xe00] sm:$0xff]
    %v652 = vld [vmem:[#allocation5 + $0xe08] sm:$0xff]
    %v653 = vld [vmem:[#allocation5 + $0xe10] sm:$0xff]
    %v654 = vld [vmem:[#allocation5 + $0xe18] sm:$0xff]
    %v655 = vld [vmem:[#allocation5 + $0xe20] sm:$0xff]
    %v656 = vld [vmem:[#allocation5 + $0xe28] sm:$0xff]
    %v657 = vld [vmem:[#allocation5 + $0xe30] sm:$0xff]
    %v658 = vld [vmem:[#allocation5 + $0xe38] sm:$0xff]
    %v659 = vld [vmem:[#allocation5 + $0xe40] sm:$0xff]
    %v660 = vld [vmem:[#allocation5 + $0xe48] sm:$0xff]
    %v661 = vld [vmem:[#allocation5 + $0xe50] sm:$0xff]
    %v662 = vld [vmem:[#allocation5 + $0xe58] sm:$0xff]
    %v663 = vld [vmem:[#allocation5 + $0xe60] sm:$0xff]
    %v664 = vld [vmem:[#allocation5 + $0xe68] sm:$0xff]
    %v665 = vld [vmem:[#allocation5 + $0xe70] sm:$0xff]
    %v666 = vld [vmem:[#allocation5 + $0xe78] sm:$0xff]
    %v667 = vld [vmem:[#allocation5 + $0xe80] sm:$0xff]
    %v668 = vld [vmem:[#allocation5 + $0xe88] sm:$0xff]
    %v669 = vld [vmem:[#allocation5 + $0xe90] sm:$0xff]
    %v670 = vld [vmem:[#allocation5 + $0xe98] sm:$0xff]
    %v671 = vld [vmem:[#allocation5 + $0xea0] sm:$0xff]
    %v672 = vld [vmem:[#allocation5 + $0xea8] sm:$0xff]
    %v673 = vld [vmem:[#allocation5 + $0xeb0] sm:$0xff]
    %v674 = vld [vmem:[#allocation5 + $0xeb8] sm:$0xff]
    %v675 = vld [vmem:[#allocation5 + $0xec0] sm:$0xff]
    %v676 = vld [vmem:[#allocation5 + $0xec8] sm:$0xff]
    %v677 = vld [vmem:[#allocation5 + $0xed0] sm:$0xff]
    %v678 = vld [vmem:[#allocation5 + $0xed8] sm:$0xff]
    %v679 = vld [vmem:[#allocation5 + $0xee0] sm:$0xff]
    %v680 = vld [vmem:[#allocation5 + $0xee8] sm:$0xff]
    %v681 = vld [vmem:[#allocation5 + $0xef0] sm:$0xff]
    %v682 = vld [vmem:[#allocation5 + $0xef8] sm:$0xff]
    %v683 = vld [vmem:[#allocation5 + $0xf00] sm:$0xff]
    %v684 = vld [vmem:[#allocation5 + $0xf08] sm:$0xff]
    %v685 = vld [vmem:[#allocation5 + $0xf10] sm:$0xff]
    %v686 = vld [vmem:[#allocation5 + $0xf18] sm:$0xff]
    %v687 = vld [vmem:[#allocation5 + $0xf20] sm:$0xff]
    %v688 = vld [vmem:[#allocation5 + $0xf28] sm:$0xff]
    %v689 = vld [vmem:[#allocation5 + $0xf30] sm:$0xff]
    %v690 = vld [vmem:[#allocation5 + $0xf38] sm:$0xff]
    %v691 = vld [vmem:[#allocation5 + $0xf40] sm:$0xff]
    %v692 = vld [vmem:[#allocation5 + $0xf48] sm:$0xff]
    %v693 = vld [vmem:[#allocation5 + $0xf50] sm:$0xff]
    %v694 = vld [vmem:[#allocation5 + $0xf58] sm:$0xff]
    %v695 = vld [vmem:[#allocation5 + $0xf60] sm:$0xff]
    %v696 = vld [vmem:[#allocation5 + $0xf68] sm:$0xff]
    %v697 = vld [vmem:[#allocation5 + $0xf70] sm:$0xff]
    %v698 = vld [vmem:[#allocation5 + $0xf78] sm:$0xff]
    %v699 = vld [vmem:[#allocation5 + $0xf80] sm:$0xff]
    %v700 = vld [vmem:[#allocation5 + $0xf88] sm:$0xff]
    %v701 = vld [vmem:[#allocation5 + $0xf90] sm:$0xff]
    %v702 = vld [vmem:[#allocation5 + $0xf98] sm:$0xff]
    %v703 = vld [vmem:[#allocation5 + $0xfa0] sm:$0xff]
    %v704 = vld [vmem:[#allocation5 + $0xfa8] sm:$0xff]
    %v705 = vld [vmem:[#allocation5 + $0xfb0] sm:$0xff]
    %v706 = vld [vmem:[#allocation5 + $0xfb8] sm:$0xff]
    %v707 = vld [vmem:[#allocation5 + $0xfc0] sm:$0xff]
    %v708 = vld [vmem:[#allocation5 + $0xfc8] sm:$0xff]
    %v709 = vld [vmem:[#allocation5 + $0xfd0] sm:$0xff]
    %v710 = vld [vmem:[#allocation5 + $0xfd8] sm:$0xff]
    %v711 = vld [vmem:[#allocation5 + $0xfe0] sm:$0xff]
    %v712 = vld [vmem:[#allocation5 + $0xfe8] sm:$0xff]
    %v713 = vld [vmem:[#allocation5 + $0xff0] sm:$0xff]
    %v714 = vld [vmem:[#allocation5 + $0xff8] sm:$0xff]
    %v715 = vld [vmem:[#allocation7] sm:$0xff]
    %v716 = vld [vmem:[#allocation7 + $0x8] sm:$0xff]
    %v719 = vperm.slane %v715, 0
    %v720 = vperm.slane %v715, 1
    %v721 = vperm.slane %v715, 2
    %v722 = vperm.slane %v715, 3
    %v723 = vperm.slane %v715, 4
    %v724 = vperm.slane %v715, 5
    %v725 = vperm.slane %v715, 6
    %v726 = vperm.slane %v715, 7
    %v727 = vperm.slane %v716, 0
    %v728 = vperm.slane %v716, 1
    %v729 = vperm.slane %v716, 2
    %v730 = vperm.slane %v716, 3
    %v731 = vperm.slane %v716, 4
    %v732 = vperm.slane %v716, 5
    %v733 = vperm.slane %v716, 6
    %v734 = vperm.slane %v716, 7
    %v759 = vunpack.c.l.b16 %v195
    %v760 = vunpack.c.h.b16 %v195
    %v761 = vunpack.c.l.b16 %v196
    %v762 = vunpack.c.h.b16 %v196
    %v763 = vunpack.c.l.b16 %v197
    %v764 = vunpack.c.h.b16 %v197
    %v765 = vunpack.c.l.b16 %v198
    %v766 = vunpack.c.h.b16 %v198
    %v767 = vunpack.c.l.b16 %v199
    %v768 = vunpack.c.h.b16 %v199
    %v769 = vunpack.c.l.b16 %v200
    %v770 = vunpack.c.h.b16 %v200
    %v771 = vunpack.c.l.b16 %v201
    %v772 = vunpack.c.h.b16 %v201
    %v773 = vunpack.c.l.b16 %v202
    %v774 = vunpack.c.h.b16 %v202
    %v775 = vpack.c.b16 %v763, %v759
    %v776 = vpack.c.b16 %v764, %v760
    %v777 = vpack.c.b16 %v765, %v761
    %v778 = vpack.c.b16 %v766, %v762
    %v779 = vpack.c.b16 %v771, %v767
    %v780 = vpack.c.b16 %v772, %v768
    %v781 = vpack.c.b16 %v773, %v769
    %v782 = vpack.c.b16 %v774, %v770
    %v1303 = vunpack.c.l.b16 %v203
    %v1304 = vunpack.c.h.b16 %v203
    %v1305 = vunpack.c.l.b16 %v204
    %v1306 = vunpack.c.h.b16 %v204
    %v1307 = vunpack.c.l.b16 %v205
    %v1308 = vunpack.c.h.b16 %v205
    %v1309 = vunpack.c.l.b16 %v206
    %v1310 = vunpack.c.h.b16 %v206
    %v1311 = vunpack.c.l.b16 %v207
    %v1312 = vunpack.c.h.b16 %v207
    %v1313 = vunpack.c.l.b16 %v208
    %v1314 = vunpack.c.h.b16 %v208
    %v1315 = vunpack.c.l.b16 %v209
    %v1316 = vunpack.c.h.b16 %v209
    %v1317 = vunpack.c.l.b16 %v210
    %v1318 = vunpack.c.h.b16 %v210
    %v1319 = vunpack.c.l.b16 %v211
    %v1320 = vunpack.c.h.b16 %v211
    %v1321 = vunpack.c.l.b16 %v212
    %v1322 = vunpack.c.h.b16 %v212
    %v1323 = vunpack.c.l.b16 %v213
    %v1324 = vunpack.c.h.b16 %v213
    %v1325 = vunpack.c.l.b16 %v214
    %v1326 = vunpack.c.h.b16 %v214
    %v1327 = vunpack.c.l.b16 %v215
    %v1328 = vunpack.c.h.b16 %v215
    %v1329 = vunpack.c.l.b16 %v216
    %v1330 = vunpack.c.h.b16 %v216
    %v1331 = vunpack.c.l.b16 %v217
    %v1332 = vunpack.c.h.b16 %v217
    %v1333 = vunpack.c.l.b16 %v218
    %v1334 = vunpack.c.h.b16 %v218
    %v1335 = vunpack.c.l.b16 %v219
    %v1336 = vunpack.c.h.b16 %v219
    %v1337 = vunpack.c.l.b16 %v220
    %v1338 = vunpack.c.h.b16 %v220
    %v1339 = vunpack.c.l.b16 %v221
    %v1340 = vunpack.c.h.b16 %v221
    %v1341 = vunpack.c.l.b16 %v222
    %v1342 = vunpack.c.h.b16 %v222
    %v1343 = vunpack.c.l.b16 %v223
    %v1344 = vunpack.c.h.b16 %v223
    %v1345 = vunpack.c.l.b16 %v224
    %v1346 = vunpack.c.h.b16 %v224
    %v1347 = vunpack.c.l.b16 %v225
    %v1348 = vunpack.c.h.b16 %v225
    %v1349 = vunpack.c.l.b16 %v226
    %v1350 = vunpack.c.h.b16 %v226
    %v1351 = vunpack.c.l.b16 %v227
    %v1352 = vunpack.c.h.b16 %v227
    %v1353 = vunpack.c.l.b16 %v228
    %v1354 = vunpack.c.h.b16 %v228
    %v1355 = vunpack.c.l.b16 %v229
    %v1356 = vunpack.c.h.b16 %v229
    %v1357 = vunpack.c.l.b16 %v230
    %v1358 = vunpack.c.h.b16 %v230
    %v1359 = vunpack.c.l.b16 %v231
    %v1360 = vunpack.c.h.b16 %v231
    %v1361 = vunpack.c.l.b16 %v232
    %v1362 = vunpack.c.h.b16 %v232
    %v1363 = vunpack.c.l.b16 %v233
    %v1364 = vunpack.c.h.b16 %v233
    %v1365 = vunpack.c.l.b16 %v234
    %v1366 = vunpack.c.h.b16 %v234
    %v1367 = vunpack.c.l.b16 %v235
    %v1368 = vunpack.c.h.b16 %v235
    %v1369 = vunpack.c.l.b16 %v236
    %v1370 = vunpack.c.h.b16 %v236
    %v1371 = vunpack.c.l.b16 %v237
    %v1372 = vunpack.c.h.b16 %v237
    %v1373 = vunpack.c.l.b16 %v238
    %v1374 = vunpack.c.h.b16 %v238
    %v1375 = vunpack.c.l.b16 %v239
    %v1376 = vunpack.c.h.b16 %v239
    %v1377 = vunpack.c.l.b16 %v240
    %v1378 = vunpack.c.h.b16 %v240
    %v1379 = vunpack.c.l.b16 %v241
    %v1380 = vunpack.c.h.b16 %v241
    %v1381 = vunpack.c.l.b16 %v242
    %v1382 = vunpack.c.h.b16 %v242
    %v1383 = vunpack.c.l.b16 %v243
    %v1384 = vunpack.c.h.b16 %v243
    %v1385 = vunpack.c.l.b16 %v244
    %v1386 = vunpack.c.h.b16 %v244
    %v1387 = vunpack.c.l.b16 %v245
    %v1388 = vunpack.c.h.b16 %v245
    %v1389 = vunpack.c.l.b16 %v246
    %v1390 = vunpack.c.h.b16 %v246
    %v1391 = vunpack.c.l.b16 %v247
    %v1392 = vunpack.c.h.b16 %v247
    %v1393 = vunpack.c.l.b16 %v248
    %v1394 = vunpack.c.h.b16 %v248
    %v1395 = vunpack.c.l.b16 %v249
    %v1396 = vunpack.c.h.b16 %v249
    %v1397 = vunpack.c.l.b16 %v250
    %v1398 = vunpack.c.h.b16 %v250
    %v1399 = vunpack.c.l.b16 %v251
    %v1400 = vunpack.c.h.b16 %v251
    %v1401 = vunpack.c.l.b16 %v252
    %v1402 = vunpack.c.h.b16 %v252
    %v1403 = vunpack.c.l.b16 %v253
    %v1404 = vunpack.c.h.b16 %v253
    %v1405 = vunpack.c.l.b16 %v254
    %v1406 = vunpack.c.h.b16 %v254
    %v1407 = vunpack.c.l.b16 %v255
    %v1408 = vunpack.c.h.b16 %v255
    %v1409 = vunpack.c.l.b16 %v256
    %v1410 = vunpack.c.h.b16 %v256
    %v1411 = vunpack.c.l.b16 %v257
    %v1412 = vunpack.c.h.b16 %v257
    %v1413 = vunpack.c.l.b16 %v258
    %v1414 = vunpack.c.h.b16 %v258
    %v1415 = vunpack.c.l.b16 %v259
    %v1416 = vunpack.c.h.b16 %v259
    %v1417 = vunpack.c.l.b16 %v260
    %v1418 = vunpack.c.h.b16 %v260
    %v1419 = vunpack.c.l.b16 %v261
    %v1420 = vunpack.c.h.b16 %v261
    %v1421 = vunpack.c.l.b16 %v262
    %v1422 = vunpack.c.h.b16 %v262
    %v1423 = vunpack.c.l.b16 %v263
    %v1424 = vunpack.c.h.b16 %v263
    %v1425 = vunpack.c.l.b16 %v264
    %v1426 = vunpack.c.h.b16 %v264
    %v1427 = vunpack.c.l.b16 %v265
    %v1428 = vunpack.c.h.b16 %v265
    %v1429 = vunpack.c.l.b16 %v266
    %v1430 = vunpack.c.h.b16 %v266
    %v1431 = vunpack.c.l.b16 %v267
    %v1432 = vunpack.c.h.b16 %v267
    %v1433 = vunpack.c.l.b16 %v268
    %v1434 = vunpack.c.h.b16 %v268
    %v1435 = vunpack.c.l.b16 %v269
    %v1436 = vunpack.c.h.b16 %v269
    %v1437 = vunpack.c.l.b16 %v270
    %v1438 = vunpack.c.h.b16 %v270
    %v1439 = vunpack.c.l.b16 %v271
    %v1440 = vunpack.c.h.b16 %v271
    %v1441 = vunpack.c.l.b16 %v272
    %v1442 = vunpack.c.h.b16 %v272
    %v1443 = vunpack.c.l.b16 %v273
    %v1444 = vunpack.c.h.b16 %v273
    %v1445 = vunpack.c.l.b16 %v274
    %v1446 = vunpack.c.h.b16 %v274
    %v1447 = vunpack.c.l.b16 %v275
    %v1448 = vunpack.c.h.b16 %v275
    %v1449 = vunpack.c.l.b16 %v276
    %v1450 = vunpack.c.h.b16 %v276
    %v1451 = vunpack.c.l.b16 %v277
    %v1452 = vunpack.c.h.b16 %v277
    %v1453 = vunpack.c.l.b16 %v278
    %v1454 = vunpack.c.h.b16 %v278
    %v1455 = vunpack.c.l.b16 %v279
    %v1456 = vunpack.c.h.b16 %v279
    %v1457 = vunpack.c.l.b16 %v280
    %v1458 = vunpack.c.h.b16 %v280
    %v1459 = vunpack.c.l.b16 %v281
    %v1460 = vunpack.c.h.b16 %v281
    %v1461 = vunpack.c.l.b16 %v282
    %v1462 = vunpack.c.h.b16 %v282
    %v1463 = vunpack.c.l.b16 %v283
    %v1464 = vunpack.c.h.b16 %v283
    %v1465 = vunpack.c.l.b16 %v284
    %v1466 = vunpack.c.h.b16 %v284
    %v1467 = vunpack.c.l.b16 %v285
    %v1468 = vunpack.c.h.b16 %v285
    %v1469 = vunpack.c.l.b16 %v286
    %v1470 = vunpack.c.h.b16 %v286
    %v1471 = vunpack.c.l.b16 %v287
    %v1472 = vunpack.c.h.b16 %v287
    %v1473 = vunpack.c.l.b16 %v288
    %v1474 = vunpack.c.h.b16 %v288
    %v1475 = vunpack.c.l.b16 %v289
    %v1476 = vunpack.c.h.b16 %v289
    %v1477 = vunpack.c.l.b16 %v290
    %v1478 = vunpack.c.h.b16 %v290
    %v1479 = vunpack.c.l.b16 %v291
    %v1480 = vunpack.c.h.b16 %v291
    %v1481 = vunpack.c.l.b16 %v292
    %v1482 = vunpack.c.h.b16 %v292
    %v1483 = vunpack.c.l.b16 %v293
    %v1484 = vunpack.c.h.b16 %v293
    %v1485 = vunpack.c.l.b16 %v294
    %v1486 = vunpack.c.h.b16 %v294
    %v1487 = vunpack.c.l.b16 %v295
    %v1488 = vunpack.c.h.b16 %v295
    %v1489 = vunpack.c.l.b16 %v296
    %v1490 = vunpack.c.h.b16 %v296
    %v1491 = vunpack.c.l.b16 %v297
    %v1492 = vunpack.c.h.b16 %v297
    %v1493 = vunpack.c.l.b16 %v298
    %v1494 = vunpack.c.h.b16 %v298
    %v1495 = vunpack.c.l.b16 %v299
    %v1496 = vunpack.c.h.b16 %v299
    %v1497 = vunpack.c.l.b16 %v300
    %v1498 = vunpack.c.h.b16 %v300
    %v1499 = vunpack.c.l.b16 %v301
    %v1500 = vunpack.c.h.b16 %v301
    %v1501 = vunpack.c.l.b16 %v302
    %v1502 = vunpack.c.h.b16 %v302
    %v1503 = vunpack.c.l.b16 %v303
    %v1504 = vunpack.c.h.b16 %v303
    %v1505 = vunpack.c.l.b16 %v304
    %v1506 = vunpack.c.h.b16 %v304
    %v1507 = vunpack.c.l.b16 %v305
    %v1508 = vunpack.c.h.b16 %v305
    %v1509 = vunpack.c.l.b16 %v306
    %v1510 = vunpack.c.h.b16 %v306
    %v1511 = vunpack.c.l.b16 %v307
    %v1512 = vunpack.c.h.b16 %v307
    %v1513 = vunpack.c.l.b16 %v308
    %v1514 = vunpack.c.h.b16 %v308
    %v1515 = vunpack.c.l.b16 %v309
    %v1516 = vunpack.c.h.b16 %v309
    %v1517 = vunpack.c.l.b16 %v310
    %v1518 = vunpack.c.h.b16 %v310
    %v1519 = vunpack.c.l.b16 %v311
    %v1520 = vunpack.c.h.b16 %v311
    %v1521 = vunpack.c.l.b16 %v312
    %v1522 = vunpack.c.h.b16 %v312
    %v1523 = vunpack.c.l.b16 %v313
    %v1524 = vunpack.c.h.b16 %v313
    %v1525 = vunpack.c.l.b16 %v314
    %v1526 = vunpack.c.h.b16 %v314
    %v1527 = vunpack.c.l.b16 %v315
    %v1528 = vunpack.c.h.b16 %v315
    %v1529 = vunpack.c.l.b16 %v316
    %v1530 = vunpack.c.h.b16 %v316
    %v1531 = vunpack.c.l.b16 %v317
    %v1532 = vunpack.c.h.b16 %v317
    %v1533 = vunpack.c.l.b16 %v318
    %v1534 = vunpack.c.h.b16 %v318
    %v1535 = vunpack.c.l.b16 %v319
    %v1536 = vunpack.c.h.b16 %v319
    %v1537 = vunpack.c.l.b16 %v320
    %v1538 = vunpack.c.h.b16 %v320
    %v1539 = vunpack.c.l.b16 %v321
    %v1540 = vunpack.c.h.b16 %v321
    %v1541 = vunpack.c.l.b16 %v322
    %v1542 = vunpack.c.h.b16 %v322
    %v1543 = vunpack.c.l.b16 %v323
    %v1544 = vunpack.c.h.b16 %v323
    %v1545 = vunpack.c.l.b16 %v324
    %v1546 = vunpack.c.h.b16 %v324
    %v1547 = vunpack.c.l.b16 %v325
    %v1548 = vunpack.c.h.b16 %v325
    %v1549 = vunpack.c.l.b16 %v326
    %v1550 = vunpack.c.h.b16 %v326
    %v1551 = vunpack.c.l.b16 %v327
    %v1552 = vunpack.c.h.b16 %v327
    %v1553 = vunpack.c.l.b16 %v328
    %v1554 = vunpack.c.h.b16 %v328
    %v1555 = vunpack.c.l.b16 %v329
    %v1556 = vunpack.c.h.b16 %v329
    %v1557 = vunpack.c.l.b16 %v330
    %v1558 = vunpack.c.h.b16 %v330
    %v1559 = vunpack.c.l.b16 %v331
    %v1560 = vunpack.c.h.b16 %v331
    %v1561 = vunpack.c.l.b16 %v332
    %v1562 = vunpack.c.h.b16 %v332
    %v1563 = vunpack.c.l.b16 %v333
    %v1564 = vunpack.c.h.b16 %v333
    %v1565 = vunpack.c.l.b16 %v334
    %v1566 = vunpack.c.h.b16 %v334
    %v1567 = vunpack.c.l.b16 %v335
    %v1568 = vunpack.c.h.b16 %v335
    %v1569 = vunpack.c.l.b16 %v336
    %v1570 = vunpack.c.h.b16 %v336
    %v1571 = vunpack.c.l.b16 %v337
    %v1572 = vunpack.c.h.b16 %v337
    %v1573 = vunpack.c.l.b16 %v338
    %v1574 = vunpack.c.h.b16 %v338
    %v1575 = vunpack.c.l.b16 %v339
    %v1576 = vunpack.c.h.b16 %v339
    %v1577 = vunpack.c.l.b16 %v340
    %v1578 = vunpack.c.h.b16 %v340
    %v1579 = vunpack.c.l.b16 %v341
    %v1580 = vunpack.c.h.b16 %v341
    %v1581 = vunpack.c.l.b16 %v342
    %v1582 = vunpack.c.h.b16 %v342
    %v1583 = vunpack.c.l.b16 %v343
    %v1584 = vunpack.c.h.b16 %v343
    %v1585 = vunpack.c.l.b16 %v344
    %v1586 = vunpack.c.h.b16 %v344
    %v1587 = vunpack.c.l.b16 %v345
    %v1588 = vunpack.c.h.b16 %v345
    %v1589 = vunpack.c.l.b16 %v346
    %v1590 = vunpack.c.h.b16 %v346
    %v1591 = vunpack.c.l.b16 %v347
    %v1592 = vunpack.c.h.b16 %v347
    %v1593 = vunpack.c.l.b16 %v348
    %v1594 = vunpack.c.h.b16 %v348
    %v1595 = vunpack.c.l.b16 %v349
    %v1596 = vunpack.c.h.b16 %v349
    %v1597 = vunpack.c.l.b16 %v350
    %v1598 = vunpack.c.h.b16 %v350
    %v1599 = vunpack.c.l.b16 %v351
    %v1600 = vunpack.c.h.b16 %v351
    %v1601 = vunpack.c.l.b16 %v352
    %v1602 = vunpack.c.h.b16 %v352
    %v1603 = vunpack.c.l.b16 %v353
    %v1604 = vunpack.c.h.b16 %v353
    %v1605 = vunpack.c.l.b16 %v354
    %v1606 = vunpack.c.h.b16 %v354
    %v1607 = vunpack.c.l.b16 %v355
    %v1608 = vunpack.c.h.b16 %v355
    %v1609 = vunpack.c.l.b16 %v356
    %v1610 = vunpack.c.h.b16 %v356
    %v1611 = vunpack.c.l.b16 %v357
    %v1612 = vunpack.c.h.b16 %v357
    %v1613 = vunpack.c.l.b16 %v358
    %v1614 = vunpack.c.h.b16 %v358
    %v1615 = vunpack.c.l.b16 %v359
    %v1616 = vunpack.c.h.b16 %v359
    %v1617 = vunpack.c.l.b16 %v360
    %v1618 = vunpack.c.h.b16 %v360
    %v1619 = vunpack.c.l.b16 %v361
    %v1620 = vunpack.c.h.b16 %v361
    %v1621 = vunpack.c.l.b16 %v362
    %v1622 = vunpack.c.h.b16 %v362
    %v1623 = vunpack.c.l.b16 %v363
    %v1624 = vunpack.c.h.b16 %v363
    %v1625 = vunpack.c.l.b16 %v364
    %v1626 = vunpack.c.h.b16 %v364
    %v1627 = vunpack.c.l.b16 %v365
    %v1628 = vunpack.c.h.b16 %v365
    %v1629 = vunpack.c.l.b16 %v366
    %v1630 = vunpack.c.h.b16 %v366
    %v1631 = vunpack.c.l.b16 %v367
    %v1632 = vunpack.c.h.b16 %v367
    %v1633 = vunpack.c.l.b16 %v368
    %v1634 = vunpack.c.h.b16 %v368
    %v1635 = vunpack.c.l.b16 %v369
    %v1636 = vunpack.c.h.b16 %v369
    %v1637 = vunpack.c.l.b16 %v370
    %v1638 = vunpack.c.h.b16 %v370
    %v1639 = vunpack.c.l.b16 %v371
    %v1640 = vunpack.c.h.b16 %v371
    %v1641 = vunpack.c.l.b16 %v372
    %v1642 = vunpack.c.h.b16 %v372
    %v1643 = vunpack.c.l.b16 %v373
    %v1644 = vunpack.c.h.b16 %v373
    %v1645 = vunpack.c.l.b16 %v374
    %v1646 = vunpack.c.h.b16 %v374
    %v1647 = vunpack.c.l.b16 %v375
    %v1648 = vunpack.c.h.b16 %v375
    %v1649 = vunpack.c.l.b16 %v376
    %v1650 = vunpack.c.h.b16 %v376
    %v1651 = vunpack.c.l.b16 %v377
    %v1652 = vunpack.c.h.b16 %v377
    %v1653 = vunpack.c.l.b16 %v378
    %v1654 = vunpack.c.h.b16 %v378
    %v1655 = vunpack.c.l.b16 %v379
    %v1656 = vunpack.c.h.b16 %v379
    %v1657 = vunpack.c.l.b16 %v380
    %v1658 = vunpack.c.h.b16 %v380
    %v1659 = vunpack.c.l.b16 %v381
    %v1660 = vunpack.c.h.b16 %v381
    %v1661 = vunpack.c.l.b16 %v382
    %v1662 = vunpack.c.h.b16 %v382
    %v1663 = vunpack.c.l.b16 %v383
    %v1664 = vunpack.c.h.b16 %v383
    %v1665 = vunpack.c.l.b16 %v384
    %v1666 = vunpack.c.h.b16 %v384
    %v1667 = vunpack.c.l.b16 %v385
    %v1668 = vunpack.c.h.b16 %v385
    %v1669 = vunpack.c.l.b16 %v386
    %v1670 = vunpack.c.h.b16 %v386
    %v1671 = vunpack.c.l.b16 %v387
    %v1672 = vunpack.c.h.b16 %v387
    %v1673 = vunpack.c.l.b16 %v388
    %v1674 = vunpack.c.h.b16 %v388
    %v1675 = vunpack.c.l.b16 %v389
    %v1676 = vunpack.c.h.b16 %v389
    %v1677 = vunpack.c.l.b16 %v390
    %v1678 = vunpack.c.h.b16 %v390
    %v1679 = vunpack.c.l.b16 %v391
    %v1680 = vunpack.c.h.b16 %v391
    %v1681 = vunpack.c.l.b16 %v392
    %v1682 = vunpack.c.h.b16 %v392
    %v1683 = vunpack.c.l.b16 %v393
    %v1684 = vunpack.c.h.b16 %v393
    %v1685 = vunpack.c.l.b16 %v394
    %v1686 = vunpack.c.h.b16 %v394
    %v1687 = vunpack.c.l.b16 %v395
    %v1688 = vunpack.c.h.b16 %v395
    %v1689 = vunpack.c.l.b16 %v396
    %v1690 = vunpack.c.h.b16 %v396
    %v1691 = vunpack.c.l.b16 %v397
    %v1692 = vunpack.c.h.b16 %v397
    %v1693 = vunpack.c.l.b16 %v398
    %v1694 = vunpack.c.h.b16 %v398
    %v1695 = vunpack.c.l.b16 %v399
    %v1696 = vunpack.c.h.b16 %v399
    %v1697 = vunpack.c.l.b16 %v400
    %v1698 = vunpack.c.h.b16 %v400
    %v1699 = vunpack.c.l.b16 %v401
    %v1700 = vunpack.c.h.b16 %v401
    %v1701 = vunpack.c.l.b16 %v402
    %v1702 = vunpack.c.h.b16 %v402
    %v1703 = vunpack.c.l.b16 %v403
    %v1704 = vunpack.c.h.b16 %v403
    %v1705 = vunpack.c.l.b16 %v404
    %v1706 = vunpack.c.h.b16 %v404
    %v1707 = vunpack.c.l.b16 %v405
    %v1708 = vunpack.c.h.b16 %v405
    %v1709 = vunpack.c.l.b16 %v406
    %v1710 = vunpack.c.h.b16 %v406
    %v1711 = vunpack.c.l.b16 %v407
    %v1712 = vunpack.c.h.b16 %v407
    %v1713 = vunpack.c.l.b16 %v408
    %v1714 = vunpack.c.h.b16 %v408
    %v1715 = vunpack.c.l.b16 %v409
    %v1716 = vunpack.c.h.b16 %v409
    %v1717 = vunpack.c.l.b16 %v410
    %v1718 = vunpack.c.h.b16 %v410
    %v1719 = vunpack.c.l.b16 %v411
    %v1720 = vunpack.c.h.b16 %v411
    %v1721 = vunpack.c.l.b16 %v412
    %v1722 = vunpack.c.h.b16 %v412
    %v1723 = vunpack.c.l.b16 %v413
    %v1724 = vunpack.c.h.b16 %v413
    %v1725 = vunpack.c.l.b16 %v414
    %v1726 = vunpack.c.h.b16 %v414
    %v1727 = vunpack.c.l.b16 %v415
    %v1728 = vunpack.c.h.b16 %v415
    %v1729 = vunpack.c.l.b16 %v416
    %v1730 = vunpack.c.h.b16 %v416
    %v1731 = vunpack.c.l.b16 %v417
    %v1732 = vunpack.c.h.b16 %v417
    %v1733 = vunpack.c.l.b16 %v418
    %v1734 = vunpack.c.h.b16 %v418
    %v1735 = vunpack.c.l.b16 %v419
    %v1736 = vunpack.c.h.b16 %v419
    %v1737 = vunpack.c.l.b16 %v420
    %v1738 = vunpack.c.h.b16 %v420
    %v1739 = vunpack.c.l.b16 %v421
    %v1740 = vunpack.c.h.b16 %v421
    %v1741 = vunpack.c.l.b16 %v422
    %v1742 = vunpack.c.h.b16 %v422
    %v1743 = vunpack.c.l.b16 %v423
    %v1744 = vunpack.c.h.b16 %v423
    %v1745 = vunpack.c.l.b16 %v424
    %v1746 = vunpack.c.h.b16 %v424
    %v1747 = vunpack.c.l.b16 %v425
    %v1748 = vunpack.c.h.b16 %v425
    %v1749 = vunpack.c.l.b16 %v426
    %v1750 = vunpack.c.h.b16 %v426
    %v1751 = vunpack.c.l.b16 %v427
    %v1752 = vunpack.c.h.b16 %v427
    %v1753 = vunpack.c.l.b16 %v428
    %v1754 = vunpack.c.h.b16 %v428
    %v1755 = vunpack.c.l.b16 %v429
    %v1756 = vunpack.c.h.b16 %v429
    %v1757 = vunpack.c.l.b16 %v430
    %v1758 = vunpack.c.h.b16 %v430
    %v1759 = vunpack.c.l.b16 %v431
    %v1760 = vunpack.c.h.b16 %v431
    %v1761 = vunpack.c.l.b16 %v432
    %v1762 = vunpack.c.h.b16 %v432
    %v1763 = vunpack.c.l.b16 %v433
    %v1764 = vunpack.c.h.b16 %v433
    %v1765 = vunpack.c.l.b16 %v434
    %v1766 = vunpack.c.h.b16 %v434
    %v1767 = vunpack.c.l.b16 %v435
    %v1768 = vunpack.c.h.b16 %v435
    %v1769 = vunpack.c.l.b16 %v436
    %v1770 = vunpack.c.h.b16 %v436
    %v1771 = vunpack.c.l.b16 %v437
    %v1772 = vunpack.c.h.b16 %v437
    %v1773 = vunpack.c.l.b16 %v438
    %v1774 = vunpack.c.h.b16 %v438
    %v1775 = vunpack.c.l.b16 %v439
    %v1776 = vunpack.c.h.b16 %v439
    %v1777 = vunpack.c.l.b16 %v440
    %v1778 = vunpack.c.h.b16 %v440
    %v1779 = vunpack.c.l.b16 %v441
    %v1780 = vunpack.c.h.b16 %v441
    %v1781 = vunpack.c.l.b16 %v442
    %v1782 = vunpack.c.h.b16 %v442
    %v1783 = vunpack.c.l.b16 %v443
    %v1784 = vunpack.c.h.b16 %v443
    %v1785 = vunpack.c.l.b16 %v444
    %v1786 = vunpack.c.h.b16 %v444
    %v1787 = vunpack.c.l.b16 %v445
    %v1788 = vunpack.c.h.b16 %v445
    %v1789 = vunpack.c.l.b16 %v446
    %v1790 = vunpack.c.h.b16 %v446
    %v1791 = vunpack.c.l.b16 %v447
    %v1792 = vunpack.c.h.b16 %v447
    %v1793 = vunpack.c.l.b16 %v448
    %v1794 = vunpack.c.h.b16 %v448
    %v1795 = vunpack.c.l.b16 %v449
    %v1796 = vunpack.c.h.b16 %v449
    %v1797 = vunpack.c.l.b16 %v450
    %v1798 = vunpack.c.h.b16 %v450
    %v1799 = vunpack.c.l.b16 %v451
    %v1800 = vunpack.c.h.b16 %v451
    %v1801 = vunpack.c.l.b16 %v452
    %v1802 = vunpack.c.h.b16 %v452
    %v1803 = vunpack.c.l.b16 %v453
    %v1804 = vunpack.c.h.b16 %v453
    %v1805 = vunpack.c.l.b16 %v454
    %v1806 = vunpack.c.h.b16 %v454
    %v1807 = vunpack.c.l.b16 %v455
    %v1808 = vunpack.c.h.b16 %v455
    %v1809 = vunpack.c.l.b16 %v456
    %v1810 = vunpack.c.h.b16 %v456
    %v1811 = vunpack.c.l.b16 %v457
    %v1812 = vunpack.c.h.b16 %v457
    %v1813 = vunpack.c.l.b16 %v458
    %v1814 = vunpack.c.h.b16 %v458
    %v1815 = vunpack.c.l.b16 %v459
    %v1816 = vunpack.c.h.b16 %v459
    %v1817 = vunpack.c.l.b16 %v460
    %v1818 = vunpack.c.h.b16 %v460
    %v1819 = vunpack.c.l.b16 %v461
    %v1820 = vunpack.c.h.b16 %v461
    %v1821 = vunpack.c.l.b16 %v462
    %v1822 = vunpack.c.h.b16 %v462
    %v1823 = vunpack.c.l.b16 %v463
    %v1824 = vunpack.c.h.b16 %v463
    %v1825 = vunpack.c.l.b16 %v464
    %v1826 = vunpack.c.h.b16 %v464
    %v1827 = vunpack.c.l.b16 %v465
    %v1828 = vunpack.c.h.b16 %v465
    %v1829 = vunpack.c.l.b16 %v466
    %v1830 = vunpack.c.h.b16 %v466
    %v1831 = vunpack.c.l.b16 %v467
    %v1832 = vunpack.c.h.b16 %v467
    %v1833 = vunpack.c.l.b16 %v468
    %v1834 = vunpack.c.h.b16 %v468
    %v1835 = vunpack.c.l.b16 %v469
    %v1836 = vunpack.c.h.b16 %v469
    %v1837 = vunpack.c.l.b16 %v470
    %v1838 = vunpack.c.h.b16 %v470
    %v1839 = vunpack.c.l.b16 %v471
    %v1840 = vunpack.c.h.b16 %v471
    %v1841 = vunpack.c.l.b16 %v472
    %v1842 = vunpack.c.h.b16 %v472
    %v1843 = vunpack.c.l.b16 %v473
    %v1844 = vunpack.c.h.b16 %v473
    %v1845 = vunpack.c.l.b16 %v474
    %v1846 = vunpack.c.h.b16 %v474
    %v1847 = vunpack.c.l.b16 %v475
    %v1848 = vunpack.c.h.b16 %v475
    %v1849 = vunpack.c.l.b16 %v476
    %v1850 = vunpack.c.h.b16 %v476
    %v1851 = vunpack.c.l.b16 %v477
    %v1852 = vunpack.c.h.b16 %v477
    %v1853 = vunpack.c.l.b16 %v478
    %v1854 = vunpack.c.h.b16 %v478
    %v1855 = vunpack.c.l.b16 %v479
    %v1856 = vunpack.c.h.b16 %v479
    %v1857 = vunpack.c.l.b16 %v480
    %v1858 = vunpack.c.h.b16 %v480
    %v1859 = vunpack.c.l.b16 %v481
    %v1860 = vunpack.c.h.b16 %v481
    %v1861 = vunpack.c.l.b16 %v482
    %v1862 = vunpack.c.h.b16 %v482
    %v1863 = vunpack.c.l.b16 %v483
    %v1864 = vunpack.c.h.b16 %v483
    %v1865 = vunpack.c.l.b16 %v484
    %v1866 = vunpack.c.h.b16 %v484
    %v1867 = vunpack.c.l.b16 %v485
    %v1868 = vunpack.c.h.b16 %v485
    %v1869 = vunpack.c.l.b16 %v486
    %v1870 = vunpack.c.h.b16 %v486
    %v1871 = vunpack.c.l.b16 %v487
    %v1872 = vunpack.c.h.b16 %v487
    %v1873 = vunpack.c.l.b16 %v488
    %v1874 = vunpack.c.h.b16 %v488
    %v1875 = vunpack.c.l.b16 %v489
    %v1876 = vunpack.c.h.b16 %v489
    %v1877 = vunpack.c.l.b16 %v490
    %v1878 = vunpack.c.h.b16 %v490
    %v1879 = vunpack.c.l.b16 %v491
    %v1880 = vunpack.c.h.b16 %v491
    %v1881 = vunpack.c.l.b16 %v492
    %v1882 = vunpack.c.h.b16 %v492
    %v1883 = vunpack.c.l.b16 %v493
    %v1884 = vunpack.c.h.b16 %v493
    %v1885 = vunpack.c.l.b16 %v494
    %v1886 = vunpack.c.h.b16 %v494
    %v1887 = vunpack.c.l.b16 %v495
    %v1888 = vunpack.c.h.b16 %v495
    %v1889 = vunpack.c.l.b16 %v496
    %v1890 = vunpack.c.h.b16 %v496
    %v1891 = vunpack.c.l.b16 %v497
    %v1892 = vunpack.c.h.b16 %v497
    %v1893 = vunpack.c.l.b16 %v498
    %v1894 = vunpack.c.h.b16 %v498
    %v1895 = vunpack.c.l.b16 %v499
    %v1896 = vunpack.c.h.b16 %v499
    %v1897 = vunpack.c.l.b16 %v500
    %v1898 = vunpack.c.h.b16 %v500
    %v1899 = vunpack.c.l.b16 %v501
    %v1900 = vunpack.c.h.b16 %v501
    %v1901 = vunpack.c.l.b16 %v502
    %v1902 = vunpack.c.h.b16 %v502
    %v1903 = vunpack.c.l.b16 %v503
    %v1904 = vunpack.c.h.b16 %v503
    %v1905 = vunpack.c.l.b16 %v504
    %v1906 = vunpack.c.h.b16 %v504
    %v1907 = vunpack.c.l.b16 %v505
    %v1908 = vunpack.c.h.b16 %v505
    %v1909 = vunpack.c.l.b16 %v506
    %v1910 = vunpack.c.h.b16 %v506
    %v1911 = vunpack.c.l.b16 %v507
    %v1912 = vunpack.c.h.b16 %v507
    %v1913 = vunpack.c.l.b16 %v508
    %v1914 = vunpack.c.h.b16 %v508
    %v1915 = vunpack.c.l.b16 %v509
    %v1916 = vunpack.c.h.b16 %v509
    %v1917 = vunpack.c.l.b16 %v510
    %v1918 = vunpack.c.h.b16 %v510
    %v1919 = vunpack.c.l.b16 %v511
    %v1920 = vunpack.c.h.b16 %v511
    %v1921 = vunpack.c.l.b16 %v512
    %v1922 = vunpack.c.h.b16 %v512
    %v1923 = vunpack.c.l.b16 %v513
    %v1924 = vunpack.c.h.b16 %v513
    %v1925 = vunpack.c.l.b16 %v514
    %v1926 = vunpack.c.h.b16 %v514
    %v1927 = vunpack.c.l.b16 %v515
    %v1928 = vunpack.c.h.b16 %v515
    %v1929 = vunpack.c.l.b16 %v516
    %v1930 = vunpack.c.h.b16 %v516
    %v1931 = vunpack.c.l.b16 %v517
    %v1932 = vunpack.c.h.b16 %v517
    %v1933 = vunpack.c.l.b16 %v518
    %v1934 = vunpack.c.h.b16 %v518
    %v1935 = vunpack.c.l.b16 %v519
    %v1936 = vunpack.c.h.b16 %v519
    %v1937 = vunpack.c.l.b16 %v520
    %v1938 = vunpack.c.h.b16 %v520
    %v1939 = vunpack.c.l.b16 %v521
    %v1940 = vunpack.c.h.b16 %v521
    %v1941 = vunpack.c.l.b16 %v522
    %v1942 = vunpack.c.h.b16 %v522
    %v1943 = vunpack.c.l.b16 %v523
    %v1944 = vunpack.c.h.b16 %v523
    %v1945 = vunpack.c.l.b16 %v524
    %v1946 = vunpack.c.h.b16 %v524
    %v1947 = vunpack.c.l.b16 %v525
    %v1948 = vunpack.c.h.b16 %v525
    %v1949 = vunpack.c.l.b16 %v526
    %v1950 = vunpack.c.h.b16 %v526
    %v1951 = vunpack.c.l.b16 %v527
    %v1952 = vunpack.c.h.b16 %v527
    %v1953 = vunpack.c.l.b16 %v528
    %v1954 = vunpack.c.h.b16 %v528
    %v1955 = vunpack.c.l.b16 %v529
    %v1956 = vunpack.c.h.b16 %v529
    %v1957 = vunpack.c.l.b16 %v530
    %v1958 = vunpack.c.h.b16 %v530
    %v1959 = vunpack.c.l.b16 %v531
    %v1960 = vunpack.c.h.b16 %v531
    %v1961 = vunpack.c.l.b16 %v532
    %v1962 = vunpack.c.h.b16 %v532
    %v1963 = vunpack.c.l.b16 %v533
    %v1964 = vunpack.c.h.b16 %v533
    %v1965 = vunpack.c.l.b16 %v534
    %v1966 = vunpack.c.h.b16 %v534
    %v1967 = vunpack.c.l.b16 %v535
    %v1968 = vunpack.c.h.b16 %v535
    %v1969 = vunpack.c.l.b16 %v536
    %v1970 = vunpack.c.h.b16 %v536
    %v1971 = vunpack.c.l.b16 %v537
    %v1972 = vunpack.c.h.b16 %v537
    %v1973 = vunpack.c.l.b16 %v538
    %v1974 = vunpack.c.h.b16 %v538
    %v1975 = vunpack.c.l.b16 %v539
    %v1976 = vunpack.c.h.b16 %v539
    %v1977 = vunpack.c.l.b16 %v540
    %v1978 = vunpack.c.h.b16 %v540
    %v1979 = vunpack.c.l.b16 %v541
    %v1980 = vunpack.c.h.b16 %v541
    %v1981 = vunpack.c.l.b16 %v542
    %v1982 = vunpack.c.h.b16 %v542
    %v1983 = vunpack.c.l.b16 %v543
    %v1984 = vunpack.c.h.b16 %v543
    %v1985 = vunpack.c.l.b16 %v544
    %v1986 = vunpack.c.h.b16 %v544
    %v1987 = vunpack.c.l.b16 %v545
    %v1988 = vunpack.c.h.b16 %v545
    %v1989 = vunpack.c.l.b16 %v546
    %v1990 = vunpack.c.h.b16 %v546
    %v1991 = vunpack.c.l.b16 %v547
    %v1992 = vunpack.c.h.b16 %v547
    %v1993 = vunpack.c.l.b16 %v548
    %v1994 = vunpack.c.h.b16 %v548
    %v1995 = vunpack.c.l.b16 %v549
    %v1996 = vunpack.c.h.b16 %v549
    %v1997 = vunpack.c.l.b16 %v550
    %v1998 = vunpack.c.h.b16 %v550
    %v1999 = vunpack.c.l.b16 %v551
    %v2000 = vunpack.c.h.b16 %v551
    %v2001 = vunpack.c.l.b16 %v552
    %v2002 = vunpack.c.h.b16 %v552
    %v2003 = vunpack.c.l.b16 %v553
    %v2004 = vunpack.c.h.b16 %v553
    %v2005 = vunpack.c.l.b16 %v554
    %v2006 = vunpack.c.h.b16 %v554
    %v2007 = vunpack.c.l.b16 %v555
    %v2008 = vunpack.c.h.b16 %v555
    %v2009 = vunpack.c.l.b16 %v556
    %v2010 = vunpack.c.h.b16 %v556
    %v2011 = vunpack.c.l.b16 %v557
    %v2012 = vunpack.c.h.b16 %v557
    %v2013 = vunpack.c.l.b16 %v558
    %v2014 = vunpack.c.h.b16 %v558
    %v2015 = vunpack.c.l.b16 %v559
    %v2016 = vunpack.c.h.b16 %v559
    %v2017 = vunpack.c.l.b16 %v560
    %v2018 = vunpack.c.h.b16 %v560
    %v2019 = vunpack.c.l.b16 %v561
    %v2020 = vunpack.c.h.b16 %v561
    %v2021 = vunpack.c.l.b16 %v562
    %v2022 = vunpack.c.h.b16 %v562
    %v2023 = vunpack.c.l.b16 %v563
    %v2024 = vunpack.c.h.b16 %v563
    %v2025 = vunpack.c.l.b16 %v564
    %v2026 = vunpack.c.h.b16 %v564
    %v2027 = vunpack.c.l.b16 %v565
    %v2028 = vunpack.c.h.b16 %v565
    %v2029 = vunpack.c.l.b16 %v566
    %v2030 = vunpack.c.h.b16 %v566
    %v2031 = vunpack.c.l.b16 %v567
    %v2032 = vunpack.c.h.b16 %v567
    %v2033 = vunpack.c.l.b16 %v568
    %v2034 = vunpack.c.h.b16 %v568
    %v2035 = vunpack.c.l.b16 %v569
    %v2036 = vunpack.c.h.b16 %v569
    %v2037 = vunpack.c.l.b16 %v570
    %v2038 = vunpack.c.h.b16 %v570
    %v2039 = vunpack.c.l.b16 %v571
    %v2040 = vunpack.c.h.b16 %v571
    %v2041 = vunpack.c.l.b16 %v572
    %v2042 = vunpack.c.h.b16 %v572
    %v2043 = vunpack.c.l.b16 %v573
    %v2044 = vunpack.c.h.b16 %v573
    %v2045 = vunpack.c.l.b16 %v574
    %v2046 = vunpack.c.h.b16 %v574
    %v2047 = vunpack.c.l.b16 %v575
    %v2048 = vunpack.c.h.b16 %v575
    %v2049 = vunpack.c.l.b16 %v576
    %v2050 = vunpack.c.h.b16 %v576
    %v2051 = vunpack.c.l.b16 %v577
    %v2052 = vunpack.c.h.b16 %v577
    %v2053 = vunpack.c.l.b16 %v578
    %v2054 = vunpack.c.h.b16 %v578
    %v2055 = vunpack.c.l.b16 %v579
    %v2056 = vunpack.c.h.b16 %v579
    %v2057 = vunpack.c.l.b16 %v580
    %v2058 = vunpack.c.h.b16 %v580
    %v2059 = vunpack.c.l.b16 %v581
    %v2060 = vunpack.c.h.b16 %v581
    %v2061 = vunpack.c.l.b16 %v582
    %v2062 = vunpack.c.h.b16 %v582
    %v2063 = vunpack.c.l.b16 %v583
    %v2064 = vunpack.c.h.b16 %v583
    %v2065 = vunpack.c.l.b16 %v584
    %v2066 = vunpack.c.h.b16 %v584
    %v2067 = vunpack.c.l.b16 %v585
    %v2068 = vunpack.c.h.b16 %v585
    %v2069 = vunpack.c.l.b16 %v586
    %v2070 = vunpack.c.h.b16 %v586
    %v2071 = vunpack.c.l.b16 %v587
    %v2072 = vunpack.c.h.b16 %v587
    %v2073 = vunpack.c.l.b16 %v588
    %v2074 = vunpack.c.h.b16 %v588
    %v2075 = vunpack.c.l.b16 %v589
    %v2076 = vunpack.c.h.b16 %v589
    %v2077 = vunpack.c.l.b16 %v590
    %v2078 = vunpack.c.h.b16 %v590
    %v2079 = vunpack.c.l.b16 %v591
    %v2080 = vunpack.c.h.b16 %v591
    %v2081 = vunpack.c.l.b16 %v592
    %v2082 = vunpack.c.h.b16 %v592
    %v2083 = vunpack.c.l.b16 %v593
    %v2084 = vunpack.c.h.b16 %v593
    %v2085 = vunpack.c.l.b16 %v594
    %v2086 = vunpack.c.h.b16 %v594
    %v2087 = vunpack.c.l.b16 %v595
    %v2088 = vunpack.c.h.b16 %v595
    %v2089 = vunpack.c.l.b16 %v596
    %v2090 = vunpack.c.h.b16 %v596
    %v2091 = vunpack.c.l.b16 %v597
    %v2092 = vunpack.c.h.b16 %v597
    %v2093 = vunpack.c.l.b16 %v598
    %v2094 = vunpack.c.h.b16 %v598
    %v2095 = vunpack.c.l.b16 %v599
    %v2096 = vunpack.c.h.b16 %v599
    %v2097 = vunpack.c.l.b16 %v600
    %v2098 = vunpack.c.h.b16 %v600
    %v2099 = vunpack.c.l.b16 %v601
    %v2100 = vunpack.c.h.b16 %v601
    %v2101 = vunpack.c.l.b16 %v602
    %v2102 = vunpack.c.h.b16 %v602
    %v2103 = vunpack.c.l.b16 %v603
    %v2104 = vunpack.c.h.b16 %v603
    %v2105 = vunpack.c.l.b16 %v604
    %v2106 = vunpack.c.h.b16 %v604
    %v2107 = vunpack.c.l.b16 %v605
    %v2108 = vunpack.c.h.b16 %v605
    %v2109 = vunpack.c.l.b16 %v606
    %v2110 = vunpack.c.h.b16 %v606
    %v2111 = vunpack.c.l.b16 %v607
    %v2112 = vunpack.c.h.b16 %v607
    %v2113 = vunpack.c.l.b16 %v608
    %v2114 = vunpack.c.h.b16 %v608
    %v2115 = vunpack.c.l.b16 %v609
    %v2116 = vunpack.c.h.b16 %v609
    %v2117 = vunpack.c.l.b16 %v610
    %v2118 = vunpack.c.h.b16 %v610
    %v2119 = vunpack.c.l.b16 %v611
    %v2120 = vunpack.c.h.b16 %v611
    %v2121 = vunpack.c.l.b16 %v612
    %v2122 = vunpack.c.h.b16 %v612
    %v2123 = vunpack.c.l.b16 %v613
    %v2124 = vunpack.c.h.b16 %v613
    %v2125 = vunpack.c.l.b16 %v614
    %v2126 = vunpack.c.h.b16 %v614
    %v2127 = vunpack.c.l.b16 %v615
    %v2128 = vunpack.c.h.b16 %v615
    %v2129 = vunpack.c.l.b16 %v616
    %v2130 = vunpack.c.h.b16 %v616
    %v2131 = vunpack.c.l.b16 %v617
    %v2132 = vunpack.c.h.b16 %v617
    %v2133 = vunpack.c.l.b16 %v618
    %v2134 = vunpack.c.h.b16 %v618
    %v2135 = vunpack.c.l.b16 %v619
    %v2136 = vunpack.c.h.b16 %v619
    %v2137 = vunpack.c.l.b16 %v620
    %v2138 = vunpack.c.h.b16 %v620
    %v2139 = vunpack.c.l.b16 %v621
    %v2140 = vunpack.c.h.b16 %v621
    %v2141 = vunpack.c.l.b16 %v622
    %v2142 = vunpack.c.h.b16 %v622
    %v2143 = vunpack.c.l.b16 %v623
    %v2144 = vunpack.c.h.b16 %v623
    %v2145 = vunpack.c.l.b16 %v624
    %v2146 = vunpack.c.h.b16 %v624
    %v2147 = vunpack.c.l.b16 %v625
    %v2148 = vunpack.c.h.b16 %v625
    %v2149 = vunpack.c.l.b16 %v626
    %v2150 = vunpack.c.h.b16 %v626
    %v2151 = vunpack.c.l.b16 %v627
    %v2152 = vunpack.c.h.b16 %v627
    %v2153 = vunpack.c.l.b16 %v628
    %v2154 = vunpack.c.h.b16 %v628
    %v2155 = vunpack.c.l.b16 %v629
    %v2156 = vunpack.c.h.b16 %v629
    %v2157 = vunpack.c.l.b16 %v630
    %v2158 = vunpack.c.h.b16 %v630
    %v2159 = vunpack.c.l.b16 %v631
    %v2160 = vunpack.c.h.b16 %v631
    %v2161 = vunpack.c.l.b16 %v632
    %v2162 = vunpack.c.h.b16 %v632
    %v2163 = vunpack.c.l.b16 %v633
    %v2164 = vunpack.c.h.b16 %v633
    %v2165 = vunpack.c.l.b16 %v634
    %v2166 = vunpack.c.h.b16 %v634
    %v2167 = vunpack.c.l.b16 %v635
    %v2168 = vunpack.c.h.b16 %v635
    %v2169 = vunpack.c.l.b16 %v636
    %v2170 = vunpack.c.h.b16 %v636
    %v2171 = vunpack.c.l.b16 %v637
    %v2172 = vunpack.c.h.b16 %v637
    %v2173 = vunpack.c.l.b16 %v638
    %v2174 = vunpack.c.h.b16 %v638
    %v2175 = vunpack.c.l.b16 %v639
    %v2176 = vunpack.c.h.b16 %v639
    %v2177 = vunpack.c.l.b16 %v640
    %v2178 = vunpack.c.h.b16 %v640
    %v2179 = vunpack.c.l.b16 %v641
    %v2180 = vunpack.c.h.b16 %v641
    %v2181 = vunpack.c.l.b16 %v642
    %v2182 = vunpack.c.h.b16 %v642
    %v2183 = vunpack.c.l.b16 %v643
    %v2184 = vunpack.c.h.b16 %v643
    %v2185 = vunpack.c.l.b16 %v644
    %v2186 = vunpack.c.h.b16 %v644
    %v2187 = vunpack.c.l.b16 %v645
    %v2188 = vunpack.c.h.b16 %v645
    %v2189 = vunpack.c.l.b16 %v646
    %v2190 = vunpack.c.h.b16 %v646
    %v2191 = vunpack.c.l.b16 %v647
    %v2192 = vunpack.c.h.b16 %v647
    %v2193 = vunpack.c.l.b16 %v648
    %v2194 = vunpack.c.h.b16 %v648
    %v2195 = vunpack.c.l.b16 %v649
    %v2196 = vunpack.c.h.b16 %v649
    %v2197 = vunpack.c.l.b16 %v650
    %v2198 = vunpack.c.h.b16 %v650
    %v2199 = vunpack.c.l.b16 %v651
    %v2200 = vunpack.c.h.b16 %v651
    %v2201 = vunpack.c.l.b16 %v652
    %v2202 = vunpack.c.h.b16 %v652
    %v2203 = vunpack.c.l.b16 %v653
    %v2204 = vunpack.c.h.b16 %v653
    %v2205 = vunpack.c.l.b16 %v654
    %v2206 = vunpack.c.h.b16 %v654
    %v2207 = vunpack.c.l.b16 %v655
    %v2208 = vunpack.c.h.b16 %v655
    %v2209 = vunpack.c.l.b16 %v656
    %v2210 = vunpack.c.h.b16 %v656
    %v2211 = vunpack.c.l.b16 %v657
    %v2212 = vunpack.c.h.b16 %v657
    %v2213 = vunpack.c.l.b16 %v658
    %v2214 = vunpack.c.h.b16 %v658
    %v2215 = vunpack.c.l.b16 %v659
    %v2216 = vunpack.c.h.b16 %v659
    %v2217 = vunpack.c.l.b16 %v660
    %v2218 = vunpack.c.h.b16 %v660
    %v2219 = vunpack.c.l.b16 %v661
    %v2220 = vunpack.c.h.b16 %v661
    %v2221 = vunpack.c.l.b16 %v662
    %v2222 = vunpack.c.h.b16 %v662
    %v2223 = vunpack.c.l.b16 %v663
    %v2224 = vunpack.c.h.b16 %v663
    %v2225 = vunpack.c.l.b16 %v664
    %v2226 = vunpack.c.h.b16 %v664
    %v2227 = vunpack.c.l.b16 %v665
    %v2228 = vunpack.c.h.b16 %v665
    %v2229 = vunpack.c.l.b16 %v666
    %v2230 = vunpack.c.h.b16 %v666
    %v2231 = vunpack.c.l.b16 %v667
    %v2232 = vunpack.c.h.b16 %v667
    %v2233 = vunpack.c.l.b16 %v668
    %v2234 = vunpack.c.h.b16 %v668
    %v2235 = vunpack.c.l.b16 %v669
    %v2236 = vunpack.c.h.b16 %v669
    %v2237 = vunpack.c.l.b16 %v670
    %v2238 = vunpack.c.h.b16 %v670
    %v2239 = vunpack.c.l.b16 %v671
    %v2240 = vunpack.c.h.b16 %v671
    %v2241 = vunpack.c.l.b16 %v672
    %v2242 = vunpack.c.h.b16 %v672
    %v2243 = vunpack.c.l.b16 %v673
    %v2244 = vunpack.c.h.b16 %v673
    %v2245 = vunpack.c.l.b16 %v674
    %v2246 = vunpack.c.h.b16 %v674
    %v2247 = vunpack.c.l.b16 %v675
    %v2248 = vunpack.c.h.b16 %v675
    %v2249 = vunpack.c.l.b16 %v676
    %v2250 = vunpack.c.h.b16 %v676
    %v2251 = vunpack.c.l.b16 %v677
    %v2252 = vunpack.c.h.b16 %v677
    %v2253 = vunpack.c.l.b16 %v678
    %v2254 = vunpack.c.h.b16 %v678
    %v2255 = vunpack.c.l.b16 %v679
    %v2256 = vunpack.c.h.b16 %v679
    %v2257 = vunpack.c.l.b16 %v680
    %v2258 = vunpack.c.h.b16 %v680
    %v2259 = vunpack.c.l.b16 %v681
    %v2260 = vunpack.c.h.b16 %v681
    %v2261 = vunpack.c.l.b16 %v682
    %v2262 = vunpack.c.h.b16 %v682
    %v2263 = vunpack.c.l.b16 %v683
    %v2264 = vunpack.c.h.b16 %v683
    %v2265 = vunpack.c.l.b16 %v684
    %v2266 = vunpack.c.h.b16 %v684
    %v2267 = vunpack.c.l.b16 %v685
    %v2268 = vunpack.c.h.b16 %v685
    %v2269 = vunpack.c.l.b16 %v686
    %v2270 = vunpack.c.h.b16 %v686
    %v2271 = vunpack.c.l.b16 %v687
    %v2272 = vunpack.c.h.b16 %v687
    %v2273 = vunpack.c.l.b16 %v688
    %v2274 = vunpack.c.h.b16 %v688
    %v2275 = vunpack.c.l.b16 %v689
    %v2276 = vunpack.c.h.b16 %v689
    %v2277 = vunpack.c.l.b16 %v690
    %v2278 = vunpack.c.h.b16 %v690
    %v2279 = vunpack.c.l.b16 %v691
    %v2280 = vunpack.c.h.b16 %v691
    %v2281 = vunpack.c.l.b16 %v692
    %v2282 = vunpack.c.h.b16 %v692
    %v2283 = vunpack.c.l.b16 %v693
    %v2284 = vunpack.c.h.b16 %v693
    %v2285 = vunpack.c.l.b16 %v694
    %v2286 = vunpack.c.h.b16 %v694
    %v2287 = vunpack.c.l.b16 %v695
    %v2288 = vunpack.c.h.b16 %v695
    %v2289 = vunpack.c.l.b16 %v696
    %v2290 = vunpack.c.h.b16 %v696
    %v2291 = vunpack.c.l.b16 %v697
    %v2292 = vunpack.c.h.b16 %v697
    %v2293 = vunpack.c.l.b16 %v698
    %v2294 = vunpack.c.h.b16 %v698
    %v2295 = vunpack.c.l.b16 %v699
    %v2296 = vunpack.c.h.b16 %v699
    %v2297 = vunpack.c.l.b16 %v700
    %v2298 = vunpack.c.h.b16 %v700
    %v2299 = vunpack.c.l.b16 %v701
    %v2300 = vunpack.c.h.b16 %v701
    %v2301 = vunpack.c.l.b16 %v702
    %v2302 = vunpack.c.h.b16 %v702
    %v2303 = vunpack.c.l.b16 %v703
    %v2304 = vunpack.c.h.b16 %v703
    %v2305 = vunpack.c.l.b16 %v704
    %v2306 = vunpack.c.h.b16 %v704
    %v2307 = vunpack.c.l.b16 %v705
    %v2308 = vunpack.c.h.b16 %v705
    %v2309 = vunpack.c.l.b16 %v706
    %v2310 = vunpack.c.h.b16 %v706
    %v2311 = vunpack.c.l.b16 %v707
    %v2312 = vunpack.c.h.b16 %v707
    %v2313 = vunpack.c.l.b16 %v708
    %v2314 = vunpack.c.h.b16 %v708
    %v2315 = vunpack.c.l.b16 %v709
    %v2316 = vunpack.c.h.b16 %v709
    %v2317 = vunpack.c.l.b16 %v710
    %v2318 = vunpack.c.h.b16 %v710
    %v2319 = vunpack.c.l.b16 %v711
    %v2320 = vunpack.c.h.b16 %v711
    %v2321 = vunpack.c.l.b16 %v712
    %v2322 = vunpack.c.h.b16 %v712
    %v2323 = vunpack.c.l.b16 %v713
    %v2324 = vunpack.c.h.b16 %v713
    %v2325 = vunpack.c.l.b16 %v714
    %v2326 = vunpack.c.h.b16 %v714
    %v2327 = vpack.c.b16 %v1319, %v1303
    %v2328 = vpack.c.b16 %v1320, %v1304
    %v2329 = vpack.c.b16 %v1321, %v1305
    %v2330 = vpack.c.b16 %v1322, %v1306
    %v2331 = vpack.c.b16 %v1323, %v1307
    %v2332 = vpack.c.b16 %v1324, %v1308
    %v2333 = vpack.c.b16 %v1325, %v1309
    %v2334 = vpack.c.b16 %v1326, %v1310
    %v2335 = vpack.c.b16 %v1327, %v1311
    %v2336 = vpack.c.b16 %v1328, %v1312
    %v2337 = vpack.c.b16 %v1329, %v1313
    %v2338 = vpack.c.b16 %v1330, %v1314
    %v2339 = vpack.c.b16 %v1331, %v1315
    %v2340 = vpack.c.b16 %v1332, %v1316
    %v2341 = vpack.c.b16 %v1333, %v1317
    %v2342 = vpack.c.b16 %v1334, %v1318
    %v2343 = vpack.c.b16 %v1351, %v1335
    %v2344 = vpack.c.b16 %v1352, %v1336
    %v2345 = vpack.c.b16 %v1353, %v1337
    %v2346 = vpack.c.b16 %v1354, %v1338
    %v2347 = vpack.c.b16 %v1355, %v1339
    %v2348 = vpack.c.b16 %v1356, %v1340
    %v2349 = vpack.c.b16 %v1357, %v1341
    %v2350 = vpack.c.b16 %v1358, %v1342
    %v2351 = vpack.c.b16 %v1359, %v1343
    %v2352 = vpack.c.b16 %v1360, %v1344
    %v2353 = vpack.c.b16 %v1361, %v1345
    %v2354 = vpack.c.b16 %v1362, %v1346
    %v2355 = vpack.c.b16 %v1363, %v1347
    %v2356 = vpack.c.b16 %v1364, %v1348
    %v2357 = vpack.c.b16 %v1365, %v1349
    %v2358 = vpack.c.b16 %v1366, %v1350
    %v2359 = vpack.c.b16 %v1383, %v1367
    %v2360 = vpack.c.b16 %v1384, %v1368
    %v2361 = vpack.c.b16 %v1385, %v1369
    %v2362 = vpack.c.b16 %v1386, %v1370
    %v2363 = vpack.c.b16 %v1387, %v1371
    %v2364 = vpack.c.b16 %v1388, %v1372
    %v2365 = vpack.c.b16 %v1389, %v1373
    %v2366 = vpack.c.b16 %v1390, %v1374
    %v2367 = vpack.c.b16 %v1391, %v1375
    %v2368 = vpack.c.b16 %v1392, %v1376
    %v2369 = vpack.c.b16 %v1393, %v1377
    %v2370 = vpack.c.b16 %v1394, %v1378
    %v2371 = vpack.c.b16 %v1395, %v1379
    %v2372 = vpack.c.b16 %v1396, %v1380
    %v2373 = vpack.c.b16 %v1397, %v1381
    %v2374 = vpack.c.b16 %v1398, %v1382
    %v2375 = vpack.c.b16 %v1415, %v1399
    %v2376 = vpack.c.b16 %v1416, %v1400
    %v2377 = vpack.c.b16 %v1417, %v1401
    %v2378 = vpack.c.b16 %v1418, %v1402
    %v2379 = vpack.c.b16 %v1419, %v1403
    %v2380 = vpack.c.b16 %v1420, %v1404
    %v2381 = vpack.c.b16 %v1421, %v1405
    %v2382 = vpack.c.b16 %v1422, %v1406
    %v2383 = vpack.c.b16 %v1423, %v1407
    %v2384 = vpack.c.b16 %v1424, %v1408
    %v2385 = vpack.c.b16 %v1425, %v1409
    %v2386 = vpack.c.b16 %v1426, %v1410
    %v2387 = vpack.c.b16 %v1427, %v1411
    %v2388 = vpack.c.b16 %v1428, %v1412
    %v2389 = vpack.c.b16 %v1429, %v1413
    %v2390 = vpack.c.b16 %v1430, %v1414
    %v2391 = vpack.c.b16 %v1447, %v1431
    %v2392 = vpack.c.b16 %v1448, %v1432
    %v2393 = vpack.c.b16 %v1449, %v1433
    %v2394 = vpack.c.b16 %v1450, %v1434
    %v2395 = vpack.c.b16 %v1451, %v1435
    %v2396 = vpack.c.b16 %v1452, %v1436
    %v2397 = vpack.c.b16 %v1453, %v1437
    %v2398 = vpack.c.b16 %v1454, %v1438
    %v2399 = vpack.c.b16 %v1455, %v1439
    %v2400 = vpack.c.b16 %v1456, %v1440
    %v2401 = vpack.c.b16 %v1457, %v1441
    %v2402 = vpack.c.b16 %v1458, %v1442
    %v2403 = vpack.c.b16 %v1459, %v1443
    %v2404 = vpack.c.b16 %v1460, %v1444
    %v2405 = vpack.c.b16 %v1461, %v1445
    %v2406 = vpack.c.b16 %v1462, %v1446
    %v2407 = vpack.c.b16 %v1479, %v1463
    %v2408 = vpack.c.b16 %v1480, %v1464
    %v2409 = vpack.c.b16 %v1481, %v1465
    %v2410 = vpack.c.b16 %v1482, %v1466
    %v2411 = vpack.c.b16 %v1483, %v1467
    %v2412 = vpack.c.b16 %v1484, %v1468
    %v2413 = vpack.c.b16 %v1485, %v1469
    %v2414 = vpack.c.b16 %v1486, %v1470
    %v2415 = vpack.c.b16 %v1487, %v1471
    %v2416 = vpack.c.b16 %v1488, %v1472
    %v2417 = vpack.c.b16 %v1489, %v1473
    %v2418 = vpack.c.b16 %v1490, %v1474
    %v2419 = vpack.c.b16 %v1491, %v1475
    %v2420 = vpack.c.b16 %v1492, %v1476
    %v2421 = vpack.c.b16 %v1493, %v1477
    %v2422 = vpack.c.b16 %v1494, %v1478
    %v2423 = vpack.c.b16 %v1511, %v1495
    %v2424 = vpack.c.b16 %v1512, %v1496
    %v2425 = vpack.c.b16 %v1513, %v1497
    %v2426 = vpack.c.b16 %v1514, %v1498
    %v2427 = vpack.c.b16 %v1515, %v1499
    %v2428 = vpack.c.b16 %v1516, %v1500
    %v2429 = vpack.c.b16 %v1517, %v1501
    %v2430 = vpack.c.b16 %v1518, %v1502
    %v2431 = vpack.c.b16 %v1519, %v1503
    %v2432 = vpack.c.b16 %v1520, %v1504
    %v2433 = vpack.c.b16 %v1521, %v1505
    %v2434 = vpack.c.b16 %v1522, %v1506
    %v2435 = vpack.c.b16 %v1523, %v1507
    %v2436 = vpack.c.b16 %v1524, %v1508
    %v2437 = vpack.c.b16 %v1525, %v1509
    %v2438 = vpack.c.b16 %v1526, %v1510
    %v2439 = vpack.c.b16 %v1543, %v1527
    %v2440 = vpack.c.b16 %v1544, %v1528
    %v2441 = vpack.c.b16 %v1545, %v1529
    %v2442 = vpack.c.b16 %v1546, %v1530
    %v2443 = vpack.c.b16 %v1547, %v1531
    %v2444 = vpack.c.b16 %v1548, %v1532
    %v2445 = vpack.c.b16 %v1549, %v1533
    %v2446 = vpack.c.b16 %v1550, %v1534
    %v2447 = vpack.c.b16 %v1551, %v1535
    %v2448 = vpack.c.b16 %v1552, %v1536
    %v2449 = vpack.c.b16 %v1553, %v1537
    %v2450 = vpack.c.b16 %v1554, %v1538
    %v2451 = vpack.c.b16 %v1555, %v1539
    %v2452 = vpack.c.b16 %v1556, %v1540
    %v2453 = vpack.c.b16 %v1557, %v1541
    %v2454 = vpack.c.b16 %v1558, %v1542
    %v2455 = vpack.c.b16 %v1575, %v1559
    %v2456 = vpack.c.b16 %v1576, %v1560
    %v2457 = vpack.c.b16 %v1577, %v1561
    %v2458 = vpack.c.b16 %v1578, %v1562
    %v2459 = vpack.c.b16 %v1579, %v1563
    %v2460 = vpack.c.b16 %v1580, %v1564
    %v2461 = vpack.c.b16 %v1581, %v1565
    %v2462 = vpack.c.b16 %v1582, %v1566
    %v2463 = vpack.c.b16 %v1583, %v1567
    %v2464 = vpack.c.b16 %v1584, %v1568
    %v2465 = vpack.c.b16 %v1585, %v1569
    %v2466 = vpack.c.b16 %v1586, %v1570
    %v2467 = vpack.c.b16 %v1587, %v1571
    %v2468 = vpack.c.b16 %v1588, %v1572
    %v2469 = vpack.c.b16 %v1589, %v1573
    %v2470 = vpack.c.b16 %v1590, %v1574
    %v2471 = vpack.c.b16 %v1607, %v1591
    %v2472 = vpack.c.b16 %v1608, %v1592
    %v2473 = vpack.c.b16 %v1609, %v1593
    %v2474 = vpack.c.b16 %v1610, %v1594
    %v2475 = vpack.c.b16 %v1611, %v1595
    %v2476 = vpack.c.b16 %v1612, %v1596
    %v2477 = vpack.c.b16 %v1613, %v1597
    %v2478 = vpack.c.b16 %v1614, %v1598
    %v2479 = vpack.c.b16 %v1615, %v1599
    %v2480 = vpack.c.b16 %v1616, %v1600
    %v2481 = vpack.c.b16 %v1617, %v1601
    %v2482 = vpack.c.b16 %v1618, %v1602
    %v2483 = vpack.c.b16 %v1619, %v1603
    %v2484 = vpack.c.b16 %v1620, %v1604
    %v2485 = vpack.c.b16 %v1621, %v1605
    %v2486 = vpack.c.b16 %v1622, %v1606
    %v2487 = vpack.c.b16 %v1639, %v1623
    %v2488 = vpack.c.b16 %v1640, %v1624
    %v2489 = vpack.c.b16 %v1641, %v1625
    %v2490 = vpack.c.b16 %v1642, %v1626
    %v2491 = vpack.c.b16 %v1643, %v1627
    %v2492 = vpack.c.b16 %v1644, %v1628
    %v2493 = vpack.c.b16 %v1645, %v1629
    %v2494 = vpack.c.b16 %v1646, %v1630
    %v2495 = vpack.c.b16 %v1647, %v1631
    %v2496 = vpack.c.b16 %v1648, %v1632
    %v2497 = vpack.c.b16 %v1649, %v1633
    %v2498 = vpack.c.b16 %v1650, %v1634
    %v2499 = vpack.c.b16 %v1651, %v1635
    %v2500 = vpack.c.b16 %v1652, %v1636
    %v2501 = vpack.c.b16 %v1653, %v1637
    %v2502 = vpack.c.b16 %v1654, %v1638
    %v2503 = vpack.c.b16 %v1671, %v1655
    %v2504 = vpack.c.b16 %v1672, %v1656
    %v2505 = vpack.c.b16 %v1673, %v1657
    %v2506 = vpack.c.b16 %v1674, %v1658
    %v2507 = vpack.c.b16 %v1675, %v1659
    %v2508 = vpack.c.b16 %v1676, %v1660
    %v2509 = vpack.c.b16 %v1677, %v1661
    %v2510 = vpack.c.b16 %v1678, %v1662
    %v2511 = vpack.c.b16 %v1679, %v1663
    %v2512 = vpack.c.b16 %v1680, %v1664
    %v2513 = vpack.c.b16 %v1681, %v1665
    %v2514 = vpack.c.b16 %v1682, %v1666
    %v2515 = vpack.c.b16 %v1683, %v1667
    %v2516 = vpack.c.b16 %v1684, %v1668
    %v2517 = vpack.c.b16 %v1685, %v1669
    %v2518 = vpack.c.b16 %v1686, %v1670
    %v2519 = vpack.c.b16 %v1703, %v1687
    %v2520 = vpack.c.b16 %v1704, %v1688
    %v2521 = vpack.c.b16 %v1705, %v1689
    %v2522 = vpack.c.b16 %v1706, %v1690
    %v2523 = vpack.c.b16 %v1707, %v1691
    %v2524 = vpack.c.b16 %v1708, %v1692
    %v2525 = vpack.c.b16 %v1709, %v1693
    %v2526 = vpack.c.b16 %v1710, %v1694
    %v2527 = vpack.c.b16 %v1711, %v1695
    %v2528 = vpack.c.b16 %v1712, %v1696
    %v2529 = vpack.c.b16 %v1713, %v1697
    %v2530 = vpack.c.b16 %v1714, %v1698
    %v2531 = vpack.c.b16 %v1715, %v1699
    %v2532 = vpack.c.b16 %v1716, %v1700
    %v2533 = vpack.c.b16 %v1717, %v1701
    %v2534 = vpack.c.b16 %v1718, %v1702
    %v2535 = vpack.c.b16 %v1735, %v1719
    %v2536 = vpack.c.b16 %v1736, %v1720
    %v2537 = vpack.c.b16 %v1737, %v1721
    %v2538 = vpack.c.b16 %v1738, %v1722
    %v2539 = vpack.c.b16 %v1739, %v1723
    %v2540 = vpack.c.b16 %v1740, %v1724
    %v2541 = vpack.c.b16 %v1741, %v1725
    %v2542 = vpack.c.b16 %v1742, %v1726
    %v2543 = vpack.c.b16 %v1743, %v1727
    %v2544 = vpack.c.b16 %v1744, %v1728
    %v2545 = vpack.c.b16 %v1745, %v1729
    %v2546 = vpack.c.b16 %v1746, %v1730
    %v2547 = vpack.c.b16 %v1747, %v1731
    %v2548 = vpack.c.b16 %v1748, %v1732
    %v2549 = vpack.c.b16 %v1749, %v1733
    %v2550 = vpack.c.b16 %v1750, %v1734
    %v2551 = vpack.c.b16 %v1767, %v1751
    %v2552 = vpack.c.b16 %v1768, %v1752
    %v2553 = vpack.c.b16 %v1769, %v1753
    %v2554 = vpack.c.b16 %v1770, %v1754
    %v2555 = vpack.c.b16 %v1771, %v1755
    %v2556 = vpack.c.b16 %v1772, %v1756
    %v2557 = vpack.c.b16 %v1773, %v1757
    %v2558 = vpack.c.b16 %v1774, %v1758
    %v2559 = vpack.c.b16 %v1775, %v1759
    %v2560 = vpack.c.b16 %v1776, %v1760
    %v2561 = vpack.c.b16 %v1777, %v1761
    %v2562 = vpack.c.b16 %v1778, %v1762
    %v2563 = vpack.c.b16 %v1779, %v1763
    %v2564 = vpack.c.b16 %v1780, %v1764
    %v2565 = vpack.c.b16 %v1781, %v1765
    %v2566 = vpack.c.b16 %v1782, %v1766
    %v2567 = vpack.c.b16 %v1799, %v1783
    %v2568 = vpack.c.b16 %v1800, %v1784
    %v2569 = vpack.c.b16 %v1801, %v1785
    %v2570 = vpack.c.b16 %v1802, %v1786
    %v2571 = vpack.c.b16 %v1803, %v1787
    %v2572 = vpack.c.b16 %v1804, %v1788
    %v2573 = vpack.c.b16 %v1805, %v1789
    %v2574 = vpack.c.b16 %v1806, %v1790
    %v2575 = vpack.c.b16 %v1807, %v1791
    %v2576 = vpack.c.b16 %v1808, %v1792
    %v2577 = vpack.c.b16 %v1809, %v1793
    %v2578 = vpack.c.b16 %v1810, %v1794
    %v2579 = vpack.c.b16 %v1811, %v1795
    %v2580 = vpack.c.b16 %v1812, %v1796
    %v2581 = vpack.c.b16 %v1813, %v1797
    %v2582 = vpack.c.b16 %v1814, %v1798
    %v2583 = vpack.c.b16 %v1831, %v1815
    %v2584 = vpack.c.b16 %v1832, %v1816
    %v2585 = vpack.c.b16 %v1833, %v1817
    %v2586 = vpack.c.b16 %v1834, %v1818
    %v2587 = vpack.c.b16 %v1835, %v1819
    %v2588 = vpack.c.b16 %v1836, %v1820
    %v2589 = vpack.c.b16 %v1837, %v1821
    %v2590 = vpack.c.b16 %v1838, %v1822
    %v2591 = vpack.c.b16 %v1839, %v1823
    %v2592 = vpack.c.b16 %v1840, %v1824
    %v2593 = vpack.c.b16 %v1841, %v1825
    %v2594 = vpack.c.b16 %v1842, %v1826
    %v2595 = vpack.c.b16 %v1843, %v1827
    %v2596 = vpack.c.b16 %v1844, %v1828
    %v2597 = vpack.c.b16 %v1845, %v1829
    %v2598 = vpack.c.b16 %v1846, %v1830
    %v2599 = vpack.c.b16 %v1863, %v1847
    %v2600 = vpack.c.b16 %v1864, %v1848
    %v2601 = vpack.c.b16 %v1865, %v1849
    %v2602 = vpack.c.b16 %v1866, %v1850
    %v2603 = vpack.c.b16 %v1867, %v1851
    %v2604 = vpack.c.b16 %v1868, %v1852
    %v2605 = vpack.c.b16 %v1869, %v1853
    %v2606 = vpack.c.b16 %v1870, %v1854
    %v2607 = vpack.c.b16 %v1871, %v1855
    %v2608 = vpack.c.b16 %v1872, %v1856
    %v2609 = vpack.c.b16 %v1873, %v1857
    %v2610 = vpack.c.b16 %v1874, %v1858
    %v2611 = vpack.c.b16 %v1875, %v1859
    %v2612 = vpack.c.b16 %v1876, %v1860
    %v2613 = vpack.c.b16 %v1877, %v1861
    %v2614 = vpack.c.b16 %v1878, %v1862
    %v2615 = vpack.c.b16 %v1895, %v1879
    %v2616 = vpack.c.b16 %v1896, %v1880
    %v2617 = vpack.c.b16 %v1897, %v1881
    %v2618 = vpack.c.b16 %v1898, %v1882
    %v2619 = vpack.c.b16 %v1899, %v1883
    %v2620 = vpack.c.b16 %v1900, %v1884
    %v2621 = vpack.c.b16 %v1901, %v1885
    %v2622 = vpack.c.b16 %v1902, %v1886
    %v2623 = vpack.c.b16 %v1903, %v1887
    %v2624 = vpack.c.b16 %v1904, %v1888
    %v2625 = vpack.c.b16 %v1905, %v1889
    %v2626 = vpack.c.b16 %v1906, %v1890
    %v2627 = vpack.c.b16 %v1907, %v1891
    %v2628 = vpack.c.b16 %v1908, %v1892
    %v2629 = vpack.c.b16 %v1909, %v1893
    %v2630 = vpack.c.b16 %v1910, %v1894
    %v2631 = vpack.c.b16 %v1927, %v1911
    %v2632 = vpack.c.b16 %v1928, %v1912
    %v2633 = vpack.c.b16 %v1929, %v1913
    %v2634 = vpack.c.b16 %v1930, %v1914
    %v2635 = vpack.c.b16 %v1931, %v1915
    %v2636 = vpack.c.b16 %v1932, %v1916
    %v2637 = vpack.c.b16 %v1933, %v1917
    %v2638 = vpack.c.b16 %v1934, %v1918
    %v2639 = vpack.c.b16 %v1935, %v1919
    %v2640 = vpack.c.b16 %v1936, %v1920
    %v2641 = vpack.c.b16 %v1937, %v1921
    %v2642 = vpack.c.b16 %v1938, %v1922
    %v2643 = vpack.c.b16 %v1939, %v1923
    %v2644 = vpack.c.b16 %v1940, %v1924
    %v2645 = vpack.c.b16 %v1941, %v1925
    %v2646 = vpack.c.b16 %v1942, %v1926
    %v2647 = vpack.c.b16 %v1959, %v1943
    %v2648 = vpack.c.b16 %v1960, %v1944
    %v2649 = vpack.c.b16 %v1961, %v1945
    %v2650 = vpack.c.b16 %v1962, %v1946
    %v2651 = vpack.c.b16 %v1963, %v1947
    %v2652 = vpack.c.b16 %v1964, %v1948
    %v2653 = vpack.c.b16 %v1965, %v1949
    %v2654 = vpack.c.b16 %v1966, %v1950
    %v2655 = vpack.c.b16 %v1967, %v1951
    %v2656 = vpack.c.b16 %v1968, %v1952
    %v2657 = vpack.c.b16 %v1969, %v1953
    %v2658 = vpack.c.b16 %v1970, %v1954
    %v2659 = vpack.c.b16 %v1971, %v1955
    %v2660 = vpack.c.b16 %v1972, %v1956
    %v2661 = vpack.c.b16 %v1973, %v1957
    %v2662 = vpack.c.b16 %v1974, %v1958
    %v2663 = vpack.c.b16 %v1991, %v1975
    %v2664 = vpack.c.b16 %v1992, %v1976
    %v2665 = vpack.c.b16 %v1993, %v1977
    %v2666 = vpack.c.b16 %v1994, %v1978
    %v2667 = vpack.c.b16 %v1995, %v1979
    %v2668 = vpack.c.b16 %v1996, %v1980
    %v2669 = vpack.c.b16 %v1997, %v1981
    %v2670 = vpack.c.b16 %v1998, %v1982
    %v2671 = vpack.c.b16 %v1999, %v1983
    %v2672 = vpack.c.b16 %v2000, %v1984
    %v2673 = vpack.c.b16 %v2001, %v1985
    %v2674 = vpack.c.b16 %v2002, %v1986
    %v2675 = vpack.c.b16 %v2003, %v1987
    %v2676 = vpack.c.b16 %v2004, %v1988
    %v2677 = vpack.c.b16 %v2005, %v1989
    %v2678 = vpack.c.b16 %v2006, %v1990
    %v2679 = vpack.c.b16 %v2023, %v2007
    %v2680 = vpack.c.b16 %v2024, %v2008
    %v2681 = vpack.c.b16 %v2025, %v2009
    %v2682 = vpack.c.b16 %v2026, %v2010
    %v2683 = vpack.c.b16 %v2027, %v2011
    %v2684 = vpack.c.b16 %v2028, %v2012
    %v2685 = vpack.c.b16 %v2029, %v2013
    %v2686 = vpack.c.b16 %v2030, %v2014
    %v2687 = vpack.c.b16 %v2031, %v2015
    %v2688 = vpack.c.b16 %v2032, %v2016
    %v2689 = vpack.c.b16 %v2033, %v2017
    %v2690 = vpack.c.b16 %v2034, %v2018
    %v2691 = vpack.c.b16 %v2035, %v2019
    %v2692 = vpack.c.b16 %v2036, %v2020
    %v2693 = vpack.c.b16 %v2037, %v2021
    %v2694 = vpack.c.b16 %v2038, %v2022
    %v2695 = vpack.c.b16 %v2055, %v2039
    %v2696 = vpack.c.b16 %v2056, %v2040
    %v2697 = vpack.c.b16 %v2057, %v2041
    %v2698 = vpack.c.b16 %v2058, %v2042
    %v2699 = vpack.c.b16 %v2059, %v2043
    %v2700 = vpack.c.b16 %v2060, %v2044
    %v2701 = vpack.c.b16 %v2061, %v2045
    %v2702 = vpack.c.b16 %v2062, %v2046
    %v2703 = vpack.c.b16 %v2063, %v2047
    %v2704 = vpack.c.b16 %v2064, %v2048
    %v2705 = vpack.c.b16 %v2065, %v2049
    %v2706 = vpack.c.b16 %v2066, %v2050
    %v2707 = vpack.c.b16 %v2067, %v2051
    %v2708 = vpack.c.b16 %v2068, %v2052
    %v2709 = vpack.c.b16 %v2069, %v2053
    %v2710 = vpack.c.b16 %v2070, %v2054
    %v2711 = vpack.c.b16 %v2087, %v2071
    %v2712 = vpack.c.b16 %v2088, %v2072
    %v2713 = vpack.c.b16 %v2089, %v2073
    %v2714 = vpack.c.b16 %v2090, %v2074
    %v2715 = vpack.c.b16 %v2091, %v2075
    %v2716 = vpack.c.b16 %v2092, %v2076
    %v2717 = vpack.c.b16 %v2093, %v2077
    %v2718 = vpack.c.b16 %v2094, %v2078
    %v2719 = vpack.c.b16 %v2095, %v2079
    %v2720 = vpack.c.b16 %v2096, %v2080
    %v2721 = vpack.c.b16 %v2097, %v2081
    %v2722 = vpack.c.b16 %v2098, %v2082
    %v2723 = vpack.c.b16 %v2099, %v2083
    %v2724 = vpack.c.b16 %v2100, %v2084
    %v2725 = vpack.c.b16 %v2101, %v2085
    %v2726 = vpack.c.b16 %v2102, %v2086
    %v2727 = vpack.c.b16 %v2119, %v2103
    %v2728 = vpack.c.b16 %v2120, %v2104
    %v2729 = vpack.c.b16 %v2121, %v2105
    %v2730 = vpack.c.b16 %v2122, %v2106
    %v2731 = vpack.c.b16 %v2123, %v2107
    %v2732 = vpack.c.b16 %v2124, %v2108
    %v2733 = vpack.c.b16 %v2125, %v2109
    %v2734 = vpack.c.b16 %v2126, %v2110
    %v2735 = vpack.c.b16 %v2127, %v2111
    %v2736 = vpack.c.b16 %v2128, %v2112
    %v2737 = vpack.c.b16 %v2129, %v2113
    %v2738 = vpack.c.b16 %v2130, %v2114
    %v2739 = vpack.c.b16 %v2131, %v2115
    %v2740 = vpack.c.b16 %v2132, %v2116
    %v2741 = vpack.c.b16 %v2133, %v2117
    %v2742 = vpack.c.b16 %v2134, %v2118
    %v2743 = vpack.c.b16 %v2151, %v2135
    %v2744 = vpack.c.b16 %v2152, %v2136
    %v2745 = vpack.c.b16 %v2153, %v2137
    %v2746 = vpack.c.b16 %v2154, %v2138
    %v2747 = vpack.c.b16 %v2155, %v2139
    %v2748 = vpack.c.b16 %v2156, %v2140
    %v2749 = vpack.c.b16 %v2157, %v2141
    %v2750 = vpack.c.b16 %v2158, %v2142
    %v2751 = vpack.c.b16 %v2159, %v2143
    %v2752 = vpack.c.b16 %v2160, %v2144
    %v2753 = vpack.c.b16 %v2161, %v2145
    %v2754 = vpack.c.b16 %v2162, %v2146
    %v2755 = vpack.c.b16 %v2163, %v2147
    %v2756 = vpack.c.b16 %v2164, %v2148
    %v2757 = vpack.c.b16 %v2165, %v2149
    %v2758 = vpack.c.b16 %v2166, %v2150
    %v2759 = vpack.c.b16 %v2183, %v2167
    %v2760 = vpack.c.b16 %v2184, %v2168
    %v2761 = vpack.c.b16 %v2185, %v2169
    %v2762 = vpack.c.b16 %v2186, %v2170
    %v2763 = vpack.c.b16 %v2187, %v2171
    %v2764 = vpack.c.b16 %v2188, %v2172
    %v2765 = vpack.c.b16 %v2189, %v2173
    %v2766 = vpack.c.b16 %v2190, %v2174
    %v2767 = vpack.c.b16 %v2191, %v2175
    %v2768 = vpack.c.b16 %v2192, %v2176
    %v2769 = vpack.c.b16 %v2193, %v2177
    %v2770 = vpack.c.b16 %v2194, %v2178
    %v2771 = vpack.c.b16 %v2195, %v2179
    %v2772 = vpack.c.b16 %v2196, %v2180
    %v2773 = vpack.c.b16 %v2197, %v2181
    %v2774 = vpack.c.b16 %v2198, %v2182
    %v2775 = vpack.c.b16 %v2215, %v2199
    %v2776 = vpack.c.b16 %v2216, %v2200
    %v2777 = vpack.c.b16 %v2217, %v2201
    %v2778 = vpack.c.b16 %v2218, %v2202
    %v2779 = vpack.c.b16 %v2219, %v2203
    %v2780 = vpack.c.b16 %v2220, %v2204
    %v2781 = vpack.c.b16 %v2221, %v2205
    %v2782 = vpack.c.b16 %v2222, %v2206
    %v2783 = vpack.c.b16 %v2223, %v2207
    %v2784 = vpack.c.b16 %v2224, %v2208
    %v2785 = vpack.c.b16 %v2225, %v2209
    %v2786 = vpack.c.b16 %v2226, %v2210
    %v2787 = vpack.c.b16 %v2227, %v2211
    %v2788 = vpack.c.b16 %v2228, %v2212
    %v2789 = vpack.c.b16 %v2229, %v2213
    %v2790 = vpack.c.b16 %v2230, %v2214
    %v2791 = vpack.c.b16 %v2247, %v2231
    %v2792 = vpack.c.b16 %v2248, %v2232
    %v2793 = vpack.c.b16 %v2249, %v2233
    %v2794 = vpack.c.b16 %v2250, %v2234
    %v2795 = vpack.c.b16 %v2251, %v2235
    %v2796 = vpack.c.b16 %v2252, %v2236
    %v2797 = vpack.c.b16 %v2253, %v2237
    %v2798 = vpack.c.b16 %v2254, %v2238
    %v2799 = vpack.c.b16 %v2255, %v2239
    %v2800 = vpack.c.b16 %v2256, %v2240
    %v2801 = vpack.c.b16 %v2257, %v2241
    %v2802 = vpack.c.b16 %v2258, %v2242
    %v2803 = vpack.c.b16 %v2259, %v2243
    %v2804 = vpack.c.b16 %v2260, %v2244
    %v2805 = vpack.c.b16 %v2261, %v2245
    %v2806 = vpack.c.b16 %v2262, %v2246
    %v2807 = vpack.c.b16 %v2279, %v2263
    %v2808 = vpack.c.b16 %v2280, %v2264
    %v2809 = vpack.c.b16 %v2281, %v2265
    %v2810 = vpack.c.b16 %v2282, %v2266
    %v2811 = vpack.c.b16 %v2283, %v2267
    %v2812 = vpack.c.b16 %v2284, %v2268
    %v2813 = vpack.c.b16 %v2285, %v2269
    %v2814 = vpack.c.b16 %v2286, %v2270
    %v2815 = vpack.c.b16 %v2287, %v2271
    %v2816 = vpack.c.b16 %v2288, %v2272
    %v2817 = vpack.c.b16 %v2289, %v2273
    %v2818 = vpack.c.b16 %v2290, %v2274
    %v2819 = vpack.c.b16 %v2291, %v2275
    %v2820 = vpack.c.b16 %v2292, %v2276
    %v2821 = vpack.c.b16 %v2293, %v2277
    %v2822 = vpack.c.b16 %v2294, %v2278
    %v2823 = vpack.c.b16 %v2311, %v2295
    %v2824 = vpack.c.b16 %v2312, %v2296
    %v2825 = vpack.c.b16 %v2313, %v2297
    %v2826 = vpack.c.b16 %v2314, %v2298
    %v2827 = vpack.c.b16 %v2315, %v2299
    %v2828 = vpack.c.b16 %v2316, %v2300
    %v2829 = vpack.c.b16 %v2317, %v2301
    %v2830 = vpack.c.b16 %v2318, %v2302
    %v2831 = vpack.c.b16 %v2319, %v2303
    %v2832 = vpack.c.b16 %v2320, %v2304
    %v2833 = vpack.c.b16 %v2321, %v2305
    %v2834 = vpack.c.b16 %v2322, %v2306
    %v2835 = vpack.c.b16 %v2323, %v2307
    %v2836 = vpack.c.b16 %v2324, %v2308
    %v2837 = vpack.c.b16 %v2325, %v2309
    %v2838 = vpack.c.b16 %v2326, %v2310
    %3351 = vmatpush.bf16.msra.mxu0 %v2439
    %3352 = vmatpush.bf16.msra.mxu0 %v2423
    %3353 = vmatpush.bf16.msra.mxu0 %v2407
    %3354 = vmatpush.bf16.msra.mxu0 %v2391
    %3355 = vmatpush.bf16.msra.mxu0 %v2375
    %3356 = vmatpush.bf16.msra.mxu0 %v2359
    %3357 = vmatpush.bf16.msra.mxu0 %v2343
    %3358 = vmatpush.bf16.msra.mxu0 %v2327
    %3359 = vmatmul.bf16.gmra.mxu0 %v775
    %v3360 = vpop.f32.mrf.mxu0
    %v3361 = vadd.f32 %v719, %v3360
    %v3362 = vpop.f32.mrf.mxu0
    %v3363 = vadd.f32 %v719, %v3362
    %3364 = vmatmul.bf16.gmra.mxu0 %v779
    %v3365 = vpop.f32.mrf.mxu0
    %v3366 = vadd.f32 %v719, %v3365
    %v3367 = vpop.f32.mrf.mxu0
    %v3368 = vadd.f32 %v719, %v3367
    %3369 = vdwg.mxu0
    %3370 = vmatpush.bf16.msra.mxu0 %v2567
    %3371 = vmatpush.bf16.msra.mxu0 %v2551
    %3372 = vmatpush.bf16.msra.mxu0 %v2535
    %3373 = vmatpush.bf16.msra.mxu0 %v2519
    %3374 = vmatpush.bf16.msra.mxu0 %v2503
    %3375 = vmatpush.bf16.msra.mxu0 %v2487
    %3376 = vmatpush.bf16.msra.mxu0 %v2471
    %3377 = vmatpush.bf16.msra.mxu0 %v2455
    %3378 = vmatmul.bf16.gmra.mxu0 %v776
    %v3379 = vpop.f32.mrf.mxu0
    %v3380 = vadd.f32 %v3361, %v3379
    %v3381 = vpop.f32.mrf.mxu0
    %v3382 = vadd.f32 %v3363, %v3381
    %3383 = vmatmul.bf16.gmra.mxu0 %v780
    %v3384 = vpop.f32.mrf.mxu0
    %v3385 = vadd.f32 %v3366, %v3384
    %v3386 = vpop.f32.mrf.mxu0
    %v3387 = vadd.f32 %v3368, %v3386
    %3388 = vdwg.mxu0
    %3389 = vmatpush.bf16.msra.mxu0 %v2695
    %3390 = vmatpush.bf16.msra.mxu0 %v2679
    %3391 = vmatpush.bf16.msra.mxu0 %v2663
    %3392 = vmatpush.bf16.msra.mxu0 %v2647
    %3393 = vmatpush.bf16.msra.mxu0 %v2631
    %3394 = vmatpush.bf16.msra.mxu0 %v2615
    %3395 = vmatpush.bf16.msra.mxu0 %v2599
    %3396 = vmatpush.bf16.msra.mxu0 %v2583
    %3397 = vmatmul.bf16.gmra.mxu0 %v777
    %v3398 = vpop.f32.mrf.mxu0
    %v3399 = vadd.f32 %v3380, %v3398
    %v3400 = vpop.f32.mrf.mxu0
    %v3401 = vadd.f32 %v3382, %v3400
    %3402 = vmatmul.bf16.gmra.mxu0 %v781
    %v3403 = vpop.f32.mrf.mxu0
    %v3404 = vadd.f32 %v3385, %v3403
    %v3405 = vpop.f32.mrf.mxu0
    %v3406 = vadd.f32 %v3387, %v3405
    %3407 = vdwg.mxu0
    %3408 = vmatpush.bf16.msra.mxu0 %v2823
    %3409 = vmatpush.bf16.msra.mxu0 %v2807
    %3410 = vmatpush.bf16.msra.mxu0 %v2791
    %3411 = vmatpush.bf16.msra.mxu0 %v2775
    %3412 = vmatpush.bf16.msra.mxu0 %v2759
    %3413 = vmatpush.bf16.msra.mxu0 %v2743
    %3414 = vmatpush.bf16.msra.mxu0 %v2727
    %3415 = vmatpush.bf16.msra.mxu0 %v2711
    %3416 = vmatmul.bf16.gmra.mxu0 %v778
    %v3417 = vpop.f32.mrf.mxu0
    %v3418 = vadd.f32 %v3399, %v3417
    %v3419 = vpop.f32.mrf.mxu0
    %v3420 = vadd.f32 %v3401, %v3419
    %3421 = vmatmul.bf16.gmra.mxu0 %v782
    %v3422 = vpop.f32.mrf.mxu0
    %v3423 = vadd.f32 %v3404, %v3422
    %v3424 = vpop.f32.mrf.mxu0
    %v3425 = vadd.f32 %v3406, %v3424
    %3426 = vdwg.mxu0
    %3427 = vmatpush.bf16.msra.mxu0 %v2440
    %3428 = vmatpush.bf16.msra.mxu0 %v2424
    %3429 = vmatpush.bf16.msra.mxu0 %v2408
    %3430 = vmatpush.bf16.msra.mxu0 %v2392
    %3431 = vmatpush.bf16.msra.mxu0 %v2376
    %3432 = vmatpush.bf16.msra.mxu0 %v2360
    %3433 = vmatpush.bf16.msra.mxu0 %v2344
    %3434 = vmatpush.bf16.msra.mxu0 %v2328
    %3435 = vmatmul.bf16.gmra.mxu0 %v775
    %v3436 = vpop.f32.mrf.mxu0
    %v3437 = vadd.f32 %v720, %v3436
    %v3438 = vpop.f32.mrf.mxu0
    %v3439 = vadd.f32 %v720, %v3438
    %3440 = vmatmul.bf16.gmra.mxu0 %v779
    %v3441 = vpop.f32.mrf.mxu0
    %v3442 = vadd.f32 %v720, %v3441
    %v3443 = vpop.f32.mrf.mxu0
    %v3444 = vadd.f32 %v720, %v3443
    %3445 = vdwg.mxu0
    %3446 = vmatpush.bf16.msra.mxu0 %v2568
    %3447 = vmatpush.bf16.msra.mxu0 %v2552
    %3448 = vmatpush.bf16.msra.mxu0 %v2536
    %3449 = vmatpush.bf16.msra.mxu0 %v2520
    %3450 = vmatpush.bf16.msra.mxu0 %v2504
    %3451 = vmatpush.bf16.msra.mxu0 %v2488
    %3452 = vmatpush.bf16.msra.mxu0 %v2472
    %3453 = vmatpush.bf16.msra.mxu0 %v2456
    %3454 = vmatmul.bf16.gmra.mxu0 %v776
    %v3455 = vpop.f32.mrf.mxu0
    %v3456 = vadd.f32 %v3437, %v3455
    %v3457 = vpop.f32.mrf.mxu0
    %v3458 = vadd.f32 %v3439, %v3457
    %3459 = vmatmul.bf16.gmra.mxu0 %v780
    %v3460 = vpop.f32.mrf.mxu0
    %v3461 = vadd.f32 %v3442, %v3460
    %v3462 = vpop.f32.mrf.mxu0
    %v3463 = vadd.f32 %v3444, %v3462
    %3464 = vdwg.mxu0
    %3465 = vmatpush.bf16.msra.mxu0 %v2696
    %3466 = vmatpush.bf16.msra.mxu0 %v2680
    %3467 = vmatpush.bf16.msra.mxu0 %v2664
    %3468 = vmatpush.bf16.msra.mxu0 %v2648
    %3469 = vmatpush.bf16.msra.mxu0 %v2632
    %3470 = vmatpush.bf16.msra.mxu0 %v2616
    %3471 = vmatpush.bf16.msra.mxu0 %v2600
    %3472 = vmatpush.bf16.msra.mxu0 %v2584
    %3473 = vmatmul.bf16.gmra.mxu0 %v777
    %v3474 = vpop.f32.mrf.mxu0
    %v3475 = vadd.f32 %v3456, %v3474
    %v3476 = vpop.f32.mrf.mxu0
    %v3477 = vadd.f32 %v3458, %v3476
    %3478 = vmatmul.bf16.gmra.mxu0 %v781
    %v3479 = vpop.f32.mrf.mxu0
    %v3480 = vadd.f32 %v3461, %v3479
    %v3481 = vpop.f32.mrf.mxu0
    %v3482 = vadd.f32 %v3463, %v3481
    %3483 = vdwg.mxu0
    %3484 = vmatpush.bf16.msra.mxu0 %v2824
    %3485 = vmatpush.bf16.msra.mxu0 %v2808
    %3486 = vmatpush.bf16.msra.mxu0 %v2792
    %3487 = vmatpush.bf16.msra.mxu0 %v2776
    %3488 = vmatpush.bf16.msra.mxu0 %v2760
    %3489 = vmatpush.bf16.msra.mxu0 %v2744
    %3490 = vmatpush.bf16.msra.mxu0 %v2728
    %3491 = vmatpush.bf16.msra.mxu0 %v2712
    %3492 = vmatmul.bf16.gmra.mxu0 %v778
    %v3493 = vpop.f32.mrf.mxu0
    %v3494 = vadd.f32 %v3475, %v3493
    %v3495 = vpop.f32.mrf.mxu0
    %v3496 = vadd.f32 %v3477, %v3495
    %3497 = vmatmul.bf16.gmra.mxu0 %v782
    %v3498 = vpop.f32.mrf.mxu0
    %v3499 = vadd.f32 %v3480, %v3498
    %v3500 = vpop.f32.mrf.mxu0
    %v3501 = vadd.f32 %v3482, %v3500
    %3502 = vdwg.mxu0
    %3503 = vmatpush.bf16.msra.mxu0 %v2441
    %3504 = vmatpush.bf16.msra.mxu0 %v2425
    %3505 = vmatpush.bf16.msra.mxu0 %v2409
    %3506 = vmatpush.bf16.msra.mxu0 %v2393
    %3507 = vmatpush.bf16.msra.mxu0 %v2377
    %3508 = vmatpush.bf16.msra.mxu0 %v2361
    %3509 = vmatpush.bf16.msra.mxu0 %v2345
    %3510 = vmatpush.bf16.msra.mxu0 %v2329
    %3511 = vmatmul.bf16.gmra.mxu0 %v775
    %v3512 = vpop.f32.mrf.mxu0
    %v3513 = vadd.f32 %v721, %v3512
    %v3514 = vpop.f32.mrf.mxu0
    %v3515 = vadd.f32 %v721, %v3514
    %3516 = vmatmul.bf16.gmra.mxu0 %v779
    %v3517 = vpop.f32.mrf.mxu0
    %v3518 = vadd.f32 %v721, %v3517
    %v3519 = vpop.f32.mrf.mxu0
    %v3520 = vadd.f32 %v721, %v3519
    %3521 = vdwg.mxu0
    %3522 = vmatpush.bf16.msra.mxu0 %v2569
    %3523 = vmatpush.bf16.msra.mxu0 %v2553
    %3524 = vmatpush.bf16.msra.mxu0 %v2537
    %3525 = vmatpush.bf16.msra.mxu0 %v2521
    %3526 = vmatpush.bf16.msra.mxu0 %v2505
    %3527 = vmatpush.bf16.msra.mxu0 %v2489
    %3528 = vmatpush.bf16.msra.mxu0 %v2473
    %3529 = vmatpush.bf16.msra.mxu0 %v2457
    %3530 = vmatmul.bf16.gmra.mxu0 %v776
    %v3531 = vpop.f32.mrf.mxu0
    %v3532 = vadd.f32 %v3513, %v3531
    %v3533 = vpop.f32.mrf.mxu0
    %v3534 = vadd.f32 %v3515, %v3533
    %3535 = vmatmul.bf16.gmra.mxu0 %v780
    %v3536 = vpop.f32.mrf.mxu0
    %v3537 = vadd.f32 %v3518, %v3536
    %v3538 = vpop.f32.mrf.mxu0
    %v3539 = vadd.f32 %v3520, %v3538
    %3540 = vdwg.mxu0
    %3541 = vmatpush.bf16.msra.mxu0 %v2697
    %3542 = vmatpush.bf16.msra.mxu0 %v2681
    %3543 = vmatpush.bf16.msra.mxu0 %v2665
    %3544 = vmatpush.bf16.msra.mxu0 %v2649
    %3545 = vmatpush.bf16.msra.mxu0 %v2633
    %3546 = vmatpush.bf16.msra.mxu0 %v2617
    %3547 = vmatpush.bf16.msra.mxu0 %v2601
    %3548 = vmatpush.bf16.msra.mxu0 %v2585
    %3549 = vmatmul.bf16.gmra.mxu0 %v777
    %v3550 = vpop.f32.mrf.mxu0
    %v3551 = vadd.f32 %v3532, %v3550
    %v3552 = vpop.f32.mrf.mxu0
    %v3553 = vadd.f32 %v3534, %v3552
    %3554 = vmatmul.bf16.gmra.mxu0 %v781
    %v3555 = vpop.f32.mrf.mxu0
    %v3556 = vadd.f32 %v3537, %v3555
    %v3557 = vpop.f32.mrf.mxu0
    %v3558 = vadd.f32 %v3539, %v3557
    %3559 = vdwg.mxu0
    %3560 = vmatpush.bf16.msra.mxu0 %v2825
    %3561 = vmatpush.bf16.msra.mxu0 %v2809
    %3562 = vmatpush.bf16.msra.mxu0 %v2793
    %3563 = vmatpush.bf16.msra.mxu0 %v2777
    %3564 = vmatpush.bf16.msra.mxu0 %v2761
    %3565 = vmatpush.bf16.msra.mxu0 %v2745
    %3566 = vmatpush.bf16.msra.mxu0 %v2729
    %3567 = vmatpush.bf16.msra.mxu0 %v2713
    %3568 = vmatmul.bf16.gmra.mxu0 %v778
    %v3569 = vpop.f32.mrf.mxu0
    %v3570 = vadd.f32 %v3551, %v3569
    %v3571 = vpop.f32.mrf.mxu0
    %v3572 = vadd.f32 %v3553, %v3571
    %3573 = vmatmul.bf16.gmra.mxu0 %v782
    %v3574 = vpop.f32.mrf.mxu0
    %v3575 = vadd.f32 %v3556, %v3574
    %v3576 = vpop.f32.mrf.mxu0
    %v3577 = vadd.f32 %v3558, %v3576
    %3578 = vdwg.mxu0
    %3579 = vmatpush.bf16.msra.mxu0 %v2442
    %3580 = vmatpush.bf16.msra.mxu0 %v2426
    %3581 = vmatpush.bf16.msra.mxu0 %v2410
    %3582 = vmatpush.bf16.msra.mxu0 %v2394
    %3583 = vmatpush.bf16.msra.mxu0 %v2378
    %3584 = vmatpush.bf16.msra.mxu0 %v2362
    %3585 = vmatpush.bf16.msra.mxu0 %v2346
    %3586 = vmatpush.bf16.msra.mxu0 %v2330
    %3587 = vmatmul.bf16.gmra.mxu0 %v775
    %v3588 = vpop.f32.mrf.mxu0
    %v3589 = vadd.f32 %v722, %v3588
    %v3590 = vpop.f32.mrf.mxu0
    %v3591 = vadd.f32 %v722, %v3590
    %3592 = vmatmul.bf16.gmra.mxu0 %v779
    %v3593 = vpop.f32.mrf.mxu0
    %v3594 = vadd.f32 %v722, %v3593
    %v3595 = vpop.f32.mrf.mxu0
    %v3596 = vadd.f32 %v722, %v3595
    %3597 = vdwg.mxu0
    %3598 = vmatpush.bf16.msra.mxu0 %v2570
    %3599 = vmatpush.bf16.msra.mxu0 %v2554
    %3600 = vmatpush.bf16.msra.mxu0 %v2538
    %3601 = vmatpush.bf16.msra.mxu0 %v2522
    %3602 = vmatpush.bf16.msra.mxu0 %v2506
    %3603 = vmatpush.bf16.msra.mxu0 %v2490
    %3604 = vmatpush.bf16.msra.mxu0 %v2474
    %3605 = vmatpush.bf16.msra.mxu0 %v2458
    %3606 = vmatmul.bf16.gmra.mxu0 %v776
    %v3607 = vpop.f32.mrf.mxu0
    %v3608 = vadd.f32 %v3589, %v3607
    %v3609 = vpop.f32.mrf.mxu0
    %v3610 = vadd.f32 %v3591, %v3609
    %3611 = vmatmul.bf16.gmra.mxu0 %v780
    %v3612 = vpop.f32.mrf.mxu0
    %v3613 = vadd.f32 %v3594, %v3612
    %v3614 = vpop.f32.mrf.mxu0
    %v3615 = vadd.f32 %v3596, %v3614
    %3616 = vdwg.mxu0
    %3617 = vmatpush.bf16.msra.mxu0 %v2698
    %3618 = vmatpush.bf16.msra.mxu0 %v2682
    %3619 = vmatpush.bf16.msra.mxu0 %v2666
    %3620 = vmatpush.bf16.msra.mxu0 %v2650
    %3621 = vmatpush.bf16.msra.mxu0 %v2634
    %3622 = vmatpush.bf16.msra.mxu0 %v2618
    %3623 = vmatpush.bf16.msra.mxu0 %v2602
    %3624 = vmatpush.bf16.msra.mxu0 %v2586
    %3625 = vmatmul.bf16.gmra.mxu0 %v777
    %v3626 = vpop.f32.mrf.mxu0
    %v3627 = vadd.f32 %v3608, %v3626
    %v3628 = vpop.f32.mrf.mxu0
    %v3629 = vadd.f32 %v3610, %v3628
    %3630 = vmatmul.bf16.gmra.mxu0 %v781
    %v3631 = vpop.f32.mrf.mxu0
    %v3632 = vadd.f32 %v3613, %v3631
    %v3633 = vpop.f32.mrf.mxu0
    %v3634 = vadd.f32 %v3615, %v3633
    %3635 = vdwg.mxu0
    %3636 = vmatpush.bf16.msra.mxu0 %v2826
    %3637 = vmatpush.bf16.msra.mxu0 %v2810
    %3638 = vmatpush.bf16.msra.mxu0 %v2794
    %3639 = vmatpush.bf16.msra.mxu0 %v2778
    %3640 = vmatpush.bf16.msra.mxu0 %v2762
    %3641 = vmatpush.bf16.msra.mxu0 %v2746
    %3642 = vmatpush.bf16.msra.mxu0 %v2730
    %3643 = vmatpush.bf16.msra.mxu0 %v2714
    %3644 = vmatmul.bf16.gmra.mxu0 %v778
    %v3645 = vpop.f32.mrf.mxu0
    %v3646 = vadd.f32 %v3627, %v3645
    %v3647 = vpop.f32.mrf.mxu0
    %v3648 = vadd.f32 %v3629, %v3647
    %3649 = vmatmul.bf16.gmra.mxu0 %v782
    %v3650 = vpop.f32.mrf.mxu0
    %v3651 = vadd.f32 %v3632, %v3650
    %v3652 = vpop.f32.mrf.mxu0
    %v3653 = vadd.f32 %v3634, %v3652
    %3654 = vdwg.mxu0
    %3655 = vmatpush.bf16.msra.mxu0 %v2443
    %3656 = vmatpush.bf16.msra.mxu0 %v2427
    %3657 = vmatpush.bf16.msra.mxu0 %v2411
    %3658 = vmatpush.bf16.msra.mxu0 %v2395
    %3659 = vmatpush.bf16.msra.mxu0 %v2379
    %3660 = vmatpush.bf16.msra.mxu0 %v2363
    %3661 = vmatpush.bf16.msra.mxu0 %v2347
    %3662 = vmatpush.bf16.msra.mxu0 %v2331
    %3663 = vmatmul.bf16.gmra.mxu0 %v775
    %v3664 = vpop.f32.mrf.mxu0
    %v3665 = vadd.f32 %v723, %v3664
    %v3666 = vpop.f32.mrf.mxu0
    %v3667 = vadd.f32 %v723, %v3666
    %3668 = vmatmul.bf16.gmra.mxu0 %v779
    %v3669 = vpop.f32.mrf.mxu0
    %v3670 = vadd.f32 %v723, %v3669
    %v3671 = vpop.f32.mrf.mxu0
    %v3672 = vadd.f32 %v723, %v3671
    %3673 = vdwg.mxu0
    %3674 = vmatpush.bf16.msra.mxu0 %v2571
    %3675 = vmatpush.bf16.msra.mxu0 %v2555
    %3676 = vmatpush.bf16.msra.mxu0 %v2539
    %3677 = vmatpush.bf16.msra.mxu0 %v2523
    %3678 = vmatpush.bf16.msra.mxu0 %v2507
    %3679 = vmatpush.bf16.msra.mxu0 %v2491
    %3680 = vmatpush.bf16.msra.mxu0 %v2475
    %3681 = vmatpush.bf16.msra.mxu0 %v2459
    %3682 = vmatmul.bf16.gmra.mxu0 %v776
    %v3683 = vpop.f32.mrf.mxu0
    %v3684 = vadd.f32 %v3665, %v3683
    %v3685 = vpop.f32.mrf.mxu0
    %v3686 = vadd.f32 %v3667, %v3685
    %3687 = vmatmul.bf16.gmra.mxu0 %v780
    %v3688 = vpop.f32.mrf.mxu0
    %v3689 = vadd.f32 %v3670, %v3688
    %v3690 = vpop.f32.mrf.mxu0
    %v3691 = vadd.f32 %v3672, %v3690
    %3692 = vdwg.mxu0
    %3693 = vmatpush.bf16.msra.mxu0 %v2699
    %3694 = vmatpush.bf16.msra.mxu0 %v2683
    %3695 = vmatpush.bf16.msra.mxu0 %v2667
    %3696 = vmatpush.bf16.msra.mxu0 %v2651
    %3697 = vmatpush.bf16.msra.mxu0 %v2635
    %3698 = vmatpush.bf16.msra.mxu0 %v2619
    %3699 = vmatpush.bf16.msra.mxu0 %v2603
    %3700 = vmatpush.bf16.msra.mxu0 %v2587
    %3701 = vmatmul.bf16.gmra.mxu0 %v777
    %v3702 = vpop.f32.mrf.mxu0
    %v3703 = vadd.f32 %v3684, %v3702
    %v3704 = vpop.f32.mrf.mxu0
    %v3705 = vadd.f32 %v3686, %v3704
    %3706 = vmatmul.bf16.gmra.mxu0 %v781
    %v3707 = vpop.f32.mrf.mxu0
    %v3708 = vadd.f32 %v3689, %v3707
    %v3709 = vpop.f32.mrf.mxu0
    %v3710 = vadd.f32 %v3691, %v3709
    %3711 = vdwg.mxu0
    %3712 = vmatpush.bf16.msra.mxu0 %v2827
    %3713 = vmatpush.bf16.msra.mxu0 %v2811
    %3714 = vmatpush.bf16.msra.mxu0 %v2795
    %3715 = vmatpush.bf16.msra.mxu0 %v2779
    %3716 = vmatpush.bf16.msra.mxu0 %v2763
    %3717 = vmatpush.bf16.msra.mxu0 %v2747
    %3718 = vmatpush.bf16.msra.mxu0 %v2731
    %3719 = vmatpush.bf16.msra.mxu0 %v2715
    %3720 = vmatmul.bf16.gmra.mxu0 %v778
    %v3721 = vpop.f32.mrf.mxu0
    %v3722 = vadd.f32 %v3703, %v3721
    %v3723 = vpop.f32.mrf.mxu0
    %v3724 = vadd.f32 %v3705, %v3723
    %3725 = vmatmul.bf16.gmra.mxu0 %v782
    %v3726 = vpop.f32.mrf.mxu0
    %v3727 = vadd.f32 %v3708, %v3726
    %v3728 = vpop.f32.mrf.mxu0
    %v3729 = vadd.f32 %v3710, %v3728
    %3730 = vdwg.mxu0
    %3731 = vmatpush.bf16.msra.mxu0 %v2444
    %3732 = vmatpush.bf16.msra.mxu0 %v2428
    %3733 = vmatpush.bf16.msra.mxu0 %v2412
    %3734 = vmatpush.bf16.msra.mxu0 %v2396
    %3735 = vmatpush.bf16.msra.mxu0 %v2380
    %3736 = vmatpush.bf16.msra.mxu0 %v2364
    %3737 = vmatpush.bf16.msra.mxu0 %v2348
    %3738 = vmatpush.bf16.msra.mxu0 %v2332
    %3739 = vmatmul.bf16.gmra.mxu0 %v775
    %v3740 = vpop.f32.mrf.mxu0
    %v3741 = vadd.f32 %v724, %v3740
    %v3742 = vpop.f32.mrf.mxu0
    %v3743 = vadd.f32 %v724, %v3742
    %3744 = vmatmul.bf16.gmra.mxu0 %v779
    %v3745 = vpop.f32.mrf.mxu0
    %v3746 = vadd.f32 %v724, %v3745
    %v3747 = vpop.f32.mrf.mxu0
    %v3748 = vadd.f32 %v724, %v3747
    %3749 = vdwg.mxu0
    %3750 = vmatpush.bf16.msra.mxu0 %v2572
    %3751 = vmatpush.bf16.msra.mxu0 %v2556
    %3752 = vmatpush.bf16.msra.mxu0 %v2540
    %3753 = vmatpush.bf16.msra.mxu0 %v2524
    %3754 = vmatpush.bf16.msra.mxu0 %v2508
    %3755 = vmatpush.bf16.msra.mxu0 %v2492
    %3756 = vmatpush.bf16.msra.mxu0 %v2476
    %3757 = vmatpush.bf16.msra.mxu0 %v2460
    %3758 = vmatmul.bf16.gmra.mxu0 %v776
    %v3759 = vpop.f32.mrf.mxu0
    %v3760 = vadd.f32 %v3741, %v3759
    %v3761 = vpop.f32.mrf.mxu0
    %v3762 = vadd.f32 %v3743, %v3761
    %3763 = vmatmul.bf16.gmra.mxu0 %v780
    %v3764 = vpop.f32.mrf.mxu0
    %v3765 = vadd.f32 %v3746, %v3764
    %v3766 = vpop.f32.mrf.mxu0
    %v3767 = vadd.f32 %v3748, %v3766
    %3768 = vdwg.mxu0
    %3769 = vmatpush.bf16.msra.mxu0 %v2700
    %3770 = vmatpush.bf16.msra.mxu0 %v2684
    %3771 = vmatpush.bf16.msra.mxu0 %v2668
    %3772 = vmatpush.bf16.msra.mxu0 %v2652
    %3773 = vmatpush.bf16.msra.mxu0 %v2636
    %3774 = vmatpush.bf16.msra.mxu0 %v2620
    %3775 = vmatpush.bf16.msra.mxu0 %v2604
    %3776 = vmatpush.bf16.msra.mxu0 %v2588
    %3777 = vmatmul.bf16.gmra.mxu0 %v777
    %v3778 = vpop.f32.mrf.mxu0
    %v3779 = vadd.f32 %v3760, %v3778
    %v3780 = vpop.f32.mrf.mxu0
    %v3781 = vadd.f32 %v3762, %v3780
    %3782 = vmatmul.bf16.gmra.mxu0 %v781
    %v3783 = vpop.f32.mrf.mxu0
    %v3784 = vadd.f32 %v3765, %v3783
    %v3785 = vpop.f32.mrf.mxu0
    %v3786 = vadd.f32 %v3767, %v3785
    %3787 = vdwg.mxu0
    %3788 = vmatpush.bf16.msra.mxu0 %v2828
    %3789 = vmatpush.bf16.msra.mxu0 %v2812
    %3790 = vmatpush.bf16.msra.mxu0 %v2796
    %3791 = vmatpush.bf16.msra.mxu0 %v2780
    %3792 = vmatpush.bf16.msra.mxu0 %v2764
    %3793 = vmatpush.bf16.msra.mxu0 %v2748
    %3794 = vmatpush.bf16.msra.mxu0 %v2732
    %3795 = vmatpush.bf16.msra.mxu0 %v2716
    %3796 = vmatmul.bf16.gmra.mxu0 %v778
    %v3797 = vpop.f32.mrf.mxu0
    %v3798 = vadd.f32 %v3779, %v3797
    %v3799 = vpop.f32.mrf.mxu0
    %v3800 = vadd.f32 %v3781, %v3799
    %3801 = vmatmul.bf16.gmra.mxu0 %v782
    %v3802 = vpop.f32.mrf.mxu0
    %v3803 = vadd.f32 %v3784, %v3802
    %v3804 = vpop.f32.mrf.mxu0
    %v3805 = vadd.f32 %v3786, %v3804
    %3806 = vdwg.mxu0
    %3807 = vmatpush.bf16.msra.mxu0 %v2445
    %3808 = vmatpush.bf16.msra.mxu0 %v2429
    %3809 = vmatpush.bf16.msra.mxu0 %v2413
    %3810 = vmatpush.bf16.msra.mxu0 %v2397
    %3811 = vmatpush.bf16.msra.mxu0 %v2381
    %3812 = vmatpush.bf16.msra.mxu0 %v2365
    %3813 = vmatpush.bf16.msra.mxu0 %v2349
    %3814 = vmatpush.bf16.msra.mxu0 %v2333
    %3815 = vmatmul.bf16.gmra.mxu0 %v775
    %v3816 = vpop.f32.mrf.mxu0
    %v3817 = vadd.f32 %v725, %v3816
    %v3818 = vpop.f32.mrf.mxu0
    %v3819 = vadd.f32 %v725, %v3818
    %3820 = vmatmul.bf16.gmra.mxu0 %v779
    %v3821 = vpop.f32.mrf.mxu0
    %v3822 = vadd.f32 %v725, %v3821
    %v3823 = vpop.f32.mrf.mxu0
    %v3824 = vadd.f32 %v725, %v3823
    %3825 = vdwg.mxu0
    %3826 = vmatpush.bf16.msra.mxu0 %v2573
    %3827 = vmatpush.bf16.msra.mxu0 %v2557
    %3828 = vmatpush.bf16.msra.mxu0 %v2541
    %3829 = vmatpush.bf16.msra.mxu0 %v2525
    %3830 = vmatpush.bf16.msra.mxu0 %v2509
    %3831 = vmatpush.bf16.msra.mxu0 %v2493
    %3832 = vmatpush.bf16.msra.mxu0 %v2477
    %3833 = vmatpush.bf16.msra.mxu0 %v2461
    %3834 = vmatmul.bf16.gmra.mxu0 %v776
    %v3835 = vpop.f32.mrf.mxu0
    %v3836 = vadd.f32 %v3817, %v3835
    %v3837 = vpop.f32.mrf.mxu0
    %v3838 = vadd.f32 %v3819, %v3837
    %3839 = vmatmul.bf16.gmra.mxu0 %v780
    %v3840 = vpop.f32.mrf.mxu0
    %v3841 = vadd.f32 %v3822, %v3840
    %v3842 = vpop.f32.mrf.mxu0
    %v3843 = vadd.f32 %v3824, %v3842
    %3844 = vdwg.mxu0
    %3845 = vmatpush.bf16.msra.mxu0 %v2701
    %3846 = vmatpush.bf16.msra.mxu0 %v2685
    %3847 = vmatpush.bf16.msra.mxu0 %v2669
    %3848 = vmatpush.bf16.msra.mxu0 %v2653
    %3849 = vmatpush.bf16.msra.mxu0 %v2637
    %3850 = vmatpush.bf16.msra.mxu0 %v2621
    %3851 = vmatpush.bf16.msra.mxu0 %v2605
    %3852 = vmatpush.bf16.msra.mxu0 %v2589
    %3853 = vmatmul.bf16.gmra.mxu0 %v777
    %v3854 = vpop.f32.mrf.mxu0
    %v3855 = vadd.f32 %v3836, %v3854
    %v3856 = vpop.f32.mrf.mxu0
    %v3857 = vadd.f32 %v3838, %v3856
    %3858 = vmatmul.bf16.gmra.mxu0 %v781
    %v3859 = vpop.f32.mrf.mxu0
    %v3860 = vadd.f32 %v3841, %v3859
    %v3861 = vpop.f32.mrf.mxu0
    %v3862 = vadd.f32 %v3843, %v3861
    %3863 = vdwg.mxu0
    %3864 = vmatpush.bf16.msra.mxu0 %v2829
    %3865 = vmatpush.bf16.msra.mxu0 %v2813
    %3866 = vmatpush.bf16.msra.mxu0 %v2797
    %3867 = vmatpush.bf16.msra.mxu0 %v2781
    %3868 = vmatpush.bf16.msra.mxu0 %v2765
    %3869 = vmatpush.bf16.msra.mxu0 %v2749
    %3870 = vmatpush.bf16.msra.mxu0 %v2733
    %3871 = vmatpush.bf16.msra.mxu0 %v2717
    %3872 = vmatmul.bf16.gmra.mxu0 %v778
    %v3873 = vpop.f32.mrf.mxu0
    %v3874 = vadd.f32 %v3855, %v3873
    %v3875 = vpop.f32.mrf.mxu0
    %v3876 = vadd.f32 %v3857, %v3875
    %3877 = vmatmul.bf16.gmra.mxu0 %v782
    %v3878 = vpop.f32.mrf.mxu0
    %v3879 = vadd.f32 %v3860, %v3878
    %v3880 = vpop.f32.mrf.mxu0
    %v3881 = vadd.f32 %v3862, %v3880
    %3882 = vdwg.mxu0
    %3883 = vmatpush.bf16.msra.mxu0 %v2446
    %3884 = vmatpush.bf16.msra.mxu0 %v2430
    %3885 = vmatpush.bf16.msra.mxu0 %v2414
    %3886 = vmatpush.bf16.msra.mxu0 %v2398
    %3887 = vmatpush.bf16.msra.mxu0 %v2382
    %3888 = vmatpush.bf16.msra.mxu0 %v2366
    %3889 = vmatpush.bf16.msra.mxu0 %v2350
    %3890 = vmatpush.bf16.msra.mxu0 %v2334
    %3891 = vmatmul.bf16.gmra.mxu0 %v775
    %v3892 = vpop.f32.mrf.mxu0
    %v3893 = vadd.f32 %v726, %v3892
    %v3894 = vpop.f32.mrf.mxu0
    %v3895 = vadd.f32 %v726, %v3894
    %3896 = vmatmul.bf16.gmra.mxu0 %v779
    %v3897 = vpop.f32.mrf.mxu0
    %v3898 = vadd.f32 %v726, %v3897
    %v3899 = vpop.f32.mrf.mxu0
    %v3900 = vadd.f32 %v726, %v3899
    %3901 = vdwg.mxu0
    %3902 = vmatpush.bf16.msra.mxu0 %v2574
    %3903 = vmatpush.bf16.msra.mxu0 %v2558
    %3904 = vmatpush.bf16.msra.mxu0 %v2542
    %3905 = vmatpush.bf16.msra.mxu0 %v2526
    %3906 = vmatpush.bf16.msra.mxu0 %v2510
    %3907 = vmatpush.bf16.msra.mxu0 %v2494
    %3908 = vmatpush.bf16.msra.mxu0 %v2478
    %3909 = vmatpush.bf16.msra.mxu0 %v2462
    %3910 = vmatmul.bf16.gmra.mxu0 %v776
    %v3911 = vpop.f32.mrf.mxu0
    %v3912 = vadd.f32 %v3893, %v3911
    %v3913 = vpop.f32.mrf.mxu0
    %v3914 = vadd.f32 %v3895, %v3913
    %3915 = vmatmul.bf16.gmra.mxu0 %v780
    %v3916 = vpop.f32.mrf.mxu0
    %v3917 = vadd.f32 %v3898, %v3916
    %v3918 = vpop.f32.mrf.mxu0
    %v3919 = vadd.f32 %v3900, %v3918
    %3920 = vdwg.mxu0
    %3921 = vmatpush.bf16.msra.mxu0 %v2702
    %3922 = vmatpush.bf16.msra.mxu0 %v2686
    %3923 = vmatpush.bf16.msra.mxu0 %v2670
    %3924 = vmatpush.bf16.msra.mxu0 %v2654
    %3925 = vmatpush.bf16.msra.mxu0 %v2638
    %3926 = vmatpush.bf16.msra.mxu0 %v2622
    %3927 = vmatpush.bf16.msra.mxu0 %v2606
    %3928 = vmatpush.bf16.msra.mxu0 %v2590
    %3929 = vmatmul.bf16.gmra.mxu0 %v777
    %v3930 = vpop.f32.mrf.mxu0
    %v3931 = vadd.f32 %v3912, %v3930
    %v3932 = vpop.f32.mrf.mxu0
    %v3933 = vadd.f32 %v3914, %v3932
    %3934 = vmatmul.bf16.gmra.mxu0 %v781
    %v3935 = vpop.f32.mrf.mxu0
    %v3936 = vadd.f32 %v3917, %v3935
    %v3937 = vpop.f32.mrf.mxu0
    %v3938 = vadd.f32 %v3919, %v3937
    %3939 = vdwg.mxu0
    %3940 = vmatpush.bf16.msra.mxu0 %v2830
    %3941 = vmatpush.bf16.msra.mxu0 %v2814
    %3942 = vmatpush.bf16.msra.mxu0 %v2798
    %3943 = vmatpush.bf16.msra.mxu0 %v2782
    %3944 = vmatpush.bf16.msra.mxu0 %v2766
    %3945 = vmatpush.bf16.msra.mxu0 %v2750
    %3946 = vmatpush.bf16.msra.mxu0 %v2734
    %3947 = vmatpush.bf16.msra.mxu0 %v2718
    %3948 = vmatmul.bf16.gmra.mxu0 %v778
    %v3949 = vpop.f32.mrf.mxu0
    %v3950 = vadd.f32 %v3931, %v3949
    %v3951 = vpop.f32.mrf.mxu0
    %v3952 = vadd.f32 %v3933, %v3951
    %3953 = vmatmul.bf16.gmra.mxu0 %v782
    %v3954 = vpop.f32.mrf.mxu0
    %v3955 = vadd.f32 %v3936, %v3954
    %v3956 = vpop.f32.mrf.mxu0
    %v3957 = vadd.f32 %v3938, %v3956
    %3958 = vdwg.mxu0
    %3959 = vmatpush.bf16.msra.mxu0 %v2447
    %3960 = vmatpush.bf16.msra.mxu0 %v2431
    %3961 = vmatpush.bf16.msra.mxu0 %v2415
    %3962 = vmatpush.bf16.msra.mxu0 %v2399
    %3963 = vmatpush.bf16.msra.mxu0 %v2383
    %3964 = vmatpush.bf16.msra.mxu0 %v2367
    %3965 = vmatpush.bf16.msra.mxu0 %v2351
    %3966 = vmatpush.bf16.msra.mxu0 %v2335
    %3967 = vmatmul.bf16.gmra.mxu0 %v775
    %v3968 = vpop.f32.mrf.mxu0
    %v3969 = vadd.f32 %v727, %v3968
    %v3970 = vpop.f32.mrf.mxu0
    %v3971 = vadd.f32 %v727, %v3970
    %3972 = vmatmul.bf16.gmra.mxu0 %v779
    %v3973 = vpop.f32.mrf.mxu0
    %v3974 = vadd.f32 %v727, %v3973
    %v3975 = vpop.f32.mrf.mxu0
    %v3976 = vadd.f32 %v727, %v3975
    %3977 = vdwg.mxu0
    %3978 = vmatpush.bf16.msra.mxu0 %v2575
    %3979 = vmatpush.bf16.msra.mxu0 %v2559
    %3980 = vmatpush.bf16.msra.mxu0 %v2543
    %3981 = vmatpush.bf16.msra.mxu0 %v2527
    %3982 = vmatpush.bf16.msra.mxu0 %v2511
    %3983 = vmatpush.bf16.msra.mxu0 %v2495
    %3984 = vmatpush.bf16.msra.mxu0 %v2479
    %3985 = vmatpush.bf16.msra.mxu0 %v2463
    %3986 = vmatmul.bf16.gmra.mxu0 %v776
    %v3987 = vpop.f32.mrf.mxu0
    %v3988 = vadd.f32 %v3969, %v3987
    %v3989 = vpop.f32.mrf.mxu0
    %v3990 = vadd.f32 %v3971, %v3989
    %3991 = vmatmul.bf16.gmra.mxu0 %v780
    %v3992 = vpop.f32.mrf.mxu0
    %v3993 = vadd.f32 %v3974, %v3992
    %v3994 = vpop.f32.mrf.mxu0
    %v3995 = vadd.f32 %v3976, %v3994
    %3996 = vdwg.mxu0
    %3997 = vmatpush.bf16.msra.mxu0 %v2703
    %3998 = vmatpush.bf16.msra.mxu0 %v2687
    %3999 = vmatpush.bf16.msra.mxu0 %v2671
    %4000 = vmatpush.bf16.msra.mxu0 %v2655
    %4001 = vmatpush.bf16.msra.mxu0 %v2639
    %4002 = vmatpush.bf16.msra.mxu0 %v2623
    %4003 = vmatpush.bf16.msra.mxu0 %v2607
    %4004 = vmatpush.bf16.msra.mxu0 %v2591
    %4005 = vmatmul.bf16.gmra.mxu0 %v777
    %v4006 = vpop.f32.mrf.mxu0
    %v4007 = vadd.f32 %v3988, %v4006
    %v4008 = vpop.f32.mrf.mxu0
    %v4009 = vadd.f32 %v3990, %v4008
    %4010 = vmatmul.bf16.gmra.mxu0 %v781
    %v4011 = vpop.f32.mrf.mxu0
    %v4012 = vadd.f32 %v3993, %v4011
    %v4013 = vpop.f32.mrf.mxu0
    %v4014 = vadd.f32 %v3995, %v4013
    %4015 = vdwg.mxu0
    %4016 = vmatpush.bf16.msra.mxu0 %v2831
    %4017 = vmatpush.bf16.msra.mxu0 %v2815
    %4018 = vmatpush.bf16.msra.mxu0 %v2799
    %4019 = vmatpush.bf16.msra.mxu0 %v2783
    %4020 = vmatpush.bf16.msra.mxu0 %v2767
    %4021 = vmatpush.bf16.msra.mxu0 %v2751
    %4022 = vmatpush.bf16.msra.mxu0 %v2735
    %4023 = vmatpush.bf16.msra.mxu0 %v2719
    %4024 = vmatmul.bf16.gmra.mxu0 %v778
    %v4025 = vpop.f32.mrf.mxu0
    %v4026 = vadd.f32 %v4007, %v4025
    %v4027 = vpop.f32.mrf.mxu0
    %v4028 = vadd.f32 %v4009, %v4027
    %4029 = vmatmul.bf16.gmra.mxu0 %v782
    %v4030 = vpop.f32.mrf.mxu0
    %v4031 = vadd.f32 %v4012, %v4030
    %v4032 = vpop.f32.mrf.mxu0
    %v4033 = vadd.f32 %v4014, %v4032
    %4034 = vdwg.mxu0
    %4035 = vmatpush.bf16.msra.mxu0 %v2448
    %4036 = vmatpush.bf16.msra.mxu0 %v2432
    %4037 = vmatpush.bf16.msra.mxu0 %v2416
    %4038 = vmatpush.bf16.msra.mxu0 %v2400
    %4039 = vmatpush.bf16.msra.mxu0 %v2384
    %4040 = vmatpush.bf16.msra.mxu0 %v2368
    %4041 = vmatpush.bf16.msra.mxu0 %v2352
    %4042 = vmatpush.bf16.msra.mxu0 %v2336
    %4043 = vmatmul.bf16.gmra.mxu0 %v775
    %v4044 = vpop.f32.mrf.mxu0
    %v4045 = vadd.f32 %v728, %v4044
    %v4046 = vpop.f32.mrf.mxu0
    %v4047 = vadd.f32 %v728, %v4046
    %4048 = vmatmul.bf16.gmra.mxu0 %v779
    %v4049 = vpop.f32.mrf.mxu0
    %v4050 = vadd.f32 %v728, %v4049
    %v4051 = vpop.f32.mrf.mxu0
    %v4052 = vadd.f32 %v728, %v4051
    %4053 = vdwg.mxu0
    %4054 = vmatpush.bf16.msra.mxu0 %v2576
    %4055 = vmatpush.bf16.msra.mxu0 %v2560
    %4056 = vmatpush.bf16.msra.mxu0 %v2544
    %4057 = vmatpush.bf16.msra.mxu0 %v2528
    %4058 = vmatpush.bf16.msra.mxu0 %v2512
    %4059 = vmatpush.bf16.msra.mxu0 %v2496
    %4060 = vmatpush.bf16.msra.mxu0 %v2480
    %4061 = vmatpush.bf16.msra.mxu0 %v2464
    %4062 = vmatmul.bf16.gmra.mxu0 %v776
    %v4063 = vpop.f32.mrf.mxu0
    %v4064 = vadd.f32 %v4045, %v4063
    %v4065 = vpop.f32.mrf.mxu0
    %v4066 = vadd.f32 %v4047, %v4065
    %4067 = vmatmul.bf16.gmra.mxu0 %v780
    %v4068 = vpop.f32.mrf.mxu0
    %v4069 = vadd.f32 %v4050, %v4068
    %v4070 = vpop.f32.mrf.mxu0
    %v4071 = vadd.f32 %v4052, %v4070
    %4072 = vdwg.mxu0
    %4073 = vmatpush.bf16.msra.mxu0 %v2704
    %4074 = vmatpush.bf16.msra.mxu0 %v2688
    %4075 = vmatpush.bf16.msra.mxu0 %v2672
    %4076 = vmatpush.bf16.msra.mxu0 %v2656
    %4077 = vmatpush.bf16.msra.mxu0 %v2640
    %4078 = vmatpush.bf16.msra.mxu0 %v2624
    %4079 = vmatpush.bf16.msra.mxu0 %v2608
    %4080 = vmatpush.bf16.msra.mxu0 %v2592
    %4081 = vmatmul.bf16.gmra.mxu0 %v777
    %v4082 = vpop.f32.mrf.mxu0
    %v4083 = vadd.f32 %v4064, %v4082
    %v4084 = vpop.f32.mrf.mxu0
    %v4085 = vadd.f32 %v4066, %v4084
    %4086 = vmatmul.bf16.gmra.mxu0 %v781
    %v4087 = vpop.f32.mrf.mxu0
    %v4088 = vadd.f32 %v4069, %v4087
    %v4089 = vpop.f32.mrf.mxu0
    %v4090 = vadd.f32 %v4071, %v4089
    %4091 = vdwg.mxu0
    %4092 = vmatpush.bf16.msra.mxu0 %v2832
    %4093 = vmatpush.bf16.msra.mxu0 %v2816
    %4094 = vmatpush.bf16.msra.mxu0 %v2800
    %4095 = vmatpush.bf16.msra.mxu0 %v2784
    %4096 = vmatpush.bf16.msra.mxu0 %v2768
    %4097 = vmatpush.bf16.msra.mxu0 %v2752
    %4098 = vmatpush.bf16.msra.mxu0 %v2736
    %4099 = vmatpush.bf16.msra.mxu0 %v2720
    %4100 = vmatmul.bf16.gmra.mxu0 %v778
    %v4101 = vpop.f32.mrf.mxu0
    %v4102 = vadd.f32 %v4083, %v4101
    %v4103 = vpop.f32.mrf.mxu0
    %v4104 = vadd.f32 %v4085, %v4103
    %4105 = vmatmul.bf16.gmra.mxu0 %v782
    %v4106 = vpop.f32.mrf.mxu0
    %v4107 = vadd.f32 %v4088, %v4106
    %v4108 = vpop.f32.mrf.mxu0
    %v4109 = vadd.f32 %v4090, %v4108
    %4110 = vdwg.mxu0
    %4111 = vmatpush.bf16.msra.mxu0 %v2449
    %4112 = vmatpush.bf16.msra.mxu0 %v2433
    %4113 = vmatpush.bf16.msra.mxu0 %v2417
    %4114 = vmatpush.bf16.msra.mxu0 %v2401
    %4115 = vmatpush.bf16.msra.mxu0 %v2385
    %4116 = vmatpush.bf16.msra.mxu0 %v2369
    %4117 = vmatpush.bf16.msra.mxu0 %v2353
    %4118 = vmatpush.bf16.msra.mxu0 %v2337
    %4119 = vmatmul.bf16.gmra.mxu0 %v775
    %v4120 = vpop.f32.mrf.mxu0
    %v4121 = vadd.f32 %v729, %v4120
    %v4122 = vpop.f32.mrf.mxu0
    %v4123 = vadd.f32 %v729, %v4122
    %4124 = vmatmul.bf16.gmra.mxu0 %v779
    %v4125 = vpop.f32.mrf.mxu0
    %v4126 = vadd.f32 %v729, %v4125
    %v4127 = vpop.f32.mrf.mxu0
    %v4128 = vadd.f32 %v729, %v4127
    %4129 = vdwg.mxu0
    %4130 = vmatpush.bf16.msra.mxu0 %v2577
    %4131 = vmatpush.bf16.msra.mxu0 %v2561
    %4132 = vmatpush.bf16.msra.mxu0 %v2545
    %4133 = vmatpush.bf16.msra.mxu0 %v2529
    %4134 = vmatpush.bf16.msra.mxu0 %v2513
    %4135 = vmatpush.bf16.msra.mxu0 %v2497
    %4136 = vmatpush.bf16.msra.mxu0 %v2481
    %4137 = vmatpush.bf16.msra.mxu0 %v2465
    %4138 = vmatmul.bf16.gmra.mxu0 %v776
    %v4139 = vpop.f32.mrf.mxu0
    %v4140 = vadd.f32 %v4121, %v4139
    %v4141 = vpop.f32.mrf.mxu0
    %v4142 = vadd.f32 %v4123, %v4141
    %4143 = vmatmul.bf16.gmra.mxu0 %v780
    %v4144 = vpop.f32.mrf.mxu0
    %v4145 = vadd.f32 %v4126, %v4144
    %v4146 = vpop.f32.mrf.mxu0
    %v4147 = vadd.f32 %v4128, %v4146
    %4148 = vdwg.mxu0
    %4149 = vmatpush.bf16.msra.mxu0 %v2705
    %4150 = vmatpush.bf16.msra.mxu0 %v2689
    %4151 = vmatpush.bf16.msra.mxu0 %v2673
    %4152 = vmatpush.bf16.msra.mxu0 %v2657
    %4153 = vmatpush.bf16.msra.mxu0 %v2641
    %4154 = vmatpush.bf16.msra.mxu0 %v2625
    %4155 = vmatpush.bf16.msra.mxu0 %v2609
    %4156 = vmatpush.bf16.msra.mxu0 %v2593
    %4157 = vmatmul.bf16.gmra.mxu0 %v777
    %v4158 = vpop.f32.mrf.mxu0
    %v4159 = vadd.f32 %v4140, %v4158
    %v4160 = vpop.f32.mrf.mxu0
    %v4161 = vadd.f32 %v4142, %v4160
    %4162 = vmatmul.bf16.gmra.mxu0 %v781
    %v4163 = vpop.f32.mrf.mxu0
    %v4164 = vadd.f32 %v4145, %v4163
    %v4165 = vpop.f32.mrf.mxu0
    %v4166 = vadd.f32 %v4147, %v4165
    %4167 = vdwg.mxu0
    %4168 = vmatpush.bf16.msra.mxu0 %v2833
    %4169 = vmatpush.bf16.msra.mxu0 %v2817
    %4170 = vmatpush.bf16.msra.mxu0 %v2801
    %4171 = vmatpush.bf16.msra.mxu0 %v2785
    %4172 = vmatpush.bf16.msra.mxu0 %v2769
    %4173 = vmatpush.bf16.msra.mxu0 %v2753
    %4174 = vmatpush.bf16.msra.mxu0 %v2737
    %4175 = vmatpush.bf16.msra.mxu0 %v2721
    %4176 = vmatmul.bf16.gmra.mxu0 %v778
    %v4177 = vpop.f32.mrf.mxu0
    %v4178 = vadd.f32 %v4159, %v4177
    %v4179 = vpop.f32.mrf.mxu0
    %v4180 = vadd.f32 %v4161, %v4179
    %4181 = vmatmul.bf16.gmra.mxu0 %v782
    %v4182 = vpop.f32.mrf.mxu0
    %v4183 = vadd.f32 %v4164, %v4182
    %v4184 = vpop.f32.mrf.mxu0
    %v4185 = vadd.f32 %v4166, %v4184
    %4186 = vdwg.mxu0
    %4187 = vmatpush.bf16.msra.mxu0 %v2450
    %4188 = vmatpush.bf16.msra.mxu0 %v2434
    %4189 = vmatpush.bf16.msra.mxu0 %v2418
    %4190 = vmatpush.bf16.msra.mxu0 %v2402
    %4191 = vmatpush.bf16.msra.mxu0 %v2386
    %4192 = vmatpush.bf16.msra.mxu0 %v2370
    %4193 = vmatpush.bf16.msra.mxu0 %v2354
    %4194 = vmatpush.bf16.msra.mxu0 %v2338
    %4195 = vmatmul.bf16.gmra.mxu0 %v775
    %v4196 = vpop.f32.mrf.mxu0
    %v4197 = vadd.f32 %v730, %v4196
    %v4198 = vpop.f32.mrf.mxu0
    %v4199 = vadd.f32 %v730, %v4198
    %4200 = vmatmul.bf16.gmra.mxu0 %v779
    %v4201 = vpop.f32.mrf.mxu0
    %v4202 = vadd.f32 %v730, %v4201
    %v4203 = vpop.f32.mrf.mxu0
    %v4204 = vadd.f32 %v730, %v4203
    %4205 = vdwg.mxu0
    %4206 = vmatpush.bf16.msra.mxu0 %v2578
    %4207 = vmatpush.bf16.msra.mxu0 %v2562
    %4208 = vmatpush.bf16.msra.mxu0 %v2546
    %4209 = vmatpush.bf16.msra.mxu0 %v2530
    %4210 = vmatpush.bf16.msra.mxu0 %v2514
    %4211 = vmatpush.bf16.msra.mxu0 %v2498
    %4212 = vmatpush.bf16.msra.mxu0 %v2482
    %4213 = vmatpush.bf16.msra.mxu0 %v2466
    %4214 = vmatmul.bf16.gmra.mxu0 %v776
    %v4215 = vpop.f32.mrf.mxu0
    %v4216 = vadd.f32 %v4197, %v4215
    %v4217 = vpop.f32.mrf.mxu0
    %v4218 = vadd.f32 %v4199, %v4217
    %4219 = vmatmul.bf16.gmra.mxu0 %v780
    %v4220 = vpop.f32.mrf.mxu0
    %v4221 = vadd.f32 %v4202, %v4220
    %v4222 = vpop.f32.mrf.mxu0
    %v4223 = vadd.f32 %v4204, %v4222
    %4224 = vdwg.mxu0
    %4225 = vmatpush.bf16.msra.mxu0 %v2706
    %4226 = vmatpush.bf16.msra.mxu0 %v2690
    %4227 = vmatpush.bf16.msra.mxu0 %v2674
    %4228 = vmatpush.bf16.msra.mxu0 %v2658
    %4229 = vmatpush.bf16.msra.mxu0 %v2642
    %4230 = vmatpush.bf16.msra.mxu0 %v2626
    %4231 = vmatpush.bf16.msra.mxu0 %v2610
    %4232 = vmatpush.bf16.msra.mxu0 %v2594
    %4233 = vmatmul.bf16.gmra.mxu0 %v777
    %v4234 = vpop.f32.mrf.mxu0
    %v4235 = vadd.f32 %v4216, %v4234
    %v4236 = vpop.f32.mrf.mxu0
    %v4237 = vadd.f32 %v4218, %v4236
    %4238 = vmatmul.bf16.gmra.mxu0 %v781
    %v4239 = vpop.f32.mrf.mxu0
    %v4240 = vadd.f32 %v4221, %v4239
    %v4241 = vpop.f32.mrf.mxu0
    %v4242 = vadd.f32 %v4223, %v4241
    %4243 = vdwg.mxu0
    %4244 = vmatpush.bf16.msra.mxu0 %v2834
    %4245 = vmatpush.bf16.msra.mxu0 %v2818
    %4246 = vmatpush.bf16.msra.mxu0 %v2802
    %4247 = vmatpush.bf16.msra.mxu0 %v2786
    %4248 = vmatpush.bf16.msra.mxu0 %v2770
    %4249 = vmatpush.bf16.msra.mxu0 %v2754
    %4250 = vmatpush.bf16.msra.mxu0 %v2738
    %4251 = vmatpush.bf16.msra.mxu0 %v2722
    %4252 = vmatmul.bf16.gmra.mxu0 %v778
    %v4253 = vpop.f32.mrf.mxu0
    %v4254 = vadd.f32 %v4235, %v4253
    %v4255 = vpop.f32.mrf.mxu0
    %v4256 = vadd.f32 %v4237, %v4255
    %4257 = vmatmul.bf16.gmra.mxu0 %v782
    %v4258 = vpop.f32.mrf.mxu0
    %v4259 = vadd.f32 %v4240, %v4258
    %v4260 = vpop.f32.mrf.mxu0
    %v4261 = vadd.f32 %v4242, %v4260
    %4262 = vdwg.mxu0
    %4263 = vmatpush.bf16.msra.mxu0 %v2451
    %4264 = vmatpush.bf16.msra.mxu0 %v2435
    %4265 = vmatpush.bf16.msra.mxu0 %v2419
    %4266 = vmatpush.bf16.msra.mxu0 %v2403
    %4267 = vmatpush.bf16.msra.mxu0 %v2387
    %4268 = vmatpush.bf16.msra.mxu0 %v2371
    %4269 = vmatpush.bf16.msra.mxu0 %v2355
    %4270 = vmatpush.bf16.msra.mxu0 %v2339
    %4271 = vmatmul.bf16.gmra.mxu0 %v775
    %v4272 = vpop.f32.mrf.mxu0
    %v4273 = vadd.f32 %v731, %v4272
    %v4274 = vpop.f32.mrf.mxu0
    %v4275 = vadd.f32 %v731, %v4274
    %4276 = vmatmul.bf16.gmra.mxu0 %v779
    %v4277 = vpop.f32.mrf.mxu0
    %v4278 = vadd.f32 %v731, %v4277
    %v4279 = vpop.f32.mrf.mxu0
    %v4280 = vadd.f32 %v731, %v4279
    %4281 = vdwg.mxu0
    %4282 = vmatpush.bf16.msra.mxu0 %v2579
    %4283 = vmatpush.bf16.msra.mxu0 %v2563
    %4284 = vmatpush.bf16.msra.mxu0 %v2547
    %4285 = vmatpush.bf16.msra.mxu0 %v2531
    %4286 = vmatpush.bf16.msra.mxu0 %v2515
    %4287 = vmatpush.bf16.msra.mxu0 %v2499
    %4288 = vmatpush.bf16.msra.mxu0 %v2483
    %4289 = vmatpush.bf16.msra.mxu0 %v2467
    %4290 = vmatmul.bf16.gmra.mxu0 %v776
    %v4291 = vpop.f32.mrf.mxu0
    %v4292 = vadd.f32 %v4273, %v4291
    %v4293 = vpop.f32.mrf.mxu0
    %v4294 = vadd.f32 %v4275, %v4293
    %4295 = vmatmul.bf16.gmra.mxu0 %v780
    %v4296 = vpop.f32.mrf.mxu0
    %v4297 = vadd.f32 %v4278, %v4296
    %v4298 = vpop.f32.mrf.mxu0
    %v4299 = vadd.f32 %v4280, %v4298
    %4300 = vdwg.mxu0
    %4301 = vmatpush.bf16.msra.mxu0 %v2707
    %4302 = vmatpush.bf16.msra.mxu0 %v2691
    %4303 = vmatpush.bf16.msra.mxu0 %v2675
    %4304 = vmatpush.bf16.msra.mxu0 %v2659
    %4305 = vmatpush.bf16.msra.mxu0 %v2643
    %4306 = vmatpush.bf16.msra.mxu0 %v2627
    %4307 = vmatpush.bf16.msra.mxu0 %v2611
    %4308 = vmatpush.bf16.msra.mxu0 %v2595
    %4309 = vmatmul.bf16.gmra.mxu0 %v777
    %v4310 = vpop.f32.mrf.mxu0
    %v4311 = vadd.f32 %v4292, %v4310
    %v4312 = vpop.f32.mrf.mxu0
    %v4313 = vadd.f32 %v4294, %v4312
    %4314 = vmatmul.bf16.gmra.mxu0 %v781
    %v4315 = vpop.f32.mrf.mxu0
    %v4316 = vadd.f32 %v4297, %v4315
    %v4317 = vpop.f32.mrf.mxu0
    %v4318 = vadd.f32 %v4299, %v4317
    %4319 = vdwg.mxu0
    %4320 = vmatpush.bf16.msra.mxu0 %v2835
    %4321 = vmatpush.bf16.msra.mxu0 %v2819
    %4322 = vmatpush.bf16.msra.mxu0 %v2803
    %4323 = vmatpush.bf16.msra.mxu0 %v2787
    %4324 = vmatpush.bf16.msra.mxu0 %v2771
    %4325 = vmatpush.bf16.msra.mxu0 %v2755
    %4326 = vmatpush.bf16.msra.mxu0 %v2739
    %4327 = vmatpush.bf16.msra.mxu0 %v2723
    %4328 = vmatmul.bf16.gmra.mxu0 %v778
    %v4329 = vpop.f32.mrf.mxu0
    %v4330 = vadd.f32 %v4311, %v4329
    %v4331 = vpop.f32.mrf.mxu0
    %v4332 = vadd.f32 %v4313, %v4331
    %4333 = vmatmul.bf16.gmra.mxu0 %v782
    %v4334 = vpop.f32.mrf.mxu0
    %v4335 = vadd.f32 %v4316, %v4334
    %v4336 = vpop.f32.mrf.mxu0
    %v4337 = vadd.f32 %v4318, %v4336
    %4338 = vdwg.mxu0
    %4339 = vmatpush.bf16.msra.mxu0 %v2452
    %4340 = vmatpush.bf16.msra.mxu0 %v2436
    %4341 = vmatpush.bf16.msra.mxu0 %v2420
    %4342 = vmatpush.bf16.msra.mxu0 %v2404
    %4343 = vmatpush.bf16.msra.mxu0 %v2388
    %4344 = vmatpush.bf16.msra.mxu0 %v2372
    %4345 = vmatpush.bf16.msra.mxu0 %v2356
    %4346 = vmatpush.bf16.msra.mxu0 %v2340
    %4347 = vmatmul.bf16.gmra.mxu0 %v775
    %v4348 = vpop.f32.mrf.mxu0
    %v4349 = vadd.f32 %v732, %v4348
    %v4350 = vpop.f32.mrf.mxu0
    %v4351 = vadd.f32 %v732, %v4350
    %4352 = vmatmul.bf16.gmra.mxu0 %v779
    %v4353 = vpop.f32.mrf.mxu0
    %v4354 = vadd.f32 %v732, %v4353
    %v4355 = vpop.f32.mrf.mxu0
    %v4356 = vadd.f32 %v732, %v4355
    %4357 = vdwg.mxu0
    %4358 = vmatpush.bf16.msra.mxu0 %v2580
    %4359 = vmatpush.bf16.msra.mxu0 %v2564
    %4360 = vmatpush.bf16.msra.mxu0 %v2548
    %4361 = vmatpush.bf16.msra.mxu0 %v2532
    %4362 = vmatpush.bf16.msra.mxu0 %v2516
    %4363 = vmatpush.bf16.msra.mxu0 %v2500
    %4364 = vmatpush.bf16.msra.mxu0 %v2484
    %4365 = vmatpush.bf16.msra.mxu0 %v2468
    %4366 = vmatmul.bf16.gmra.mxu0 %v776
    %v4367 = vpop.f32.mrf.mxu0
    %v4368 = vadd.f32 %v4349, %v4367
    %v4369 = vpop.f32.mrf.mxu0
    %v4370 = vadd.f32 %v4351, %v4369
    %4371 = vmatmul.bf16.gmra.mxu0 %v780
    %v4372 = vpop.f32.mrf.mxu0
    %v4373 = vadd.f32 %v4354, %v4372
    %v4374 = vpop.f32.mrf.mxu0
    %v4375 = vadd.f32 %v4356, %v4374
    %4376 = vdwg.mxu0
    %4377 = vmatpush.bf16.msra.mxu0 %v2708
    %4378 = vmatpush.bf16.msra.mxu0 %v2692
    %4379 = vmatpush.bf16.msra.mxu0 %v2676
    %4380 = vmatpush.bf16.msra.mxu0 %v2660
    %4381 = vmatpush.bf16.msra.mxu0 %v2644
    %4382 = vmatpush.bf16.msra.mxu0 %v2628
    %4383 = vmatpush.bf16.msra.mxu0 %v2612
    %4384 = vmatpush.bf16.msra.mxu0 %v2596
    %4385 = vmatmul.bf16.gmra.mxu0 %v777
    %v4386 = vpop.f32.mrf.mxu0
    %v4387 = vadd.f32 %v4368, %v4386
    %v4388 = vpop.f32.mrf.mxu0
    %v4389 = vadd.f32 %v4370, %v4388
    %4390 = vmatmul.bf16.gmra.mxu0 %v781
    %v4391 = vpop.f32.mrf.mxu0
    %v4392 = vadd.f32 %v4373, %v4391
    %v4393 = vpop.f32.mrf.mxu0
    %v4394 = vadd.f32 %v4375, %v4393
    %4395 = vdwg.mxu0
    %4396 = vmatpush.bf16.msra.mxu0 %v2836
    %4397 = vmatpush.bf16.msra.mxu0 %v2820
    %4398 = vmatpush.bf16.msra.mxu0 %v2804
    %4399 = vmatpush.bf16.msra.mxu0 %v2788
    %4400 = vmatpush.bf16.msra.mxu0 %v2772
    %4401 = vmatpush.bf16.msra.mxu0 %v2756
    %4402 = vmatpush.bf16.msra.mxu0 %v2740
    %4403 = vmatpush.bf16.msra.mxu0 %v2724
    %4404 = vmatmul.bf16.gmra.mxu0 %v778
    %v4405 = vpop.f32.mrf.mxu0
    %v4406 = vadd.f32 %v4387, %v4405
    %v4407 = vpop.f32.mrf.mxu0
    %v4408 = vadd.f32 %v4389, %v4407
    %4409 = vmatmul.bf16.gmra.mxu0 %v782
    %v4410 = vpop.f32.mrf.mxu0
    %v4411 = vadd.f32 %v4392, %v4410
    %v4412 = vpop.f32.mrf.mxu0
    %v4413 = vadd.f32 %v4394, %v4412
    %4414 = vdwg.mxu0
    %4415 = vmatpush.bf16.msra.mxu0 %v2453
    %4416 = vmatpush.bf16.msra.mxu0 %v2437
    %4417 = vmatpush.bf16.msra.mxu0 %v2421
    %4418 = vmatpush.bf16.msra.mxu0 %v2405
    %4419 = vmatpush.bf16.msra.mxu0 %v2389
    %4420 = vmatpush.bf16.msra.mxu0 %v2373
    %4421 = vmatpush.bf16.msra.mxu0 %v2357
    %4422 = vmatpush.bf16.msra.mxu0 %v2341
    %4423 = vmatmul.bf16.gmra.mxu0 %v775
    %v4424 = vpop.f32.mrf.mxu0
    %v4425 = vadd.f32 %v733, %v4424
    %v4426 = vpop.f32.mrf.mxu0
    %v4427 = vadd.f32 %v733, %v4426
    %4428 = vmatmul.bf16.gmra.mxu0 %v779
    %v4429 = vpop.f32.mrf.mxu0
    %v4430 = vadd.f32 %v733, %v4429
    %v4431 = vpop.f32.mrf.mxu0
    %v4432 = vadd.f32 %v733, %v4431
    %4433 = vdwg.mxu0
    %4434 = vmatpush.bf16.msra.mxu0 %v2581
    %4435 = vmatpush.bf16.msra.mxu0 %v2565
    %4436 = vmatpush.bf16.msra.mxu0 %v2549
    %4437 = vmatpush.bf16.msra.mxu0 %v2533
    %4438 = vmatpush.bf16.msra.mxu0 %v2517
    %4439 = vmatpush.bf16.msra.mxu0 %v2501
    %4440 = vmatpush.bf16.msra.mxu0 %v2485
    %4441 = vmatpush.bf16.msra.mxu0 %v2469
    %4442 = vmatmul.bf16.gmra.mxu0 %v776
    %v4443 = vpop.f32.mrf.mxu0
    %v4444 = vadd.f32 %v4425, %v4443
    %v4445 = vpop.f32.mrf.mxu0
    %v4446 = vadd.f32 %v4427, %v4445
    %4447 = vmatmul.bf16.gmra.mxu0 %v780
    %v4448 = vpop.f32.mrf.mxu0
    %v4449 = vadd.f32 %v4430, %v4448
    %v4450 = vpop.f32.mrf.mxu0
    %v4451 = vadd.f32 %v4432, %v4450
    %4452 = vdwg.mxu0
    %4453 = vmatpush.bf16.msra.mxu0 %v2709
    %4454 = vmatpush.bf16.msra.mxu0 %v2693
    %4455 = vmatpush.bf16.msra.mxu0 %v2677
    %4456 = vmatpush.bf16.msra.mxu0 %v2661
    %4457 = vmatpush.bf16.msra.mxu0 %v2645
    %4458 = vmatpush.bf16.msra.mxu0 %v2629
    %4459 = vmatpush.bf16.msra.mxu0 %v2613
    %4460 = vmatpush.bf16.msra.mxu0 %v2597
    %4461 = vmatmul.bf16.gmra.mxu0 %v777
    %v4462 = vpop.f32.mrf.mxu0
    %v4463 = vadd.f32 %v4444, %v4462
    %v4464 = vpop.f32.mrf.mxu0
    %v4465 = vadd.f32 %v4446, %v4464
    %4466 = vmatmul.bf16.gmra.mxu0 %v781
    %v4467 = vpop.f32.mrf.mxu0
    %v4468 = vadd.f32 %v4449, %v4467
    %v4469 = vpop.f32.mrf.mxu0
    %v4470 = vadd.f32 %v4451, %v4469
    %4471 = vdwg.mxu0
    %4472 = vmatpush.bf16.msra.mxu0 %v2837
    %4473 = vmatpush.bf16.msra.mxu0 %v2821
    %4474 = vmatpush.bf16.msra.mxu0 %v2805
    %4475 = vmatpush.bf16.msra.mxu0 %v2789
    %4476 = vmatpush.bf16.msra.mxu0 %v2773
    %4477 = vmatpush.bf16.msra.mxu0 %v2757
    %4478 = vmatpush.bf16.msra.mxu0 %v2741
    %4479 = vmatpush.bf16.msra.mxu0 %v2725
    %4480 = vmatmul.bf16.gmra.mxu0 %v778
    %v4481 = vpop.f32.mrf.mxu0
    %v4482 = vadd.f32 %v4463, %v4481
    %v4483 = vpop.f32.mrf.mxu0
    %v4484 = vadd.f32 %v4465, %v4483
    %4485 = vmatmul.bf16.gmra.mxu0 %v782
    %v4486 = vpop.f32.mrf.mxu0
    %v4487 = vadd.f32 %v4468, %v4486
    %v4488 = vpop.f32.mrf.mxu0
    %v4489 = vadd.f32 %v4470, %v4488
    %4490 = vdwg.mxu0
    %4491 = vmatpush.bf16.msra.mxu0 %v2454
    %4492 = vmatpush.bf16.msra.mxu0 %v2438
    %4493 = vmatpush.bf16.msra.mxu0 %v2422
    %4494 = vmatpush.bf16.msra.mxu0 %v2406
    %4495 = vmatpush.bf16.msra.mxu0 %v2390
    %4496 = vmatpush.bf16.msra.mxu0 %v2374
    %4497 = vmatpush.bf16.msra.mxu0 %v2358
    %4498 = vmatpush.bf16.msra.mxu0 %v2342
    %4499 = vmatmul.bf16.gmra.mxu0 %v775
    %v4500 = vpop.f32.mrf.mxu0
    %v4501 = vadd.f32 %v734, %v4500
    %v4502 = vpop.f32.mrf.mxu0
    %v4503 = vadd.f32 %v734, %v4502
    %4504 = vmatmul.bf16.gmra.mxu0 %v779
    %v4505 = vpop.f32.mrf.mxu0
    %v4506 = vadd.f32 %v734, %v4505
    %v4507 = vpop.f32.mrf.mxu0
    %v4508 = vadd.f32 %v734, %v4507
    %4509 = vdwg.mxu0
    %4510 = vmatpush.bf16.msra.mxu0 %v2582
    %4511 = vmatpush.bf16.msra.mxu0 %v2566
    %4512 = vmatpush.bf16.msra.mxu0 %v2550
    %4513 = vmatpush.bf16.msra.mxu0 %v2534
    %4514 = vmatpush.bf16.msra.mxu0 %v2518
    %4515 = vmatpush.bf16.msra.mxu0 %v2502
    %4516 = vmatpush.bf16.msra.mxu0 %v2486
    %4517 = vmatpush.bf16.msra.mxu0 %v2470
    %4518 = vmatmul.bf16.gmra.mxu0 %v776
    %v4519 = vpop.f32.mrf.mxu0
    %v4520 = vadd.f32 %v4501, %v4519
    %v4521 = vpop.f32.mrf.mxu0
    %v4522 = vadd.f32 %v4503, %v4521
    %4523 = vmatmul.bf16.gmra.mxu0 %v780
    %v4524 = vpop.f32.mrf.mxu0
    %v4525 = vadd.f32 %v4506, %v4524
    %v4526 = vpop.f32.mrf.mxu0
    %v4527 = vadd.f32 %v4508, %v4526
    %4528 = vdwg.mxu0
    %4529 = vmatpush.bf16.msra.mxu0 %v2710
    %4530 = vmatpush.bf16.msra.mxu0 %v2694
    %4531 = vmatpush.bf16.msra.mxu0 %v2678
    %4532 = vmatpush.bf16.msra.mxu0 %v2662
    %4533 = vmatpush.bf16.msra.mxu0 %v2646
    %4534 = vmatpush.bf16.msra.mxu0 %v2630
    %4535 = vmatpush.bf16.msra.mxu0 %v2614
    %4536 = vmatpush.bf16.msra.mxu0 %v2598
    %4537 = vmatmul.bf16.gmra.mxu0 %v777
    %v4538 = vpop.f32.mrf.mxu0
    %v4539 = vadd.f32 %v4520, %v4538
    %v4540 = vpop.f32.mrf.mxu0
    %v4541 = vadd.f32 %v4522, %v4540
    %4542 = vmatmul.bf16.gmra.mxu0 %v781
    %v4543 = vpop.f32.mrf.mxu0
    %v4544 = vadd.f32 %v4525, %v4543
    %v4545 = vpop.f32.mrf.mxu0
    %v4546 = vadd.f32 %v4527, %v4545
    %4547 = vdwg.mxu0
    %4548 = vmatpush.bf16.msra.mxu0 %v2838
    %4549 = vmatpush.bf16.msra.mxu0 %v2822
    %4550 = vmatpush.bf16.msra.mxu0 %v2806
    %4551 = vmatpush.bf16.msra.mxu0 %v2790
    %4552 = vmatpush.bf16.msra.mxu0 %v2774
    %4553 = vmatpush.bf16.msra.mxu0 %v2758
    %4554 = vmatpush.bf16.msra.mxu0 %v2742
    %4555 = vmatpush.bf16.msra.mxu0 %v2726
    %4556 = vmatmul.bf16.gmra.mxu0 %v778
    %v4557 = vpop.f32.mrf.mxu0
    %v4558 = vadd.f32 %v4539, %v4557
    %v4559 = vpop.f32.mrf.mxu0
    %v4560 = vadd.f32 %v4541, %v4559
    %4561 = vmatmul.bf16.gmra.mxu0 %v782
    %v4562 = vpop.f32.mrf.mxu0
    %v4563 = vadd.f32 %v4544, %v4562
    %v4564 = vpop.f32.mrf.mxu0
    %v4565 = vadd.f32 %v4546, %v4564
    %4566 = vdwg.mxu0
    %v4567 = vmax.f32 %v3418, 0.0
    %v4568 = vmax.f32 %v3494, 0.0
    %v4569 = vmax.f32 %v3570, 0.0
    %v4570 = vmax.f32 %v3646, 0.0
    %v4571 = vmax.f32 %v3722, 0.0
    %v4572 = vmax.f32 %v3798, 0.0
    %v4573 = vmax.f32 %v3874, 0.0
    %v4574 = vmax.f32 %v3950, 0.0
    %v4575 = vmax.f32 %v4026, 0.0
    %v4576 = vmax.f32 %v4102, 0.0
    %v4577 = vmax.f32 %v4178, 0.0
    %v4578 = vmax.f32 %v4254, 0.0
    %v4579 = vmax.f32 %v4330, 0.0
    %v4580 = vmax.f32 %v4406, 0.0
    %v4581 = vmax.f32 %v4482, 0.0
    %v4582 = vmax.f32 %v4558, 0.0
    %v4583 = vmax.f32 %v3420, 0.0
    %v4584 = vmax.f32 %v3496, 0.0
    %v4585 = vmax.f32 %v3572, 0.0
    %v4586 = vmax.f32 %v3648, 0.0
    %v4587 = vmax.f32 %v3724, 0.0
    %v4588 = vmax.f32 %v3800, 0.0
    %v4589 = vmax.f32 %v3876, 0.0
    %v4590 = vmax.f32 %v3952, 0.0
    %v4591 = vmax.f32 %v4028, 0.0
    %v4592 = vmax.f32 %v4104, 0.0
    %v4593 = vmax.f32 %v4180, 0.0
    %v4594 = vmax.f32 %v4256, 0.0
    %v4595 = vmax.f32 %v4332, 0.0
    %v4596 = vmax.f32 %v4408, 0.0
    %v4597 = vmax.f32 %v4484, 0.0
    %v4598 = vmax.f32 %v4560, 0.0
    %v4599 = vmax.f32 %v3423, 0.0
    %v4600 = vmax.f32 %v3499, 0.0
    %v4601 = vmax.f32 %v3575, 0.0
    %v4602 = vmax.f32 %v3651, 0.0
    %v4603 = vmax.f32 %v3727, 0.0
    %v4604 = vmax.f32 %v3803, 0.0
    %v4605 = vmax.f32 %v3879, 0.0
    %v4606 = vmax.f32 %v3955, 0.0
    %v4607 = vmax.f32 %v4031, 0.0
    %v4608 = vmax.f32 %v4107, 0.0
    %v4609 = vmax.f32 %v4183, 0.0
    %v4610 = vmax.f32 %v4259, 0.0
    %v4611 = vmax.f32 %v4335, 0.0
    %v4612 = vmax.f32 %v4411, 0.0
    %v4613 = vmax.f32 %v4487, 0.0
    %v4614 = vmax.f32 %v4563, 0.0
    %v4615 = vmax.f32 %v3425, 0.0
    %v4616 = vmax.f32 %v3501, 0.0
    %v4617 = vmax.f32 %v3577, 0.0
    %v4618 = vmax.f32 %v3653, 0.0
    %v4619 = vmax.f32 %v3729, 0.0
    %v4620 = vmax.f32 %v3805, 0.0
    %v4621 = vmax.f32 %v3881, 0.0
    %v4622 = vmax.f32 %v3957, 0.0
    %v4623 = vmax.f32 %v4033, 0.0
    %v4624 = vmax.f32 %v4109, 0.0
    %v4625 = vmax.f32 %v4185, 0.0
    %v4626 = vmax.f32 %v4261, 0.0
    %v4627 = vmax.f32 %v4337, 0.0
    %v4628 = vmax.f32 %v4413, 0.0
    %v4629 = vmax.f32 %v4489, 0.0
    %v4630 = vmax.f32 %v4565, 0.0
    %v4631 = vld [vmem:[#allocation11] sm:$0xff]
    %v4632 = vld [vmem:[#allocation11 + $0x8] sm:$0xff]
    %v4633 = vld [vmem:[#allocation11 + $0x10] sm:$0xff]
    %v4634 = vld [vmem:[#allocation11 + $0x18] sm:$0xff]
    %v4635 = vld [vmem:[#allocation11 + $0x20] sm:$0xff]
    %v4636 = vld [vmem:[#allocation11 + $0x28] sm:$0xff]
    %v4637 = vld [vmem:[#allocation11 + $0x30] sm:$0xff]
    %v4638 = vld [vmem:[#allocation11 + $0x38] sm:$0xff]
    %v4639 = vld [vmem:[#allocation11 + $0x40] sm:$0xff]
    %v4640 = vld [vmem:[#allocation11 + $0x48] sm:$0xff]
    %v4641 = vld [vmem:[#allocation11 + $0x50] sm:$0xff]
    %v4642 = vld [vmem:[#allocation11 + $0x58] sm:$0xff]
    %v4643 = vld [vmem:[#allocation11 + $0x60] sm:$0xff]
    %v4644 = vld [vmem:[#allocation11 + $0x68] sm:$0xff]
    %v4645 = vld [vmem:[#allocation11 + $0x70] sm:$0xff]
    %v4646 = vld [vmem:[#allocation11 + $0x78] sm:$0xff]
    %v4647 = vpack.c.bf16 %v4583, %v4567
    %v4648 = vpack.c.bf16 %v4584, %v4568
    %v4649 = vpack.c.bf16 %v4585, %v4569
    %v4650 = vpack.c.bf16 %v4586, %v4570
    %v4651 = vpack.c.bf16 %v4587, %v4571
    %v4652 = vpack.c.bf16 %v4588, %v4572
    %v4653 = vpack.c.bf16 %v4589, %v4573
    %v4654 = vpack.c.bf16 %v4590, %v4574
    %v4655 = vpack.c.bf16 %v4591, %v4575
    %v4656 = vpack.c.bf16 %v4592, %v4576
    %v4657 = vpack.c.bf16 %v4593, %v4577
    %v4658 = vpack.c.bf16 %v4594, %v4578
    %v4659 = vpack.c.bf16 %v4595, %v4579
    %v4660 = vpack.c.bf16 %v4596, %v4580
    %v4661 = vpack.c.bf16 %v4597, %v4581
    %v4662 = vpack.c.bf16 %v4598, %v4582
    %v4663 = vpack.c.bf16 %v4615, %v4599
    %v4664 = vpack.c.bf16 %v4616, %v4600
    %v4665 = vpack.c.bf16 %v4617, %v4601
    %v4666 = vpack.c.bf16 %v4618, %v4602
    %v4667 = vpack.c.bf16 %v4619, %v4603
    %v4668 = vpack.c.bf16 %v4620, %v4604
    %v4669 = vpack.c.bf16 %v4621, %v4605
    %v4670 = vpack.c.bf16 %v4622, %v4606
    %v4671 = vpack.c.bf16 %v4623, %v4607
    %v4672 = vpack.c.bf16 %v4624, %v4608
    %v4673 = vpack.c.bf16 %v4625, %v4609
    %v4674 = vpack.c.bf16 %v4626, %v4610
    %v4675 = vpack.c.bf16 %v4627, %v4611
    %v4676 = vpack.c.bf16 %v4628, %v4612
    %v4677 = vpack.c.bf16 %v4629, %v4613
    %v4678 = vpack.c.bf16 %v4630, %v4614
    %v4679 = vld [vmem:[#allocation8] sm:$0xff]
    %v4680 = vld [vmem:[#allocation8 + $0x8] sm:$0xff]
    %v4681 = vld [vmem:[#allocation8 + $0x10] sm:$0xff]
    %v4682 = vld [vmem:[#allocation8 + $0x18] sm:$0xff]
    %v4683 = vld [vmem:[#allocation8 + $0x20] sm:$0xff]
    %v4684 = vld [vmem:[#allocation8 + $0x28] sm:$0xff]
    %v4685 = vld [vmem:[#allocation8 + $0x30] sm:$0xff]
    %v4686 = vld [vmem:[#allocation8 + $0x38] sm:$0xff]
    %v4687 = vld [vmem:[#allocation8 + $0x40] sm:$0xff]
    %v4688 = vld [vmem:[#allocation8 + $0x48] sm:$0xff]
    %v4689 = vld [vmem:[#allocation8 + $0x50] sm:$0xff]
    %v4690 = vld [vmem:[#allocation8 + $0x58] sm:$0xff]
    %v4691 = vld [vmem:[#allocation8 + $0x60] sm:$0xff]
    %v4692 = vld [vmem:[#allocation8 + $0x68] sm:$0xff]
    %v4693 = vld [vmem:[#allocation8 + $0x70] sm:$0xff]
    %v4694 = vld [vmem:[#allocation8 + $0x78] sm:$0xff]
    %v4695 = vld [vmem:[#allocation8 + $0x80] sm:$0xff]
    %v4696 = vld [vmem:[#allocation8 + $0x88] sm:$0xff]
    %v4697 = vld [vmem:[#allocation8 + $0x90] sm:$0xff]
    %v4698 = vld [vmem:[#allocation8 + $0x98] sm:$0xff]
    %v4699 = vld [vmem:[#allocation8 + $0xa0] sm:$0xff]
    %v4700 = vld [vmem:[#allocation8 + $0xa8] sm:$0xff]
    %v4701 = vld [vmem:[#allocation8 + $0xb0] sm:$0xff]
    %v4702 = vld [vmem:[#allocation8 + $0xb8] sm:$0xff]
    %v4703 = vld [vmem:[#allocation8 + $0xc0] sm:$0xff]
    %v4704 = vld [vmem:[#allocation8 + $0xc8] sm:$0xff]
    %v4705 = vld [vmem:[#allocation8 + $0xd0] sm:$0xff]
    %v4706 = vld [vmem:[#allocation8 + $0xd8] sm:$0xff]
    %v4707 = vld [vmem:[#allocation8 + $0xe0] sm:$0xff]
    %v4708 = vld [vmem:[#allocation8 + $0xe8] sm:$0xff]
    %v4709 = vld [vmem:[#allocation8 + $0xf0] sm:$0xff]
    %v4710 = vld [vmem:[#allocation8 + $0xf8] sm:$0xff]
    %v4711 = vld [vmem:[#allocation8 + $0x100] sm:$0xff]
    %v4712 = vld [vmem:[#allocation8 + $0x108] sm:$0xff]
    %v4713 = vld [vmem:[#allocation8 + $0x110] sm:$0xff]
    %v4714 = vld [vmem:[#allocation8 + $0x118] sm:$0xff]
    %v4715 = vld [vmem:[#allocation8 + $0x120] sm:$0xff]
    %v4716 = vld [vmem:[#allocation8 + $0x128] sm:$0xff]
    %v4717 = vld [vmem:[#allocation8 + $0x130] sm:$0xff]
    %v4718 = vld [vmem:[#allocation8 + $0x138] sm:$0xff]
    %v4719 = vld [vmem:[#allocation8 + $0x140] sm:$0xff]
    %v4720 = vld [vmem:[#allocation8 + $0x148] sm:$0xff]
    %v4721 = vld [vmem:[#allocation8 + $0x150] sm:$0xff]
    %v4722 = vld [vmem:[#allocation8 + $0x158] sm:$0xff]
    %v4723 = vld [vmem:[#allocation8 + $0x160] sm:$0xff]
    %v4724 = vld [vmem:[#allocation8 + $0x168] sm:$0xff]
    %v4725 = vld [vmem:[#allocation8 + $0x170] sm:$0xff]
    %v4726 = vld [vmem:[#allocation8 + $0x178] sm:$0xff]
    %v4727 = vld [vmem:[#allocation8 + $0x180] sm:$0xff]
    %v4728 = vld [vmem:[#allocation8 + $0x188] sm:$0xff]
    %v4729 = vld [vmem:[#allocation8 + $0x190] sm:$0xff]
    %v4730 = vld [vmem:[#allocation8 + $0x198] sm:$0xff]
    %v4731 = vld [vmem:[#allocation8 + $0x1a0] sm:$0xff]
    %v4732 = vld [vmem:[#allocation8 + $0x1a8] sm:$0xff]
    %v4733 = vld [vmem:[#allocation8 + $0x1b0] sm:$0xff]
    %v4734 = vld [vmem:[#allocation8 + $0x1b8] sm:$0xff]
    %v4735 = vld [vmem:[#allocation8 + $0x1c0] sm:$0xff]
    %v4736 = vld [vmem:[#allocation8 + $0x1c8] sm:$0xff]
    %v4737 = vld [vmem:[#allocation8 + $0x1d0] sm:$0xff]
    %v4738 = vld [vmem:[#allocation8 + $0x1d8] sm:$0xff]
    %v4739 = vld [vmem:[#allocation8 + $0x1e0] sm:$0xff]
    %v4740 = vld [vmem:[#allocation8 + $0x1e8] sm:$0xff]
    %v4741 = vld [vmem:[#allocation8 + $0x1f0] sm:$0xff]
    %v4742 = vld [vmem:[#allocation8 + $0x1f8] sm:$0xff]
    %v4743 = vld [vmem:[#allocation8 + $0x200] sm:$0xff]
    %v4744 = vld [vmem:[#allocation8 + $0x208] sm:$0xff]
    %v4745 = vld [vmem:[#allocation8 + $0x210] sm:$0xff]
    %v4746 = vld [vmem:[#allocation8 + $0x218] sm:$0xff]
    %v4747 = vld [vmem:[#allocation8 + $0x220] sm:$0xff]
    %v4748 = vld [vmem:[#allocation8 + $0x228] sm:$0xff]
    %v4749 = vld [vmem:[#allocation8 + $0x230] sm:$0xff]
    %v4750 = vld [vmem:[#allocation8 + $0x238] sm:$0xff]
    %v4751 = vld [vmem:[#allocation8 + $0x240] sm:$0xff]
    %v4752 = vld [vmem:[#allocation8 + $0x248] sm:$0xff]
    %v4753 = vld [vmem:[#allocation8 + $0x250] sm:$0xff]
    %v4754 = vld [vmem:[#allocation8 + $0x258] sm:$0xff]
    %v4755 = vld [vmem:[#allocation8 + $0x260] sm:$0xff]
    %v4756 = vld [vmem:[#allocation8 + $0x268] sm:$0xff]
    %v4757 = vld [vmem:[#allocation8 + $0x270] sm:$0xff]
    %v4758 = vld [vmem:[#allocation8 + $0x278] sm:$0xff]
    %v4759 = vld [vmem:[#allocation8 + $0x280] sm:$0xff]
    %v4760 = vld [vmem:[#allocation8 + $0x288] sm:$0xff]
    %v4761 = vld [vmem:[#allocation8 + $0x290] sm:$0xff]
    %v4762 = vld [vmem:[#allocation8 + $0x298] sm:$0xff]
    %v4763 = vld [vmem:[#allocation8 + $0x2a0] sm:$0xff]
    %v4764 = vld [vmem:[#allocation8 + $0x2a8] sm:$0xff]
    %v4765 = vld [vmem:[#allocation8 + $0x2b0] sm:$0xff]
    %v4766 = vld [vmem:[#allocation8 + $0x2b8] sm:$0xff]
    %v4767 = vld [vmem:[#allocation8 + $0x2c0] sm:$0xff]
    %v4768 = vld [vmem:[#allocation8 + $0x2c8] sm:$0xff]
    %v4769 = vld [vmem:[#allocation8 + $0x2d0] sm:$0xff]
    %v4770 = vld [vmem:[#allocation8 + $0x2d8] sm:$0xff]
    %v4771 = vld [vmem:[#allocation8 + $0x2e0] sm:$0xff]
    %v4772 = vld [vmem:[#allocation8 + $0x2e8] sm:$0xff]
    %v4773 = vld [vmem:[#allocation8 + $0x2f0] sm:$0xff]
    %v4774 = vld [vmem:[#allocation8 + $0x2f8] sm:$0xff]
    %v4775 = vld [vmem:[#allocation8 + $0x300] sm:$0xff]
    %v4776 = vld [vmem:[#allocation8 + $0x308] sm:$0xff]
    %v4777 = vld [vmem:[#allocation8 + $0x310] sm:$0xff]
    %v4778 = vld [vmem:[#allocation8 + $0x318] sm:$0xff]
    %v4779 = vld [vmem:[#allocation8 + $0x320] sm:$0xff]
    %v4780 = vld [vmem:[#allocation8 + $0x328] sm:$0xff]
    %v4781 = vld [vmem:[#allocation8 + $0x330] sm:$0xff]
    %v4782 = vld [vmem:[#allocation8 + $0x338] sm:$0xff]
    %v4783 = vld [vmem:[#allocation8 + $0x340] sm:$0xff]
    %v4784 = vld [vmem:[#allocation8 + $0x348] sm:$0xff]
    %v4785 = vld [vmem:[#allocation8 + $0x350] sm:$0xff]
    %v4786 = vld [vmem:[#allocation8 + $0x358] sm:$0xff]
    %v4787 = vld [vmem:[#allocation8 + $0x360] sm:$0xff]
    %v4788 = vld [vmem:[#allocation8 + $0x368] sm:$0xff]
    %v4789 = vld [vmem:[#allocation8 + $0x370] sm:$0xff]
    %v4790 = vld [vmem:[#allocation8 + $0x378] sm:$0xff]
    %v4791 = vld [vmem:[#allocation8 + $0x380] sm:$0xff]
    %v4792 = vld [vmem:[#allocation8 + $0x388] sm:$0xff]
    %v4793 = vld [vmem:[#allocation8 + $0x390] sm:$0xff]
    %v4794 = vld [vmem:[#allocation8 + $0x398] sm:$0xff]
    %v4795 = vld [vmem:[#allocation8 + $0x3a0] sm:$0xff]
    %v4796 = vld [vmem:[#allocation8 + $0x3a8] sm:$0xff]
    %v4797 = vld [vmem:[#allocation8 + $0x3b0] sm:$0xff]
    %v4798 = vld [vmem:[#allocation8 + $0x3b8] sm:$0xff]
    %v4799 = vld [vmem:[#allocation8 + $0x3c0] sm:$0xff]
    %v4800 = vld [vmem:[#allocation8 + $0x3c8] sm:$0xff]
    %v4801 = vld [vmem:[#allocation8 + $0x3d0] sm:$0xff]
    %v4802 = vld [vmem:[#allocation8 + $0x3d8] sm:$0xff]
    %v4803 = vld [vmem:[#allocation8 + $0x3e0] sm:$0xff]
    %v4804 = vld [vmem:[#allocation8 + $0x3e8] sm:$0xff]
    %v4805 = vld [vmem:[#allocation8 + $0x3f0] sm:$0xff]
    %v4806 = vld [vmem:[#allocation8 + $0x3f8] sm:$0xff]
    %v4807 = vld [vmem:[#allocation8 + $0x400] sm:$0xff]
    %v4808 = vld [vmem:[#allocation8 + $0x408] sm:$0xff]
    %v4809 = vld [vmem:[#allocation8 + $0x410] sm:$0xff]
    %v4810 = vld [vmem:[#allocation8 + $0x418] sm:$0xff]
    %v4811 = vld [vmem:[#allocation8 + $0x420] sm:$0xff]
    %v4812 = vld [vmem:[#allocation8 + $0x428] sm:$0xff]
    %v4813 = vld [vmem:[#allocation8 + $0x430] sm:$0xff]
    %v4814 = vld [vmem:[#allocation8 + $0x438] sm:$0xff]
    %v4815 = vld [vmem:[#allocation8 + $0x440] sm:$0xff]
    %v4816 = vld [vmem:[#allocation8 + $0x448] sm:$0xff]
    %v4817 = vld [vmem:[#allocation8 + $0x450] sm:$0xff]
    %v4818 = vld [vmem:[#allocation8 + $0x458] sm:$0xff]
    %v4819 = vld [vmem:[#allocation8 + $0x460] sm:$0xff]
    %v4820 = vld [vmem:[#allocation8 + $0x468] sm:$0xff]
    %v4821 = vld [vmem:[#allocation8 + $0x470] sm:$0xff]
    %v4822 = vld [vmem:[#allocation8 + $0x478] sm:$0xff]
    %v4823 = vld [vmem:[#allocation8 + $0x480] sm:$0xff]
    %v4824 = vld [vmem:[#allocation8 + $0x488] sm:$0xff]
    %v4825 = vld [vmem:[#allocation8 + $0x490] sm:$0xff]
    %v4826 = vld [vmem:[#allocation8 + $0x498] sm:$0xff]
    %v4827 = vld [vmem:[#allocation8 + $0x4a0] sm:$0xff]
    %v4828 = vld [vmem:[#allocation8 + $0x4a8] sm:$0xff]
    %v4829 = vld [vmem:[#allocation8 + $0x4b0] sm:$0xff]
    %v4830 = vld [vmem:[#allocation8 + $0x4b8] sm:$0xff]
    %v4831 = vld [vmem:[#allocation8 + $0x4c0] sm:$0xff]
    %v4832 = vld [vmem:[#allocation8 + $0x4c8] sm:$0xff]
    %v4833 = vld [vmem:[#allocation8 + $0x4d0] sm:$0xff]
    %v4834 = vld [vmem:[#allocation8 + $0x4d8] sm:$0xff]
    %v4835 = vld [vmem:[#allocation8 + $0x4e0] sm:$0xff]
    %v4836 = vld [vmem:[#allocation8 + $0x4e8] sm:$0xff]
    %v4837 = vld [vmem:[#allocation8 + $0x4f0] sm:$0xff]
    %v4838 = vld [vmem:[#allocation8 + $0x4f8] sm:$0xff]
    %v4839 = vld [vmem:[#allocation8 + $0x500] sm:$0xff]
    %v4840 = vld [vmem:[#allocation8 + $0x508] sm:$0xff]
    %v4841 = vld [vmem:[#allocation8 + $0x510] sm:$0xff]
    %v4842 = vld [vmem:[#allocation8 + $0x518] sm:$0xff]
    %v4843 = vld [vmem:[#allocation8 + $0x520] sm:$0xff]
    %v4844 = vld [vmem:[#allocation8 + $0x528] sm:$0xff]
    %v4845 = vld [vmem:[#allocation8 + $0x530] sm:$0xff]
    %v4846 = vld [vmem:[#allocation8 + $0x538] sm:$0xff]
    %v4847 = vld [vmem:[#allocation8 + $0x540] sm:$0xff]
    %v4848 = vld [vmem:[#allocation8 + $0x548] sm:$0xff]
    %v4849 = vld [vmem:[#allocation8 + $0x550] sm:$0xff]
    %v4850 = vld [vmem:[#allocation8 + $0x558] sm:$0xff]
    %v4851 = vld [vmem:[#allocation8 + $0x560] sm:$0xff]
    %v4852 = vld [vmem:[#allocation8 + $0x568] sm:$0xff]
    %v4853 = vld [vmem:[#allocation8 + $0x570] sm:$0xff]
    %v4854 = vld [vmem:[#allocation8 + $0x578] sm:$0xff]
    %v4855 = vld [vmem:[#allocation8 + $0x580] sm:$0xff]
    %v4856 = vld [vmem:[#allocation8 + $0x588] sm:$0xff]
    %v4857 = vld [vmem:[#allocation8 + $0x590] sm:$0xff]
    %v4858 = vld [vmem:[#allocation8 + $0x598] sm:$0xff]
    %v4859 = vld [vmem:[#allocation8 + $0x5a0] sm:$0xff]
    %v4860 = vld [vmem:[#allocation8 + $0x5a8] sm:$0xff]
    %v4861 = vld [vmem:[#allocation8 + $0x5b0] sm:$0xff]
    %v4862 = vld [vmem:[#allocation8 + $0x5b8] sm:$0xff]
    %v4863 = vld [vmem:[#allocation8 + $0x5c0] sm:$0xff]
    %v4864 = vld [vmem:[#allocation8 + $0x5c8] sm:$0xff]
    %v4865 = vld [vmem:[#allocation8 + $0x5d0] sm:$0xff]
    %v4866 = vld [vmem:[#allocation8 + $0x5d8] sm:$0xff]
    %v4867 = vld [vmem:[#allocation8 + $0x5e0] sm:$0xff]
    %v4868 = vld [vmem:[#allocation8 + $0x5e8] sm:$0xff]
    %v4869 = vld [vmem:[#allocation8 + $0x5f0] sm:$0xff]
    %v4870 = vld [vmem:[#allocation8 + $0x5f8] sm:$0xff]
    %v4871 = vld [vmem:[#allocation8 + $0x600] sm:$0xff]
    %v4872 = vld [vmem:[#allocation8 + $0x608] sm:$0xff]
    %v4873 = vld [vmem:[#allocation8 + $0x610] sm:$0xff]
    %v4874 = vld [vmem:[#allocation8 + $0x618] sm:$0xff]
    %v4875 = vld [vmem:[#allocation8 + $0x620] sm:$0xff]
    %v4876 = vld [vmem:[#allocation8 + $0x628] sm:$0xff]
    %v4877 = vld [vmem:[#allocation8 + $0x630] sm:$0xff]
    %v4878 = vld [vmem:[#allocation8 + $0x638] sm:$0xff]
    %v4879 = vld [vmem:[#allocation8 + $0x640] sm:$0xff]
    %v4880 = vld [vmem:[#allocation8 + $0x648] sm:$0xff]
    %v4881 = vld [vmem:[#allocation8 + $0x650] sm:$0xff]
    %v4882 = vld [vmem:[#allocation8 + $0x658] sm:$0xff]
    %v4883 = vld [vmem:[#allocation8 + $0x660] sm:$0xff]
    %v4884 = vld [vmem:[#allocation8 + $0x668] sm:$0xff]
    %v4885 = vld [vmem:[#allocation8 + $0x670] sm:$0xff]
    %v4886 = vld [vmem:[#allocation8 + $0x678] sm:$0xff]
    %v4887 = vld [vmem:[#allocation8 + $0x680] sm:$0xff]
    %v4888 = vld [vmem:[#allocation8 + $0x688] sm:$0xff]
    %v4889 = vld [vmem:[#allocation8 + $0x690] sm:$0xff]
    %v4890 = vld [vmem:[#allocation8 + $0x698] sm:$0xff]
    %v4891 = vld [vmem:[#allocation8 + $0x6a0] sm:$0xff]
    %v4892 = vld [vmem:[#allocation8 + $0x6a8] sm:$0xff]
    %v4893 = vld [vmem:[#allocation8 + $0x6b0] sm:$0xff]
    %v4894 = vld [vmem:[#allocation8 + $0x6b8] sm:$0xff]
    %v4895 = vld [vmem:[#allocation8 + $0x6c0] sm:$0xff]
    %v4896 = vld [vmem:[#allocation8 + $0x6c8] sm:$0xff]
    %v4897 = vld [vmem:[#allocation8 + $0x6d0] sm:$0xff]
    %v4898 = vld [vmem:[#allocation8 + $0x6d8] sm:$0xff]
    %v4899 = vld [vmem:[#allocation8 + $0x6e0] sm:$0xff]
    %v4900 = vld [vmem:[#allocation8 + $0x6e8] sm:$0xff]
    %v4901 = vld [vmem:[#allocation8 + $0x6f0] sm:$0xff]
    %v4902 = vld [vmem:[#allocation8 + $0x6f8] sm:$0xff]
    %v4903 = vld [vmem:[#allocation8 + $0x700] sm:$0xff]
    %v4904 = vld [vmem:[#allocation8 + $0x708] sm:$0xff]
    %v4905 = vld [vmem:[#allocation8 + $0x710] sm:$0xff]
    %v4906 = vld [vmem:[#allocation8 + $0x718] sm:$0xff]
    %v4907 = vld [vmem:[#allocation8 + $0x720] sm:$0xff]
    %v4908 = vld [vmem:[#allocation8 + $0x728] sm:$0xff]
    %v4909 = vld [vmem:[#allocation8 + $0x730] sm:$0xff]
    %v4910 = vld [vmem:[#allocation8 + $0x738] sm:$0xff]
    %v4911 = vld [vmem:[#allocation8 + $0x740] sm:$0xff]
    %v4912 = vld [vmem:[#allocation8 + $0x748] sm:$0xff]
    %v4913 = vld [vmem:[#allocation8 + $0x750] sm:$0xff]
    %v4914 = vld [vmem:[#allocation8 + $0x758] sm:$0xff]
    %v4915 = vld [vmem:[#allocation8 + $0x760] sm:$0xff]
    %v4916 = vld [vmem:[#allocation8 + $0x768] sm:$0xff]
    %v4917 = vld [vmem:[#allocation8 + $0x770] sm:$0xff]
    %v4918 = vld [vmem:[#allocation8 + $0x778] sm:$0xff]
    %v4919 = vld [vmem:[#allocation8 + $0x780] sm:$0xff]
    %v4920 = vld [vmem:[#allocation8 + $0x788] sm:$0xff]
    %v4921 = vld [vmem:[#allocation8 + $0x790] sm:$0xff]
    %v4922 = vld [vmem:[#allocation8 + $0x798] sm:$0xff]
    %v4923 = vld [vmem:[#allocation8 + $0x7a0] sm:$0xff]
    %v4924 = vld [vmem:[#allocation8 + $0x7a8] sm:$0xff]
    %v4925 = vld [vmem:[#allocation8 + $0x7b0] sm:$0xff]
    %v4926 = vld [vmem:[#allocation8 + $0x7b8] sm:$0xff]
    %v4927 = vld [vmem:[#allocation8 + $0x7c0] sm:$0xff]
    %v4928 = vld [vmem:[#allocation8 + $0x7c8] sm:$0xff]
    %v4929 = vld [vmem:[#allocation8 + $0x7d0] sm:$0xff]
    %v4930 = vld [vmem:[#allocation8 + $0x7d8] sm:$0xff]
    %v4931 = vld [vmem:[#allocation8 + $0x7e0] sm:$0xff]
    %v4932 = vld [vmem:[#allocation8 + $0x7e8] sm:$0xff]
    %v4933 = vld [vmem:[#allocation8 + $0x7f0] sm:$0xff]
    %v4934 = vld [vmem:[#allocation8 + $0x7f8] sm:$0xff]
    %v4935 = vld [vmem:[#allocation8 + $0x800] sm:$0xff]
    %v4936 = vld [vmem:[#allocation8 + $0x808] sm:$0xff]
    %v4937 = vld [vmem:[#allocation8 + $0x810] sm:$0xff]
    %v4938 = vld [vmem:[#allocation8 + $0x818] sm:$0xff]
    %v4939 = vld [vmem:[#allocation8 + $0x820] sm:$0xff]
    %v4940 = vld [vmem:[#allocation8 + $0x828] sm:$0xff]
    %v4941 = vld [vmem:[#allocation8 + $0x830] sm:$0xff]
    %v4942 = vld [vmem:[#allocation8 + $0x838] sm:$0xff]
    %v4943 = vld [vmem:[#allocation8 + $0x840] sm:$0xff]
    %v4944 = vld [vmem:[#allocation8 + $0x848] sm:$0xff]
    %v4945 = vld [vmem:[#allocation8 + $0x850] sm:$0xff]
    %v4946 = vld [vmem:[#allocation8 + $0x858] sm:$0xff]
    %v4947 = vld [vmem:[#allocation8 + $0x860] sm:$0xff]
    %v4948 = vld [vmem:[#allocation8 + $0x868] sm:$0xff]
    %v4949 = vld [vmem:[#allocation8 + $0x870] sm:$0xff]
    %v4950 = vld [vmem:[#allocation8 + $0x878] sm:$0xff]
    %v4951 = vld [vmem:[#allocation8 + $0x880] sm:$0xff]
    %v4952 = vld [vmem:[#allocation8 + $0x888] sm:$0xff]
    %v4953 = vld [vmem:[#allocation8 + $0x890] sm:$0xff]
    %v4954 = vld [vmem:[#allocation8 + $0x898] sm:$0xff]
    %v4955 = vld [vmem:[#allocation8 + $0x8a0] sm:$0xff]
    %v4956 = vld [vmem:[#allocation8 + $0x8a8] sm:$0xff]
    %v4957 = vld [vmem:[#allocation8 + $0x8b0] sm:$0xff]
    %v4958 = vld [vmem:[#allocation8 + $0x8b8] sm:$0xff]
    %v4959 = vld [vmem:[#allocation8 + $0x8c0] sm:$0xff]
    %v4960 = vld [vmem:[#allocation8 + $0x8c8] sm:$0xff]
    %v4961 = vld [vmem:[#allocation8 + $0x8d0] sm:$0xff]
    %v4962 = vld [vmem:[#allocation8 + $0x8d8] sm:$0xff]
    %v4963 = vld [vmem:[#allocation8 + $0x8e0] sm:$0xff]
    %v4964 = vld [vmem:[#allocation8 + $0x8e8] sm:$0xff]
    %v4965 = vld [vmem:[#allocation8 + $0x8f0] sm:$0xff]
    %v4966 = vld [vmem:[#allocation8 + $0x8f8] sm:$0xff]
    %v4967 = vld [vmem:[#allocation8 + $0x900] sm:$0xff]
    %v4968 = vld [vmem:[#allocation8 + $0x908] sm:$0xff]
    %v4969 = vld [vmem:[#allocation8 + $0x910] sm:$0xff]
    %v4970 = vld [vmem:[#allocation8 + $0x918] sm:$0xff]
    %v4971 = vld [vmem:[#allocation8 + $0x920] sm:$0xff]
    %v4972 = vld [vmem:[#allocation8 + $0x928] sm:$0xff]
    %v4973 = vld [vmem:[#allocation8 + $0x930] sm:$0xff]
    %v4974 = vld [vmem:[#allocation8 + $0x938] sm:$0xff]
    %v4975 = vld [vmem:[#allocation8 + $0x940] sm:$0xff]
    %v4976 = vld [vmem:[#allocation8 + $0x948] sm:$0xff]
    %v4977 = vld [vmem:[#allocation8 + $0x950] sm:$0xff]
    %v4978 = vld [vmem:[#allocation8 + $0x958] sm:$0xff]
    %v4979 = vld [vmem:[#allocation8 + $0x960] sm:$0xff]
    %v4980 = vld [vmem:[#allocation8 + $0x968] sm:$0xff]
    %v4981 = vld [vmem:[#allocation8 + $0x970] sm:$0xff]
    %v4982 = vld [vmem:[#allocation8 + $0x978] sm:$0xff]
    %v4983 = vld [vmem:[#allocation8 + $0x980] sm:$0xff]
    %v4984 = vld [vmem:[#allocation8 + $0x988] sm:$0xff]
    %v4985 = vld [vmem:[#allocation8 + $0x990] sm:$0xff]
    %v4986 = vld [vmem:[#allocation8 + $0x998] sm:$0xff]
    %v4987 = vld [vmem:[#allocation8 + $0x9a0] sm:$0xff]
    %v4988 = vld [vmem:[#allocation8 + $0x9a8] sm:$0xff]
    %v4989 = vld [vmem:[#allocation8 + $0x9b0] sm:$0xff]
    %v4990 = vld [vmem:[#allocation8 + $0x9b8] sm:$0xff]
    %v4991 = vld [vmem:[#allocation8 + $0x9c0] sm:$0xff]
    %v4992 = vld [vmem:[#allocation8 + $0x9c8] sm:$0xff]
    %v4993 = vld [vmem:[#allocation8 + $0x9d0] sm:$0xff]
    %v4994 = vld [vmem:[#allocation8 + $0x9d8] sm:$0xff]
    %v4995 = vld [vmem:[#allocation8 + $0x9e0] sm:$0xff]
    %v4996 = vld [vmem:[#allocation8 + $0x9e8] sm:$0xff]
    %v4997 = vld [vmem:[#allocation8 + $0x9f0] sm:$0xff]
    %v4998 = vld [vmem:[#allocation8 + $0x9f8] sm:$0xff]
    %v4999 = vld [vmem:[#allocation8 + $0xa00] sm:$0xff]
    %v5000 = vld [vmem:[#allocation8 + $0xa08] sm:$0xff]
    %v5001 = vld [vmem:[#allocation8 + $0xa10] sm:$0xff]
    %v5002 = vld [vmem:[#allocation8 + $0xa18] sm:$0xff]
    %v5003 = vld [vmem:[#allocation8 + $0xa20] sm:$0xff]
    %v5004 = vld [vmem:[#allocation8 + $0xa28] sm:$0xff]
    %v5005 = vld [vmem:[#allocation8 + $0xa30] sm:$0xff]
    %v5006 = vld [vmem:[#allocation8 + $0xa38] sm:$0xff]
    %v5007 = vld [vmem:[#allocation8 + $0xa40] sm:$0xff]
    %v5008 = vld [vmem:[#allocation8 + $0xa48] sm:$0xff]
    %v5009 = vld [vmem:[#allocation8 + $0xa50] sm:$0xff]
    %v5010 = vld [vmem:[#allocation8 + $0xa58] sm:$0xff]
    %v5011 = vld [vmem:[#allocation8 + $0xa60] sm:$0xff]
    %v5012 = vld [vmem:[#allocation8 + $0xa68] sm:$0xff]
    %v5013 = vld [vmem:[#allocation8 + $0xa70] sm:$0xff]
    %v5014 = vld [vmem:[#allocation8 + $0xa78] sm:$0xff]
    %v5015 = vld [vmem:[#allocation8 + $0xa80] sm:$0xff]
    %v5016 = vld [vmem:[#allocation8 + $0xa88] sm:$0xff]
    %v5017 = vld [vmem:[#allocation8 + $0xa90] sm:$0xff]
    %v5018 = vld [vmem:[#allocation8 + $0xa98] sm:$0xff]
    %v5019 = vld [vmem:[#allocation8 + $0xaa0] sm:$0xff]
    %v5020 = vld [vmem:[#allocation8 + $0xaa8] sm:$0xff]
    %v5021 = vld [vmem:[#allocation8 + $0xab0] sm:$0xff]
    %v5022 = vld [vmem:[#allocation8 + $0xab8] sm:$0xff]
    %v5023 = vld [vmem:[#allocation8 + $0xac0] sm:$0xff]
    %v5024 = vld [vmem:[#allocation8 + $0xac8] sm:$0xff]
    %v5025 = vld [vmem:[#allocation8 + $0xad0] sm:$0xff]
    %v5026 = vld [vmem:[#allocation8 + $0xad8] sm:$0xff]
    %v5027 = vld [vmem:[#allocation8 + $0xae0] sm:$0xff]
    %v5028 = vld [vmem:[#allocation8 + $0xae8] sm:$0xff]
    %v5029 = vld [vmem:[#allocation8 + $0xaf0] sm:$0xff]
    %v5030 = vld [vmem:[#allocation8 + $0xaf8] sm:$0xff]
    %v5031 = vld [vmem:[#allocation8 + $0xb00] sm:$0xff]
    %v5032 = vld [vmem:[#allocation8 + $0xb08] sm:$0xff]
    %v5033 = vld [vmem:[#allocation8 + $0xb10] sm:$0xff]
    %v5034 = vld [vmem:[#allocation8 + $0xb18] sm:$0xff]
    %v5035 = vld [vmem:[#allocation8 + $0xb20] sm:$0xff]
    %v5036 = vld [vmem:[#allocation8 + $0xb28] sm:$0xff]
    %v5037 = vld [vmem:[#allocation8 + $0xb30] sm:$0xff]
    %v5038 = vld [vmem:[#allocation8 + $0xb38] sm:$0xff]
    %v5039 = vld [vmem:[#allocation8 + $0xb40] sm:$0xff]
    %v5040 = vld [vmem:[#allocation8 + $0xb48] sm:$0xff]
    %v5041 = vld [vmem:[#allocation8 + $0xb50] sm:$0xff]
    %v5042 = vld [vmem:[#allocation8 + $0xb58] sm:$0xff]
    %v5043 = vld [vmem:[#allocation8 + $0xb60] sm:$0xff]
    %v5044 = vld [vmem:[#allocation8 + $0xb68] sm:$0xff]
    %v5045 = vld [vmem:[#allocation8 + $0xb70] sm:$0xff]
    %v5046 = vld [vmem:[#allocation8 + $0xb78] sm:$0xff]
    %v5047 = vld [vmem:[#allocation8 + $0xb80] sm:$0xff]
    %v5048 = vld [vmem:[#allocation8 + $0xb88] sm:$0xff]
    %v5049 = vld [vmem:[#allocation8 + $0xb90] sm:$0xff]
    %v5050 = vld [vmem:[#allocation8 + $0xb98] sm:$0xff]
    %v5051 = vld [vmem:[#allocation8 + $0xba0] sm:$0xff]
    %v5052 = vld [vmem:[#allocation8 + $0xba8] sm:$0xff]
    %v5053 = vld [vmem:[#allocation8 + $0xbb0] sm:$0xff]
    %v5054 = vld [vmem:[#allocation8 + $0xbb8] sm:$0xff]
    %v5055 = vld [vmem:[#allocation8 + $0xbc0] sm:$0xff]
    %v5056 = vld [vmem:[#allocation8 + $0xbc8] sm:$0xff]
    %v5057 = vld [vmem:[#allocation8 + $0xbd0] sm:$0xff]
    %v5058 = vld [vmem:[#allocation8 + $0xbd8] sm:$0xff]
    %v5059 = vld [vmem:[#allocation8 + $0xbe0] sm:$0xff]
    %v5060 = vld [vmem:[#allocation8 + $0xbe8] sm:$0xff]
    %v5061 = vld [vmem:[#allocation8 + $0xbf0] sm:$0xff]
    %v5062 = vld [vmem:[#allocation8 + $0xbf8] sm:$0xff]
    %v5063 = vld [vmem:[#allocation8 + $0xc00] sm:$0xff]
    %v5064 = vld [vmem:[#allocation8 + $0xc08] sm:$0xff]
    %v5065 = vld [vmem:[#allocation8 + $0xc10] sm:$0xff]
    %v5066 = vld [vmem:[#allocation8 + $0xc18] sm:$0xff]
    %v5067 = vld [vmem:[#allocation8 + $0xc20] sm:$0xff]
    %v5068 = vld [vmem:[#allocation8 + $0xc28] sm:$0xff]
    %v5069 = vld [vmem:[#allocation8 + $0xc30] sm:$0xff]
    %v5070 = vld [vmem:[#allocation8 + $0xc38] sm:$0xff]
    %v5071 = vld [vmem:[#allocation8 + $0xc40] sm:$0xff]
    %v5072 = vld [vmem:[#allocation8 + $0xc48] sm:$0xff]
    %v5073 = vld [vmem:[#allocation8 + $0xc50] sm:$0xff]
    %v5074 = vld [vmem:[#allocation8 + $0xc58] sm:$0xff]
    %v5075 = vld [vmem:[#allocation8 + $0xc60] sm:$0xff]
    %v5076 = vld [vmem:[#allocation8 + $0xc68] sm:$0xff]
    %v5077 = vld [vmem:[#allocation8 + $0xc70] sm:$0xff]
    %v5078 = vld [vmem:[#allocation8 + $0xc78] sm:$0xff]
    %v5079 = vld [vmem:[#allocation8 + $0xc80] sm:$0xff]
    %v5080 = vld [vmem:[#allocation8 + $0xc88] sm:$0xff]
    %v5081 = vld [vmem:[#allocation8 + $0xc90] sm:$0xff]
    %v5082 = vld [vmem:[#allocation8 + $0xc98] sm:$0xff]
    %v5083 = vld [vmem:[#allocation8 + $0xca0] sm:$0xff]
    %v5084 = vld [vmem:[#allocation8 + $0xca8] sm:$0xff]
    %v5085 = vld [vmem:[#allocation8 + $0xcb0] sm:$0xff]
    %v5086 = vld [vmem:[#allocation8 + $0xcb8] sm:$0xff]
    %v5087 = vld [vmem:[#allocation8 + $0xcc0] sm:$0xff]
    %v5088 = vld [vmem:[#allocation8 + $0xcc8] sm:$0xff]
    %v5089 = vld [vmem:[#allocation8 + $0xcd0] sm:$0xff]
    %v5090 = vld [vmem:[#allocation8 + $0xcd8] sm:$0xff]
    %v5091 = vld [vmem:[#allocation8 + $0xce0] sm:$0xff]
    %v5092 = vld [vmem:[#allocation8 + $0xce8] sm:$0xff]
    %v5093 = vld [vmem:[#allocation8 + $0xcf0] sm:$0xff]
    %v5094 = vld [vmem:[#allocation8 + $0xcf8] sm:$0xff]
    %v5095 = vld [vmem:[#allocation8 + $0xd00] sm:$0xff]
    %v5096 = vld [vmem:[#allocation8 + $0xd08] sm:$0xff]
    %v5097 = vld [vmem:[#allocation8 + $0xd10] sm:$0xff]
    %v5098 = vld [vmem:[#allocation8 + $0xd18] sm:$0xff]
    %v5099 = vld [vmem:[#allocation8 + $0xd20] sm:$0xff]
    %v5100 = vld [vmem:[#allocation8 + $0xd28] sm:$0xff]
    %v5101 = vld [vmem:[#allocation8 + $0xd30] sm:$0xff]
    %v5102 = vld [vmem:[#allocation8 + $0xd38] sm:$0xff]
    %v5103 = vld [vmem:[#allocation8 + $0xd40] sm:$0xff]
    %v5104 = vld [vmem:[#allocation8 + $0xd48] sm:$0xff]
    %v5105 = vld [vmem:[#allocation8 + $0xd50] sm:$0xff]
    %v5106 = vld [vmem:[#allocation8 + $0xd58] sm:$0xff]
    %v5107 = vld [vmem:[#allocation8 + $0xd60] sm:$0xff]
    %v5108 = vld [vmem:[#allocation8 + $0xd68] sm:$0xff]
    %v5109 = vld [vmem:[#allocation8 + $0xd70] sm:$0xff]
    %v5110 = vld [vmem:[#allocation8 + $0xd78] sm:$0xff]
    %v5111 = vld [vmem:[#allocation8 + $0xd80] sm:$0xff]
    %v5112 = vld [vmem:[#allocation8 + $0xd88] sm:$0xff]
    %v5113 = vld [vmem:[#allocation8 + $0xd90] sm:$0xff]
    %v5114 = vld [vmem:[#allocation8 + $0xd98] sm:$0xff]
    %v5115 = vld [vmem:[#allocation8 + $0xda0] sm:$0xff]
    %v5116 = vld [vmem:[#allocation8 + $0xda8] sm:$0xff]
    %v5117 = vld [vmem:[#allocation8 + $0xdb0] sm:$0xff]
    %v5118 = vld [vmem:[#allocation8 + $0xdb8] sm:$0xff]
    %v5119 = vld [vmem:[#allocation8 + $0xdc0] sm:$0xff]
    %v5120 = vld [vmem:[#allocation8 + $0xdc8] sm:$0xff]
    %v5121 = vld [vmem:[#allocation8 + $0xdd0] sm:$0xff]
    %v5122 = vld [vmem:[#allocation8 + $0xdd8] sm:$0xff]
    %v5123 = vld [vmem:[#allocation8 + $0xde0] sm:$0xff]
    %v5124 = vld [vmem:[#allocation8 + $0xde8] sm:$0xff]
    %v5125 = vld [vmem:[#allocation8 + $0xdf0] sm:$0xff]
    %v5126 = vld [vmem:[#allocation8 + $0xdf8] sm:$0xff]
    %v5127 = vld [vmem:[#allocation8 + $0xe00] sm:$0xff]
    %v5128 = vld [vmem:[#allocation8 + $0xe08] sm:$0xff]
    %v5129 = vld [vmem:[#allocation8 + $0xe10] sm:$0xff]
    %v5130 = vld [vmem:[#allocation8 + $0xe18] sm:$0xff]
    %v5131 = vld [vmem:[#allocation8 + $0xe20] sm:$0xff]
    %v5132 = vld [vmem:[#allocation8 + $0xe28] sm:$0xff]
    %v5133 = vld [vmem:[#allocation8 + $0xe30] sm:$0xff]
    %v5134 = vld [vmem:[#allocation8 + $0xe38] sm:$0xff]
    %v5135 = vld [vmem:[#allocation8 + $0xe40] sm:$0xff]
    %v5136 = vld [vmem:[#allocation8 + $0xe48] sm:$0xff]
    %v5137 = vld [vmem:[#allocation8 + $0xe50] sm:$0xff]
    %v5138 = vld [vmem:[#allocation8 + $0xe58] sm:$0xff]
    %v5139 = vld [vmem:[#allocation8 + $0xe60] sm:$0xff]
    %v5140 = vld [vmem:[#allocation8 + $0xe68] sm:$0xff]
    %v5141 = vld [vmem:[#allocation8 + $0xe70] sm:$0xff]
    %v5142 = vld [vmem:[#allocation8 + $0xe78] sm:$0xff]
    %v5143 = vld [vmem:[#allocation8 + $0xe80] sm:$0xff]
    %v5144 = vld [vmem:[#allocation8 + $0xe88] sm:$0xff]
    %v5145 = vld [vmem:[#allocation8 + $0xe90] sm:$0xff]
    %v5146 = vld [vmem:[#allocation8 + $0xe98] sm:$0xff]
    %v5147 = vld [vmem:[#allocation8 + $0xea0] sm:$0xff]
    %v5148 = vld [vmem:[#allocation8 + $0xea8] sm:$0xff]
    %v5149 = vld [vmem:[#allocation8 + $0xeb0] sm:$0xff]
    %v5150 = vld [vmem:[#allocation8 + $0xeb8] sm:$0xff]
    %v5151 = vld [vmem:[#allocation8 + $0xec0] sm:$0xff]
    %v5152 = vld [vmem:[#allocation8 + $0xec8] sm:$0xff]
    %v5153 = vld [vmem:[#allocation8 + $0xed0] sm:$0xff]
    %v5154 = vld [vmem:[#allocation8 + $0xed8] sm:$0xff]
    %v5155 = vld [vmem:[#allocation8 + $0xee0] sm:$0xff]
    %v5156 = vld [vmem:[#allocation8 + $0xee8] sm:$0xff]
    %v5157 = vld [vmem:[#allocation8 + $0xef0] sm:$0xff]
    %v5158 = vld [vmem:[#allocation8 + $0xef8] sm:$0xff]
    %v5159 = vld [vmem:[#allocation8 + $0xf00] sm:$0xff]
    %v5160 = vld [vmem:[#allocation8 + $0xf08] sm:$0xff]
    %v5161 = vld [vmem:[#allocation8 + $0xf10] sm:$0xff]
    %v5162 = vld [vmem:[#allocation8 + $0xf18] sm:$0xff]
    %v5163 = vld [vmem:[#allocation8 + $0xf20] sm:$0xff]
    %v5164 = vld [vmem:[#allocation8 + $0xf28] sm:$0xff]
    %v5165 = vld [vmem:[#allocation8 + $0xf30] sm:$0xff]
    %v5166 = vld [vmem:[#allocation8 + $0xf38] sm:$0xff]
    %v5167 = vld [vmem:[#allocation8 + $0xf40] sm:$0xff]
    %v5168 = vld [vmem:[#allocation8 + $0xf48] sm:$0xff]
    %v5169 = vld [vmem:[#allocation8 + $0xf50] sm:$0xff]
    %v5170 = vld [vmem:[#allocation8 + $0xf58] sm:$0xff]
    %v5171 = vld [vmem:[#allocation8 + $0xf60] sm:$0xff]
    %v5172 = vld [vmem:[#allocation8 + $0xf68] sm:$0xff]
    %v5173 = vld [vmem:[#allocation8 + $0xf70] sm:$0xff]
    %v5174 = vld [vmem:[#allocation8 + $0xf78] sm:$0xff]
    %v5175 = vld [vmem:[#allocation8 + $0xf80] sm:$0xff]
    %v5176 = vld [vmem:[#allocation8 + $0xf88] sm:$0xff]
    %v5177 = vld [vmem:[#allocation8 + $0xf90] sm:$0xff]
    %v5178 = vld [vmem:[#allocation8 + $0xf98] sm:$0xff]
    %v5179 = vld [vmem:[#allocation8 + $0xfa0] sm:$0xff]
    %v5180 = vld [vmem:[#allocation8 + $0xfa8] sm:$0xff]
    %v5181 = vld [vmem:[#allocation8 + $0xfb0] sm:$0xff]
    %v5182 = vld [vmem:[#allocation8 + $0xfb8] sm:$0xff]
    %v5183 = vld [vmem:[#allocation8 + $0xfc0] sm:$0xff]
    %v5184 = vld [vmem:[#allocation8 + $0xfc8] sm:$0xff]
    %v5185 = vld [vmem:[#allocation8 + $0xfd0] sm:$0xff]
    %v5186 = vld [vmem:[#allocation8 + $0xfd8] sm:$0xff]
    %v5187 = vld [vmem:[#allocation8 + $0xfe0] sm:$0xff]
    %v5188 = vld [vmem:[#allocation8 + $0xfe8] sm:$0xff]
    %v5189 = vld [vmem:[#allocation8 + $0xff0] sm:$0xff]
    %v5190 = vld [vmem:[#allocation8 + $0xff8] sm:$0xff]
    %v5703 = vunpack.c.l.b16 %v4679
    %v5704 = vunpack.c.h.b16 %v4679
    %v5705 = vunpack.c.l.b16 %v4680
    %v5706 = vunpack.c.h.b16 %v4680
    %v5707 = vunpack.c.l.b16 %v4681
    %v5708 = vunpack.c.h.b16 %v4681
    %v5709 = vunpack.c.l.b16 %v4682
    %v5710 = vunpack.c.h.b16 %v4682
    %v5711 = vunpack.c.l.b16 %v4683
    %v5712 = vunpack.c.h.b16 %v4683
    %v5713 = vunpack.c.l.b16 %v4684
    %v5714 = vunpack.c.h.b16 %v4684
    %v5715 = vunpack.c.l.b16 %v4685
    %v5716 = vunpack.c.h.b16 %v4685
    %v5717 = vunpack.c.l.b16 %v4686
    %v5718 = vunpack.c.h.b16 %v4686
    %v5719 = vunpack.c.l.b16 %v4687
    %v5720 = vunpack.c.h.b16 %v4687
    %v5721 = vunpack.c.l.b16 %v4688
    %v5722 = vunpack.c.h.b16 %v4688
    %v5723 = vunpack.c.l.b16 %v4689
    %v5724 = vunpack.c.h.b16 %v4689
    %v5725 = vunpack.c.l.b16 %v4690
    %v5726 = vunpack.c.h.b16 %v4690
    %v5727 = vunpack.c.l.b16 %v4691
    %v5728 = vunpack.c.h.b16 %v4691
    %v5729 = vunpack.c.l.b16 %v4692
    %v5730 = vunpack.c.h.b16 %v4692
    %v5731 = vunpack.c.l.b16 %v4693
    %v5732 = vunpack.c.h.b16 %v4693
    %v5733 = vunpack.c.l.b16 %v4694
    %v5734 = vunpack.c.h.b16 %v4694
    %v5735 = vunpack.c.l.b16 %v4695
    %v5736 = vunpack.c.h.b16 %v4695
    %v5737 = vunpack.c.l.b16 %v4696
    %v5738 = vunpack.c.h.b16 %v4696
    %v5739 = vunpack.c.l.b16 %v4697
    %v5740 = vunpack.c.h.b16 %v4697
    %v5741 = vunpack.c.l.b16 %v4698
    %v5742 = vunpack.c.h.b16 %v4698
    %v5743 = vunpack.c.l.b16 %v4699
    %v5744 = vunpack.c.h.b16 %v4699
    %v5745 = vunpack.c.l.b16 %v4700
    %v5746 = vunpack.c.h.b16 %v4700
    %v5747 = vunpack.c.l.b16 %v4701
    %v5748 = vunpack.c.h.b16 %v4701
    %v5749 = vunpack.c.l.b16 %v4702
    %v5750 = vunpack.c.h.b16 %v4702
    %v5751 = vunpack.c.l.b16 %v4703
    %v5752 = vunpack.c.h.b16 %v4703
    %v5753 = vunpack.c.l.b16 %v4704
    %v5754 = vunpack.c.h.b16 %v4704
    %v5755 = vunpack.c.l.b16 %v4705
    %v5756 = vunpack.c.h.b16 %v4705
    %v5757 = vunpack.c.l.b16 %v4706
    %v5758 = vunpack.c.h.b16 %v4706
    %v5759 = vunpack.c.l.b16 %v4707
    %v5760 = vunpack.c.h.b16 %v4707
    %v5761 = vunpack.c.l.b16 %v4708
    %v5762 = vunpack.c.h.b16 %v4708
    %v5763 = vunpack.c.l.b16 %v4709
    %v5764 = vunpack.c.h.b16 %v4709
    %v5765 = vunpack.c.l.b16 %v4710
    %v5766 = vunpack.c.h.b16 %v4710
    %v5767 = vunpack.c.l.b16 %v4711
    %v5768 = vunpack.c.h.b16 %v4711
    %v5769 = vunpack.c.l.b16 %v4712
    %v5770 = vunpack.c.h.b16 %v4712
    %v5771 = vunpack.c.l.b16 %v4713
    %v5772 = vunpack.c.h.b16 %v4713
    %v5773 = vunpack.c.l.b16 %v4714
    %v5774 = vunpack.c.h.b16 %v4714
    %v5775 = vunpack.c.l.b16 %v4715
    %v5776 = vunpack.c.h.b16 %v4715
    %v5777 = vunpack.c.l.b16 %v4716
    %v5778 = vunpack.c.h.b16 %v4716
    %v5779 = vunpack.c.l.b16 %v4717
    %v5780 = vunpack.c.h.b16 %v4717
    %v5781 = vunpack.c.l.b16 %v4718
    %v5782 = vunpack.c.h.b16 %v4718
    %v5783 = vunpack.c.l.b16 %v4719
    %v5784 = vunpack.c.h.b16 %v4719
    %v5785 = vunpack.c.l.b16 %v4720
    %v5786 = vunpack.c.h.b16 %v4720
    %v5787 = vunpack.c.l.b16 %v4721
    %v5788 = vunpack.c.h.b16 %v4721
    %v5789 = vunpack.c.l.b16 %v4722
    %v5790 = vunpack.c.h.b16 %v4722
    %v5791 = vunpack.c.l.b16 %v4723
    %v5792 = vunpack.c.h.b16 %v4723
    %v5793 = vunpack.c.l.b16 %v4724
    %v5794 = vunpack.c.h.b16 %v4724
    %v5795 = vunpack.c.l.b16 %v4725
    %v5796 = vunpack.c.h.b16 %v4725
    %v5797 = vunpack.c.l.b16 %v4726
    %v5798 = vunpack.c.h.b16 %v4726
    %v5799 = vunpack.c.l.b16 %v4727
    %v5800 = vunpack.c.h.b16 %v4727
    %v5801 = vunpack.c.l.b16 %v4728
    %v5802 = vunpack.c.h.b16 %v4728
    %v5803 = vunpack.c.l.b16 %v4729
    %v5804 = vunpack.c.h.b16 %v4729
    %v5805 = vunpack.c.l.b16 %v4730
    %v5806 = vunpack.c.h.b16 %v4730
    %v5807 = vunpack.c.l.b16 %v4731
    %v5808 = vunpack.c.h.b16 %v4731
    %v5809 = vunpack.c.l.b16 %v4732
    %v5810 = vunpack.c.h.b16 %v4732
    %v5811 = vunpack.c.l.b16 %v4733
    %v5812 = vunpack.c.h.b16 %v4733
    %v5813 = vunpack.c.l.b16 %v4734
    %v5814 = vunpack.c.h.b16 %v4734
    %v5815 = vunpack.c.l.b16 %v4735
    %v5816 = vunpack.c.h.b16 %v4735
    %v5817 = vunpack.c.l.b16 %v4736
    %v5818 = vunpack.c.h.b16 %v4736
    %v5819 = vunpack.c.l.b16 %v4737
    %v5820 = vunpack.c.h.b16 %v4737
    %v5821 = vunpack.c.l.b16 %v4738
    %v5822 = vunpack.c.h.b16 %v4738
    %v5823 = vunpack.c.l.b16 %v4739
    %v5824 = vunpack.c.h.b16 %v4739
    %v5825 = vunpack.c.l.b16 %v4740
    %v5826 = vunpack.c.h.b16 %v4740
    %v5827 = vunpack.c.l.b16 %v4741
    %v5828 = vunpack.c.h.b16 %v4741
    %v5829 = vunpack.c.l.b16 %v4742
    %v5830 = vunpack.c.h.b16 %v4742
    %v5831 = vunpack.c.l.b16 %v4743
    %v5832 = vunpack.c.h.b16 %v4743
    %v5833 = vunpack.c.l.b16 %v4744
    %v5834 = vunpack.c.h.b16 %v4744
    %v5835 = vunpack.c.l.b16 %v4745
    %v5836 = vunpack.c.h.b16 %v4745
    %v5837 = vunpack.c.l.b16 %v4746
    %v5838 = vunpack.c.h.b16 %v4746
    %v5839 = vunpack.c.l.b16 %v4747
    %v5840 = vunpack.c.h.b16 %v4747
    %v5841 = vunpack.c.l.b16 %v4748
    %v5842 = vunpack.c.h.b16 %v4748
    %v5843 = vunpack.c.l.b16 %v4749
    %v5844 = vunpack.c.h.b16 %v4749
    %v5845 = vunpack.c.l.b16 %v4750
    %v5846 = vunpack.c.h.b16 %v4750
    %v5847 = vunpack.c.l.b16 %v4751
    %v5848 = vunpack.c.h.b16 %v4751
    %v5849 = vunpack.c.l.b16 %v4752
    %v5850 = vunpack.c.h.b16 %v4752
    %v5851 = vunpack.c.l.b16 %v4753
    %v5852 = vunpack.c.h.b16 %v4753
    %v5853 = vunpack.c.l.b16 %v4754
    %v5854 = vunpack.c.h.b16 %v4754
    %v5855 = vunpack.c.l.b16 %v4755
    %v5856 = vunpack.c.h.b16 %v4755
    %v5857 = vunpack.c.l.b16 %v4756
    %v5858 = vunpack.c.h.b16 %v4756
    %v5859 = vunpack.c.l.b16 %v4757
    %v5860 = vunpack.c.h.b16 %v4757
    %v5861 = vunpack.c.l.b16 %v4758
    %v5862 = vunpack.c.h.b16 %v4758
    %v5863 = vunpack.c.l.b16 %v4759
    %v5864 = vunpack.c.h.b16 %v4759
    %v5865 = vunpack.c.l.b16 %v4760
    %v5866 = vunpack.c.h.b16 %v4760
    %v5867 = vunpack.c.l.b16 %v4761
    %v5868 = vunpack.c.h.b16 %v4761
    %v5869 = vunpack.c.l.b16 %v4762
    %v5870 = vunpack.c.h.b16 %v4762
    %v5871 = vunpack.c.l.b16 %v4763
    %v5872 = vunpack.c.h.b16 %v4763
    %v5873 = vunpack.c.l.b16 %v4764
    %v5874 = vunpack.c.h.b16 %v4764
    %v5875 = vunpack.c.l.b16 %v4765
    %v5876 = vunpack.c.h.b16 %v4765
    %v5877 = vunpack.c.l.b16 %v4766
    %v5878 = vunpack.c.h.b16 %v4766
    %v5879 = vunpack.c.l.b16 %v4767
    %v5880 = vunpack.c.h.b16 %v4767
    %v5881 = vunpack.c.l.b16 %v4768
    %v5882 = vunpack.c.h.b16 %v4768
    %v5883 = vunpack.c.l.b16 %v4769
    %v5884 = vunpack.c.h.b16 %v4769
    %v5885 = vunpack.c.l.b16 %v4770
    %v5886 = vunpack.c.h.b16 %v4770
    %v5887 = vunpack.c.l.b16 %v4771
    %v5888 = vunpack.c.h.b16 %v4771
    %v5889 = vunpack.c.l.b16 %v4772
    %v5890 = vunpack.c.h.b16 %v4772
    %v5891 = vunpack.c.l.b16 %v4773
    %v5892 = vunpack.c.h.b16 %v4773
    %v5893 = vunpack.c.l.b16 %v4774
    %v5894 = vunpack.c.h.b16 %v4774
    %v5895 = vunpack.c.l.b16 %v4775
    %v5896 = vunpack.c.h.b16 %v4775
    %v5897 = vunpack.c.l.b16 %v4776
    %v5898 = vunpack.c.h.b16 %v4776
    %v5899 = vunpack.c.l.b16 %v4777
    %v5900 = vunpack.c.h.b16 %v4777
    %v5901 = vunpack.c.l.b16 %v4778
    %v5902 = vunpack.c.h.b16 %v4778
    %v5903 = vunpack.c.l.b16 %v4779
    %v5904 = vunpack.c.h.b16 %v4779
    %v5905 = vunpack.c.l.b16 %v4780
    %v5906 = vunpack.c.h.b16 %v4780
    %v5907 = vunpack.c.l.b16 %v4781
    %v5908 = vunpack.c.h.b16 %v4781
    %v5909 = vunpack.c.l.b16 %v4782
    %v5910 = vunpack.c.h.b16 %v4782
    %v5911 = vunpack.c.l.b16 %v4783
    %v5912 = vunpack.c.h.b16 %v4783
    %v5913 = vunpack.c.l.b16 %v4784
    %v5914 = vunpack.c.h.b16 %v4784
    %v5915 = vunpack.c.l.b16 %v4785
    %v5916 = vunpack.c.h.b16 %v4785
    %v5917 = vunpack.c.l.b16 %v4786
    %v5918 = vunpack.c.h.b16 %v4786
    %v5919 = vunpack.c.l.b16 %v4787
    %v5920 = vunpack.c.h.b16 %v4787
    %v5921 = vunpack.c.l.b16 %v4788
    %v5922 = vunpack.c.h.b16 %v4788
    %v5923 = vunpack.c.l.b16 %v4789
    %v5924 = vunpack.c.h.b16 %v4789
    %v5925 = vunpack.c.l.b16 %v4790
    %v5926 = vunpack.c.h.b16 %v4790
    %v5927 = vunpack.c.l.b16 %v4791
    %v5928 = vunpack.c.h.b16 %v4791
    %v5929 = vunpack.c.l.b16 %v4792
    %v5930 = vunpack.c.h.b16 %v4792
    %v5931 = vunpack.c.l.b16 %v4793
    %v5932 = vunpack.c.h.b16 %v4793
    %v5933 = vunpack.c.l.b16 %v4794
    %v5934 = vunpack.c.h.b16 %v4794
    %v5935 = vunpack.c.l.b16 %v4795
    %v5936 = vunpack.c.h.b16 %v4795
    %v5937 = vunpack.c.l.b16 %v4796
    %v5938 = vunpack.c.h.b16 %v4796
    %v5939 = vunpack.c.l.b16 %v4797
    %v5940 = vunpack.c.h.b16 %v4797
    %v5941 = vunpack.c.l.b16 %v4798
    %v5942 = vunpack.c.h.b16 %v4798
    %v5943 = vunpack.c.l.b16 %v4799
    %v5944 = vunpack.c.h.b16 %v4799
    %v5945 = vunpack.c.l.b16 %v4800
    %v5946 = vunpack.c.h.b16 %v4800
    %v5947 = vunpack.c.l.b16 %v4801
    %v5948 = vunpack.c.h.b16 %v4801
    %v5949 = vunpack.c.l.b16 %v4802
    %v5950 = vunpack.c.h.b16 %v4802
    %v5951 = vunpack.c.l.b16 %v4803
    %v5952 = vunpack.c.h.b16 %v4803
    %v5953 = vunpack.c.l.b16 %v4804
    %v5954 = vunpack.c.h.b16 %v4804
    %v5955 = vunpack.c.l.b16 %v4805
    %v5956 = vunpack.c.h.b16 %v4805
    %v5957 = vunpack.c.l.b16 %v4806
    %v5958 = vunpack.c.h.b16 %v4806
    %v5959 = vunpack.c.l.b16 %v4807
    %v5960 = vunpack.c.h.b16 %v4807
    %v5961 = vunpack.c.l.b16 %v4808
    %v5962 = vunpack.c.h.b16 %v4808
    %v5963 = vunpack.c.l.b16 %v4809
    %v5964 = vunpack.c.h.b16 %v4809
    %v5965 = vunpack.c.l.b16 %v4810
    %v5966 = vunpack.c.h.b16 %v4810
    %v5967 = vunpack.c.l.b16 %v4811
    %v5968 = vunpack.c.h.b16 %v4811
    %v5969 = vunpack.c.l.b16 %v4812
    %v5970 = vunpack.c.h.b16 %v4812
    %v5971 = vunpack.c.l.b16 %v4813
    %v5972 = vunpack.c.h.b16 %v4813
    %v5973 = vunpack.c.l.b16 %v4814
    %v5974 = vunpack.c.h.b16 %v4814
    %v5975 = vunpack.c.l.b16 %v4815
    %v5976 = vunpack.c.h.b16 %v4815
    %v5977 = vunpack.c.l.b16 %v4816
    %v5978 = vunpack.c.h.b16 %v4816
    %v5979 = vunpack.c.l.b16 %v4817
    %v5980 = vunpack.c.h.b16 %v4817
    %v5981 = vunpack.c.l.b16 %v4818
    %v5982 = vunpack.c.h.b16 %v4818
    %v5983 = vunpack.c.l.b16 %v4819
    %v5984 = vunpack.c.h.b16 %v4819
    %v5985 = vunpack.c.l.b16 %v4820
    %v5986 = vunpack.c.h.b16 %v4820
    %v5987 = vunpack.c.l.b16 %v4821
    %v5988 = vunpack.c.h.b16 %v4821
    %v5989 = vunpack.c.l.b16 %v4822
    %v5990 = vunpack.c.h.b16 %v4822
    %v5991 = vunpack.c.l.b16 %v4823
    %v5992 = vunpack.c.h.b16 %v4823
    %v5993 = vunpack.c.l.b16 %v4824
    %v5994 = vunpack.c.h.b16 %v4824
    %v5995 = vunpack.c.l.b16 %v4825
    %v5996 = vunpack.c.h.b16 %v4825
    %v5997 = vunpack.c.l.b16 %v4826
    %v5998 = vunpack.c.h.b16 %v4826
    %v5999 = vunpack.c.l.b16 %v4827
    %v6000 = vunpack.c.h.b16 %v4827
    %v6001 = vunpack.c.l.b16 %v4828
    %v6002 = vunpack.c.h.b16 %v4828
    %v6003 = vunpack.c.l.b16 %v4829
    %v6004 = vunpack.c.h.b16 %v4829
    %v6005 = vunpack.c.l.b16 %v4830
    %v6006 = vunpack.c.h.b16 %v4830
    %v6007 = vunpack.c.l.b16 %v4831
    %v6008 = vunpack.c.h.b16 %v4831
    %v6009 = vunpack.c.l.b16 %v4832
    %v6010 = vunpack.c.h.b16 %v4832
    %v6011 = vunpack.c.l.b16 %v4833
    %v6012 = vunpack.c.h.b16 %v4833
    %v6013 = vunpack.c.l.b16 %v4834
    %v6014 = vunpack.c.h.b16 %v4834
    %v6015 = vunpack.c.l.b16 %v4835
    %v6016 = vunpack.c.h.b16 %v4835
    %v6017 = vunpack.c.l.b16 %v4836
    %v6018 = vunpack.c.h.b16 %v4836
    %v6019 = vunpack.c.l.b16 %v4837
    %v6020 = vunpack.c.h.b16 %v4837
    %v6021 = vunpack.c.l.b16 %v4838
    %v6022 = vunpack.c.h.b16 %v4838
    %v6023 = vunpack.c.l.b16 %v4839
    %v6024 = vunpack.c.h.b16 %v4839
    %v6025 = vunpack.c.l.b16 %v4840
    %v6026 = vunpack.c.h.b16 %v4840
    %v6027 = vunpack.c.l.b16 %v4841
    %v6028 = vunpack.c.h.b16 %v4841
    %v6029 = vunpack.c.l.b16 %v4842
    %v6030 = vunpack.c.h.b16 %v4842
    %v6031 = vunpack.c.l.b16 %v4843
    %v6032 = vunpack.c.h.b16 %v4843
    %v6033 = vunpack.c.l.b16 %v4844
    %v6034 = vunpack.c.h.b16 %v4844
    %v6035 = vunpack.c.l.b16 %v4845
    %v6036 = vunpack.c.h.b16 %v4845
    %v6037 = vunpack.c.l.b16 %v4846
    %v6038 = vunpack.c.h.b16 %v4846
    %v6039 = vunpack.c.l.b16 %v4847
    %v6040 = vunpack.c.h.b16 %v4847
    %v6041 = vunpack.c.l.b16 %v4848
    %v6042 = vunpack.c.h.b16 %v4848
    %v6043 = vunpack.c.l.b16 %v4849
    %v6044 = vunpack.c.h.b16 %v4849
    %v6045 = vunpack.c.l.b16 %v4850
    %v6046 = vunpack.c.h.b16 %v4850
    %v6047 = vunpack.c.l.b16 %v4851
    %v6048 = vunpack.c.h.b16 %v4851
    %v6049 = vunpack.c.l.b16 %v4852
    %v6050 = vunpack.c.h.b16 %v4852
    %v6051 = vunpack.c.l.b16 %v4853
    %v6052 = vunpack.c.h.b16 %v4853
    %v6053 = vunpack.c.l.b16 %v4854
    %v6054 = vunpack.c.h.b16 %v4854
    %v6055 = vunpack.c.l.b16 %v4855
    %v6056 = vunpack.c.h.b16 %v4855
    %v6057 = vunpack.c.l.b16 %v4856
    %v6058 = vunpack.c.h.b16 %v4856
    %v6059 = vunpack.c.l.b16 %v4857
    %v6060 = vunpack.c.h.b16 %v4857
    %v6061 = vunpack.c.l.b16 %v4858
    %v6062 = vunpack.c.h.b16 %v4858
    %v6063 = vunpack.c.l.b16 %v4859
    %v6064 = vunpack.c.h.b16 %v4859
    %v6065 = vunpack.c.l.b16 %v4860
    %v6066 = vunpack.c.h.b16 %v4860
    %v6067 = vunpack.c.l.b16 %v4861
    %v6068 = vunpack.c.h.b16 %v4861
    %v6069 = vunpack.c.l.b16 %v4862
    %v6070 = vunpack.c.h.b16 %v4862
    %v6071 = vunpack.c.l.b16 %v4863
    %v6072 = vunpack.c.h.b16 %v4863
    %v6073 = vunpack.c.l.b16 %v4864
    %v6074 = vunpack.c.h.b16 %v4864
    %v6075 = vunpack.c.l.b16 %v4865
    %v6076 = vunpack.c.h.b16 %v4865
    %v6077 = vunpack.c.l.b16 %v4866
    %v6078 = vunpack.c.h.b16 %v4866
    %v6079 = vunpack.c.l.b16 %v4867
    %v6080 = vunpack.c.h.b16 %v4867
    %v6081 = vunpack.c.l.b16 %v4868
    %v6082 = vunpack.c.h.b16 %v4868
    %v6083 = vunpack.c.l.b16 %v4869
    %v6084 = vunpack.c.h.b16 %v4869
    %v6085 = vunpack.c.l.b16 %v4870
    %v6086 = vunpack.c.h.b16 %v4870
    %v6087 = vunpack.c.l.b16 %v4871
    %v6088 = vunpack.c.h.b16 %v4871
    %v6089 = vunpack.c.l.b16 %v4872
    %v6090 = vunpack.c.h.b16 %v4872
    %v6091 = vunpack.c.l.b16 %v4873
    %v6092 = vunpack.c.h.b16 %v4873
    %v6093 = vunpack.c.l.b16 %v4874
    %v6094 = vunpack.c.h.b16 %v4874
    %v6095 = vunpack.c.l.b16 %v4875
    %v6096 = vunpack.c.h.b16 %v4875
    %v6097 = vunpack.c.l.b16 %v4876
    %v6098 = vunpack.c.h.b16 %v4876
    %v6099 = vunpack.c.l.b16 %v4877
    %v6100 = vunpack.c.h.b16 %v4877
    %v6101 = vunpack.c.l.b16 %v4878
    %v6102 = vunpack.c.h.b16 %v4878
    %v6103 = vunpack.c.l.b16 %v4879
    %v6104 = vunpack.c.h.b16 %v4879
    %v6105 = vunpack.c.l.b16 %v4880
    %v6106 = vunpack.c.h.b16 %v4880
    %v6107 = vunpack.c.l.b16 %v4881
    %v6108 = vunpack.c.h.b16 %v4881
    %v6109 = vunpack.c.l.b16 %v4882
    %v6110 = vunpack.c.h.b16 %v4882
    %v6111 = vunpack.c.l.b16 %v4883
    %v6112 = vunpack.c.h.b16 %v4883
    %v6113 = vunpack.c.l.b16 %v4884
    %v6114 = vunpack.c.h.b16 %v4884
    %v6115 = vunpack.c.l.b16 %v4885
    %v6116 = vunpack.c.h.b16 %v4885
    %v6117 = vunpack.c.l.b16 %v4886
    %v6118 = vunpack.c.h.b16 %v4886
    %v6119 = vunpack.c.l.b16 %v4887
    %v6120 = vunpack.c.h.b16 %v4887
    %v6121 = vunpack.c.l.b16 %v4888
    %v6122 = vunpack.c.h.b16 %v4888
    %v6123 = vunpack.c.l.b16 %v4889
    %v6124 = vunpack.c.h.b16 %v4889
    %v6125 = vunpack.c.l.b16 %v4890
    %v6126 = vunpack.c.h.b16 %v4890
    %v6127 = vunpack.c.l.b16 %v4891
    %v6128 = vunpack.c.h.b16 %v4891
    %v6129 = vunpack.c.l.b16 %v4892
    %v6130 = vunpack.c.h.b16 %v4892
    %v6131 = vunpack.c.l.b16 %v4893
    %v6132 = vunpack.c.h.b16 %v4893
    %v6133 = vunpack.c.l.b16 %v4894
    %v6134 = vunpack.c.h.b16 %v4894
    %v6135 = vunpack.c.l.b16 %v4895
    %v6136 = vunpack.c.h.b16 %v4895
    %v6137 = vunpack.c.l.b16 %v4896
    %v6138 = vunpack.c.h.b16 %v4896
    %v6139 = vunpack.c.l.b16 %v4897
    %v6140 = vunpack.c.h.b16 %v4897
    %v6141 = vunpack.c.l.b16 %v4898
    %v6142 = vunpack.c.h.b16 %v4898
    %v6143 = vunpack.c.l.b16 %v4899
    %v6144 = vunpack.c.h.b16 %v4899
    %v6145 = vunpack.c.l.b16 %v4900
    %v6146 = vunpack.c.h.b16 %v4900
    %v6147 = vunpack.c.l.b16 %v4901
    %v6148 = vunpack.c.h.b16 %v4901
    %v6149 = vunpack.c.l.b16 %v4902
    %v6150 = vunpack.c.h.b16 %v4902
    %v6151 = vunpack.c.l.b16 %v4903
    %v6152 = vunpack.c.h.b16 %v4903
    %v6153 = vunpack.c.l.b16 %v4904
    %v6154 = vunpack.c.h.b16 %v4904
    %v6155 = vunpack.c.l.b16 %v4905
    %v6156 = vunpack.c.h.b16 %v4905
    %v6157 = vunpack.c.l.b16 %v4906
    %v6158 = vunpack.c.h.b16 %v4906
    %v6159 = vunpack.c.l.b16 %v4907
    %v6160 = vunpack.c.h.b16 %v4907
    %v6161 = vunpack.c.l.b16 %v4908
    %v6162 = vunpack.c.h.b16 %v4908
    %v6163 = vunpack.c.l.b16 %v4909
    %v6164 = vunpack.c.h.b16 %v4909
    %v6165 = vunpack.c.l.b16 %v4910
    %v6166 = vunpack.c.h.b16 %v4910
    %v6167 = vunpack.c.l.b16 %v4911
    %v6168 = vunpack.c.h.b16 %v4911
    %v6169 = vunpack.c.l.b16 %v4912
    %v6170 = vunpack.c.h.b16 %v4912
    %v6171 = vunpack.c.l.b16 %v4913
    %v6172 = vunpack.c.h.b16 %v4913
    %v6173 = vunpack.c.l.b16 %v4914
    %v6174 = vunpack.c.h.b16 %v4914
    %v6175 = vunpack.c.l.b16 %v4915
    %v6176 = vunpack.c.h.b16 %v4915
    %v6177 = vunpack.c.l.b16 %v4916
    %v6178 = vunpack.c.h.b16 %v4916
    %v6179 = vunpack.c.l.b16 %v4917
    %v6180 = vunpack.c.h.b16 %v4917
    %v6181 = vunpack.c.l.b16 %v4918
    %v6182 = vunpack.c.h.b16 %v4918
    %v6183 = vunpack.c.l.b16 %v4919
    %v6184 = vunpack.c.h.b16 %v4919
    %v6185 = vunpack.c.l.b16 %v4920
    %v6186 = vunpack.c.h.b16 %v4920
    %v6187 = vunpack.c.l.b16 %v4921
    %v6188 = vunpack.c.h.b16 %v4921
    %v6189 = vunpack.c.l.b16 %v4922
    %v6190 = vunpack.c.h.b16 %v4922
    %v6191 = vunpack.c.l.b16 %v4923
    %v6192 = vunpack.c.h.b16 %v4923
    %v6193 = vunpack.c.l.b16 %v4924
    %v6194 = vunpack.c.h.b16 %v4924
    %v6195 = vunpack.c.l.b16 %v4925
    %v6196 = vunpack.c.h.b16 %v4925
    %v6197 = vunpack.c.l.b16 %v4926
    %v6198 = vunpack.c.h.b16 %v4926
    %v6199 = vunpack.c.l.b16 %v4927
    %v6200 = vunpack.c.h.b16 %v4927
    %v6201 = vunpack.c.l.b16 %v4928
    %v6202 = vunpack.c.h.b16 %v4928
    %v6203 = vunpack.c.l.b16 %v4929
    %v6204 = vunpack.c.h.b16 %v4929
    %v6205 = vunpack.c.l.b16 %v4930
    %v6206 = vunpack.c.h.b16 %v4930
    %v6207 = vunpack.c.l.b16 %v4931
    %v6208 = vunpack.c.h.b16 %v4931
    %v6209 = vunpack.c.l.b16 %v4932
    %v6210 = vunpack.c.h.b16 %v4932
    %v6211 = vunpack.c.l.b16 %v4933
    %v6212 = vunpack.c.h.b16 %v4933
    %v6213 = vunpack.c.l.b16 %v4934
    %v6214 = vunpack.c.h.b16 %v4934
    %v6215 = vunpack.c.l.b16 %v4935
    %v6216 = vunpack.c.h.b16 %v4935
    %v6217 = vunpack.c.l.b16 %v4936
    %v6218 = vunpack.c.h.b16 %v4936
    %v6219 = vunpack.c.l.b16 %v4937
    %v6220 = vunpack.c.h.b16 %v4937
    %v6221 = vunpack.c.l.b16 %v4938
    %v6222 = vunpack.c.h.b16 %v4938
    %v6223 = vunpack.c.l.b16 %v4939
    %v6224 = vunpack.c.h.b16 %v4939
    %v6225 = vunpack.c.l.b16 %v4940
    %v6226 = vunpack.c.h.b16 %v4940
    %v6227 = vunpack.c.l.b16 %v4941
    %v6228 = vunpack.c.h.b16 %v4941
    %v6229 = vunpack.c.l.b16 %v4942
    %v6230 = vunpack.c.h.b16 %v4942
    %v6231 = vunpack.c.l.b16 %v4943
    %v6232 = vunpack.c.h.b16 %v4943
    %v6233 = vunpack.c.l.b16 %v4944
    %v6234 = vunpack.c.h.b16 %v4944
    %v6235 = vunpack.c.l.b16 %v4945
    %v6236 = vunpack.c.h.b16 %v4945
    %v6237 = vunpack.c.l.b16 %v4946
    %v6238 = vunpack.c.h.b16 %v4946
    %v6239 = vunpack.c.l.b16 %v4947
    %v6240 = vunpack.c.h.b16 %v4947
    %v6241 = vunpack.c.l.b16 %v4948
    %v6242 = vunpack.c.h.b16 %v4948
    %v6243 = vunpack.c.l.b16 %v4949
    %v6244 = vunpack.c.h.b16 %v4949
    %v6245 = vunpack.c.l.b16 %v4950
    %v6246 = vunpack.c.h.b16 %v4950
    %v6247 = vunpack.c.l.b16 %v4951
    %v6248 = vunpack.c.h.b16 %v4951
    %v6249 = vunpack.c.l.b16 %v4952
    %v6250 = vunpack.c.h.b16 %v4952
    %v6251 = vunpack.c.l.b16 %v4953
    %v6252 = vunpack.c.h.b16 %v4953
    %v6253 = vunpack.c.l.b16 %v4954
    %v6254 = vunpack.c.h.b16 %v4954
    %v6255 = vunpack.c.l.b16 %v4955
    %v6256 = vunpack.c.h.b16 %v4955
    %v6257 = vunpack.c.l.b16 %v4956
    %v6258 = vunpack.c.h.b16 %v4956
    %v6259 = vunpack.c.l.b16 %v4957
    %v6260 = vunpack.c.h.b16 %v4957
    %v6261 = vunpack.c.l.b16 %v4958
    %v6262 = vunpack.c.h.b16 %v4958
    %v6263 = vunpack.c.l.b16 %v4959
    %v6264 = vunpack.c.h.b16 %v4959
    %v6265 = vunpack.c.l.b16 %v4960
    %v6266 = vunpack.c.h.b16 %v4960
    %v6267 = vunpack.c.l.b16 %v4961
    %v6268 = vunpack.c.h.b16 %v4961
    %v6269 = vunpack.c.l.b16 %v4962
    %v6270 = vunpack.c.h.b16 %v4962
    %v6271 = vunpack.c.l.b16 %v4963
    %v6272 = vunpack.c.h.b16 %v4963
    %v6273 = vunpack.c.l.b16 %v4964
    %v6274 = vunpack.c.h.b16 %v4964
    %v6275 = vunpack.c.l.b16 %v4965
    %v6276 = vunpack.c.h.b16 %v4965
    %v6277 = vunpack.c.l.b16 %v4966
    %v6278 = vunpack.c.h.b16 %v4966
    %v6279 = vunpack.c.l.b16 %v4967
    %v6280 = vunpack.c.h.b16 %v4967
    %v6281 = vunpack.c.l.b16 %v4968
    %v6282 = vunpack.c.h.b16 %v4968
    %v6283 = vunpack.c.l.b16 %v4969
    %v6284 = vunpack.c.h.b16 %v4969
    %v6285 = vunpack.c.l.b16 %v4970
    %v6286 = vunpack.c.h.b16 %v4970
    %v6287 = vunpack.c.l.b16 %v4971
    %v6288 = vunpack.c.h.b16 %v4971
    %v6289 = vunpack.c.l.b16 %v4972
    %v6290 = vunpack.c.h.b16 %v4972
    %v6291 = vunpack.c.l.b16 %v4973
    %v6292 = vunpack.c.h.b16 %v4973
    %v6293 = vunpack.c.l.b16 %v4974
    %v6294 = vunpack.c.h.b16 %v4974
    %v6295 = vunpack.c.l.b16 %v4975
    %v6296 = vunpack.c.h.b16 %v4975
    %v6297 = vunpack.c.l.b16 %v4976
    %v6298 = vunpack.c.h.b16 %v4976
    %v6299 = vunpack.c.l.b16 %v4977
    %v6300 = vunpack.c.h.b16 %v4977
    %v6301 = vunpack.c.l.b16 %v4978
    %v6302 = vunpack.c.h.b16 %v4978
    %v6303 = vunpack.c.l.b16 %v4979
    %v6304 = vunpack.c.h.b16 %v4979
    %v6305 = vunpack.c.l.b16 %v4980
    %v6306 = vunpack.c.h.b16 %v4980
    %v6307 = vunpack.c.l.b16 %v4981
    %v6308 = vunpack.c.h.b16 %v4981
    %v6309 = vunpack.c.l.b16 %v4982
    %v6310 = vunpack.c.h.b16 %v4982
    %v6311 = vunpack.c.l.b16 %v4983
    %v6312 = vunpack.c.h.b16 %v4983
    %v6313 = vunpack.c.l.b16 %v4984
    %v6314 = vunpack.c.h.b16 %v4984
    %v6315 = vunpack.c.l.b16 %v4985
    %v6316 = vunpack.c.h.b16 %v4985
    %v6317 = vunpack.c.l.b16 %v4986
    %v6318 = vunpack.c.h.b16 %v4986
    %v6319 = vunpack.c.l.b16 %v4987
    %v6320 = vunpack.c.h.b16 %v4987
    %v6321 = vunpack.c.l.b16 %v4988
    %v6322 = vunpack.c.h.b16 %v4988
    %v6323 = vunpack.c.l.b16 %v4989
    %v6324 = vunpack.c.h.b16 %v4989
    %v6325 = vunpack.c.l.b16 %v4990
    %v6326 = vunpack.c.h.b16 %v4990
    %v6327 = vunpack.c.l.b16 %v4991
    %v6328 = vunpack.c.h.b16 %v4991
    %v6329 = vunpack.c.l.b16 %v4992
    %v6330 = vunpack.c.h.b16 %v4992
    %v6331 = vunpack.c.l.b16 %v4993
    %v6332 = vunpack.c.h.b16 %v4993
    %v6333 = vunpack.c.l.b16 %v4994
    %v6334 = vunpack.c.h.b16 %v4994
    %v6335 = vunpack.c.l.b16 %v4995
    %v6336 = vunpack.c.h.b16 %v4995
    %v6337 = vunpack.c.l.b16 %v4996
    %v6338 = vunpack.c.h.b16 %v4996
    %v6339 = vunpack.c.l.b16 %v4997
    %v6340 = vunpack.c.h.b16 %v4997
    %v6341 = vunpack.c.l.b16 %v4998
    %v6342 = vunpack.c.h.b16 %v4998
    %v6343 = vunpack.c.l.b16 %v4999
    %v6344 = vunpack.c.h.b16 %v4999
    %v6345 = vunpack.c.l.b16 %v5000
    %v6346 = vunpack.c.h.b16 %v5000
    %v6347 = vunpack.c.l.b16 %v5001
    %v6348 = vunpack.c.h.b16 %v5001
    %v6349 = vunpack.c.l.b16 %v5002
    %v6350 = vunpack.c.h.b16 %v5002
    %v6351 = vunpack.c.l.b16 %v5003
    %v6352 = vunpack.c.h.b16 %v5003
    %v6353 = vunpack.c.l.b16 %v5004
    %v6354 = vunpack.c.h.b16 %v5004
    %v6355 = vunpack.c.l.b16 %v5005
    %v6356 = vunpack.c.h.b16 %v5005
    %v6357 = vunpack.c.l.b16 %v5006
    %v6358 = vunpack.c.h.b16 %v5006
    %v6359 = vunpack.c.l.b16 %v5007
    %v6360 = vunpack.c.h.b16 %v5007
    %v6361 = vunpack.c.l.b16 %v5008
    %v6362 = vunpack.c.h.b16 %v5008
    %v6363 = vunpack.c.l.b16 %v5009
    %v6364 = vunpack.c.h.b16 %v5009
    %v6365 = vunpack.c.l.b16 %v5010
    %v6366 = vunpack.c.h.b16 %v5010
    %v6367 = vunpack.c.l.b16 %v5011
    %v6368 = vunpack.c.h.b16 %v5011
    %v6369 = vunpack.c.l.b16 %v5012
    %v6370 = vunpack.c.h.b16 %v5012
    %v6371 = vunpack.c.l.b16 %v5013
    %v6372 = vunpack.c.h.b16 %v5013
    %v6373 = vunpack.c.l.b16 %v5014
    %v6374 = vunpack.c.h.b16 %v5014
    %v6375 = vunpack.c.l.b16 %v5015
    %v6376 = vunpack.c.h.b16 %v5015
    %v6377 = vunpack.c.l.b16 %v5016
    %v6378 = vunpack.c.h.b16 %v5016
    %v6379 = vunpack.c.l.b16 %v5017
    %v6380 = vunpack.c.h.b16 %v5017
    %v6381 = vunpack.c.l.b16 %v5018
    %v6382 = vunpack.c.h.b16 %v5018
    %v6383 = vunpack.c.l.b16 %v5019
    %v6384 = vunpack.c.h.b16 %v5019
    %v6385 = vunpack.c.l.b16 %v5020
    %v6386 = vunpack.c.h.b16 %v5020
    %v6387 = vunpack.c.l.b16 %v5021
    %v6388 = vunpack.c.h.b16 %v5021
    %v6389 = vunpack.c.l.b16 %v5022
    %v6390 = vunpack.c.h.b16 %v5022
    %v6391 = vunpack.c.l.b16 %v5023
    %v6392 = vunpack.c.h.b16 %v5023
    %v6393 = vunpack.c.l.b16 %v5024
    %v6394 = vunpack.c.h.b16 %v5024
    %v6395 = vunpack.c.l.b16 %v5025
    %v6396 = vunpack.c.h.b16 %v5025
    %v6397 = vunpack.c.l.b16 %v5026
    %v6398 = vunpack.c.h.b16 %v5026
    %v6399 = vunpack.c.l.b16 %v5027
    %v6400 = vunpack.c.h.b16 %v5027
    %v6401 = vunpack.c.l.b16 %v5028
    %v6402 = vunpack.c.h.b16 %v5028
    %v6403 = vunpack.c.l.b16 %v5029
    %v6404 = vunpack.c.h.b16 %v5029
    %v6405 = vunpack.c.l.b16 %v5030
    %v6406 = vunpack.c.h.b16 %v5030
    %v6407 = vunpack.c.l.b16 %v5031
    %v6408 = vunpack.c.h.b16 %v5031
    %v6409 = vunpack.c.l.b16 %v5032
    %v6410 = vunpack.c.h.b16 %v5032
    %v6411 = vunpack.c.l.b16 %v5033
    %v6412 = vunpack.c.h.b16 %v5033
    %v6413 = vunpack.c.l.b16 %v5034
    %v6414 = vunpack.c.h.b16 %v5034
    %v6415 = vunpack.c.l.b16 %v5035
    %v6416 = vunpack.c.h.b16 %v5035
    %v6417 = vunpack.c.l.b16 %v5036
    %v6418 = vunpack.c.h.b16 %v5036
    %v6419 = vunpack.c.l.b16 %v5037
    %v6420 = vunpack.c.h.b16 %v5037
    %v6421 = vunpack.c.l.b16 %v5038
    %v6422 = vunpack.c.h.b16 %v5038
    %v6423 = vunpack.c.l.b16 %v5039
    %v6424 = vunpack.c.h.b16 %v5039
    %v6425 = vunpack.c.l.b16 %v5040
    %v6426 = vunpack.c.h.b16 %v5040
    %v6427 = vunpack.c.l.b16 %v5041
    %v6428 = vunpack.c.h.b16 %v5041
    %v6429 = vunpack.c.l.b16 %v5042
    %v6430 = vunpack.c.h.b16 %v5042
    %v6431 = vunpack.c.l.b16 %v5043
    %v6432 = vunpack.c.h.b16 %v5043
    %v6433 = vunpack.c.l.b16 %v5044
    %v6434 = vunpack.c.h.b16 %v5044
    %v6435 = vunpack.c.l.b16 %v5045
    %v6436 = vunpack.c.h.b16 %v5045
    %v6437 = vunpack.c.l.b16 %v5046
    %v6438 = vunpack.c.h.b16 %v5046
    %v6439 = vunpack.c.l.b16 %v5047
    %v6440 = vunpack.c.h.b16 %v5047
    %v6441 = vunpack.c.l.b16 %v5048
    %v6442 = vunpack.c.h.b16 %v5048
    %v6443 = vunpack.c.l.b16 %v5049
    %v6444 = vunpack.c.h.b16 %v5049
    %v6445 = vunpack.c.l.b16 %v5050
    %v6446 = vunpack.c.h.b16 %v5050
    %v6447 = vunpack.c.l.b16 %v5051
    %v6448 = vunpack.c.h.b16 %v5051
    %v6449 = vunpack.c.l.b16 %v5052
    %v6450 = vunpack.c.h.b16 %v5052
    %v6451 = vunpack.c.l.b16 %v5053
    %v6452 = vunpack.c.h.b16 %v5053
    %v6453 = vunpack.c.l.b16 %v5054
    %v6454 = vunpack.c.h.b16 %v5054
    %v6455 = vunpack.c.l.b16 %v5055
    %v6456 = vunpack.c.h.b16 %v5055
    %v6457 = vunpack.c.l.b16 %v5056
    %v6458 = vunpack.c.h.b16 %v5056
    %v6459 = vunpack.c.l.b16 %v5057
    %v6460 = vunpack.c.h.b16 %v5057
    %v6461 = vunpack.c.l.b16 %v5058
    %v6462 = vunpack.c.h.b16 %v5058
    %v6463 = vunpack.c.l.b16 %v5059
    %v6464 = vunpack.c.h.b16 %v5059
    %v6465 = vunpack.c.l.b16 %v5060
    %v6466 = vunpack.c.h.b16 %v5060
    %v6467 = vunpack.c.l.b16 %v5061
    %v6468 = vunpack.c.h.b16 %v5061
    %v6469 = vunpack.c.l.b16 %v5062
    %v6470 = vunpack.c.h.b16 %v5062
    %v6471 = vunpack.c.l.b16 %v5063
    %v6472 = vunpack.c.h.b16 %v5063
    %v6473 = vunpack.c.l.b16 %v5064
    %v6474 = vunpack.c.h.b16 %v5064
    %v6475 = vunpack.c.l.b16 %v5065
    %v6476 = vunpack.c.h.b16 %v5065
    %v6477 = vunpack.c.l.b16 %v5066
    %v6478 = vunpack.c.h.b16 %v5066
    %v6479 = vunpack.c.l.b16 %v5067
    %v6480 = vunpack.c.h.b16 %v5067
    %v6481 = vunpack.c.l.b16 %v5068
    %v6482 = vunpack.c.h.b16 %v5068
    %v6483 = vunpack.c.l.b16 %v5069
    %v6484 = vunpack.c.h.b16 %v5069
    %v6485 = vunpack.c.l.b16 %v5070
    %v6486 = vunpack.c.h.b16 %v5070
    %v6487 = vunpack.c.l.b16 %v5071
    %v6488 = vunpack.c.h.b16 %v5071
    %v6489 = vunpack.c.l.b16 %v5072
    %v6490 = vunpack.c.h.b16 %v5072
    %v6491 = vunpack.c.l.b16 %v5073
    %v6492 = vunpack.c.h.b16 %v5073
    %v6493 = vunpack.c.l.b16 %v5074
    %v6494 = vunpack.c.h.b16 %v5074
    %v6495 = vunpack.c.l.b16 %v5075
    %v6496 = vunpack.c.h.b16 %v5075
    %v6497 = vunpack.c.l.b16 %v5076
    %v6498 = vunpack.c.h.b16 %v5076
    %v6499 = vunpack.c.l.b16 %v5077
    %v6500 = vunpack.c.h.b16 %v5077
    %v6501 = vunpack.c.l.b16 %v5078
    %v6502 = vunpack.c.h.b16 %v5078
    %v6503 = vunpack.c.l.b16 %v5079
    %v6504 = vunpack.c.h.b16 %v5079
    %v6505 = vunpack.c.l.b16 %v5080
    %v6506 = vunpack.c.h.b16 %v5080
    %v6507 = vunpack.c.l.b16 %v5081
    %v6508 = vunpack.c.h.b16 %v5081
    %v6509 = vunpack.c.l.b16 %v5082
    %v6510 = vunpack.c.h.b16 %v5082
    %v6511 = vunpack.c.l.b16 %v5083
    %v6512 = vunpack.c.h.b16 %v5083
    %v6513 = vunpack.c.l.b16 %v5084
    %v6514 = vunpack.c.h.b16 %v5084
    %v6515 = vunpack.c.l.b16 %v5085
    %v6516 = vunpack.c.h.b16 %v5085
    %v6517 = vunpack.c.l.b16 %v5086
    %v6518 = vunpack.c.h.b16 %v5086
    %v6519 = vunpack.c.l.b16 %v5087
    %v6520 = vunpack.c.h.b16 %v5087
    %v6521 = vunpack.c.l.b16 %v5088
    %v6522 = vunpack.c.h.b16 %v5088
    %v6523 = vunpack.c.l.b16 %v5089
    %v6524 = vunpack.c.h.b16 %v5089
    %v6525 = vunpack.c.l.b16 %v5090
    %v6526 = vunpack.c.h.b16 %v5090
    %v6527 = vunpack.c.l.b16 %v5091
    %v6528 = vunpack.c.h.b16 %v5091
    %v6529 = vunpack.c.l.b16 %v5092
    %v6530 = vunpack.c.h.b16 %v5092
    %v6531 = vunpack.c.l.b16 %v5093
    %v6532 = vunpack.c.h.b16 %v5093
    %v6533 = vunpack.c.l.b16 %v5094
    %v6534 = vunpack.c.h.b16 %v5094
    %v6535 = vunpack.c.l.b16 %v5095
    %v6536 = vunpack.c.h.b16 %v5095
    %v6537 = vunpack.c.l.b16 %v5096
    %v6538 = vunpack.c.h.b16 %v5096
    %v6539 = vunpack.c.l.b16 %v5097
    %v6540 = vunpack.c.h.b16 %v5097
    %v6541 = vunpack.c.l.b16 %v5098
    %v6542 = vunpack.c.h.b16 %v5098
    %v6543 = vunpack.c.l.b16 %v5099
    %v6544 = vunpack.c.h.b16 %v5099
    %v6545 = vunpack.c.l.b16 %v5100
    %v6546 = vunpack.c.h.b16 %v5100
    %v6547 = vunpack.c.l.b16 %v5101
    %v6548 = vunpack.c.h.b16 %v5101
    %v6549 = vunpack.c.l.b16 %v5102
    %v6550 = vunpack.c.h.b16 %v5102
    %v6551 = vunpack.c.l.b16 %v5103
    %v6552 = vunpack.c.h.b16 %v5103
    %v6553 = vunpack.c.l.b16 %v5104
    %v6554 = vunpack.c.h.b16 %v5104
    %v6555 = vunpack.c.l.b16 %v5105
    %v6556 = vunpack.c.h.b16 %v5105
    %v6557 = vunpack.c.l.b16 %v5106
    %v6558 = vunpack.c.h.b16 %v5106
    %v6559 = vunpack.c.l.b16 %v5107
    %v6560 = vunpack.c.h.b16 %v5107
    %v6561 = vunpack.c.l.b16 %v5108
    %v6562 = vunpack.c.h.b16 %v5108
    %v6563 = vunpack.c.l.b16 %v5109
    %v6564 = vunpack.c.h.b16 %v5109
    %v6565 = vunpack.c.l.b16 %v5110
    %v6566 = vunpack.c.h.b16 %v5110
    %v6567 = vunpack.c.l.b16 %v5111
    %v6568 = vunpack.c.h.b16 %v5111
    %v6569 = vunpack.c.l.b16 %v5112
    %v6570 = vunpack.c.h.b16 %v5112
    %v6571 = vunpack.c.l.b16 %v5113
    %v6572 = vunpack.c.h.b16 %v5113
    %v6573 = vunpack.c.l.b16 %v5114
    %v6574 = vunpack.c.h.b16 %v5114
    %v6575 = vunpack.c.l.b16 %v5115
    %v6576 = vunpack.c.h.b16 %v5115
    %v6577 = vunpack.c.l.b16 %v5116
    %v6578 = vunpack.c.h.b16 %v5116
    %v6579 = vunpack.c.l.b16 %v5117
    %v6580 = vunpack.c.h.b16 %v5117
    %v6581 = vunpack.c.l.b16 %v5118
    %v6582 = vunpack.c.h.b16 %v5118
    %v6583 = vunpack.c.l.b16 %v5119
    %v6584 = vunpack.c.h.b16 %v5119
    %v6585 = vunpack.c.l.b16 %v5120
    %v6586 = vunpack.c.h.b16 %v5120
    %v6587 = vunpack.c.l.b16 %v5121
    %v6588 = vunpack.c.h.b16 %v5121
    %v6589 = vunpack.c.l.b16 %v5122
    %v6590 = vunpack.c.h.b16 %v5122
    %v6591 = vunpack.c.l.b16 %v5123
    %v6592 = vunpack.c.h.b16 %v5123
    %v6593 = vunpack.c.l.b16 %v5124
    %v6594 = vunpack.c.h.b16 %v5124
    %v6595 = vunpack.c.l.b16 %v5125
    %v6596 = vunpack.c.h.b16 %v5125
    %v6597 = vunpack.c.l.b16 %v5126
    %v6598 = vunpack.c.h.b16 %v5126
    %v6599 = vunpack.c.l.b16 %v5127
    %v6600 = vunpack.c.h.b16 %v5127
    %v6601 = vunpack.c.l.b16 %v5128
    %v6602 = vunpack.c.h.b16 %v5128
    %v6603 = vunpack.c.l.b16 %v5129
    %v6604 = vunpack.c.h.b16 %v5129
    %v6605 = vunpack.c.l.b16 %v5130
    %v6606 = vunpack.c.h.b16 %v5130
    %v6607 = vunpack.c.l.b16 %v5131
    %v6608 = vunpack.c.h.b16 %v5131
    %v6609 = vunpack.c.l.b16 %v5132
    %v6610 = vunpack.c.h.b16 %v5132
    %v6611 = vunpack.c.l.b16 %v5133
    %v6612 = vunpack.c.h.b16 %v5133
    %v6613 = vunpack.c.l.b16 %v5134
    %v6614 = vunpack.c.h.b16 %v5134
    %v6615 = vunpack.c.l.b16 %v5135
    %v6616 = vunpack.c.h.b16 %v5135
    %v6617 = vunpack.c.l.b16 %v5136
    %v6618 = vunpack.c.h.b16 %v5136
    %v6619 = vunpack.c.l.b16 %v5137
    %v6620 = vunpack.c.h.b16 %v5137
    %v6621 = vunpack.c.l.b16 %v5138
    %v6622 = vunpack.c.h.b16 %v5138
    %v6623 = vunpack.c.l.b16 %v5139
    %v6624 = vunpack.c.h.b16 %v5139
    %v6625 = vunpack.c.l.b16 %v5140
    %v6626 = vunpack.c.h.b16 %v5140
    %v6627 = vunpack.c.l.b16 %v5141
    %v6628 = vunpack.c.h.b16 %v5141
    %v6629 = vunpack.c.l.b16 %v5142
    %v6630 = vunpack.c.h.b16 %v5142
    %v6631 = vunpack.c.l.b16 %v5143
    %v6632 = vunpack.c.h.b16 %v5143
    %v6633 = vunpack.c.l.b16 %v5144
    %v6634 = vunpack.c.h.b16 %v5144
    %v6635 = vunpack.c.l.b16 %v5145
    %v6636 = vunpack.c.h.b16 %v5145
    %v6637 = vunpack.c.l.b16 %v5146
    %v6638 = vunpack.c.h.b16 %v5146
    %v6639 = vunpack.c.l.b16 %v5147
    %v6640 = vunpack.c.h.b16 %v5147
    %v6641 = vunpack.c.l.b16 %v5148
    %v6642 = vunpack.c.h.b16 %v5148
    %v6643 = vunpack.c.l.b16 %v5149
    %v6644 = vunpack.c.h.b16 %v5149
    %v6645 = vunpack.c.l.b16 %v5150
    %v6646 = vunpack.c.h.b16 %v5150
    %v6647 = vunpack.c.l.b16 %v5151
    %v6648 = vunpack.c.h.b16 %v5151
    %v6649 = vunpack.c.l.b16 %v5152
    %v6650 = vunpack.c.h.b16 %v5152
    %v6651 = vunpack.c.l.b16 %v5153
    %v6652 = vunpack.c.h.b16 %v5153
    %v6653 = vunpack.c.l.b16 %v5154
    %v6654 = vunpack.c.h.b16 %v5154
    %v6655 = vunpack.c.l.b16 %v5155
    %v6656 = vunpack.c.h.b16 %v5155
    %v6657 = vunpack.c.l.b16 %v5156
    %v6658 = vunpack.c.h.b16 %v5156
    %v6659 = vunpack.c.l.b16 %v5157
    %v6660 = vunpack.c.h.b16 %v5157
    %v6661 = vunpack.c.l.b16 %v5158
    %v6662 = vunpack.c.h.b16 %v5158
    %v6663 = vunpack.c.l.b16 %v5159
    %v6664 = vunpack.c.h.b16 %v5159
    %v6665 = vunpack.c.l.b16 %v5160
    %v6666 = vunpack.c.h.b16 %v5160
    %v6667 = vunpack.c.l.b16 %v5161
    %v6668 = vunpack.c.h.b16 %v5161
    %v6669 = vunpack.c.l.b16 %v5162
    %v6670 = vunpack.c.h.b16 %v5162
    %v6671 = vunpack.c.l.b16 %v5163
    %v6672 = vunpack.c.h.b16 %v5163
    %v6673 = vunpack.c.l.b16 %v5164
    %v6674 = vunpack.c.h.b16 %v5164
    %v6675 = vunpack.c.l.b16 %v5165
    %v6676 = vunpack.c.h.b16 %v5165
    %v6677 = vunpack.c.l.b16 %v5166
    %v6678 = vunpack.c.h.b16 %v5166
    %v6679 = vunpack.c.l.b16 %v5167
    %v6680 = vunpack.c.h.b16 %v5167
    %v6681 = vunpack.c.l.b16 %v5168
    %v6682 = vunpack.c.h.b16 %v5168
    %v6683 = vunpack.c.l.b16 %v5169
    %v6684 = vunpack.c.h.b16 %v5169
    %v6685 = vunpack.c.l.b16 %v5170
    %v6686 = vunpack.c.h.b16 %v5170
    %v6687 = vunpack.c.l.b16 %v5171
    %v6688 = vunpack.c.h.b16 %v5171
    %v6689 = vunpack.c.l.b16 %v5172
    %v6690 = vunpack.c.h.b16 %v5172
    %v6691 = vunpack.c.l.b16 %v5173
    %v6692 = vunpack.c.h.b16 %v5173
    %v6693 = vunpack.c.l.b16 %v5174
    %v6694 = vunpack.c.h.b16 %v5174
    %v6695 = vunpack.c.l.b16 %v5175
    %v6696 = vunpack.c.h.b16 %v5175
    %v6697 = vunpack.c.l.b16 %v5176
    %v6698 = vunpack.c.h.b16 %v5176
    %v6699 = vunpack.c.l.b16 %v5177
    %v6700 = vunpack.c.h.b16 %v5177
    %v6701 = vunpack.c.l.b16 %v5178
    %v6702 = vunpack.c.h.b16 %v5178
    %v6703 = vunpack.c.l.b16 %v5179
    %v6704 = vunpack.c.h.b16 %v5179
    %v6705 = vunpack.c.l.b16 %v5180
    %v6706 = vunpack.c.h.b16 %v5180
    %v6707 = vunpack.c.l.b16 %v5181
    %v6708 = vunpack.c.h.b16 %v5181
    %v6709 = vunpack.c.l.b16 %v5182
    %v6710 = vunpack.c.h.b16 %v5182
    %v6711 = vunpack.c.l.b16 %v5183
    %v6712 = vunpack.c.h.b16 %v5183
    %v6713 = vunpack.c.l.b16 %v5184
    %v6714 = vunpack.c.h.b16 %v5184
    %v6715 = vunpack.c.l.b16 %v5185
    %v6716 = vunpack.c.h.b16 %v5185
    %v6717 = vunpack.c.l.b16 %v5186
    %v6718 = vunpack.c.h.b16 %v5186
    %v6719 = vunpack.c.l.b16 %v5187
    %v6720 = vunpack.c.h.b16 %v5187
    %v6721 = vunpack.c.l.b16 %v5188
    %v6722 = vunpack.c.h.b16 %v5188
    %v6723 = vunpack.c.l.b16 %v5189
    %v6724 = vunpack.c.h.b16 %v5189
    %v6725 = vunpack.c.l.b16 %v5190
    %v6726 = vunpack.c.h.b16 %v5190
    %v6727 = vpack.c.b16 %v5707, %v5703
    %v6728 = vpack.c.b16 %v5708, %v5704
    %v6729 = vpack.c.b16 %v5709, %v5705
    %v6730 = vpack.c.b16 %v5710, %v5706
    %v6731 = vpack.c.b16 %v5715, %v5711
    %v6732 = vpack.c.b16 %v5716, %v5712
    %v6733 = vpack.c.b16 %v5717, %v5713
    %v6734 = vpack.c.b16 %v5718, %v5714
    %v6735 = vpack.c.b16 %v5723, %v5719
    %v6736 = vpack.c.b16 %v5724, %v5720
    %v6737 = vpack.c.b16 %v5725, %v5721
    %v6738 = vpack.c.b16 %v5726, %v5722
    %v6739 = vpack.c.b16 %v5731, %v5727
    %v6740 = vpack.c.b16 %v5732, %v5728
    %v6741 = vpack.c.b16 %v5733, %v5729
    %v6742 = vpack.c.b16 %v5734, %v5730
    %v6743 = vpack.c.b16 %v5739, %v5735
    %v6744 = vpack.c.b16 %v5740, %v5736
    %v6745 = vpack.c.b16 %v5741, %v5737
    %v6746 = vpack.c.b16 %v5742, %v5738
    %v6747 = vpack.c.b16 %v5747, %v5743
    %v6748 = vpack.c.b16 %v5748, %v5744
    %v6749 = vpack.c.b16 %v5749, %v5745
    %v6750 = vpack.c.b16 %v5750, %v5746
    %v6751 = vpack.c.b16 %v5755, %v5751
    %v6752 = vpack.c.b16 %v5756, %v5752
    %v6753 = vpack.c.b16 %v5757, %v5753
    %v6754 = vpack.c.b16 %v5758, %v5754
    %v6755 = vpack.c.b16 %v5763, %v5759
    %v6756 = vpack.c.b16 %v5764, %v5760
    %v6757 = vpack.c.b16 %v5765, %v5761
    %v6758 = vpack.c.b16 %v5766, %v5762
    %v6759 = vpack.c.b16 %v5771, %v5767
    %v6760 = vpack.c.b16 %v5772, %v5768
    %v6761 = vpack.c.b16 %v5773, %v5769
    %v6762 = vpack.c.b16 %v5774, %v5770
    %v6763 = vpack.c.b16 %v5779, %v5775
    %v6764 = vpack.c.b16 %v5780, %v5776
    %v6765 = vpack.c.b16 %v5781, %v5777
    %v6766 = vpack.c.b16 %v5782, %v5778
    %v6767 = vpack.c.b16 %v5787, %v5783
    %v6768 = vpack.c.b16 %v5788, %v5784
    %v6769 = vpack.c.b16 %v5789, %v5785
    %v6770 = vpack.c.b16 %v5790, %v5786
    %v6771 = vpack.c.b16 %v5795, %v5791
    %v6772 = vpack.c.b16 %v5796, %v5792
    %v6773 = vpack.c.b16 %v5797, %v5793
    %v6774 = vpack.c.b16 %v5798, %v5794
    %v6775 = vpack.c.b16 %v5803, %v5799
    %v6776 = vpack.c.b16 %v5804, %v5800
    %v6777 = vpack.c.b16 %v5805, %v5801
    %v6778 = vpack.c.b16 %v5806, %v5802
    %v6779 = vpack.c.b16 %v5811, %v5807
    %v6780 = vpack.c.b16 %v5812, %v5808
    %v6781 = vpack.c.b16 %v5813, %v5809
    %v6782 = vpack.c.b16 %v5814, %v5810
    %v6783 = vpack.c.b16 %v5819, %v5815
    %v6784 = vpack.c.b16 %v5820, %v5816
    %v6785 = vpack.c.b16 %v5821, %v5817
    %v6786 = vpack.c.b16 %v5822, %v5818
    %v6787 = vpack.c.b16 %v5827, %v5823
    %v6788 = vpack.c.b16 %v5828, %v5824
    %v6789 = vpack.c.b16 %v5829, %v5825
    %v6790 = vpack.c.b16 %v5830, %v5826
    %v6791 = vpack.c.b16 %v5835, %v5831
    %v6792 = vpack.c.b16 %v5836, %v5832
    %v6793 = vpack.c.b16 %v5837, %v5833
    %v6794 = vpack.c.b16 %v5838, %v5834
    %v6795 = vpack.c.b16 %v5843, %v5839
    %v6796 = vpack.c.b16 %v5844, %v5840
    %v6797 = vpack.c.b16 %v5845, %v5841
    %v6798 = vpack.c.b16 %v5846, %v5842
    %v6799 = vpack.c.b16 %v5851, %v5847
    %v6800 = vpack.c.b16 %v5852, %v5848
    %v6801 = vpack.c.b16 %v5853, %v5849
    %v6802 = vpack.c.b16 %v5854, %v5850
    %v6803 = vpack.c.b16 %v5859, %v5855
    %v6804 = vpack.c.b16 %v5860, %v5856
    %v6805 = vpack.c.b16 %v5861, %v5857
    %v6806 = vpack.c.b16 %v5862, %v5858
    %v6807 = vpack.c.b16 %v5867, %v5863
    %v6808 = vpack.c.b16 %v5868, %v5864
    %v6809 = vpack.c.b16 %v5869, %v5865
    %v6810 = vpack.c.b16 %v5870, %v5866
    %v6811 = vpack.c.b16 %v5875, %v5871
    %v6812 = vpack.c.b16 %v5876, %v5872
    %v6813 = vpack.c.b16 %v5877, %v5873
    %v6814 = vpack.c.b16 %v5878, %v5874
    %v6815 = vpack.c.b16 %v5883, %v5879
    %v6816 = vpack.c.b16 %v5884, %v5880
    %v6817 = vpack.c.b16 %v5885, %v5881
    %v6818 = vpack.c.b16 %v5886, %v5882
    %v6819 = vpack.c.b16 %v5891, %v5887
    %v6820 = vpack.c.b16 %v5892, %v5888
    %v6821 = vpack.c.b16 %v5893, %v5889
    %v6822 = vpack.c.b16 %v5894, %v5890
    %v6823 = vpack.c.b16 %v5899, %v5895
    %v6824 = vpack.c.b16 %v5900, %v5896
    %v6825 = vpack.c.b16 %v5901, %v5897
    %v6826 = vpack.c.b16 %v5902, %v5898
    %v6827 = vpack.c.b16 %v5907, %v5903
    %v6828 = vpack.c.b16 %v5908, %v5904
    %v6829 = vpack.c.b16 %v5909, %v5905
    %v6830 = vpack.c.b16 %v5910, %v5906
    %v6831 = vpack.c.b16 %v5915, %v5911
    %v6832 = vpack.c.b16 %v5916, %v5912
    %v6833 = vpack.c.b16 %v5917, %v5913
    %v6834 = vpack.c.b16 %v5918, %v5914
    %v6835 = vpack.c.b16 %v5923, %v5919
    %v6836 = vpack.c.b16 %v5924, %v5920
    %v6837 = vpack.c.b16 %v5925, %v5921
    %v6838 = vpack.c.b16 %v5926, %v5922
    %v6839 = vpack.c.b16 %v5931, %v5927
    %v6840 = vpack.c.b16 %v5932, %v5928
    %v6841 = vpack.c.b16 %v5933, %v5929
    %v6842 = vpack.c.b16 %v5934, %v5930
    %v6843 = vpack.c.b16 %v5939, %v5935
    %v6844 = vpack.c.b16 %v5940, %v5936
    %v6845 = vpack.c.b16 %v5941, %v5937
    %v6846 = vpack.c.b16 %v5942, %v5938
    %v6847 = vpack.c.b16 %v5947, %v5943
    %v6848 = vpack.c.b16 %v5948, %v5944
    %v6849 = vpack.c.b16 %v5949, %v5945
    %v6850 = vpack.c.b16 %v5950, %v5946
    %v6851 = vpack.c.b16 %v5955, %v5951
    %v6852 = vpack.c.b16 %v5956, %v5952
    %v6853 = vpack.c.b16 %v5957, %v5953
    %v6854 = vpack.c.b16 %v5958, %v5954
    %v6855 = vpack.c.b16 %v5963, %v5959
    %v6856 = vpack.c.b16 %v5964, %v5960
    %v6857 = vpack.c.b16 %v5965, %v5961
    %v6858 = vpack.c.b16 %v5966, %v5962
    %v6859 = vpack.c.b16 %v5971, %v5967
    %v6860 = vpack.c.b16 %v5972, %v5968
    %v6861 = vpack.c.b16 %v5973, %v5969
    %v6862 = vpack.c.b16 %v5974, %v5970
    %v6863 = vpack.c.b16 %v5979, %v5975
    %v6864 = vpack.c.b16 %v5980, %v5976
    %v6865 = vpack.c.b16 %v5981, %v5977
    %v6866 = vpack.c.b16 %v5982, %v5978
    %v6867 = vpack.c.b16 %v5987, %v5983
    %v6868 = vpack.c.b16 %v5988, %v5984
    %v6869 = vpack.c.b16 %v5989, %v5985
    %v6870 = vpack.c.b16 %v5990, %v5986
    %v6871 = vpack.c.b16 %v5995, %v5991
    %v6872 = vpack.c.b16 %v5996, %v5992
    %v6873 = vpack.c.b16 %v5997, %v5993
    %v6874 = vpack.c.b16 %v5998, %v5994
    %v6875 = vpack.c.b16 %v6003, %v5999
    %v6876 = vpack.c.b16 %v6004, %v6000
    %v6877 = vpack.c.b16 %v6005, %v6001
    %v6878 = vpack.c.b16 %v6006, %v6002
    %v6879 = vpack.c.b16 %v6011, %v6007
    %v6880 = vpack.c.b16 %v6012, %v6008
    %v6881 = vpack.c.b16 %v6013, %v6009
    %v6882 = vpack.c.b16 %v6014, %v6010
    %v6883 = vpack.c.b16 %v6019, %v6015
    %v6884 = vpack.c.b16 %v6020, %v6016
    %v6885 = vpack.c.b16 %v6021, %v6017
    %v6886 = vpack.c.b16 %v6022, %v6018
    %v6887 = vpack.c.b16 %v6027, %v6023
    %v6888 = vpack.c.b16 %v6028, %v6024
    %v6889 = vpack.c.b16 %v6029, %v6025
    %v6890 = vpack.c.b16 %v6030, %v6026
    %v6891 = vpack.c.b16 %v6035, %v6031
    %v6892 = vpack.c.b16 %v6036, %v6032
    %v6893 = vpack.c.b16 %v6037, %v6033
    %v6894 = vpack.c.b16 %v6038, %v6034
    %v6895 = vpack.c.b16 %v6043, %v6039
    %v6896 = vpack.c.b16 %v6044, %v6040
    %v6897 = vpack.c.b16 %v6045, %v6041
    %v6898 = vpack.c.b16 %v6046, %v6042
    %v6899 = vpack.c.b16 %v6051, %v6047
    %v6900 = vpack.c.b16 %v6052, %v6048
    %v6901 = vpack.c.b16 %v6053, %v6049
    %v6902 = vpack.c.b16 %v6054, %v6050
    %v6903 = vpack.c.b16 %v6059, %v6055
    %v6904 = vpack.c.b16 %v6060, %v6056
    %v6905 = vpack.c.b16 %v6061, %v6057
    %v6906 = vpack.c.b16 %v6062, %v6058
    %v6907 = vpack.c.b16 %v6067, %v6063
    %v6908 = vpack.c.b16 %v6068, %v6064
    %v6909 = vpack.c.b16 %v6069, %v6065
    %v6910 = vpack.c.b16 %v6070, %v6066
    %v6911 = vpack.c.b16 %v6075, %v6071
    %v6912 = vpack.c.b16 %v6076, %v6072
    %v6913 = vpack.c.b16 %v6077, %v6073
    %v6914 = vpack.c.b16 %v6078, %v6074
    %v6915 = vpack.c.b16 %v6083, %v6079
    %v6916 = vpack.c.b16 %v6084, %v6080
    %v6917 = vpack.c.b16 %v6085, %v6081
    %v6918 = vpack.c.b16 %v6086, %v6082
    %v6919 = vpack.c.b16 %v6091, %v6087
    %v6920 = vpack.c.b16 %v6092, %v6088
    %v6921 = vpack.c.b16 %v6093, %v6089
    %v6922 = vpack.c.b16 %v6094, %v6090
    %v6923 = vpack.c.b16 %v6099, %v6095
    %v6924 = vpack.c.b16 %v6100, %v6096
    %v6925 = vpack.c.b16 %v6101, %v6097
    %v6926 = vpack.c.b16 %v6102, %v6098
    %v6927 = vpack.c.b16 %v6107, %v6103
    %v6928 = vpack.c.b16 %v6108, %v6104
    %v6929 = vpack.c.b16 %v6109, %v6105
    %v6930 = vpack.c.b16 %v6110, %v6106
    %v6931 = vpack.c.b16 %v6115, %v6111
    %v6932 = vpack.c.b16 %v6116, %v6112
    %v6933 = vpack.c.b16 %v6117, %v6113
    %v6934 = vpack.c.b16 %v6118, %v6114
    %v6935 = vpack.c.b16 %v6123, %v6119
    %v6936 = vpack.c.b16 %v6124, %v6120
    %v6937 = vpack.c.b16 %v6125, %v6121
    %v6938 = vpack.c.b16 %v6126, %v6122
    %v6939 = vpack.c.b16 %v6131, %v6127
    %v6940 = vpack.c.b16 %v6132, %v6128
    %v6941 = vpack.c.b16 %v6133, %v6129
    %v6942 = vpack.c.b16 %v6134, %v6130
    %v6943 = vpack.c.b16 %v6139, %v6135
    %v6944 = vpack.c.b16 %v6140, %v6136
    %v6945 = vpack.c.b16 %v6141, %v6137
    %v6946 = vpack.c.b16 %v6142, %v6138
    %v6947 = vpack.c.b16 %v6147, %v6143
    %v6948 = vpack.c.b16 %v6148, %v6144
    %v6949 = vpack.c.b16 %v6149, %v6145
    %v6950 = vpack.c.b16 %v6150, %v6146
    %v6951 = vpack.c.b16 %v6155, %v6151
    %v6952 = vpack.c.b16 %v6156, %v6152
    %v6953 = vpack.c.b16 %v6157, %v6153
    %v6954 = vpack.c.b16 %v6158, %v6154
    %v6955 = vpack.c.b16 %v6163, %v6159
    %v6956 = vpack.c.b16 %v6164, %v6160
    %v6957 = vpack.c.b16 %v6165, %v6161
    %v6958 = vpack.c.b16 %v6166, %v6162
    %v6959 = vpack.c.b16 %v6171, %v6167
    %v6960 = vpack.c.b16 %v6172, %v6168
    %v6961 = vpack.c.b16 %v6173, %v6169
    %v6962 = vpack.c.b16 %v6174, %v6170
    %v6963 = vpack.c.b16 %v6179, %v6175
    %v6964 = vpack.c.b16 %v6180, %v6176
    %v6965 = vpack.c.b16 %v6181, %v6177
    %v6966 = vpack.c.b16 %v6182, %v6178
    %v6967 = vpack.c.b16 %v6187, %v6183
    %v6968 = vpack.c.b16 %v6188, %v6184
    %v6969 = vpack.c.b16 %v6189, %v6185
    %v6970 = vpack.c.b16 %v6190, %v6186
    %v6971 = vpack.c.b16 %v6195, %v6191
    %v6972 = vpack.c.b16 %v6196, %v6192
    %v6973 = vpack.c.b16 %v6197, %v6193
    %v6974 = vpack.c.b16 %v6198, %v6194
    %v6975 = vpack.c.b16 %v6203, %v6199
    %v6976 = vpack.c.b16 %v6204, %v6200
    %v6977 = vpack.c.b16 %v6205, %v6201
    %v6978 = vpack.c.b16 %v6206, %v6202
    %v6979 = vpack.c.b16 %v6211, %v6207
    %v6980 = vpack.c.b16 %v6212, %v6208
    %v6981 = vpack.c.b16 %v6213, %v6209
    %v6982 = vpack.c.b16 %v6214, %v6210
    %v6983 = vpack.c.b16 %v6219, %v6215
    %v6984 = vpack.c.b16 %v6220, %v6216
    %v6985 = vpack.c.b16 %v6221, %v6217
    %v6986 = vpack.c.b16 %v6222, %v6218
    %v6987 = vpack.c.b16 %v6227, %v6223
    %v6988 = vpack.c.b16 %v6228, %v6224
    %v6989 = vpack.c.b16 %v6229, %v6225
    %v6990 = vpack.c.b16 %v6230, %v6226
    %v6991 = vpack.c.b16 %v6235, %v6231
    %v6992 = vpack.c.b16 %v6236, %v6232
    %v6993 = vpack.c.b16 %v6237, %v6233
    %v6994 = vpack.c.b16 %v6238, %v6234
    %v6995 = vpack.c.b16 %v6243, %v6239
    %v6996 = vpack.c.b16 %v6244, %v6240
    %v6997 = vpack.c.b16 %v6245, %v6241
    %v6998 = vpack.c.b16 %v6246, %v6242
    %v6999 = vpack.c.b16 %v6251, %v6247
    %v7000 = vpack.c.b16 %v6252, %v6248
    %v7001 = vpack.c.b16 %v6253, %v6249
    %v7002 = vpack.c.b16 %v6254, %v6250
    %v7003 = vpack.c.b16 %v6259, %v6255
    %v7004 = vpack.c.b16 %v6260, %v6256
    %v7005 = vpack.c.b16 %v6261, %v6257
    %v7006 = vpack.c.b16 %v6262, %v6258
    %v7007 = vpack.c.b16 %v6267, %v6263
    %v7008 = vpack.c.b16 %v6268, %v6264
    %v7009 = vpack.c.b16 %v6269, %v6265
    %v7010 = vpack.c.b16 %v6270, %v6266
    %v7011 = vpack.c.b16 %v6275, %v6271
    %v7012 = vpack.c.b16 %v6276, %v6272
    %v7013 = vpack.c.b16 %v6277, %v6273
    %v7014 = vpack.c.b16 %v6278, %v6274
    %v7015 = vpack.c.b16 %v6283, %v6279
    %v7016 = vpack.c.b16 %v6284, %v6280
    %v7017 = vpack.c.b16 %v6285, %v6281
    %v7018 = vpack.c.b16 %v6286, %v6282
    %v7019 = vpack.c.b16 %v6291, %v6287
    %v7020 = vpack.c.b16 %v6292, %v6288
    %v7021 = vpack.c.b16 %v6293, %v6289
    %v7022 = vpack.c.b16 %v6294, %v6290
    %v7023 = vpack.c.b16 %v6299, %v6295
    %v7024 = vpack.c.b16 %v6300, %v6296
    %v7025 = vpack.c.b16 %v6301, %v6297
    %v7026 = vpack.c.b16 %v6302, %v6298
    %v7027 = vpack.c.b16 %v6307, %v6303
    %v7028 = vpack.c.b16 %v6308, %v6304
    %v7029 = vpack.c.b16 %v6309, %v6305
    %v7030 = vpack.c.b16 %v6310, %v6306
    %v7031 = vpack.c.b16 %v6315, %v6311
    %v7032 = vpack.c.b16 %v6316, %v6312
    %v7033 = vpack.c.b16 %v6317, %v6313
    %v7034 = vpack.c.b16 %v6318, %v6314
    %v7035 = vpack.c.b16 %v6323, %v6319
    %v7036 = vpack.c.b16 %v6324, %v6320
    %v7037 = vpack.c.b16 %v6325, %v6321
    %v7038 = vpack.c.b16 %v6326, %v6322
    %v7039 = vpack.c.b16 %v6331, %v6327
    %v7040 = vpack.c.b16 %v6332, %v6328
    %v7041 = vpack.c.b16 %v6333, %v6329
    %v7042 = vpack.c.b16 %v6334, %v6330
    %v7043 = vpack.c.b16 %v6339, %v6335
    %v7044 = vpack.c.b16 %v6340, %v6336
    %v7045 = vpack.c.b16 %v6341, %v6337
    %v7046 = vpack.c.b16 %v6342, %v6338
    %v7047 = vpack.c.b16 %v6347, %v6343
    %v7048 = vpack.c.b16 %v6348, %v6344
    %v7049 = vpack.c.b16 %v6349, %v6345
    %v7050 = vpack.c.b16 %v6350, %v6346
    %v7051 = vpack.c.b16 %v6355, %v6351
    %v7052 = vpack.c.b16 %v6356, %v6352
    %v7053 = vpack.c.b16 %v6357, %v6353
    %v7054 = vpack.c.b16 %v6358, %v6354
    %v7055 = vpack.c.b16 %v6363, %v6359
    %v7056 = vpack.c.b16 %v6364, %v6360
    %v7057 = vpack.c.b16 %v6365, %v6361
    %v7058 = vpack.c.b16 %v6366, %v6362
    %v7059 = vpack.c.b16 %v6371, %v6367
    %v7060 = vpack.c.b16 %v6372, %v6368
    %v7061 = vpack.c.b16 %v6373, %v6369
    %v7062 = vpack.c.b16 %v6374, %v6370
    %v7063 = vpack.c.b16 %v6379, %v6375
    %v7064 = vpack.c.b16 %v6380, %v6376
    %v7065 = vpack.c.b16 %v6381, %v6377
    %v7066 = vpack.c.b16 %v6382, %v6378
    %v7067 = vpack.c.b16 %v6387, %v6383
    %v7068 = vpack.c.b16 %v6388, %v6384
    %v7069 = vpack.c.b16 %v6389, %v6385
    %v7070 = vpack.c.b16 %v6390, %v6386
    %v7071 = vpack.c.b16 %v6395, %v6391
    %v7072 = vpack.c.b16 %v6396, %v6392
    %v7073 = vpack.c.b16 %v6397, %v6393
    %v7074 = vpack.c.b16 %v6398, %v6394
    %v7075 = vpack.c.b16 %v6403, %v6399
    %v7076 = vpack.c.b16 %v6404, %v6400
    %v7077 = vpack.c.b16 %v6405, %v6401
    %v7078 = vpack.c.b16 %v6406, %v6402
    %v7079 = vpack.c.b16 %v6411, %v6407
    %v7080 = vpack.c.b16 %v6412, %v6408
    %v7081 = vpack.c.b16 %v6413, %v6409
    %v7082 = vpack.c.b16 %v6414, %v6410
    %v7083 = vpack.c.b16 %v6419, %v6415
    %v7084 = vpack.c.b16 %v6420, %v6416
    %v7085 = vpack.c.b16 %v6421, %v6417
    %v7086 = vpack.c.b16 %v6422, %v6418
    %v7087 = vpack.c.b16 %v6427, %v6423
    %v7088 = vpack.c.b16 %v6428, %v6424
    %v7089 = vpack.c.b16 %v6429, %v6425
    %v7090 = vpack.c.b16 %v6430, %v6426
    %v7091 = vpack.c.b16 %v6435, %v6431
    %v7092 = vpack.c.b16 %v6436, %v6432
    %v7093 = vpack.c.b16 %v6437, %v6433
    %v7094 = vpack.c.b16 %v6438, %v6434
    %v7095 = vpack.c.b16 %v6443, %v6439
    %v7096 = vpack.c.b16 %v6444, %v6440
    %v7097 = vpack.c.b16 %v6445, %v6441
    %v7098 = vpack.c.b16 %v6446, %v6442
    %v7099 = vpack.c.b16 %v6451, %v6447
    %v7100 = vpack.c.b16 %v6452, %v6448
    %v7101 = vpack.c.b16 %v6453, %v6449
    %v7102 = vpack.c.b16 %v6454, %v6450
    %v7103 = vpack.c.b16 %v6459, %v6455
    %v7104 = vpack.c.b16 %v6460, %v6456
    %v7105 = vpack.c.b16 %v6461, %v6457
    %v7106 = vpack.c.b16 %v6462, %v6458
    %v7107 = vpack.c.b16 %v6467, %v6463
    %v7108 = vpack.c.b16 %v6468, %v6464
    %v7109 = vpack.c.b16 %v6469, %v6465
    %v7110 = vpack.c.b16 %v6470, %v6466
    %v7111 = vpack.c.b16 %v6475, %v6471
    %v7112 = vpack.c.b16 %v6476, %v6472
    %v7113 = vpack.c.b16 %v6477, %v6473
    %v7114 = vpack.c.b16 %v6478, %v6474
    %v7115 = vpack.c.b16 %v6483, %v6479
    %v7116 = vpack.c.b16 %v6484, %v6480
    %v7117 = vpack.c.b16 %v6485, %v6481
    %v7118 = vpack.c.b16 %v6486, %v6482
    %v7119 = vpack.c.b16 %v6491, %v6487
    %v7120 = vpack.c.b16 %v6492, %v6488
    %v7121 = vpack.c.b16 %v6493, %v6489
    %v7122 = vpack.c.b16 %v6494, %v6490
    %v7123 = vpack.c.b16 %v6499, %v6495
    %v7124 = vpack.c.b16 %v6500, %v6496
    %v7125 = vpack.c.b16 %v6501, %v6497
    %v7126 = vpack.c.b16 %v6502, %v6498
    %v7127 = vpack.c.b16 %v6507, %v6503
    %v7128 = vpack.c.b16 %v6508, %v6504
    %v7129 = vpack.c.b16 %v6509, %v6505
    %v7130 = vpack.c.b16 %v6510, %v6506
    %v7131 = vpack.c.b16 %v6515, %v6511
    %v7132 = vpack.c.b16 %v6516, %v6512
    %v7133 = vpack.c.b16 %v6517, %v6513
    %v7134 = vpack.c.b16 %v6518, %v6514
    %v7135 = vpack.c.b16 %v6523, %v6519
    %v7136 = vpack.c.b16 %v6524, %v6520
    %v7137 = vpack.c.b16 %v6525, %v6521
    %v7138 = vpack.c.b16 %v6526, %v6522
    %v7139 = vpack.c.b16 %v6531, %v6527
    %v7140 = vpack.c.b16 %v6532, %v6528
    %v7141 = vpack.c.b16 %v6533, %v6529
    %v7142 = vpack.c.b16 %v6534, %v6530
    %v7143 = vpack.c.b16 %v6539, %v6535
    %v7144 = vpack.c.b16 %v6540, %v6536
    %v7145 = vpack.c.b16 %v6541, %v6537
    %v7146 = vpack.c.b16 %v6542, %v6538
    %v7147 = vpack.c.b16 %v6547, %v6543
    %v7148 = vpack.c.b16 %v6548, %v6544
    %v7149 = vpack.c.b16 %v6549, %v6545
    %v7150 = vpack.c.b16 %v6550, %v6546
    %v7151 = vpack.c.b16 %v6555, %v6551
    %v7152 = vpack.c.b16 %v6556, %v6552
    %v7153 = vpack.c.b16 %v6557, %v6553
    %v7154 = vpack.c.b16 %v6558, %v6554
    %v7155 = vpack.c.b16 %v6563, %v6559
    %v7156 = vpack.c.b16 %v6564, %v6560
    %v7157 = vpack.c.b16 %v6565, %v6561
    %v7158 = vpack.c.b16 %v6566, %v6562
    %v7159 = vpack.c.b16 %v6571, %v6567
    %v7160 = vpack.c.b16 %v6572, %v6568
    %v7161 = vpack.c.b16 %v6573, %v6569
    %v7162 = vpack.c.b16 %v6574, %v6570
    %v7163 = vpack.c.b16 %v6579, %v6575
    %v7164 = vpack.c.b16 %v6580, %v6576
    %v7165 = vpack.c.b16 %v6581, %v6577
    %v7166 = vpack.c.b16 %v6582, %v6578
    %v7167 = vpack.c.b16 %v6587, %v6583
    %v7168 = vpack.c.b16 %v6588, %v6584
    %v7169 = vpack.c.b16 %v6589, %v6585
    %v7170 = vpack.c.b16 %v6590, %v6586
    %v7171 = vpack.c.b16 %v6595, %v6591
    %v7172 = vpack.c.b16 %v6596, %v6592
    %v7173 = vpack.c.b16 %v6597, %v6593
    %v7174 = vpack.c.b16 %v6598, %v6594
    %v7175 = vpack.c.b16 %v6603, %v6599
    %v7176 = vpack.c.b16 %v6604, %v6600
    %v7177 = vpack.c.b16 %v6605, %v6601
    %v7178 = vpack.c.b16 %v6606, %v6602
    %v7179 = vpack.c.b16 %v6611, %v6607
    %v7180 = vpack.c.b16 %v6612, %v6608
    %v7181 = vpack.c.b16 %v6613, %v6609
    %v7182 = vpack.c.b16 %v6614, %v6610
    %v7183 = vpack.c.b16 %v6619, %v6615
    %v7184 = vpack.c.b16 %v6620, %v6616
    %v7185 = vpack.c.b16 %v6621, %v6617
    %v7186 = vpack.c.b16 %v6622, %v6618
    %v7187 = vpack.c.b16 %v6627, %v6623
    %v7188 = vpack.c.b16 %v6628, %v6624
    %v7189 = vpack.c.b16 %v6629, %v6625
    %v7190 = vpack.c.b16 %v6630, %v6626
    %v7191 = vpack.c.b16 %v6635, %v6631
    %v7192 = vpack.c.b16 %v6636, %v6632
    %v7193 = vpack.c.b16 %v6637, %v6633
    %v7194 = vpack.c.b16 %v6638, %v6634
    %v7195 = vpack.c.b16 %v6643, %v6639
    %v7196 = vpack.c.b16 %v6644, %v6640
    %v7197 = vpack.c.b16 %v6645, %v6641
    %v7198 = vpack.c.b16 %v6646, %v6642
    %v7199 = vpack.c.b16 %v6651, %v6647
    %v7200 = vpack.c.b16 %v6652, %v6648
    %v7201 = vpack.c.b16 %v6653, %v6649
    %v7202 = vpack.c.b16 %v6654, %v6650
    %v7203 = vpack.c.b16 %v6659, %v6655
    %v7204 = vpack.c.b16 %v6660, %v6656
    %v7205 = vpack.c.b16 %v6661, %v6657
    %v7206 = vpack.c.b16 %v6662, %v6658
    %v7207 = vpack.c.b16 %v6667, %v6663
    %v7208 = vpack.c.b16 %v6668, %v6664
    %v7209 = vpack.c.b16 %v6669, %v6665
    %v7210 = vpack.c.b16 %v6670, %v6666
    %v7211 = vpack.c.b16 %v6675, %v6671
    %v7212 = vpack.c.b16 %v6676, %v6672
    %v7213 = vpack.c.b16 %v6677, %v6673
    %v7214 = vpack.c.b16 %v6678, %v6674
    %v7215 = vpack.c.b16 %v6683, %v6679
    %v7216 = vpack.c.b16 %v6684, %v6680
    %v7217 = vpack.c.b16 %v6685, %v6681
    %v7218 = vpack.c.b16 %v6686, %v6682
    %v7219 = vpack.c.b16 %v6691, %v6687
    %v7220 = vpack.c.b16 %v6692, %v6688
    %v7221 = vpack.c.b16 %v6693, %v6689
    %v7222 = vpack.c.b16 %v6694, %v6690
    %v7223 = vpack.c.b16 %v6699, %v6695
    %v7224 = vpack.c.b16 %v6700, %v6696
    %v7225 = vpack.c.b16 %v6701, %v6697
    %v7226 = vpack.c.b16 %v6702, %v6698
    %v7227 = vpack.c.b16 %v6707, %v6703
    %v7228 = vpack.c.b16 %v6708, %v6704
    %v7229 = vpack.c.b16 %v6709, %v6705
    %v7230 = vpack.c.b16 %v6710, %v6706
    %v7231 = vpack.c.b16 %v6715, %v6711
    %v7232 = vpack.c.b16 %v6716, %v6712
    %v7233 = vpack.c.b16 %v6717, %v6713
    %v7234 = vpack.c.b16 %v6718, %v6714
    %v7235 = vpack.c.b16 %v6723, %v6719
    %v7236 = vpack.c.b16 %v6724, %v6720
    %v7237 = vpack.c.b16 %v6725, %v6721
    %v7238 = vpack.c.b16 %v6726, %v6722
    %7751 = vmatpush.bf16.msra.mxu0 %v6755
    %7752 = vmatpush.bf16.msra.mxu0 %v6751
    %7753 = vmatpush.bf16.msra.mxu0 %v6747
    %7754 = vmatpush.bf16.msra.mxu0 %v6743
    %7755 = vmatpush.bf16.msra.mxu0 %v6739
    %7756 = vmatpush.bf16.msra.mxu0 %v6735
    %7757 = vmatpush.bf16.msra.mxu0 %v6731
    %7758 = vmatpush.bf16.msra.mxu0 %v6727
    %7759 = vmatmul.bf16.gmra.mxu0 %v4647
    %v7760 = vpop.f32.mrf.mxu0
    %v7761 = vadd.f32 0.0, %v7760
    %v7762 = vpop.f32.mrf.mxu0
    %v7763 = vadd.f32 0.0, %v7762
    %7764 = vmatmul.bf16.gmra.mxu0 %v4663
    %v7765 = vpop.f32.mrf.mxu0
    %v7766 = vadd.f32 0.0, %v7765
    %v7767 = vpop.f32.mrf.mxu0
    %v7768 = vadd.f32 0.0, %v7767
    %7769 = vdwg.mxu0
    %7770 = vmatpush.bf16.msra.mxu0 %v6787
    %7771 = vmatpush.bf16.msra.mxu0 %v6783
    %7772 = vmatpush.bf16.msra.mxu0 %v6779
    %7773 = vmatpush.bf16.msra.mxu0 %v6775
    %7774 = vmatpush.bf16.msra.mxu0 %v6771
    %7775 = vmatpush.bf16.msra.mxu0 %v6767
    %7776 = vmatpush.bf16.msra.mxu0 %v6763
    %7777 = vmatpush.bf16.msra.mxu0 %v6759
    %7778 = vmatmul.bf16.gmra.mxu0 %v4648
    %v7779 = vpop.f32.mrf.mxu0
    %v7780 = vadd.f32 %v7761, %v7779
    %v7781 = vpop.f32.mrf.mxu0
    %v7782 = vadd.f32 %v7763, %v7781
    %7783 = vmatmul.bf16.gmra.mxu0 %v4664
    %v7784 = vpop.f32.mrf.mxu0
    %v7785 = vadd.f32 %v7766, %v7784
    %v7786 = vpop.f32.mrf.mxu0
    %v7787 = vadd.f32 %v7768, %v7786
    %7788 = vdwg.mxu0
    %7789 = vmatpush.bf16.msra.mxu0 %v6819
    %7790 = vmatpush.bf16.msra.mxu0 %v6815
    %7791 = vmatpush.bf16.msra.mxu0 %v6811
    %7792 = vmatpush.bf16.msra.mxu0 %v6807
    %7793 = vmatpush.bf16.msra.mxu0 %v6803
    %7794 = vmatpush.bf16.msra.mxu0 %v6799
    %7795 = vmatpush.bf16.msra.mxu0 %v6795
    %7796 = vmatpush.bf16.msra.mxu0 %v6791
    %7797 = vmatmul.bf16.gmra.mxu0 %v4649
    %v7798 = vpop.f32.mrf.mxu0
    %v7799 = vadd.f32 %v7780, %v7798
    %v7800 = vpop.f32.mrf.mxu0
    %v7801 = vadd.f32 %v7782, %v7800
    %7802 = vmatmul.bf16.gmra.mxu0 %v4665
    %v7803 = vpop.f32.mrf.mxu0
    %v7804 = vadd.f32 %v7785, %v7803
    %v7805 = vpop.f32.mrf.mxu0
    %v7806 = vadd.f32 %v7787, %v7805
    %7807 = vdwg.mxu0
    %7808 = vmatpush.bf16.msra.mxu0 %v6851
    %7809 = vmatpush.bf16.msra.mxu0 %v6847
    %7810 = vmatpush.bf16.msra.mxu0 %v6843
    %7811 = vmatpush.bf16.msra.mxu0 %v6839
    %7812 = vmatpush.bf16.msra.mxu0 %v6835
    %7813 = vmatpush.bf16.msra.mxu0 %v6831
    %7814 = vmatpush.bf16.msra.mxu0 %v6827
    %7815 = vmatpush.bf16.msra.mxu0 %v6823
    %7816 = vmatmul.bf16.gmra.mxu0 %v4650
    %v7817 = vpop.f32.mrf.mxu0
    %v7818 = vadd.f32 %v7799, %v7817
    %v7819 = vpop.f32.mrf.mxu0
    %v7820 = vadd.f32 %v7801, %v7819
    %7821 = vmatmul.bf16.gmra.mxu0 %v4666
    %v7822 = vpop.f32.mrf.mxu0
    %v7823 = vadd.f32 %v7804, %v7822
    %v7824 = vpop.f32.mrf.mxu0
    %v7825 = vadd.f32 %v7806, %v7824
    %7826 = vdwg.mxu0
    %7827 = vmatpush.bf16.msra.mxu0 %v6883
    %7828 = vmatpush.bf16.msra.mxu0 %v6879
    %7829 = vmatpush.bf16.msra.mxu0 %v6875
    %7830 = vmatpush.bf16.msra.mxu0 %v6871
    %7831 = vmatpush.bf16.msra.mxu0 %v6867
    %7832 = vmatpush.bf16.msra.mxu0 %v6863
    %7833 = vmatpush.bf16.msra.mxu0 %v6859
    %7834 = vmatpush.bf16.msra.mxu0 %v6855
    %7835 = vmatmul.bf16.gmra.mxu0 %v4651
    %v7836 = vpop.f32.mrf.mxu0
    %v7837 = vadd.f32 %v7818, %v7836
    %v7838 = vpop.f32.mrf.mxu0
    %v7839 = vadd.f32 %v7820, %v7838
    %7840 = vmatmul.bf16.gmra.mxu0 %v4667
    %v7841 = vpop.f32.mrf.mxu0
    %v7842 = vadd.f32 %v7823, %v7841
    %v7843 = vpop.f32.mrf.mxu0
    %v7844 = vadd.f32 %v7825, %v7843
    %7845 = vdwg.mxu0
    %7846 = vmatpush.bf16.msra.mxu0 %v6915
    %7847 = vmatpush.bf16.msra.mxu0 %v6911
    %7848 = vmatpush.bf16.msra.mxu0 %v6907
    %7849 = vmatpush.bf16.msra.mxu0 %v6903
    %7850 = vmatpush.bf16.msra.mxu0 %v6899
    %7851 = vmatpush.bf16.msra.mxu0 %v6895
    %7852 = vmatpush.bf16.msra.mxu0 %v6891
    %7853 = vmatpush.bf16.msra.mxu0 %v6887
    %7854 = vmatmul.bf16.gmra.mxu0 %v4652
    %v7855 = vpop.f32.mrf.mxu0
    %v7856 = vadd.f32 %v7837, %v7855
    %v7857 = vpop.f32.mrf.mxu0
    %v7858 = vadd.f32 %v7839, %v7857
    %7859 = vmatmul.bf16.gmra.mxu0 %v4668
    %v7860 = vpop.f32.mrf.mxu0
    %v7861 = vadd.f32 %v7842, %v7860
    %v7862 = vpop.f32.mrf.mxu0
    %v7863 = vadd.f32 %v7844, %v7862
    %7864 = vdwg.mxu0
    %7865 = vmatpush.bf16.msra.mxu0 %v6947
    %7866 = vmatpush.bf16.msra.mxu0 %v6943
    %7867 = vmatpush.bf16.msra.mxu0 %v6939
    %7868 = vmatpush.bf16.msra.mxu0 %v6935
    %7869 = vmatpush.bf16.msra.mxu0 %v6931
    %7870 = vmatpush.bf16.msra.mxu0 %v6927
    %7871 = vmatpush.bf16.msra.mxu0 %v6923
    %7872 = vmatpush.bf16.msra.mxu0 %v6919
    %7873 = vmatmul.bf16.gmra.mxu0 %v4653
    %v7874 = vpop.f32.mrf.mxu0
    %v7875 = vadd.f32 %v7856, %v7874
    %v7876 = vpop.f32.mrf.mxu0
    %v7877 = vadd.f32 %v7858, %v7876
    %7878 = vmatmul.bf16.gmra.mxu0 %v4669
    %v7879 = vpop.f32.mrf.mxu0
    %v7880 = vadd.f32 %v7861, %v7879
    %v7881 = vpop.f32.mrf.mxu0
    %v7882 = vadd.f32 %v7863, %v7881
    %7883 = vdwg.mxu0
    %7884 = vmatpush.bf16.msra.mxu0 %v6979
    %7885 = vmatpush.bf16.msra.mxu0 %v6975
    %7886 = vmatpush.bf16.msra.mxu0 %v6971
    %7887 = vmatpush.bf16.msra.mxu0 %v6967
    %7888 = vmatpush.bf16.msra.mxu0 %v6963
    %7889 = vmatpush.bf16.msra.mxu0 %v6959
    %7890 = vmatpush.bf16.msra.mxu0 %v6955
    %7891 = vmatpush.bf16.msra.mxu0 %v6951
    %7892 = vmatmul.bf16.gmra.mxu0 %v4654
    %v7893 = vpop.f32.mrf.mxu0
    %v7894 = vadd.f32 %v7875, %v7893
    %v7895 = vpop.f32.mrf.mxu0
    %v7896 = vadd.f32 %v7877, %v7895
    %7897 = vmatmul.bf16.gmra.mxu0 %v4670
    %v7898 = vpop.f32.mrf.mxu0
    %v7899 = vadd.f32 %v7880, %v7898
    %v7900 = vpop.f32.mrf.mxu0
    %v7901 = vadd.f32 %v7882, %v7900
    %7902 = vdwg.mxu0
    %7903 = vmatpush.bf16.msra.mxu0 %v7011
    %7904 = vmatpush.bf16.msra.mxu0 %v7007
    %7905 = vmatpush.bf16.msra.mxu0 %v7003
    %7906 = vmatpush.bf16.msra.mxu0 %v6999
    %7907 = vmatpush.bf16.msra.mxu0 %v6995
    %7908 = vmatpush.bf16.msra.mxu0 %v6991
    %7909 = vmatpush.bf16.msra.mxu0 %v6987
    %7910 = vmatpush.bf16.msra.mxu0 %v6983
    %7911 = vmatmul.bf16.gmra.mxu0 %v4655
    %v7912 = vpop.f32.mrf.mxu0
    %v7913 = vadd.f32 %v7894, %v7912
    %v7914 = vpop.f32.mrf.mxu0
    %v7915 = vadd.f32 %v7896, %v7914
    %7916 = vmatmul.bf16.gmra.mxu0 %v4671
    %v7917 = vpop.f32.mrf.mxu0
    %v7918 = vadd.f32 %v7899, %v7917
    %v7919 = vpop.f32.mrf.mxu0
    %v7920 = vadd.f32 %v7901, %v7919
    %7921 = vdwg.mxu0
    %7922 = vmatpush.bf16.msra.mxu0 %v7043
    %7923 = vmatpush.bf16.msra.mxu0 %v7039
    %7924 = vmatpush.bf16.msra.mxu0 %v7035
    %7925 = vmatpush.bf16.msra.mxu0 %v7031
    %7926 = vmatpush.bf16.msra.mxu0 %v7027
    %7927 = vmatpush.bf16.msra.mxu0 %v7023
    %7928 = vmatpush.bf16.msra.mxu0 %v7019
    %7929 = vmatpush.bf16.msra.mxu0 %v7015
    %7930 = vmatmul.bf16.gmra.mxu0 %v4656
    %v7931 = vpop.f32.mrf.mxu0
    %v7932 = vadd.f32 %v7913, %v7931
    %v7933 = vpop.f32.mrf.mxu0
    %v7934 = vadd.f32 %v7915, %v7933
    %7935 = vmatmul.bf16.gmra.mxu0 %v4672
    %v7936 = vpop.f32.mrf.mxu0
    %v7937 = vadd.f32 %v7918, %v7936
    %v7938 = vpop.f32.mrf.mxu0
    %v7939 = vadd.f32 %v7920, %v7938
    %7940 = vdwg.mxu0
    %7941 = vmatpush.bf16.msra.mxu0 %v7075
    %7942 = vmatpush.bf16.msra.mxu0 %v7071
    %7943 = vmatpush.bf16.msra.mxu0 %v7067
    %7944 = vmatpush.bf16.msra.mxu0 %v7063
    %7945 = vmatpush.bf16.msra.mxu0 %v7059
    %7946 = vmatpush.bf16.msra.mxu0 %v7055
    %7947 = vmatpush.bf16.msra.mxu0 %v7051
    %7948 = vmatpush.bf16.msra.mxu0 %v7047
    %7949 = vmatmul.bf16.gmra.mxu0 %v4657
    %v7950 = vpop.f32.mrf.mxu0
    %v7951 = vadd.f32 %v7932, %v7950
    %v7952 = vpop.f32.mrf.mxu0
    %v7953 = vadd.f32 %v7934, %v7952
    %7954 = vmatmul.bf16.gmra.mxu0 %v4673
    %v7955 = vpop.f32.mrf.mxu0
    %v7956 = vadd.f32 %v7937, %v7955
    %v7957 = vpop.f32.mrf.mxu0
    %v7958 = vadd.f32 %v7939, %v7957
    %7959 = vdwg.mxu0
    %7960 = vmatpush.bf16.msra.mxu0 %v7107
    %7961 = vmatpush.bf16.msra.mxu0 %v7103
    %7962 = vmatpush.bf16.msra.mxu0 %v7099
    %7963 = vmatpush.bf16.msra.mxu0 %v7095
    %7964 = vmatpush.bf16.msra.mxu0 %v7091
    %7965 = vmatpush.bf16.msra.mxu0 %v7087
    %7966 = vmatpush.bf16.msra.mxu0 %v7083
    %7967 = vmatpush.bf16.msra.mxu0 %v7079
    %7968 = vmatmul.bf16.gmra.mxu0 %v4658
    %v7969 = vpop.f32.mrf.mxu0
    %v7970 = vadd.f32 %v7951, %v7969
    %v7971 = vpop.f32.mrf.mxu0
    %v7972 = vadd.f32 %v7953, %v7971
    %7973 = vmatmul.bf16.gmra.mxu0 %v4674
    %v7974 = vpop.f32.mrf.mxu0
    %v7975 = vadd.f32 %v7956, %v7974
    %v7976 = vpop.f32.mrf.mxu0
    %v7977 = vadd.f32 %v7958, %v7976
    %7978 = vdwg.mxu0
    %7979 = vmatpush.bf16.msra.mxu0 %v7139
    %7980 = vmatpush.bf16.msra.mxu0 %v7135
    %7981 = vmatpush.bf16.msra.mxu0 %v7131
    %7982 = vmatpush.bf16.msra.mxu0 %v7127
    %7983 = vmatpush.bf16.msra.mxu0 %v7123
    %7984 = vmatpush.bf16.msra.mxu0 %v7119
    %7985 = vmatpush.bf16.msra.mxu0 %v7115
    %7986 = vmatpush.bf16.msra.mxu0 %v7111
    %7987 = vmatmul.bf16.gmra.mxu0 %v4659
    %v7988 = vpop.f32.mrf.mxu0
    %v7989 = vadd.f32 %v7970, %v7988
    %v7990 = vpop.f32.mrf.mxu0
    %v7991 = vadd.f32 %v7972, %v7990
    %7992 = vmatmul.bf16.gmra.mxu0 %v4675
    %v7993 = vpop.f32.mrf.mxu0
    %v7994 = vadd.f32 %v7975, %v7993
    %v7995 = vpop.f32.mrf.mxu0
    %v7996 = vadd.f32 %v7977, %v7995
    %7997 = vdwg.mxu0
    %7998 = vmatpush.bf16.msra.mxu0 %v7171
    %7999 = vmatpush.bf16.msra.mxu0 %v7167
    %8000 = vmatpush.bf16.msra.mxu0 %v7163
    %8001 = vmatpush.bf16.msra.mxu0 %v7159
    %8002 = vmatpush.bf16.msra.mxu0 %v7155
    %8003 = vmatpush.bf16.msra.mxu0 %v7151
    %8004 = vmatpush.bf16.msra.mxu0 %v7147
    %8005 = vmatpush.bf16.msra.mxu0 %v7143
    %8006 = vmatmul.bf16.gmra.mxu0 %v4660
    %v8007 = vpop.f32.mrf.mxu0
    %v8008 = vadd.f32 %v7989, %v8007
    %v8009 = vpop.f32.mrf.mxu0
    %v8010 = vadd.f32 %v7991, %v8009
    %8011 = vmatmul.bf16.gmra.mxu0 %v4676
    %v8012 = vpop.f32.mrf.mxu0
    %v8013 = vadd.f32 %v7994, %v8012
    %v8014 = vpop.f32.mrf.mxu0
    %v8015 = vadd.f32 %v7996, %v8014
    %8016 = vdwg.mxu0
    %8017 = vmatpush.bf16.msra.mxu0 %v7203
    %8018 = vmatpush.bf16.msra.mxu0 %v7199
    %8019 = vmatpush.bf16.msra.mxu0 %v7195
    %8020 = vmatpush.bf16.msra.mxu0 %v7191
    %8021 = vmatpush.bf16.msra.mxu0 %v7187
    %8022 = vmatpush.bf16.msra.mxu0 %v7183
    %8023 = vmatpush.bf16.msra.mxu0 %v7179
    %8024 = vmatpush.bf16.msra.mxu0 %v7175
    %8025 = vmatmul.bf16.gmra.mxu0 %v4661
    %v8026 = vpop.f32.mrf.mxu0
    %v8027 = vadd.f32 %v8008, %v8026
    %v8028 = vpop.f32.mrf.mxu0
    %v8029 = vadd.f32 %v8010, %v8028
    %8030 = vmatmul.bf16.gmra.mxu0 %v4677
    %v8031 = vpop.f32.mrf.mxu0
    %v8032 = vadd.f32 %v8013, %v8031
    %v8033 = vpop.f32.mrf.mxu0
    %v8034 = vadd.f32 %v8015, %v8033
    %8035 = vdwg.mxu0
    %8036 = vmatpush.bf16.msra.mxu0 %v7235
    %8037 = vmatpush.bf16.msra.mxu0 %v7231
    %8038 = vmatpush.bf16.msra.mxu0 %v7227
    %8039 = vmatpush.bf16.msra.mxu0 %v7223
    %8040 = vmatpush.bf16.msra.mxu0 %v7219
    %8041 = vmatpush.bf16.msra.mxu0 %v7215
    %8042 = vmatpush.bf16.msra.mxu0 %v7211
    %8043 = vmatpush.bf16.msra.mxu0 %v7207
    %8044 = vmatmul.bf16.gmra.mxu0 %v4662
    %v8045 = vpop.f32.mrf.mxu0
    %v8046 = vadd.f32 %v8027, %v8045
    %v8047 = vpop.f32.mrf.mxu0
    %v8048 = vadd.f32 %v8029, %v8047
    %8049 = vmatmul.bf16.gmra.mxu0 %v4678
    %v8050 = vpop.f32.mrf.mxu0
    %v8051 = vadd.f32 %v8032, %v8050
    %v8052 = vpop.f32.mrf.mxu0
    %v8053 = vadd.f32 %v8034, %v8052
    %8054 = vdwg.mxu0
    %8055 = vmatpush.bf16.msra.mxu0 %v6756
    %8056 = vmatpush.bf16.msra.mxu0 %v6752
    %8057 = vmatpush.bf16.msra.mxu0 %v6748
    %8058 = vmatpush.bf16.msra.mxu0 %v6744
    %8059 = vmatpush.bf16.msra.mxu0 %v6740
    %8060 = vmatpush.bf16.msra.mxu0 %v6736
    %8061 = vmatpush.bf16.msra.mxu0 %v6732
    %8062 = vmatpush.bf16.msra.mxu0 %v6728
    %8063 = vmatmul.bf16.gmra.mxu0 %v4647
    %v8064 = vpop.f32.mrf.mxu0
    %v8065 = vadd.f32 0.0, %v8064
    %v8066 = vpop.f32.mrf.mxu0
    %v8067 = vadd.f32 0.0, %v8066
    %8068 = vmatmul.bf16.gmra.mxu0 %v4663
    %v8069 = vpop.f32.mrf.mxu0
    %v8070 = vadd.f32 0.0, %v8069
    %v8071 = vpop.f32.mrf.mxu0
    %v8072 = vadd.f32 0.0, %v8071
    %8073 = vdwg.mxu0
    %8074 = vmatpush.bf16.msra.mxu0 %v6788
    %8075 = vmatpush.bf16.msra.mxu0 %v6784
    %8076 = vmatpush.bf16.msra.mxu0 %v6780
    %8077 = vmatpush.bf16.msra.mxu0 %v6776
    %8078 = vmatpush.bf16.msra.mxu0 %v6772
    %8079 = vmatpush.bf16.msra.mxu0 %v6768
    %8080 = vmatpush.bf16.msra.mxu0 %v6764
    %8081 = vmatpush.bf16.msra.mxu0 %v6760
    %8082 = vmatmul.bf16.gmra.mxu0 %v4648
    %v8083 = vpop.f32.mrf.mxu0
    %v8084 = vadd.f32 %v8065, %v8083
    %v8085 = vpop.f32.mrf.mxu0
    %v8086 = vadd.f32 %v8067, %v8085
    %8087 = vmatmul.bf16.gmra.mxu0 %v4664
    %v8088 = vpop.f32.mrf.mxu0
    %v8089 = vadd.f32 %v8070, %v8088
    %v8090 = vpop.f32.mrf.mxu0
    %v8091 = vadd.f32 %v8072, %v8090
    %8092 = vdwg.mxu0
    %8093 = vmatpush.bf16.msra.mxu0 %v6820
    %8094 = vmatpush.bf16.msra.mxu0 %v6816
    %8095 = vmatpush.bf16.msra.mxu0 %v6812
    %8096 = vmatpush.bf16.msra.mxu0 %v6808
    %8097 = vmatpush.bf16.msra.mxu0 %v6804
    %8098 = vmatpush.bf16.msra.mxu0 %v6800
    %8099 = vmatpush.bf16.msra.mxu0 %v6796
    %8100 = vmatpush.bf16.msra.mxu0 %v6792
    %8101 = vmatmul.bf16.gmra.mxu0 %v4649
    %v8102 = vpop.f32.mrf.mxu0
    %v8103 = vadd.f32 %v8084, %v8102
    %v8104 = vpop.f32.mrf.mxu0
    %v8105 = vadd.f32 %v8086, %v8104
    %8106 = vmatmul.bf16.gmra.mxu0 %v4665
    %v8107 = vpop.f32.mrf.mxu0
    %v8108 = vadd.f32 %v8089, %v8107
    %v8109 = vpop.f32.mrf.mxu0
    %v8110 = vadd.f32 %v8091, %v8109
    %8111 = vdwg.mxu0
    %8112 = vmatpush.bf16.msra.mxu0 %v6852
    %8113 = vmatpush.bf16.msra.mxu0 %v6848
    %8114 = vmatpush.bf16.msra.mxu0 %v6844
    %8115 = vmatpush.bf16.msra.mxu0 %v6840
    %8116 = vmatpush.bf16.msra.mxu0 %v6836
    %8117 = vmatpush.bf16.msra.mxu0 %v6832
    %8118 = vmatpush.bf16.msra.mxu0 %v6828
    %8119 = vmatpush.bf16.msra.mxu0 %v6824
    %8120 = vmatmul.bf16.gmra.mxu0 %v4650
    %v8121 = vpop.f32.mrf.mxu0
    %v8122 = vadd.f32 %v8103, %v8121
    %v8123 = vpop.f32.mrf.mxu0
    %v8124 = vadd.f32 %v8105, %v8123
    %8125 = vmatmul.bf16.gmra.mxu0 %v4666
    %v8126 = vpop.f32.mrf.mxu0
    %v8127 = vadd.f32 %v8108, %v8126
    %v8128 = vpop.f32.mrf.mxu0
    %v8129 = vadd.f32 %v8110, %v8128
    %8130 = vdwg.mxu0
    %8131 = vmatpush.bf16.msra.mxu0 %v6884
    %8132 = vmatpush.bf16.msra.mxu0 %v6880
    %8133 = vmatpush.bf16.msra.mxu0 %v6876
    %8134 = vmatpush.bf16.msra.mxu0 %v6872
    %8135 = vmatpush.bf16.msra.mxu0 %v6868
    %8136 = vmatpush.bf16.msra.mxu0 %v6864
    %8137 = vmatpush.bf16.msra.mxu0 %v6860
    %8138 = vmatpush.bf16.msra.mxu0 %v6856
    %8139 = vmatmul.bf16.gmra.mxu0 %v4651
    %v8140 = vpop.f32.mrf.mxu0
    %v8141 = vadd.f32 %v8122, %v8140
    %v8142 = vpop.f32.mrf.mxu0
    %v8143 = vadd.f32 %v8124, %v8142
    %8144 = vmatmul.bf16.gmra.mxu0 %v4667
    %v8145 = vpop.f32.mrf.mxu0
    %v8146 = vadd.f32 %v8127, %v8145
    %v8147 = vpop.f32.mrf.mxu0
    %v8148 = vadd.f32 %v8129, %v8147
    %8149 = vdwg.mxu0
    %8150 = vmatpush.bf16.msra.mxu0 %v6916
    %8151 = vmatpush.bf16.msra.mxu0 %v6912
    %8152 = vmatpush.bf16.msra.mxu0 %v6908
    %8153 = vmatpush.bf16.msra.mxu0 %v6904
    %8154 = vmatpush.bf16.msra.mxu0 %v6900
    %8155 = vmatpush.bf16.msra.mxu0 %v6896
    %8156 = vmatpush.bf16.msra.mxu0 %v6892
    %8157 = vmatpush.bf16.msra.mxu0 %v6888
    %8158 = vmatmul.bf16.gmra.mxu0 %v4652
    %v8159 = vpop.f32.mrf.mxu0
    %v8160 = vadd.f32 %v8141, %v8159
    %v8161 = vpop.f32.mrf.mxu0
    %v8162 = vadd.f32 %v8143, %v8161
    %8163 = vmatmul.bf16.gmra.mxu0 %v4668
    %v8164 = vpop.f32.mrf.mxu0
    %v8165 = vadd.f32 %v8146, %v8164
    %v8166 = vpop.f32.mrf.mxu0
    %v8167 = vadd.f32 %v8148, %v8166
    %8168 = vdwg.mxu0
    %8169 = vmatpush.bf16.msra.mxu0 %v6948
    %8170 = vmatpush.bf16.msra.mxu0 %v6944
    %8171 = vmatpush.bf16.msra.mxu0 %v6940
    %8172 = vmatpush.bf16.msra.mxu0 %v6936
    %8173 = vmatpush.bf16.msra.mxu0 %v6932
    %8174 = vmatpush.bf16.msra.mxu0 %v6928
    %8175 = vmatpush.bf16.msra.mxu0 %v6924
    %8176 = vmatpush.bf16.msra.mxu0 %v6920
    %8177 = vmatmul.bf16.gmra.mxu0 %v4653
    %v8178 = vpop.f32.mrf.mxu0
    %v8179 = vadd.f32 %v8160, %v8178
    %v8180 = vpop.f32.mrf.mxu0
    %v8181 = vadd.f32 %v8162, %v8180
    %8182 = vmatmul.bf16.gmra.mxu0 %v4669
    %v8183 = vpop.f32.mrf.mxu0
    %v8184 = vadd.f32 %v8165, %v8183
    %v8185 = vpop.f32.mrf.mxu0
    %v8186 = vadd.f32 %v8167, %v8185
    %8187 = vdwg.mxu0
    %8188 = vmatpush.bf16.msra.mxu0 %v6980
    %8189 = vmatpush.bf16.msra.mxu0 %v6976
    %8190 = vmatpush.bf16.msra.mxu0 %v6972
    %8191 = vmatpush.bf16.msra.mxu0 %v6968
    %8192 = vmatpush.bf16.msra.mxu0 %v6964
    %8193 = vmatpush.bf16.msra.mxu0 %v6960
    %8194 = vmatpush.bf16.msra.mxu0 %v6956
    %8195 = vmatpush.bf16.msra.mxu0 %v6952
    %8196 = vmatmul.bf16.gmra.mxu0 %v4654
    %v8197 = vpop.f32.mrf.mxu0
    %v8198 = vadd.f32 %v8179, %v8197
    %v8199 = vpop.f32.mrf.mxu0
    %v8200 = vadd.f32 %v8181, %v8199
    %8201 = vmatmul.bf16.gmra.mxu0 %v4670
    %v8202 = vpop.f32.mrf.mxu0
    %v8203 = vadd.f32 %v8184, %v8202
    %v8204 = vpop.f32.mrf.mxu0
    %v8205 = vadd.f32 %v8186, %v8204
    %8206 = vdwg.mxu0
    %8207 = vmatpush.bf16.msra.mxu0 %v7012
    %8208 = vmatpush.bf16.msra.mxu0 %v7008
    %8209 = vmatpush.bf16.msra.mxu0 %v7004
    %8210 = vmatpush.bf16.msra.mxu0 %v7000
    %8211 = vmatpush.bf16.msra.mxu0 %v6996
    %8212 = vmatpush.bf16.msra.mxu0 %v6992
    %8213 = vmatpush.bf16.msra.mxu0 %v6988
    %8214 = vmatpush.bf16.msra.mxu0 %v6984
    %8215 = vmatmul.bf16.gmra.mxu0 %v4655
    %v8216 = vpop.f32.mrf.mxu0
    %v8217 = vadd.f32 %v8198, %v8216
    %v8218 = vpop.f32.mrf.mxu0
    %v8219 = vadd.f32 %v8200, %v8218
    %8220 = vmatmul.bf16.gmra.mxu0 %v4671
    %v8221 = vpop.f32.mrf.mxu0
    %v8222 = vadd.f32 %v8203, %v8221
    %v8223 = vpop.f32.mrf.mxu0
    %v8224 = vadd.f32 %v8205, %v8223
    %8225 = vdwg.mxu0
    %8226 = vmatpush.bf16.msra.mxu0 %v7044
    %8227 = vmatpush.bf16.msra.mxu0 %v7040
    %8228 = vmatpush.bf16.msra.mxu0 %v7036
    %8229 = vmatpush.bf16.msra.mxu0 %v7032
    %8230 = vmatpush.bf16.msra.mxu0 %v7028
    %8231 = vmatpush.bf16.msra.mxu0 %v7024
    %8232 = vmatpush.bf16.msra.mxu0 %v7020
    %8233 = vmatpush.bf16.msra.mxu0 %v7016
    %8234 = vmatmul.bf16.gmra.mxu0 %v4656
    %v8235 = vpop.f32.mrf.mxu0
    %v8236 = vadd.f32 %v8217, %v8235
    %v8237 = vpop.f32.mrf.mxu0
    %v8238 = vadd.f32 %v8219, %v8237
    %8239 = vmatmul.bf16.gmra.mxu0 %v4672
    %v8240 = vpop.f32.mrf.mxu0
    %v8241 = vadd.f32 %v8222, %v8240
    %v8242 = vpop.f32.mrf.mxu0
    %v8243 = vadd.f32 %v8224, %v8242
    %8244 = vdwg.mxu0
    %8245 = vmatpush.bf16.msra.mxu0 %v7076
    %8246 = vmatpush.bf16.msra.mxu0 %v7072
    %8247 = vmatpush.bf16.msra.mxu0 %v7068
    %8248 = vmatpush.bf16.msra.mxu0 %v7064
    %8249 = vmatpush.bf16.msra.mxu0 %v7060
    %8250 = vmatpush.bf16.msra.mxu0 %v7056
    %8251 = vmatpush.bf16.msra.mxu0 %v7052
    %8252 = vmatpush.bf16.msra.mxu0 %v7048
    %8253 = vmatmul.bf16.gmra.mxu0 %v4657
    %v8254 = vpop.f32.mrf.mxu0
    %v8255 = vadd.f32 %v8236, %v8254
    %v8256 = vpop.f32.mrf.mxu0
    %v8257 = vadd.f32 %v8238, %v8256
    %8258 = vmatmul.bf16.gmra.mxu0 %v4673
    %v8259 = vpop.f32.mrf.mxu0
    %v8260 = vadd.f32 %v8241, %v8259
    %v8261 = vpop.f32.mrf.mxu0
    %v8262 = vadd.f32 %v8243, %v8261
    %8263 = vdwg.mxu0
    %8264 = vmatpush.bf16.msra.mxu0 %v7108
    %8265 = vmatpush.bf16.msra.mxu0 %v7104
    %8266 = vmatpush.bf16.msra.mxu0 %v7100
    %8267 = vmatpush.bf16.msra.mxu0 %v7096
    %8268 = vmatpush.bf16.msra.mxu0 %v7092
    %8269 = vmatpush.bf16.msra.mxu0 %v7088
    %8270 = vmatpush.bf16.msra.mxu0 %v7084
    %8271 = vmatpush.bf16.msra.mxu0 %v7080
    %8272 = vmatmul.bf16.gmra.mxu0 %v4658
    %v8273 = vpop.f32.mrf.mxu0
    %v8274 = vadd.f32 %v8255, %v8273
    %v8275 = vpop.f32.mrf.mxu0
    %v8276 = vadd.f32 %v8257, %v8275
    %8277 = vmatmul.bf16.gmra.mxu0 %v4674
    %v8278 = vpop.f32.mrf.mxu0
    %v8279 = vadd.f32 %v8260, %v8278
    %v8280 = vpop.f32.mrf.mxu0
    %v8281 = vadd.f32 %v8262, %v8280
    %8282 = vdwg.mxu0
    %8283 = vmatpush.bf16.msra.mxu0 %v7140
    %8284 = vmatpush.bf16.msra.mxu0 %v7136
    %8285 = vmatpush.bf16.msra.mxu0 %v7132
    %8286 = vmatpush.bf16.msra.mxu0 %v7128
    %8287 = vmatpush.bf16.msra.mxu0 %v7124
    %8288 = vmatpush.bf16.msra.mxu0 %v7120
    %8289 = vmatpush.bf16.msra.mxu0 %v7116
    %8290 = vmatpush.bf16.msra.mxu0 %v7112
    %8291 = vmatmul.bf16.gmra.mxu0 %v4659
    %v8292 = vpop.f32.mrf.mxu0
    %v8293 = vadd.f32 %v8274, %v8292
    %v8294 = vpop.f32.mrf.mxu0
    %v8295 = vadd.f32 %v8276, %v8294
    %8296 = vmatmul.bf16.gmra.mxu0 %v4675
    %v8297 = vpop.f32.mrf.mxu0
    %v8298 = vadd.f32 %v8279, %v8297
    %v8299 = vpop.f32.mrf.mxu0
    %v8300 = vadd.f32 %v8281, %v8299
    %8301 = vdwg.mxu0
    %8302 = vmatpush.bf16.msra.mxu0 %v7172
    %8303 = vmatpush.bf16.msra.mxu0 %v7168
    %8304 = vmatpush.bf16.msra.mxu0 %v7164
    %8305 = vmatpush.bf16.msra.mxu0 %v7160
    %8306 = vmatpush.bf16.msra.mxu0 %v7156
    %8307 = vmatpush.bf16.msra.mxu0 %v7152
    %8308 = vmatpush.bf16.msra.mxu0 %v7148
    %8309 = vmatpush.bf16.msra.mxu0 %v7144
    %8310 = vmatmul.bf16.gmra.mxu0 %v4660
    %v8311 = vpop.f32.mrf.mxu0
    %v8312 = vadd.f32 %v8293, %v8311
    %v8313 = vpop.f32.mrf.mxu0
    %v8314 = vadd.f32 %v8295, %v8313
    %8315 = vmatmul.bf16.gmra.mxu0 %v4676
    %v8316 = vpop.f32.mrf.mxu0
    %v8317 = vadd.f32 %v8298, %v8316
    %v8318 = vpop.f32.mrf.mxu0
    %v8319 = vadd.f32 %v8300, %v8318
    %8320 = vdwg.mxu0
    %8321 = vmatpush.bf16.msra.mxu0 %v7204
    %8322 = vmatpush.bf16.msra.mxu0 %v7200
    %8323 = vmatpush.bf16.msra.mxu0 %v7196
    %8324 = vmatpush.bf16.msra.mxu0 %v7192
    %8325 = vmatpush.bf16.msra.mxu0 %v7188
    %8326 = vmatpush.bf16.msra.mxu0 %v7184
    %8327 = vmatpush.bf16.msra.mxu0 %v7180
    %8328 = vmatpush.bf16.msra.mxu0 %v7176
    %8329 = vmatmul.bf16.gmra.mxu0 %v4661
    %v8330 = vpop.f32.mrf.mxu0
    %v8331 = vadd.f32 %v8312, %v8330
    %v8332 = vpop.f32.mrf.mxu0
    %v8333 = vadd.f32 %v8314, %v8332
    %8334 = vmatmul.bf16.gmra.mxu0 %v4677
    %v8335 = vpop.f32.mrf.mxu0
    %v8336 = vadd.f32 %v8317, %v8335
    %v8337 = vpop.f32.mrf.mxu0
    %v8338 = vadd.f32 %v8319, %v8337
    %8339 = vdwg.mxu0
    %8340 = vmatpush.bf16.msra.mxu0 %v7236
    %8341 = vmatpush.bf16.msra.mxu0 %v7232
    %8342 = vmatpush.bf16.msra.mxu0 %v7228
    %8343 = vmatpush.bf16.msra.mxu0 %v7224
    %8344 = vmatpush.bf16.msra.mxu0 %v7220
    %8345 = vmatpush.bf16.msra.mxu0 %v7216
    %8346 = vmatpush.bf16.msra.mxu0 %v7212
    %8347 = vmatpush.bf16.msra.mxu0 %v7208
    %8348 = vmatmul.bf16.gmra.mxu0 %v4662
    %v8349 = vpop.f32.mrf.mxu0
    %v8350 = vadd.f32 %v8331, %v8349
    %v8351 = vpop.f32.mrf.mxu0
    %v8352 = vadd.f32 %v8333, %v8351
    %8353 = vmatmul.bf16.gmra.mxu0 %v4678
    %v8354 = vpop.f32.mrf.mxu0
    %v8355 = vadd.f32 %v8336, %v8354
    %v8356 = vpop.f32.mrf.mxu0
    %v8357 = vadd.f32 %v8338, %v8356
    %8358 = vdwg.mxu0
    %8359 = vmatpush.bf16.msra.mxu0 %v6757
    %8360 = vmatpush.bf16.msra.mxu0 %v6753
    %8361 = vmatpush.bf16.msra.mxu0 %v6749
    %8362 = vmatpush.bf16.msra.mxu0 %v6745
    %8363 = vmatpush.bf16.msra.mxu0 %v6741
    %8364 = vmatpush.bf16.msra.mxu0 %v6737
    %8365 = vmatpush.bf16.msra.mxu0 %v6733
    %8366 = vmatpush.bf16.msra.mxu0 %v6729
    %8367 = vmatmul.bf16.gmra.mxu0 %v4647
    %v8368 = vpop.f32.mrf.mxu0
    %v8369 = vadd.f32 0.0, %v8368
    %v8370 = vpop.f32.mrf.mxu0
    %v8371 = vadd.f32 0.0, %v8370
    %8372 = vmatmul.bf16.gmra.mxu0 %v4663
    %v8373 = vpop.f32.mrf.mxu0
    %v8374 = vadd.f32 0.0, %v8373
    %v8375 = vpop.f32.mrf.mxu0
    %v8376 = vadd.f32 0.0, %v8375
    %8377 = vdwg.mxu0
    %8378 = vmatpush.bf16.msra.mxu0 %v6789
    %8379 = vmatpush.bf16.msra.mxu0 %v6785
    %8380 = vmatpush.bf16.msra.mxu0 %v6781
    %8381 = vmatpush.bf16.msra.mxu0 %v6777
    %8382 = vmatpush.bf16.msra.mxu0 %v6773
    %8383 = vmatpush.bf16.msra.mxu0 %v6769
    %8384 = vmatpush.bf16.msra.mxu0 %v6765
    %8385 = vmatpush.bf16.msra.mxu0 %v6761
    %8386 = vmatmul.bf16.gmra.mxu0 %v4648
    %v8387 = vpop.f32.mrf.mxu0
    %v8388 = vadd.f32 %v8369, %v8387
    %v8389 = vpop.f32.mrf.mxu0
    %v8390 = vadd.f32 %v8371, %v8389
    %8391 = vmatmul.bf16.gmra.mxu0 %v4664
    %v8392 = vpop.f32.mrf.mxu0
    %v8393 = vadd.f32 %v8374, %v8392
    %v8394 = vpop.f32.mrf.mxu0
    %v8395 = vadd.f32 %v8376, %v8394
    %8396 = vdwg.mxu0
    %8397 = vmatpush.bf16.msra.mxu0 %v6821
    %8398 = vmatpush.bf16.msra.mxu0 %v6817
    %8399 = vmatpush.bf16.msra.mxu0 %v6813
    %8400 = vmatpush.bf16.msra.mxu0 %v6809
    %8401 = vmatpush.bf16.msra.mxu0 %v6805
    %8402 = vmatpush.bf16.msra.mxu0 %v6801
    %8403 = vmatpush.bf16.msra.mxu0 %v6797
    %8404 = vmatpush.bf16.msra.mxu0 %v6793
    %8405 = vmatmul.bf16.gmra.mxu0 %v4649
    %v8406 = vpop.f32.mrf.mxu0
    %v8407 = vadd.f32 %v8388, %v8406
    %v8408 = vpop.f32.mrf.mxu0
    %v8409 = vadd.f32 %v8390, %v8408
    %8410 = vmatmul.bf16.gmra.mxu0 %v4665
    %v8411 = vpop.f32.mrf.mxu0
    %v8412 = vadd.f32 %v8393, %v8411
    %v8413 = vpop.f32.mrf.mxu0
    %v8414 = vadd.f32 %v8395, %v8413
    %8415 = vdwg.mxu0
    %8416 = vmatpush.bf16.msra.mxu0 %v6853
    %8417 = vmatpush.bf16.msra.mxu0 %v6849
    %8418 = vmatpush.bf16.msra.mxu0 %v6845
    %8419 = vmatpush.bf16.msra.mxu0 %v6841
    %8420 = vmatpush.bf16.msra.mxu0 %v6837
    %8421 = vmatpush.bf16.msra.mxu0 %v6833
    %8422 = vmatpush.bf16.msra.mxu0 %v6829
    %8423 = vmatpush.bf16.msra.mxu0 %v6825
    %8424 = vmatmul.bf16.gmra.mxu0 %v4650
    %v8425 = vpop.f32.mrf.mxu0
    %v8426 = vadd.f32 %v8407, %v8425
    %v8427 = vpop.f32.mrf.mxu0
    %v8428 = vadd.f32 %v8409, %v8427
    %8429 = vmatmul.bf16.gmra.mxu0 %v4666
    %v8430 = vpop.f32.mrf.mxu0
    %v8431 = vadd.f32 %v8412, %v8430
    %v8432 = vpop.f32.mrf.mxu0
    %v8433 = vadd.f32 %v8414, %v8432
    %8434 = vdwg.mxu0
    %8435 = vmatpush.bf16.msra.mxu0 %v6885
    %8436 = vmatpush.bf16.msra.mxu0 %v6881
    %8437 = vmatpush.bf16.msra.mxu0 %v6877
    %8438 = vmatpush.bf16.msra.mxu0 %v6873
    %8439 = vmatpush.bf16.msra.mxu0 %v6869
    %8440 = vmatpush.bf16.msra.mxu0 %v6865
    %8441 = vmatpush.bf16.msra.mxu0 %v6861
    %8442 = vmatpush.bf16.msra.mxu0 %v6857
    %8443 = vmatmul.bf16.gmra.mxu0 %v4651
    %v8444 = vpop.f32.mrf.mxu0
    %v8445 = vadd.f32 %v8426, %v8444
    %v8446 = vpop.f32.mrf.mxu0
    %v8447 = vadd.f32 %v8428, %v8446
    %8448 = vmatmul.bf16.gmra.mxu0 %v4667
    %v8449 = vpop.f32.mrf.mxu0
    %v8450 = vadd.f32 %v8431, %v8449
    %v8451 = vpop.f32.mrf.mxu0
    %v8452 = vadd.f32 %v8433, %v8451
    %8453 = vdwg.mxu0
    %8454 = vmatpush.bf16.msra.mxu0 %v6917
    %8455 = vmatpush.bf16.msra.mxu0 %v6913
    %8456 = vmatpush.bf16.msra.mxu0 %v6909
    %8457 = vmatpush.bf16.msra.mxu0 %v6905
    %8458 = vmatpush.bf16.msra.mxu0 %v6901
    %8459 = vmatpush.bf16.msra.mxu0 %v6897
    %8460 = vmatpush.bf16.msra.mxu0 %v6893
    %8461 = vmatpush.bf16.msra.mxu0 %v6889
    %8462 = vmatmul.bf16.gmra.mxu0 %v4652
    %v8463 = vpop.f32.mrf.mxu0
    %v8464 = vadd.f32 %v8445, %v8463
    %v8465 = vpop.f32.mrf.mxu0
    %v8466 = vadd.f32 %v8447, %v8465
    %8467 = vmatmul.bf16.gmra.mxu0 %v4668
    %v8468 = vpop.f32.mrf.mxu0
    %v8469 = vadd.f32 %v8450, %v8468
    %v8470 = vpop.f32.mrf.mxu0
    %v8471 = vadd.f32 %v8452, %v8470
    %8472 = vdwg.mxu0
    %8473 = vmatpush.bf16.msra.mxu0 %v6949
    %8474 = vmatpush.bf16.msra.mxu0 %v6945
    %8475 = vmatpush.bf16.msra.mxu0 %v6941
    %8476 = vmatpush.bf16.msra.mxu0 %v6937
    %8477 = vmatpush.bf16.msra.mxu0 %v6933
    %8478 = vmatpush.bf16.msra.mxu0 %v6929
    %8479 = vmatpush.bf16.msra.mxu0 %v6925
    %8480 = vmatpush.bf16.msra.mxu0 %v6921
    %8481 = vmatmul.bf16.gmra.mxu0 %v4653
    %v8482 = vpop.f32.mrf.mxu0
    %v8483 = vadd.f32 %v8464, %v8482
    %v8484 = vpop.f32.mrf.mxu0
    %v8485 = vadd.f32 %v8466, %v8484
    %8486 = vmatmul.bf16.gmra.mxu0 %v4669
    %v8487 = vpop.f32.mrf.mxu0
    %v8488 = vadd.f32 %v8469, %v8487
    %v8489 = vpop.f32.mrf.mxu0
    %v8490 = vadd.f32 %v8471, %v8489
    %8491 = vdwg.mxu0
    %8492 = vmatpush.bf16.msra.mxu0 %v6981
    %8493 = vmatpush.bf16.msra.mxu0 %v6977
    %8494 = vmatpush.bf16.msra.mxu0 %v6973
    %8495 = vmatpush.bf16.msra.mxu0 %v6969
    %8496 = vmatpush.bf16.msra.mxu0 %v6965
    %8497 = vmatpush.bf16.msra.mxu0 %v6961
    %8498 = vmatpush.bf16.msra.mxu0 %v6957
    %8499 = vmatpush.bf16.msra.mxu0 %v6953
    %8500 = vmatmul.bf16.gmra.mxu0 %v4654
    %v8501 = vpop.f32.mrf.mxu0
    %v8502 = vadd.f32 %v8483, %v8501
    %v8503 = vpop.f32.mrf.mxu0
    %v8504 = vadd.f32 %v8485, %v8503
    %8505 = vmatmul.bf16.gmra.mxu0 %v4670
    %v8506 = vpop.f32.mrf.mxu0
    %v8507 = vadd.f32 %v8488, %v8506
    %v8508 = vpop.f32.mrf.mxu0
    %v8509 = vadd.f32 %v8490, %v8508
    %8510 = vdwg.mxu0
    %8511 = vmatpush.bf16.msra.mxu0 %v7013
    %8512 = vmatpush.bf16.msra.mxu0 %v7009
    %8513 = vmatpush.bf16.msra.mxu0 %v7005
    %8514 = vmatpush.bf16.msra.mxu0 %v7001
    %8515 = vmatpush.bf16.msra.mxu0 %v6997
    %8516 = vmatpush.bf16.msra.mxu0 %v6993
    %8517 = vmatpush.bf16.msra.mxu0 %v6989
    %8518 = vmatpush.bf16.msra.mxu0 %v6985
    %8519 = vmatmul.bf16.gmra.mxu0 %v4655
    %v8520 = vpop.f32.mrf.mxu0
    %v8521 = vadd.f32 %v8502, %v8520
    %v8522 = vpop.f32.mrf.mxu0
    %v8523 = vadd.f32 %v8504, %v8522
    %8524 = vmatmul.bf16.gmra.mxu0 %v4671
    %v8525 = vpop.f32.mrf.mxu0
    %v8526 = vadd.f32 %v8507, %v8525
    %v8527 = vpop.f32.mrf.mxu0
    %v8528 = vadd.f32 %v8509, %v8527
    %8529 = vdwg.mxu0
    %8530 = vmatpush.bf16.msra.mxu0 %v7045
    %8531 = vmatpush.bf16.msra.mxu0 %v7041
    %8532 = vmatpush.bf16.msra.mxu0 %v7037
    %8533 = vmatpush.bf16.msra.mxu0 %v7033
    %8534 = vmatpush.bf16.msra.mxu0 %v7029
    %8535 = vmatpush.bf16.msra.mxu0 %v7025
    %8536 = vmatpush.bf16.msra.mxu0 %v7021
    %8537 = vmatpush.bf16.msra.mxu0 %v7017
    %8538 = vmatmul.bf16.gmra.mxu0 %v4656
    %v8539 = vpop.f32.mrf.mxu0
    %v8540 = vadd.f32 %v8521, %v8539
    %v8541 = vpop.f32.mrf.mxu0
    %v8542 = vadd.f32 %v8523, %v8541
    %8543 = vmatmul.bf16.gmra.mxu0 %v4672
    %v8544 = vpop.f32.mrf.mxu0
    %v8545 = vadd.f32 %v8526, %v8544
    %v8546 = vpop.f32.mrf.mxu0
    %v8547 = vadd.f32 %v8528, %v8546
    %8548 = vdwg.mxu0
    %8549 = vmatpush.bf16.msra.mxu0 %v7077
    %8550 = vmatpush.bf16.msra.mxu0 %v7073
    %8551 = vmatpush.bf16.msra.mxu0 %v7069
    %8552 = vmatpush.bf16.msra.mxu0 %v7065
    %8553 = vmatpush.bf16.msra.mxu0 %v7061
    %8554 = vmatpush.bf16.msra.mxu0 %v7057
    %8555 = vmatpush.bf16.msra.mxu0 %v7053
    %8556 = vmatpush.bf16.msra.mxu0 %v7049
    %8557 = vmatmul.bf16.gmra.mxu0 %v4657
    %v8558 = vpop.f32.mrf.mxu0
    %v8559 = vadd.f32 %v8540, %v8558
    %v8560 = vpop.f32.mrf.mxu0
    %v8561 = vadd.f32 %v8542, %v8560
    %8562 = vmatmul.bf16.gmra.mxu0 %v4673
    %v8563 = vpop.f32.mrf.mxu0
    %v8564 = vadd.f32 %v8545, %v8563
    %v8565 = vpop.f32.mrf.mxu0
    %v8566 = vadd.f32 %v8547, %v8565
    %8567 = vdwg.mxu0
    %8568 = vmatpush.bf16.msra.mxu0 %v7109
    %8569 = vmatpush.bf16.msra.mxu0 %v7105
    %8570 = vmatpush.bf16.msra.mxu0 %v7101
    %8571 = vmatpush.bf16.msra.mxu0 %v7097
    %8572 = vmatpush.bf16.msra.mxu0 %v7093
    %8573 = vmatpush.bf16.msra.mxu0 %v7089
    %8574 = vmatpush.bf16.msra.mxu0 %v7085
    %8575 = vmatpush.bf16.msra.mxu0 %v7081
    %8576 = vmatmul.bf16.gmra.mxu0 %v4658
    %v8577 = vpop.f32.mrf.mxu0
    %v8578 = vadd.f32 %v8559, %v8577
    %v8579 = vpop.f32.mrf.mxu0
    %v8580 = vadd.f32 %v8561, %v8579
    %8581 = vmatmul.bf16.gmra.mxu0 %v4674
    %v8582 = vpop.f32.mrf.mxu0
    %v8583 = vadd.f32 %v8564, %v8582
    %v8584 = vpop.f32.mrf.mxu0
    %v8585 = vadd.f32 %v8566, %v8584
    %8586 = vdwg.mxu0
    %8587 = vmatpush.bf16.msra.mxu0 %v7141
    %8588 = vmatpush.bf16.msra.mxu0 %v7137
    %8589 = vmatpush.bf16.msra.mxu0 %v7133
    %8590 = vmatpush.bf16.msra.mxu0 %v7129
    %8591 = vmatpush.bf16.msra.mxu0 %v7125
    %8592 = vmatpush.bf16.msra.mxu0 %v7121
    %8593 = vmatpush.bf16.msra.mxu0 %v7117
    %8594 = vmatpush.bf16.msra.mxu0 %v7113
    %8595 = vmatmul.bf16.gmra.mxu0 %v4659
    %v8596 = vpop.f32.mrf.mxu0
    %v8597 = vadd.f32 %v8578, %v8596
    %v8598 = vpop.f32.mrf.mxu0
    %v8599 = vadd.f32 %v8580, %v8598
    %8600 = vmatmul.bf16.gmra.mxu0 %v4675
    %v8601 = vpop.f32.mrf.mxu0
    %v8602 = vadd.f32 %v8583, %v8601
    %v8603 = vpop.f32.mrf.mxu0
    %v8604 = vadd.f32 %v8585, %v8603
    %8605 = vdwg.mxu0
    %8606 = vmatpush.bf16.msra.mxu0 %v7173
    %8607 = vmatpush.bf16.msra.mxu0 %v7169
    %8608 = vmatpush.bf16.msra.mxu0 %v7165
    %8609 = vmatpush.bf16.msra.mxu0 %v7161
    %8610 = vmatpush.bf16.msra.mxu0 %v7157
    %8611 = vmatpush.bf16.msra.mxu0 %v7153
    %8612 = vmatpush.bf16.msra.mxu0 %v7149
    %8613 = vmatpush.bf16.msra.mxu0 %v7145
    %8614 = vmatmul.bf16.gmra.mxu0 %v4660
    %v8615 = vpop.f32.mrf.mxu0
    %v8616 = vadd.f32 %v8597, %v8615
    %v8617 = vpop.f32.mrf.mxu0
    %v8618 = vadd.f32 %v8599, %v8617
    %8619 = vmatmul.bf16.gmra.mxu0 %v4676
    %v8620 = vpop.f32.mrf.mxu0
    %v8621 = vadd.f32 %v8602, %v8620
    %v8622 = vpop.f32.mrf.mxu0
    %v8623 = vadd.f32 %v8604, %v8622
    %8624 = vdwg.mxu0
    %8625 = vmatpush.bf16.msra.mxu0 %v7205
    %8626 = vmatpush.bf16.msra.mxu0 %v7201
    %8627 = vmatpush.bf16.msra.mxu0 %v7197
    %8628 = vmatpush.bf16.msra.mxu0 %v7193
    %8629 = vmatpush.bf16.msra.mxu0 %v7189
    %8630 = vmatpush.bf16.msra.mxu0 %v7185
    %8631 = vmatpush.bf16.msra.mxu0 %v7181
    %8632 = vmatpush.bf16.msra.mxu0 %v7177
    %8633 = vmatmul.bf16.gmra.mxu0 %v4661
    %v8634 = vpop.f32.mrf.mxu0
    %v8635 = vadd.f32 %v8616, %v8634
    %v8636 = vpop.f32.mrf.mxu0
    %v8637 = vadd.f32 %v8618, %v8636
    %8638 = vmatmul.bf16.gmra.mxu0 %v4677
    %v8639 = vpop.f32.mrf.mxu0
    %v8640 = vadd.f32 %v8621, %v8639
    %v8641 = vpop.f32.mrf.mxu0
    %v8642 = vadd.f32 %v8623, %v8641
    %8643 = vdwg.mxu0
    %8644 = vmatpush.bf16.msra.mxu0 %v7237
    %8645 = vmatpush.bf16.msra.mxu0 %v7233
    %8646 = vmatpush.bf16.msra.mxu0 %v7229
    %8647 = vmatpush.bf16.msra.mxu0 %v7225
    %8648 = vmatpush.bf16.msra.mxu0 %v7221
    %8649 = vmatpush.bf16.msra.mxu0 %v7217
    %8650 = vmatpush.bf16.msra.mxu0 %v7213
    %8651 = vmatpush.bf16.msra.mxu0 %v7209
    %8652 = vmatmul.bf16.gmra.mxu0 %v4662
    %v8653 = vpop.f32.mrf.mxu0
    %v8654 = vadd.f32 %v8635, %v8653
    %v8655 = vpop.f32.mrf.mxu0
    %v8656 = vadd.f32 %v8637, %v8655
    %8657 = vmatmul.bf16.gmra.mxu0 %v4678
    %v8658 = vpop.f32.mrf.mxu0
    %v8659 = vadd.f32 %v8640, %v8658
    %v8660 = vpop.f32.mrf.mxu0
    %v8661 = vadd.f32 %v8642, %v8660
    %8662 = vdwg.mxu0
    %8663 = vmatpush.bf16.msra.mxu0 %v6758
    %8664 = vmatpush.bf16.msra.mxu0 %v6754
    %8665 = vmatpush.bf16.msra.mxu0 %v6750
    %8666 = vmatpush.bf16.msra.mxu0 %v6746
    %8667 = vmatpush.bf16.msra.mxu0 %v6742
    %8668 = vmatpush.bf16.msra.mxu0 %v6738
    %8669 = vmatpush.bf16.msra.mxu0 %v6734
    %8670 = vmatpush.bf16.msra.mxu0 %v6730
    %8671 = vmatmul.bf16.gmra.mxu0 %v4647
    %v8672 = vpop.f32.mrf.mxu0
    %v8673 = vadd.f32 0.0, %v8672
    %v8674 = vpop.f32.mrf.mxu0
    %v8675 = vadd.f32 0.0, %v8674
    %8676 = vmatmul.bf16.gmra.mxu0 %v4663
    %v8677 = vpop.f32.mrf.mxu0
    %v8678 = vadd.f32 0.0, %v8677
    %v8679 = vpop.f32.mrf.mxu0
    %v8680 = vadd.f32 0.0, %v8679
    %8681 = vdwg.mxu0
    %8682 = vmatpush.bf16.msra.mxu0 %v6790
    %8683 = vmatpush.bf16.msra.mxu0 %v6786
    %8684 = vmatpush.bf16.msra.mxu0 %v6782
    %8685 = vmatpush.bf16.msra.mxu0 %v6778
    %8686 = vmatpush.bf16.msra.mxu0 %v6774
    %8687 = vmatpush.bf16.msra.mxu0 %v6770
    %8688 = vmatpush.bf16.msra.mxu0 %v6766
    %8689 = vmatpush.bf16.msra.mxu0 %v6762
    %8690 = vmatmul.bf16.gmra.mxu0 %v4648
    %v8691 = vpop.f32.mrf.mxu0
    %v8692 = vadd.f32 %v8673, %v8691
    %v8693 = vpop.f32.mrf.mxu0
    %v8694 = vadd.f32 %v8675, %v8693
    %8695 = vmatmul.bf16.gmra.mxu0 %v4664
    %v8696 = vpop.f32.mrf.mxu0
    %v8697 = vadd.f32 %v8678, %v8696
    %v8698 = vpop.f32.mrf.mxu0
    %v8699 = vadd.f32 %v8680, %v8698
    %8700 = vdwg.mxu0
    %8701 = vmatpush.bf16.msra.mxu0 %v6822
    %8702 = vmatpush.bf16.msra.mxu0 %v6818
    %8703 = vmatpush.bf16.msra.mxu0 %v6814
    %8704 = vmatpush.bf16.msra.mxu0 %v6810
    %8705 = vmatpush.bf16.msra.mxu0 %v6806
    %8706 = vmatpush.bf16.msra.mxu0 %v6802
    %8707 = vmatpush.bf16.msra.mxu0 %v6798
    %8708 = vmatpush.bf16.msra.mxu0 %v6794
    %8709 = vmatmul.bf16.gmra.mxu0 %v4649
    %v8710 = vpop.f32.mrf.mxu0
    %v8711 = vadd.f32 %v8692, %v8710
    %v8712 = vpop.f32.mrf.mxu0
    %v8713 = vadd.f32 %v8694, %v8712
    %8714 = vmatmul.bf16.gmra.mxu0 %v4665
    %v8715 = vpop.f32.mrf.mxu0
    %v8716 = vadd.f32 %v8697, %v8715
    %v8717 = vpop.f32.mrf.mxu0
    %v8718 = vadd.f32 %v8699, %v8717
    %8719 = vdwg.mxu0
    %8720 = vmatpush.bf16.msra.mxu0 %v6854
    %8721 = vmatpush.bf16.msra.mxu0 %v6850
    %8722 = vmatpush.bf16.msra.mxu0 %v6846
    %8723 = vmatpush.bf16.msra.mxu0 %v6842
    %8724 = vmatpush.bf16.msra.mxu0 %v6838
    %8725 = vmatpush.bf16.msra.mxu0 %v6834
    %8726 = vmatpush.bf16.msra.mxu0 %v6830
    %8727 = vmatpush.bf16.msra.mxu0 %v6826
    %8728 = vmatmul.bf16.gmra.mxu0 %v4650
    %v8729 = vpop.f32.mrf.mxu0
    %v8730 = vadd.f32 %v8711, %v8729
    %v8731 = vpop.f32.mrf.mxu0
    %v8732 = vadd.f32 %v8713, %v8731
    %8733 = vmatmul.bf16.gmra.mxu0 %v4666
    %v8734 = vpop.f32.mrf.mxu0
    %v8735 = vadd.f32 %v8716, %v8734
    %v8736 = vpop.f32.mrf.mxu0
    %v8737 = vadd.f32 %v8718, %v8736
    %8738 = vdwg.mxu0
    %8739 = vmatpush.bf16.msra.mxu0 %v6886
    %8740 = vmatpush.bf16.msra.mxu0 %v6882
    %8741 = vmatpush.bf16.msra.mxu0 %v6878
    %8742 = vmatpush.bf16.msra.mxu0 %v6874
    %8743 = vmatpush.bf16.msra.mxu0 %v6870
    %8744 = vmatpush.bf16.msra.mxu0 %v6866
    %8745 = vmatpush.bf16.msra.mxu0 %v6862
    %8746 = vmatpush.bf16.msra.mxu0 %v6858
    %8747 = vmatmul.bf16.gmra.mxu0 %v4651
    %v8748 = vpop.f32.mrf.mxu0
    %v8749 = vadd.f32 %v8730, %v8748
    %v8750 = vpop.f32.mrf.mxu0
    %v8751 = vadd.f32 %v8732, %v8750
    %8752 = vmatmul.bf16.gmra.mxu0 %v4667
    %v8753 = vpop.f32.mrf.mxu0
    %v8754 = vadd.f32 %v8735, %v8753
    %v8755 = vpop.f32.mrf.mxu0
    %v8756 = vadd.f32 %v8737, %v8755
    %8757 = vdwg.mxu0
    %8758 = vmatpush.bf16.msra.mxu0 %v6918
    %8759 = vmatpush.bf16.msra.mxu0 %v6914
    %8760 = vmatpush.bf16.msra.mxu0 %v6910
    %8761 = vmatpush.bf16.msra.mxu0 %v6906
    %8762 = vmatpush.bf16.msra.mxu0 %v6902
    %8763 = vmatpush.bf16.msra.mxu0 %v6898
    %8764 = vmatpush.bf16.msra.mxu0 %v6894
    %8765 = vmatpush.bf16.msra.mxu0 %v6890
    %8766 = vmatmul.bf16.gmra.mxu0 %v4652
    %v8767 = vpop.f32.mrf.mxu0
    %v8768 = vadd.f32 %v8749, %v8767
    %v8769 = vpop.f32.mrf.mxu0
    %v8770 = vadd.f32 %v8751, %v8769
    %8771 = vmatmul.bf16.gmra.mxu0 %v4668
    %v8772 = vpop.f32.mrf.mxu0
    %v8773 = vadd.f32 %v8754, %v8772
    %v8774 = vpop.f32.mrf.mxu0
    %v8775 = vadd.f32 %v8756, %v8774
    %8776 = vdwg.mxu0
    %8777 = vmatpush.bf16.msra.mxu0 %v6950
    %8778 = vmatpush.bf16.msra.mxu0 %v6946
    %8779 = vmatpush.bf16.msra.mxu0 %v6942
    %8780 = vmatpush.bf16.msra.mxu0 %v6938
    %8781 = vmatpush.bf16.msra.mxu0 %v6934
    %8782 = vmatpush.bf16.msra.mxu0 %v6930
    %8783 = vmatpush.bf16.msra.mxu0 %v6926
    %8784 = vmatpush.bf16.msra.mxu0 %v6922
    %8785 = vmatmul.bf16.gmra.mxu0 %v4653
    %v8786 = vpop.f32.mrf.mxu0
    %v8787 = vadd.f32 %v8768, %v8786
    %v8788 = vpop.f32.mrf.mxu0
    %v8789 = vadd.f32 %v8770, %v8788
    %8790 = vmatmul.bf16.gmra.mxu0 %v4669
    %v8791 = vpop.f32.mrf.mxu0
    %v8792 = vadd.f32 %v8773, %v8791
    %v8793 = vpop.f32.mrf.mxu0
    %v8794 = vadd.f32 %v8775, %v8793
    %8795 = vdwg.mxu0
    %8796 = vmatpush.bf16.msra.mxu0 %v6982
    %8797 = vmatpush.bf16.msra.mxu0 %v6978
    %8798 = vmatpush.bf16.msra.mxu0 %v6974
    %8799 = vmatpush.bf16.msra.mxu0 %v6970
    %8800 = vmatpush.bf16.msra.mxu0 %v6966
    %8801 = vmatpush.bf16.msra.mxu0 %v6962
    %8802 = vmatpush.bf16.msra.mxu0 %v6958
    %8803 = vmatpush.bf16.msra.mxu0 %v6954
    %8804 = vmatmul.bf16.gmra.mxu0 %v4654
    %v8805 = vpop.f32.mrf.mxu0
    %v8806 = vadd.f32 %v8787, %v8805
    %v8807 = vpop.f32.mrf.mxu0
    %v8808 = vadd.f32 %v8789, %v8807
    %8809 = vmatmul.bf16.gmra.mxu0 %v4670
    %v8810 = vpop.f32.mrf.mxu0
    %v8811 = vadd.f32 %v8792, %v8810
    %v8812 = vpop.f32.mrf.mxu0
    %v8813 = vadd.f32 %v8794, %v8812
    %8814 = vdwg.mxu0
    %8815 = vmatpush.bf16.msra.mxu0 %v7014
    %8816 = vmatpush.bf16.msra.mxu0 %v7010
    %8817 = vmatpush.bf16.msra.mxu0 %v7006
    %8818 = vmatpush.bf16.msra.mxu0 %v7002
    %8819 = vmatpush.bf16.msra.mxu0 %v6998
    %8820 = vmatpush.bf16.msra.mxu0 %v6994
    %8821 = vmatpush.bf16.msra.mxu0 %v6990
    %8822 = vmatpush.bf16.msra.mxu0 %v6986
    %8823 = vmatmul.bf16.gmra.mxu0 %v4655
    %v8824 = vpop.f32.mrf.mxu0
    %v8825 = vadd.f32 %v8806, %v8824
    %v8826 = vpop.f32.mrf.mxu0
    %v8827 = vadd.f32 %v8808, %v8826
    %8828 = vmatmul.bf16.gmra.mxu0 %v4671
    %v8829 = vpop.f32.mrf.mxu0
    %v8830 = vadd.f32 %v8811, %v8829
    %v8831 = vpop.f32.mrf.mxu0
    %v8832 = vadd.f32 %v8813, %v8831
    %8833 = vdwg.mxu0
    %8834 = vmatpush.bf16.msra.mxu0 %v7046
    %8835 = vmatpush.bf16.msra.mxu0 %v7042
    %8836 = vmatpush.bf16.msra.mxu0 %v7038
    %8837 = vmatpush.bf16.msra.mxu0 %v7034
    %8838 = vmatpush.bf16.msra.mxu0 %v7030
    %8839 = vmatpush.bf16.msra.mxu0 %v7026
    %8840 = vmatpush.bf16.msra.mxu0 %v7022
    %8841 = vmatpush.bf16.msra.mxu0 %v7018
    %8842 = vmatmul.bf16.gmra.mxu0 %v4656
    %v8843 = vpop.f32.mrf.mxu0
    %v8844 = vadd.f32 %v8825, %v8843
    %v8845 = vpop.f32.mrf.mxu0
    %v8846 = vadd.f32 %v8827, %v8845
    %8847 = vmatmul.bf16.gmra.mxu0 %v4672
    %v8848 = vpop.f32.mrf.mxu0
    %v8849 = vadd.f32 %v8830, %v8848
    %v8850 = vpop.f32.mrf.mxu0
    %v8851 = vadd.f32 %v8832, %v8850
    %8852 = vdwg.mxu0
    %8853 = vmatpush.bf16.msra.mxu0 %v7078
    %8854 = vmatpush.bf16.msra.mxu0 %v7074
    %8855 = vmatpush.bf16.msra.mxu0 %v7070
    %8856 = vmatpush.bf16.msra.mxu0 %v7066
    %8857 = vmatpush.bf16.msra.mxu0 %v7062
    %8858 = vmatpush.bf16.msra.mxu0 %v7058
    %8859 = vmatpush.bf16.msra.mxu0 %v7054
    %8860 = vmatpush.bf16.msra.mxu0 %v7050
    %8861 = vmatmul.bf16.gmra.mxu0 %v4657
    %v8862 = vpop.f32.mrf.mxu0
    %v8863 = vadd.f32 %v8844, %v8862
    %v8864 = vpop.f32.mrf.mxu0
    %v8865 = vadd.f32 %v8846, %v8864
    %8866 = vmatmul.bf16.gmra.mxu0 %v4673
    %v8867 = vpop.f32.mrf.mxu0
    %v8868 = vadd.f32 %v8849, %v8867
    %v8869 = vpop.f32.mrf.mxu0
    %v8870 = vadd.f32 %v8851, %v8869
    %8871 = vdwg.mxu0
    %8872 = vmatpush.bf16.msra.mxu0 %v7110
    %8873 = vmatpush.bf16.msra.mxu0 %v7106
    %8874 = vmatpush.bf16.msra.mxu0 %v7102
    %8875 = vmatpush.bf16.msra.mxu0 %v7098
    %8876 = vmatpush.bf16.msra.mxu0 %v7094
    %8877 = vmatpush.bf16.msra.mxu0 %v7090
    %8878 = vmatpush.bf16.msra.mxu0 %v7086
    %8879 = vmatpush.bf16.msra.mxu0 %v7082
    %8880 = vmatmul.bf16.gmra.mxu0 %v4658
    %v8881 = vpop.f32.mrf.mxu0
    %v8882 = vadd.f32 %v8863, %v8881
    %v8883 = vpop.f32.mrf.mxu0
    %v8884 = vadd.f32 %v8865, %v8883
    %8885 = vmatmul.bf16.gmra.mxu0 %v4674
    %v8886 = vpop.f32.mrf.mxu0
    %v8887 = vadd.f32 %v8868, %v8886
    %v8888 = vpop.f32.mrf.mxu0
    %v8889 = vadd.f32 %v8870, %v8888
    %8890 = vdwg.mxu0
    %8891 = vmatpush.bf16.msra.mxu0 %v7142
    %8892 = vmatpush.bf16.msra.mxu0 %v7138
    %8893 = vmatpush.bf16.msra.mxu0 %v7134
    %8894 = vmatpush.bf16.msra.mxu0 %v7130
    %8895 = vmatpush.bf16.msra.mxu0 %v7126
    %8896 = vmatpush.bf16.msra.mxu0 %v7122
    %8897 = vmatpush.bf16.msra.mxu0 %v7118
    %8898 = vmatpush.bf16.msra.mxu0 %v7114
    %8899 = vmatmul.bf16.gmra.mxu0 %v4659
    %v8900 = vpop.f32.mrf.mxu0
    %v8901 = vadd.f32 %v8882, %v8900
    %v8902 = vpop.f32.mrf.mxu0
    %v8903 = vadd.f32 %v8884, %v8902
    %8904 = vmatmul.bf16.gmra.mxu0 %v4675
    %v8905 = vpop.f32.mrf.mxu0
    %v8906 = vadd.f32 %v8887, %v8905
    %v8907 = vpop.f32.mrf.mxu0
    %v8908 = vadd.f32 %v8889, %v8907
    %8909 = vdwg.mxu0
    %8910 = vmatpush.bf16.msra.mxu0 %v7174
    %8911 = vmatpush.bf16.msra.mxu0 %v7170
    %8912 = vmatpush.bf16.msra.mxu0 %v7166
    %8913 = vmatpush.bf16.msra.mxu0 %v7162
    %8914 = vmatpush.bf16.msra.mxu0 %v7158
    %8915 = vmatpush.bf16.msra.mxu0 %v7154
    %8916 = vmatpush.bf16.msra.mxu0 %v7150
    %8917 = vmatpush.bf16.msra.mxu0 %v7146
    %8918 = vmatmul.bf16.gmra.mxu0 %v4660
    %v8919 = vpop.f32.mrf.mxu0
    %v8920 = vadd.f32 %v8901, %v8919
    %v8921 = vpop.f32.mrf.mxu0
    %v8922 = vadd.f32 %v8903, %v8921
    %8923 = vmatmul.bf16.gmra.mxu0 %v4676
    %v8924 = vpop.f32.mrf.mxu0
    %v8925 = vadd.f32 %v8906, %v8924
    %v8926 = vpop.f32.mrf.mxu0
    %v8927 = vadd.f32 %v8908, %v8926
    %8928 = vdwg.mxu0
    %8929 = vmatpush.bf16.msra.mxu0 %v7206
    %8930 = vmatpush.bf16.msra.mxu0 %v7202
    %8931 = vmatpush.bf16.msra.mxu0 %v7198
    %8932 = vmatpush.bf16.msra.mxu0 %v7194
    %8933 = vmatpush.bf16.msra.mxu0 %v7190
    %8934 = vmatpush.bf16.msra.mxu0 %v7186
    %8935 = vmatpush.bf16.msra.mxu0 %v7182
    %8936 = vmatpush.bf16.msra.mxu0 %v7178
    %8937 = vmatmul.bf16.gmra.mxu0 %v4661
    %v8938 = vpop.f32.mrf.mxu0
    %v8939 = vadd.f32 %v8920, %v8938
    %v8940 = vpop.f32.mrf.mxu0
    %v8941 = vadd.f32 %v8922, %v8940
    %8942 = vmatmul.bf16.gmra.mxu0 %v4677
    %v8943 = vpop.f32.mrf.mxu0
    %v8944 = vadd.f32 %v8925, %v8943
    %v8945 = vpop.f32.mrf.mxu0
    %v8946 = vadd.f32 %v8927, %v8945
    %8947 = vdwg.mxu0
    %8948 = vmatpush.bf16.msra.mxu0 %v7238
    %8949 = vmatpush.bf16.msra.mxu0 %v7234
    %8950 = vmatpush.bf16.msra.mxu0 %v7230
    %8951 = vmatpush.bf16.msra.mxu0 %v7226
    %8952 = vmatpush.bf16.msra.mxu0 %v7222
    %8953 = vmatpush.bf16.msra.mxu0 %v7218
    %8954 = vmatpush.bf16.msra.mxu0 %v7214
    %8955 = vmatpush.bf16.msra.mxu0 %v7210
    %8956 = vmatmul.bf16.gmra.mxu0 %v4662
    %v8957 = vpop.f32.mrf.mxu0
    %v8958 = vadd.f32 %v8939, %v8957
    %v8959 = vpop.f32.mrf.mxu0
    %v8960 = vadd.f32 %v8941, %v8959
    %8961 = vmatmul.bf16.gmra.mxu0 %v4678
    %v8962 = vpop.f32.mrf.mxu0
    %v8963 = vadd.f32 %v8944, %v8962
    %v8964 = vpop.f32.mrf.mxu0
    %v8965 = vadd.f32 %v8946, %v8964
    %8966 = vdwg.mxu0
    %v8967 = vadd.f32 %v4631, %v8046
    %v8968 = vadd.f32 %v4632, %v8350
    %v8969 = vadd.f32 %v4633, %v8654
    %v8970 = vadd.f32 %v4634, %v8958
    %v8971 = vadd.f32 %v4635, %v8048
    %v8972 = vadd.f32 %v4636, %v8352
    %v8973 = vadd.f32 %v4637, %v8656
    %v8974 = vadd.f32 %v4638, %v8960
    %v8975 = vadd.f32 %v4639, %v8051
    %v8976 = vadd.f32 %v4640, %v8355
    %v8977 = vadd.f32 %v4641, %v8659
    %v8978 = vadd.f32 %v4642, %v8963
    %v8979 = vadd.f32 %v4643, %v8053
    %v8980 = vadd.f32 %v4644, %v8357
    %v8981 = vadd.f32 %v4645, %v8661
    %v8982 = vadd.f32 %v4646, %v8965
    %8983 = vst [vmem:[#allocation11] sm:$0xff] %v8967
    %8984 = vst [vmem:[#allocation11 + $0x8] sm:$0xff] %v8968
    %8985 = vst [vmem:[#allocation11 + $0x10] sm:$0xff] %v8969
    %8986 = vst [vmem:[#allocation11 + $0x18] sm:$0xff] %v8970
    %8987 = vst [vmem:[#allocation11 + $0x20] sm:$0xff] %v8971
    %8988 = vst [vmem:[#allocation11 + $0x28] sm:$0xff] %v8972
    %8989 = vst [vmem:[#allocation11 + $0x30] sm:$0xff] %v8973
    %8990 = vst [vmem:[#allocation11 + $0x38] sm:$0xff] %v8974
    %8991 = vst [vmem:[#allocation11 + $0x40] sm:$0xff] %v8975
    %8992 = vst [vmem:[#allocation11 + $0x48] sm:$0xff] %v8976
    %8993 = vst [vmem:[#allocation11 + $0x50] sm:$0xff] %v8977
    %8994 = vst [vmem:[#allocation11 + $0x58] sm:$0xff] %v8978
    %8995 = vst [vmem:[#allocation11 + $0x60] sm:$0xff] %v8979
    %8996 = vst [vmem:[#allocation11 + $0x68] sm:$0xff] %v8980
    %8997 = vst [vmem:[#allocation11 + $0x70] sm:$0xff] %v8981
    %8998 = vst [vmem:[#allocation11 + $0x78] sm:$0xff] %v8982
    // Predicated region
    $region50: #{tpu_custom_call.1} parent=1 // pred_check
      _
    $region51: #{tpu_custom_call.1} parent=1 // pred_check_branch
      %9000 = sbr.rel (0) target = $region53
    $region52: #{tpu_custom_call.1} parent=1 // pred_region
      %9002 = vsyncadd [#allocation4], 0
      %s9003 = sshll.u32 [#allocation11], 4
      %s9004 = int_to_ptr.vmem [resolvable:$true] %s9003
      %s9005 = sshll.u32 %s5, 4
      %s9006 = int_to_ptr.hbm [resolvable:$true] %s9005
      %9011 = dma.vmem_to_hbm [thread:$0]  %s9004, 2048, %s9006, [#allocation4], 512, 512, 32
    $region53: #{tpu_custom_call.1} parent=1 // pred_fallthru
      _
    // Predicated region
    $region54: #{tpu_custom_call.1} parent=1 // pred_check
      _
    $region55: #{tpu_custom_call.1} parent=1 // pred_check_branch
      %9013 = sbr.rel (0) target = $region57
    $region56: #{tpu_custom_call.1} parent=1 // pred_region
      %9015 = dma.done [#allocation4], 2048
    $region57: #{tpu_custom_call.1} parent=1 // pred_fallthru
      _
    %9016 = vsyncpa [#allocation3], 1
    %9017 = vsyncpa [#allocation6], 1
    %9018 = vsyncpa [#allocation9], 1
    %9019 = vsyncpa [#allocation4], 1

</llo_original>
